<compile_context>
chip_gen: v5e
topology: v5e:2x2
jax: 0.10.0
libtpu: 0.0.40
codegen_flags: <defaults>
</compile_context>

<pallas_src>
import functools

import jax
import jax.numpy as jnp
from jax import lax
from jax.experimental import pallas as pl
from jax.experimental.pallas import tpu as pltpu


def _round_up(x, m):
    return ((x + m - 1) // m) * m


def _pad_gate_cols(w, h, hp):
    """Pad the trailing 4*h gate axis so each of i|f|g|o spans hp lanes."""
    lead = w.shape[:-1]
    w4 = w.reshape(lead + (4, h))
    w4 = jnp.pad(w4, [(0, 0)] * len(lead) + [(0, 0), (0, hp - h)])
    return w4.reshape(lead + (4 * hp,))


def _pad_rows(w, kp):
    return jnp.pad(w, ((0, kp - w.shape[0]), (0, 0)))


# -----------------------------------------------------------------------------
# Fused kernel: input projection + stacked LSTM recurrence + output heads
# -----------------------------------------------------------------------------
def _fused_rnn_kernel(x_ref, w_in0_ref, b0_ref, wih_rest_ref, b_rest_ref,
                      whh_ref, w_head_ref, b_head_ref, out_ref,
                      gx_scr, h_scr, c_scr,
                      *, num_layers, num_chunks, time_chunk, seq_len,
                      batch_pad, hidden_pad):
    L, TC, T, Bp, Hp = num_layers, time_chunk, seq_len, batch_pad, hidden_pad
    chunk = pl.program_id(0)

    @pl.when(chunk == 0)
    def _init():
        h_scr[...] = jnp.zeros_like(h_scr)
        c_scr[...] = jnp.zeros_like(c_scr)

    # Hoisted layer-0 input projection for the whole chunk: one well-shaped
    # MXU matmul (BatchNorm already folded into w_in0 / b0 by the wrapper).
    gx_scr[...] = (
        jnp.dot(x_ref[...], w_in0_ref[...], preferred_element_type=jnp.float32)
        + b0_ref[...])

    for s in range(TC):                             # static unroll over the chunk
        g_in = gx_scr[s * Bp:(s + 1) * Bp, :]       # (Bp, 4*Hp), aligned static slice
        layer_in = g_in                             # placeholder; set below for l > 0
        for l in range(L):                          # static unroll over stacked layers
            if l == 0:
                gates = g_in
            else:
                gates = (jnp.dot(layer_in, wih_rest_ref[l - 1],
                                 preferred_element_type=jnp.float32)
                         + b_rest_ref[l - 1])
            h_old = h_scr[l]
            c_old = c_scr[l]
            gates = gates + jnp.dot(h_old, whh_ref[l],
                                    preferred_element_type=jnp.float32)
            # PyTorch gate order i|f|g|o; each gate spans a full Hp (multiple
            # of 128) lane block, so these slices are aligned vreg views.
            i_g = jax.nn.sigmoid(gates[:, 0 * Hp:1 * Hp])
            f_g = jax.nn.sigmoid(gates[:, 1 * Hp:2 * Hp])
            g_g = jnp.tanh(gates[:, 2 * Hp:3 * Hp])
            o_g = jax.nn.sigmoid(gates[:, 3 * Hp:4 * Hp])
            c_new = f_g * c_old + i_g * g_g
            h_new = o_g * jnp.tanh(c_new)

            # Padded tail timesteps (only possible on the last chunk when
            # T % TC != 0) must leave the state unchanged.
            if (num_chunks - 1) * TC + s < T:       # statically always-valid step
                h_scr[l] = h_new
                c_scr[l] = c_new
                layer_in = h_new
            else:
                valid = (chunk * TC + s) < T
                h_upd = jnp.where(valid, h_new, h_old)
                c_upd = jnp.where(valid, c_new, c_old)
                h_scr[l] = h_upd
                c_scr[l] = c_upd
                layer_in = h_upd

    # Fused output heads at the very end: h_last never leaves VMEM, and the
    # single output tile is lane-dense (last dim padded to 128).
    @pl.when(chunk == pl.num_programs(0) - 1)
    def _heads():
        h_last = h_scr[L - 1]                       # h of last layer at t = T-1
        out_ref[...] = (jnp.dot(h_last, w_head_ref[...],
                                preferred_element_type=jnp.float32)
                        + b_head_ref[...])


def fused_rnn_forward(x_tm, w_in0, b0, wih_rest, b_rest, whh_all, w_head, b_head,
                      *, num_layers, seq_len, time_chunk, batch_pad, hidden_pad,
                      head_pad):
    In = x_tm.shape[-1]
    TC, Bp, Hp, P, L = time_chunk, batch_pad, hidden_pad, head_pad, num_layers
    nc = x_tm.shape[0] // (TC * Bp)
    rest = max(L - 1, 1)

    kernel = functools.partial(
        _fused_rnn_kernel, num_layers=L, num_chunks=nc, time_chunk=TC,
        seq_len=seq_len, batch_pad=Bp, hidden_pad=Hp)

    return pl.pallas_call(
        kernel,
        out_shape=jax.ShapeDtypeStruct((Bp, P), jnp.float32),
        grid=(nc,),
        in_specs=[
            pl.BlockSpec((TC * Bp, In), lambda c: (c, 0)),        # x, time-major chunks
            pl.BlockSpec((In, 4 * Hp), lambda c: (0, 0)),         # layer-0 W_ih (BN folded)
            pl.BlockSpec((1, 4 * Hp), lambda c: (0, 0)),          # layer-0 bias (BN folded)
            pl.BlockSpec((rest, Hp, 4 * Hp), lambda c: (0, 0, 0)),  # W_ih, layers 1..L-1
            pl.BlockSpec((rest, 1, 4 * Hp), lambda c: (0, 0, 0)),   # biases, layers 1..L-1
            pl.BlockSpec((L, Hp, 4 * Hp), lambda c: (0, 0, 0)),     # W_hh, all layers
            pl.BlockSpec((Hp, P), lambda c: (0, 0)),              # fused heads weight
            pl.BlockSpec((1, P), lambda c: (0, 0)),               # fused heads bias
        ],
        out_specs=pl.BlockSpec((Bp, P), lambda c: (0, 0)),
        scratch_shapes=[
            pltpu.VMEM((TC * Bp, 4 * Hp), jnp.float32),           # hoisted gates (chunk)
            pltpu.VMEM((L, Bp, Hp), jnp.float32),                 # h state, all layers
            pltpu.VMEM((L, Bp, Hp), jnp.float32),                 # c state, all layers
        ],
        compiler_params=pltpu.CompilerParams(
            dimension_semantics=("arbitrary",),                   # serial recurrence
            vmem_limit_bytes=32 * 1024 * 1024),
    )(x_tm, w_in0, b0, wih_rest, b_rest, whh_all, w_head, b_head)


# -----------------------------------------------------------------------------
# Forward pass: glue (gather, BN-fold, padding) in JAX, compute in the kernel
# -----------------------------------------------------------------------------
def rnn_embedding_forward(x, params, num_atoms, embedding_dim, *, time_chunk=8):
    B = x.shape[0]
    A = num_atoms
    T = x.shape[2]
    E = embedding_dim
    In = A * (E + 1)
    lstm = params["lstm"]
    L = len(lstm)
    H = lstm[0]["w_hh"].shape[1]
    C = params["w2"].shape[0]

    Hp = _round_up(H, 128)          # gates land on aligned 128-lane blocks
    Bp = _round_up(B, 8)            # full sublane occupancy
    P = _round_up(C + A, 128)       # lane-dense fused-heads output
    TC = time_chunk
    nc = -(-T // TC)
    Tp = nc * TC

    # ---- embedding lookup + concat (glue gather), torch semantics -----------
    indices = x[:, :A, :].astype(jnp.int32)                 # x[:, :A].long()
    coeffs = x[:, A:, :].astype(jnp.float32)                # x[:, A:].float()
    emb = jnp.take(params["embedding"], indices, axis=0)    # (B, A, T, E)
    concat = jnp.concatenate([emb, coeffs[..., None]], axis=-1)  # (B, A, T, E+1)

    # ---- BatchNorm1d (training-mode batch stats) folded into layer-0 W_ih ---
    flat = concat.reshape(-1, E + 1)
    mean = jnp.mean(flat, axis=0)
    var = jnp.mean(jnp.square(flat - mean), axis=0)         # biased var, eps=1e-5
    scale_f = params["bn_gamma"] * lax.rsqrt(var + 1e-5)
    shift_f = params["bn_beta"] - mean * scale_f
    scale_col = jnp.tile(scale_f, A)                        # column k <-> feature k % (E+1)
    shift_col = jnp.tile(shift_f, A)

    w_ih0_t = lstm[0]["w_ih"].T                             # (In, 4H)
    w_in0 = _pad_gate_cols(w_ih0_t * scale_col[:, None], H, Hp)          # (In, 4Hp)
    b0 = lstm[0]["b_ih"] + lstm[0]["b_hh"] + shift_col @ w_ih0_t         # (4H,)
    b0 = _pad_gate_cols(b0[None, :], H, Hp)                              # (1, 4Hp)

    whh_all = jnp.stack(
        [_pad_rows(_pad_gate_cols(layer["w_hh"].T, H, Hp), Hp) for layer in lstm])
    if L > 1:
        wih_rest = jnp.stack(
            [_pad_rows(_pad_gate_cols(lstm[l]["w_ih"].T, H, Hp), Hp)
             for l in range(1, L)])
        b_rest = jnp.stack(
            [_pad_gate_cols((lstm[l]["b_ih"] + lstm[l]["b_hh"])[None, :], H, Hp)
             for l in range(1, L)])
    else:  # dummy (never read when L == 1)
        wih_rest = jnp.zeros((1, Hp, 4 * Hp), jnp.float32)
        b_rest = jnp.zeros((1, 1, 4 * Hp), jnp.float32)

    # ---- fused heads: [linear2 (indices, C) | linear1 (coefficients, A)] ----
    w_head = jnp.concatenate([params["w2"].T, params["w1"].T], axis=1)   # (H, C+A)
    w_head = jnp.pad(w_head, ((0, Hp - H), (0, P - (C + A))))
    b_head = jnp.pad(jnp.concatenate([params["b2"], params["b1"]]),
                     (0, P - (C + A)))[None, :]

    # ---- kernel input: batch/time padded, time-major, flattened -------------
    x_bt = concat.reshape(B, T, In)          # torch .view(B, T, -1): raw reinterpretation
    x_bt = jnp.pad(x_bt, ((0, Bp - B), (0, Tp - T), (0, 0)))
    x_tm = jnp.transpose(x_bt, (1, 0, 2)).reshape(Tp * Bp, In)

    out = fused_rnn_forward(
        x_tm, w_in0, b0, wih_rest, b_rest, whh_all, w_head, b_head,
        num_layers=L, seq_len=T, time_chunk=TC,
        batch_pad=Bp, hidden_pad=Hp, head_pad=P)

    out_indices = out[:B, :C]
    out_coefficients = out[:B, C:C + A]
    return out_indices, out_coefficients


# -----------------------------------------------------------------------------
# Deterministic parameter initialization (shapes from the module __init__)
# -----------------------------------------------------------------------------
def init_params(key, num_categories, num_atoms, embedding_dim, hidden_size, num_layers):
    E, H, A, C = embedding_dim, hidden_size, num_atoms, num_categories
    in0 = (E + 1) * A
    keys = iter(jax.random.split(key, 8 + 4 * num_layers))
    bound = 1.0 / (H ** 0.5)

    params = {
        "embedding": jax.random.normal(next(keys), (C, E), jnp.float32),
        "bn_gamma": jnp.ones((E + 1,), jnp.float32),
        "bn_beta": jnp.zeros((E + 1,), jnp.float32),
    }
    lstm = []
    for layer in range(num_layers):
        insz = in0 if layer == 0 else H
        lstm.append({
            "w_ih": jax.random.uniform(next(keys), (4 * H, insz), jnp.float32, -bound, bound),
            "w_hh": jax.random.uniform(next(keys), (4 * H, H), jnp.float32, -bound, bound),
            "b_ih": jax.random.uniform(next(keys), (4 * H,), jnp.float32, -bound, bound),
            "b_hh": jax.random.uniform(next(keys), (4 * H,), jnp.float32, -bound, bound),
        })
    params["lstm"] = lstm
    params["w1"] = jax.random.uniform(next(keys), (A, H), jnp.float32, -bound, bound)
    params["b1"] = jax.random.uniform(next(keys), (A,), jnp.float32, -bound, bound)
    params["w2"] = jax.random.uniform(next(keys), (C, H), jnp.float32, -bound, bound)
    params["b2"] = jax.random.uniform(next(keys), (C,), jnp.float32, -bound, bound)
    return params


if __name__ == "__main__":
    num_categories, num_atoms, embedding_dim, hidden_size, num_layers = 16, 4, 7, 32, 2
    B, T = 2, 8

    key = jax.random.PRNGKey(0)
    k_idx, k_coef, k_params = jax.random.split(key, 3)

    idx = jax.random.randint(k_idx, (B, num_atoms, T), 0, num_categories).astype(jnp.float32)
    coef = jax.random.normal(k_coef, (B, num_atoms, T), jnp.float32)
    x = jnp.concatenate([idx, coef], axis=1)               # (B, 2*num_atoms, T)

    params = init_params(k_params, num_categories, num_atoms,
                         embedding_dim, hidden_size, num_layers)

    fwd = jax.jit(functools.partial(rnn_embedding_forward,
                                    num_atoms=num_atoms,
                                    embedding_dim=embedding_dim))
    out_indices, out_coefficients = fwd(x, params)
    jax.block_until_ready((out_indices, out_coefficients))

    assert out_indices.shape == (B, num_categories)
    assert out_coefficients.shape == (B, num_atoms)
    assert out_indices.dtype == jnp.float32 and out_coefficients.dtype == jnp.float32
    print("KERNEL_OK")
</pallas_src>

<mosaic_0001>
module attributes {stable_mosaic.version = 11 : i64} {
  func.func @_fused_rnn_kernel(%arg0: i32, %arg1: memref<64x32xf32, #tpu.memory_space<vmem>>, %arg2: memref<32x512xf32, #tpu.memory_space<vmem>>, %arg3: memref<1x512xf32, #tpu.memory_space<vmem>>, %arg4: memref<1x128x512xf32, #tpu.memory_space<vmem>>, %arg5: memref<1x1x512xf32, #tpu.memory_space<vmem>>, %arg6: memref<2x128x512xf32, #tpu.memory_space<vmem>>, %arg7: memref<128x128xf32, #tpu.memory_space<vmem>>, %arg8: memref<1x128xf32, #tpu.memory_space<vmem>>, %arg9: memref<8x128xf32, #tpu.memory_space<vmem>>, %arg10: memref<64x512xf32, #tpu.memory_space<vmem>>, %arg11: memref<2x8x128xf32, #tpu.memory_space<vmem>>, %arg12: memref<2x8x128xf32, #tpu.memory_space<vmem>>) attributes {dimension_semantics = [#tpu.dimension_semantics<arbitrary>], iteration_bounds = array<i64: 1>, scalar_prefetch = 0 : i64, scratch_operands = 3 : i64, tpu.core_type = #tpu.core_type<tc>, window_params = [{transform_indices = @transform_0, window_bounds = array<i64: 64, 32>}, {pipeline_mode = #tpu.pipeline_mode<synchronous>, transform_indices = @transform_1, window_bounds = array<i64: 32, 512>}, {pipeline_mode = #tpu.pipeline_mode<synchronous>, transform_indices = @transform_2, window_bounds = array<i64: 1, 512>}, {pipeline_mode = #tpu.pipeline_mode<synchronous>, transform_indices = @transform_3, window_bounds = array<i64: 1, 128, 512>}, {pipeline_mode = #tpu.pipeline_mode<synchronous>, transform_indices = @transform_4, window_bounds = array<i64: 1, 1, 512>}, {pipeline_mode = #tpu.pipeline_mode<synchronous>, transform_indices = @transform_5, window_bounds = array<i64: 2, 128, 512>}, {pipeline_mode = #tpu.pipeline_mode<synchronous>, transform_indices = @transform_6, window_bounds = array<i64: 128, 128>}, {pipeline_mode = #tpu.pipeline_mode<synchronous>, transform_indices = @transform_7, window_bounds = array<i64: 1, 128>}, {pipeline_mode = #tpu.pipeline_mode<synchronous>, transform_indices = @transform_8, window_bounds = array<i64: 8, 128>}]} {
    %c0_i32 = arith.constant 0 : i32
    %0 = arith.cmpi eq, %arg0, %c0_i32 : i32
    %1 = arith.extui %0 : i1 to i32
    %c0_i32_0 = arith.constant 0 : i32
    %2 = arith.cmpi ne, %1, %c0_i32_0 : i32
    scf.if %2 {
      %cst_378 = arith.constant 0.000000e+00 : f32
      %701 = vector.broadcast %cst_378 : f32 to vector<2x8x128xf32>
      %c0_379 = arith.constant 0 : index
      %c0_380 = arith.constant 0 : index
      %c0_381 = arith.constant 0 : index
      %702 = vector.load %arg11[%c0_379, %c0_380, %c0_381] : memref<2x8x128xf32, #tpu.memory_space<vmem>>, vector<2x8x128xf32>
      tpu.vector_store %arg11[%c0_379, %c0_380, %c0_381], %701 {strides = array<i32>} : memref<2x8x128xf32, #tpu.memory_space<vmem>>, vector<2x8x128xf32>,
      %cst_382 = arith.constant 0.000000e+00 : f32
      %703 = vector.broadcast %cst_382 : f32 to vector<2x8x128xf32>
      %c0_383 = arith.constant 0 : index
      %c0_384 = arith.constant 0 : index
      %c0_385 = arith.constant 0 : index
      %704 = vector.load %arg12[%c0_383, %c0_384, %c0_385] : memref<2x8x128xf32, #tpu.memory_space<vmem>>, vector<2x8x128xf32>
      tpu.vector_store %arg12[%c0_383, %c0_384, %c0_385], %703 {strides = array<i32>} : memref<2x8x128xf32, #tpu.memory_space<vmem>>, vector<2x8x128xf32>,
    } else {
    }
    %c0 = arith.constant 0 : index
    %c0_1 = arith.constant 0 : index
    %3 = vector.load %arg1[%c0, %c0_1] : memref<64x32xf32, #tpu.memory_space<vmem>>, vector<64x32xf32>
    %c0_2 = arith.constant 0 : index
    %c0_3 = arith.constant 0 : index
    %4 = vector.load %arg2[%c0_2, %c0_3] : memref<32x512xf32, #tpu.memory_space<vmem>>, vector<32x512xf32>
    %cst = arith.constant dense<0.000000e+00> : vector<64x512xf32>
    %5 = tpu.matmul %3, %4, %cst {dimension_numbers = #tpu.dot_dimension_numbers<[1], [0], [0], [1], [0, 0, 1, 1], [], []>} : vector<64x32xf32>, vector<32x512xf32>, vector<64x512xf32> -> vector<64x512xf32>
    %c0_4 = arith.constant 0 : index
    %c0_5 = arith.constant 0 : index
    %6 = vector.load %arg3[%c0_4, %c0_5] : memref<1x512xf32, #tpu.memory_space<vmem>>, vector<1x512xf32>
    %7 = vector.broadcast %6 : vector<1x512xf32> to vector<64x512xf32>
    %8 = arith.addf %5, %7 : vector<64x512xf32>
    %c0_6 = arith.constant 0 : index
    %c0_7 = arith.constant 0 : index
    %9 = vector.load %arg10[%c0_6, %c0_7] : memref<64x512xf32, #tpu.memory_space<vmem>>, vector<64x512xf32>
    tpu.vector_store %arg10[%c0_6, %c0_7], %8 {strides = array<i32>} : memref<64x512xf32, #tpu.memory_space<vmem>>, vector<64x512xf32>,
    %c0_8 = arith.constant 0 : index
    %c0_9 = arith.constant 0 : index
    %10 = vector.load %arg10[%c0_8, %c0_9] : memref<64x512xf32, #tpu.memory_space<vmem>>, vector<8x512xf32>
    %c0_10 = arith.constant 0 : index
    %c0_11 = arith.constant 0 : index
    %c0_12 = arith.constant 0 : index
    %11 = vector.load %arg11[%c0_10, %c0_11, %c0_12] : memref<2x8x128xf32, #tpu.memory_space<vmem>>, vector<1x8x128xf32>
    %12 = vector.shape_cast %11 : vector<1x8x128xf32> to vector<8x128xf32>
    %c0_13 = arith.constant 0 : index
    %c0_14 = arith.constant 0 : index
    %c0_15 = arith.constant 0 : index
    %13 = vector.load %arg12[%c0_13, %c0_14, %c0_15] : memref<2x8x128xf32, #tpu.memory_space<vmem>>, vector<1x8x128xf32>
    %14 = vector.shape_cast %13 : vector<1x8x128xf32> to vector<8x128xf32>
    %c0_16 = arith.constant 0 : index
    %c0_17 = arith.constant 0 : index
    %c0_18 = arith.constant 0 : index
    %15 = vector.load %arg6[%c0_16, %c0_17, %c0_18] : memref<2x128x512xf32, #tpu.memory_space<vmem>>, vector<1x128x512xf32>
    %16 = vector.shape_cast %15 : vector<1x128x512xf32> to vector<128x512xf32>
    %cst_19 = arith.constant dense<0.000000e+00> : vector<8x512xf32>
    %17 = tpu.matmul %12, %16, %cst_19 {dimension_numbers = #tpu.dot_dimension_numbers<[1], [0], [0], [1], [0, 0, 1, 1], [], []>} : vector<8x128xf32>, vector<128x512xf32>, vector<8x512xf32> -> vector<8x512xf32>
    %18 = arith.addf %10, %17 : vector<8x512xf32>
    %19 = vector.extract_strided_slice %18 {offsets = [0, 0], sizes = [8, 128], strides = [1, 1]} : vector<8x512xf32> to vector<8x128xf32>
    %20 = arith.negf %19 : vector<8x128xf32>
    %21 = math.exp %20 : vector<8x128xf32>
    %cst_20 = arith.constant 1.000000e+00 : f32
    %22 = vector.broadcast %cst_20 : f32 to vector<8x128xf32>
    %23 = arith.addf %22, %21 : vector<8x128xf32>
    %24 = arith.divf %22, %23 : vector<8x128xf32>
    %25 = vector.extract_strided_slice %18 {offsets = [0, 128], sizes = [8, 128], strides = [1, 1]} : vector<8x512xf32> to vector<8x128xf32>
    %26 = arith.negf %25 : vector<8x128xf32>
    %27 = math.exp %26 : vector<8x128xf32>
    %cst_21 = arith.constant 1.000000e+00 : f32
    %28 = vector.broadcast %cst_21 : f32 to vector<8x128xf32>
    %29 = arith.addf %28, %27 : vector<8x128xf32>
    %30 = arith.divf %28, %29 : vector<8x128xf32>
    %31 = vector.extract_strided_slice %18 {offsets = [0, 256], sizes = [8, 128], strides = [1, 1]} : vector<8x512xf32> to vector<8x128xf32>
    %32 = math.tanh %31 : vector<8x128xf32>
    %33 = vector.extract_strided_slice %18 {offsets = [0, 384], sizes = [8, 128], strides = [1, 1]} : vector<8x512xf32> to vector<8x128xf32>
    %34 = arith.negf %33 : vector<8x128xf32>
    %35 = math.exp %34 : vector<8x128xf32>
    %cst_22 = arith.constant 1.000000e+00 : f32
    %36 = vector.broadcast %cst_22 : f32 to vector<8x128xf32>
    %37 = arith.addf %36, %35 : vector<8x128xf32>
    %38 = arith.divf %36, %37 : vector<8x128xf32>
    %39 = arith.mulf %30, %14 : vector<8x128xf32>
    %40 = arith.mulf %24, %32 : vector<8x128xf32>
    %41 = arith.addf %39, %40 : vector<8x128xf32>
    %42 = math.tanh %41 : vector<8x128xf32>
    %43 = arith.mulf %38, %42 : vector<8x128xf32>
    %c0_23 = arith.constant 0 : index
    %c0_24 = arith.constant 0 : index
    %c0_25 = arith.constant 0 : index
    %44 = vector.load %arg11[%c0_23, %c0_24, %c0_25] : memref<2x8x128xf32, #tpu.memory_space<vmem>>, vector<1x8x128xf32>
    %45 = vector.shape_cast %44 : vector<1x8x128xf32> to vector<8x128xf32>
    %46 = vector.shape_cast %43 : vector<8x128xf32> to vector<1x8x128xf32>
    tpu.vector_store %arg11[%c0_23, %c0_24, %c0_25], %46 {strides = array<i32>} : memref<2x8x128xf32, #tpu.memory_space<vmem>>, vector<1x8x128xf32>,
    %c0_26 = arith.constant 0 : index
    %c0_27 = arith.constant 0 : index
    %c0_28 = arith.constant 0 : index
    %47 = vector.load %arg12[%c0_26, %c0_27, %c0_28] : memref<2x8x128xf32, #tpu.memory_space<vmem>>, vector<1x8x128xf32>
    %48 = vector.shape_cast %47 : vector<1x8x128xf32> to vector<8x128xf32>
    %49 = vector.shape_cast %41 : vector<8x128xf32> to vector<1x8x128xf32>
    tpu.vector_store %arg12[%c0_26, %c0_27, %c0_28], %49 {strides = array<i32>} : memref<2x8x128xf32, #tpu.memory_space<vmem>>, vector<1x8x128xf32>,
    %c0_29 = arith.constant 0 : index
    %c0_30 = arith.constant 0 : index
    %c0_31 = arith.constant 0 : index
    %50 = vector.load %arg4[%c0_29, %c0_30, %c0_31] : memref<1x128x512xf32, #tpu.memory_space<vmem>>, vector<1x128x512xf32>
    %51 = vector.shape_cast %50 : vector<1x128x512xf32> to vector<128x512xf32>
    %cst_32 = arith.constant dense<0.000000e+00> : vector<8x512xf32>
    %52 = tpu.matmul %43, %51, %cst_32 {dimension_numbers = #tpu.dot_dimension_numbers<[1], [0], [0], [1], [0, 0, 1, 1], [], []>} : vector<8x128xf32>, vector<128x512xf32>, vector<8x512xf32> -> vector<8x512xf32>
    %c0_33 = arith.constant 0 : index
    %c0_34 = arith.constant 0 : index
    %c0_35 = arith.constant 0 : index
    %53 = vector.load %arg5[%c0_33, %c0_34, %c0_35] : memref<1x1x512xf32, #tpu.memory_space<vmem>>, vector<1x1x512xf32>
    %54 = vector.shape_cast %53 : vector<1x1x512xf32> to vector<1x512xf32>
    %55 = vector.broadcast %54 : vector<1x512xf32> to vector<8x512xf32>
    %56 = arith.addf %52, %55 : vector<8x512xf32>
    %c1 = arith.constant 1 : index
    %c0_36 = arith.constant 0 : index
    %c0_37 = arith.constant 0 : index
    %57 = vector.load %arg11[%c1, %c0_36, %c0_37] : memref<2x8x128xf32, #tpu.memory_space<vmem>>, vector<1x8x128xf32>
    %58 = vector.shape_cast %57 : vector<1x8x128xf32> to vector<8x128xf32>
    %c1_38 = arith.constant 1 : index
    %c0_39 = arith.constant 0 : index
    %c0_40 = arith.constant 0 : index
    %59 = vector.load %arg12[%c1_38, %c0_39, %c0_40] : memref<2x8x128xf32, #tpu.memory_space<vmem>>, vector<1x8x128xf32>
    %60 = vector.shape_cast %59 : vector<1x8x128xf32> to vector<8x128xf32>
    %c1_41 = arith.constant 1 : index
    %c0_42 = arith.constant 0 : index
    %c0_43 = arith.constant 0 : index
    %61 = vector.load %arg6[%c1_41, %c0_42, %c0_43] : memref<2x128x512xf32, #tpu.memory_space<vmem>>, vector<1x128x512xf32>
    %62 = vector.shape_cast %61 : vector<1x128x512xf32> to vector<128x512xf32>
    %cst_44 = arith.constant dense<0.000000e+00> : vector<8x512xf32>
    %63 = tpu.matmul %58, %62, %cst_44 {dimension_numbers = #tpu.dot_dimension_numbers<[1], [0], [0], [1], [0, 0, 1, 1], [], []>} : vector<8x128xf32>, vector<128x512xf32>, vector<8x512xf32> -> vector<8x512xf32>
    %64 = arith.addf %56, %63 : vector<8x512xf32>
    %65 = vector.extract_strided_slice %64 {offsets = [0, 0], sizes = [8, 128], strides = [1, 1]} : vector<8x512xf32> to vector<8x128xf32>
    %66 = arith.negf %65 : vector<8x128xf32>
    %67 = math.exp %66 : vector<8x128xf32>
    %cst_45 = arith.constant 1.000000e+00 : f32
    %68 = vector.broadcast %cst_45 : f32 to vector<8x128xf32>
    %69 = arith.addf %68, %67 : vector<8x128xf32>
    %70 = arith.divf %68, %69 : vector<8x128xf32>
    %71 = vector.extract_strided_slice %64 {offsets = [0, 128], sizes = [8, 128], strides = [1, 1]} : vector<8x512xf32> to vector<8x128xf32>
    %72 = arith.negf %71 : vector<8x128xf32>
    %73 = math.exp %72 : vector<8x128xf32>
    %cst_46 = arith.constant 1.000000e+00 : f32
    %74 = vector.broadcast %cst_46 : f32 to vector<8x128xf32>
    %75 = arith.addf %74, %73 : vector<8x128xf32>
    %76 = arith.divf %74, %75 : vector<8x128xf32>
    %77 = vector.extract_strided_slice %64 {offsets = [0, 256], sizes = [8, 128], strides = [1, 1]} : vector<8x512xf32> to vector<8x128xf32>
    %78 = math.tanh %77 : vector<8x128xf32>
    %79 = vector.extract_strided_slice %64 {offsets = [0, 384], sizes = [8, 128], strides = [1, 1]} : vector<8x512xf32> to vector<8x128xf32>
    %80 = arith.negf %79 : vector<8x128xf32>
    %81 = math.exp %80 : vector<8x128xf32>
    %cst_47 = arith.constant 1.000000e+00 : f32
    %82 = vector.broadcast %cst_47 : f32 to vector<8x128xf32>
    %83 = arith.addf %82, %81 : vector<8x128xf32>
    %84 = arith.divf %82, %83 : vector<8x128xf32>
    %85 = arith.mulf %76, %60 : vector<8x128xf32>
    %86 = arith.mulf %70, %78 : vector<8x128xf32>
    %87 = arith.addf %85, %86 : vector<8x128xf32>
    %88 = math.tanh %87 : vector<8x128xf32>
    %89 = arith.mulf %84, %88 : vector<8x128xf32>
    %c1_48 = arith.constant 1 : index
    %c0_49 = arith.constant 0 : index
    %c0_50 = arith.constant 0 : index
    %90 = vector.load %arg11[%c1_48, %c0_49, %c0_50] : memref<2x8x128xf32, #tpu.memory_space<vmem>>, vector<1x8x128xf32>
    %91 = vector.shape_cast %90 : vector<1x8x128xf32> to vector<8x128xf32>
    %92 = vector.shape_cast %89 : vector<8x128xf32> to vector<1x8x128xf32>
    tpu.vector_store %arg11[%c1_48, %c0_49, %c0_50], %92 {strides = array<i32>} : memref<2x8x128xf32, #tpu.memory_space<vmem>>, vector<1x8x128xf32>,
    %c1_51 = arith.constant 1 : index
    %c0_52 = arith.constant 0 : index
    %c0_53 = arith.constant 0 : index
    %93 = vector.load %arg12[%c1_51, %c0_52, %c0_53] : memref<2x8x128xf32, #tpu.memory_space<vmem>>, vector<1x8x128xf32>
    %94 = vector.shape_cast %93 : vector<1x8x128xf32> to vector<8x128xf32>
    %95 = vector.shape_cast %87 : vector<8x128xf32> to vector<1x8x128xf32>
    tpu.vector_store %arg12[%c1_51, %c0_52, %c0_53], %95 {strides = array<i32>} : memref<2x8x128xf32, #tpu.memory_space<vmem>>, vector<1x8x128xf32>,
    %c8 = arith.constant 8 : index
    %c0_54 = arith.constant 0 : index
    %96 = vector.load %arg10[%c8, %c0_54] : memref<64x512xf32, #tpu.memory_space<vmem>>, vector<8x512xf32>
    %c0_55 = arith.constant 0 : index
    %c0_56 = arith.constant 0 : index
    %c0_57 = arith.constant 0 : index
    %97 = vector.load %arg11[%c0_55, %c0_56, %c0_57] : memref<2x8x128xf32, #tpu.memory_space<vmem>>, vector<1x8x128xf32>
    %98 = vector.shape_cast %97 : vector<1x8x128xf32> to vector<8x128xf32>
    %c0_58 = arith.constant 0 : index
    %c0_59 = arith.constant 0 : index
    %c0_60 = arith.constant 0 : index
    %99 = vector.load %arg12[%c0_58, %c0_59, %c0_60] : memref<2x8x128xf32, #tpu.memory_space<vmem>>, vector<1x8x128xf32>
    %100 = vector.shape_cast %99 : vector<1x8x128xf32> to vector<8x128xf32>
    %c0_61 = arith.constant 0 : index
    %c0_62 = arith.constant 0 : index
    %c0_63 = arith.constant 0 : index
    %101 = vector.load %arg6[%c0_61, %c0_62, %c0_63] : memref<2x128x512xf32, #tpu.memory_space<vmem>>, vector<1x128x512xf32>
    %102 = vector.shape_cast %101 : vector<1x128x512xf32> to vector<128x512xf32>
    %cst_64 = arith.constant dense<0.000000e+00> : vector<8x512xf32>
    %103 = tpu.matmul %98, %102, %cst_64 {dimension_numbers = #tpu.dot_dimension_numbers<[1], [0], [0], [1], [0, 0, 1, 1], [], []>} : vector<8x128xf32>, vector<128x512xf32>, vector<8x512xf32> -> vector<8x512xf32>
    %104 = arith.addf %96, %103 : vector<8x512xf32>
    %105 = vector.extract_strided_slice %104 {offsets = [0, 0], sizes = [8, 128], strides = [1, 1]} : vector<8x512xf32> to vector<8x128xf32>
    %106 = arith.negf %105 : vector<8x128xf32>
    %107 = math.exp %106 : vector<8x128xf32>
    %cst_65 = arith.constant 1.000000e+00 : f32
    %108 = vector.broadcast %cst_65 : f32 to vector<8x128xf32>
    %109 = arith.addf %108, %107 : vector<8x128xf32>
    %110 = arith.divf %108, %109 : vector<8x128xf32>
    %111 = vector.extract_strided_slice %104 {offsets = [0, 128], sizes = [8, 128], strides = [1, 1]} : vector<8x512xf32> to vector<8x128xf32>
    %112 = arith.negf %111 : vector<8x128xf32>
    %113 = math.exp %112 : vector<8x128xf32>
    %cst_66 = arith.constant 1.000000e+00 : f32
    %114 = vector.broadcast %cst_66 : f32 to vector<8x128xf32>
    %115 = arith.addf %114, %113 : vector<8x128xf32>
    %116 = arith.divf %114, %115 : vector<8x128xf32>
    %117 = vector.extract_strided_slice %104 {offsets = [0, 256], sizes = [8, 128], strides = [1, 1]} : vector<8x512xf32> to vector<8x128xf32>
    %118 = math.tanh %117 : vector<8x128xf32>
    %119 = vector.extract_strided_slice %104 {offsets = [0, 384], sizes = [8, 128], strides = [1, 1]} : vector<8x512xf32> to vector<8x128xf32>
    %120 = arith.negf %119 : vector<8x128xf32>
    %121 = math.exp %120 : vector<8x128xf32>
    %cst_67 = arith.constant 1.000000e+00 : f32
    %122 = vector.broadcast %cst_67 : f32 to vector<8x128xf32>
    %123 = arith.addf %122, %121 : vector<8x128xf32>
    %124 = arith.divf %122, %123 : vector<8x128xf32>
    %125 = arith.mulf %116, %100 : vector<8x128xf32>
    %126 = arith.mulf %110, %118 : vector<8x128xf32>
    %127 = arith.addf %125, %126 : vector<8x128xf32>
    %128 = math.tanh %127 : vector<8x128xf32>
    %129 = arith.mulf %124, %128 : vector<8x128xf32>
    %c0_68 = arith.constant 0 : index
    %c0_69 = arith.constant 0 : index
    %c0_70 = arith.constant 0 : index
    %130 = vector.load %arg11[%c0_68, %c0_69, %c0_70] : memref<2x8x128xf32, #tpu.memory_space<vmem>>, vector<1x8x128xf32>
    %131 = vector.shape_cast %130 : vector<1x8x128xf32> to vector<8x128xf32>
    %132 = vector.shape_cast %129 : vector<8x128xf32> to vector<1x8x128xf32>
    tpu.vector_store %arg11[%c0_68, %c0_69, %c0_70], %132 {strides = array<i32>} : memref<2x8x128xf32, #tpu.memory_space<vmem>>, vector<1x8x128xf32>,
    %c0_71 = arith.constant 0 : index
    %c0_72 = arith.constant 0 : index
    %c0_73 = arith.constant 0 : index
    %133 = vector.load %arg12[%c0_71, %c0_72, %c0_73] : memref<2x8x128xf32, #tpu.memory_space<vmem>>, vector<1x8x128xf32>
    %134 = vector.shape_cast %133 : vector<1x8x128xf32> to vector<8x128xf32>
    %135 = vector.shape_cast %127 : vector<8x128xf32> to vector<1x8x128xf32>
    tpu.vector_store %arg12[%c0_71, %c0_72, %c0_73], %135 {strides = array<i32>} : memref<2x8x128xf32, #tpu.memory_space<vmem>>, vector<1x8x128xf32>,
    %c0_74 = arith.constant 0 : index
    %c0_75 = arith.constant 0 : index
    %c0_76 = arith.constant 0 : index
    %136 = vector.load %arg4[%c0_74, %c0_75, %c0_76] : memref<1x128x512xf32, #tpu.memory_space<vmem>>, vector<1x128x512xf32>
    %137 = vector.shape_cast %136 : vector<1x128x512xf32> to vector<128x512xf32>
    %cst_77 = arith.constant dense<0.000000e+00> : vector<8x512xf32>
    %138 = tpu.matmul %129, %137, %cst_77 {dimension_numbers = #tpu.dot_dimension_numbers<[1], [0], [0], [1], [0, 0, 1, 1], [], []>} : vector<8x128xf32>, vector<128x512xf32>, vector<8x512xf32> -> vector<8x512xf32>
    %c0_78 = arith.constant 0 : index
    %c0_79 = arith.constant 0 : index
    %c0_80 = arith.constant 0 : index
    %139 = vector.load %arg5[%c0_78, %c0_79, %c0_80] : memref<1x1x512xf32, #tpu.memory_space<vmem>>, vector<1x1x512xf32>
    %140 = vector.shape_cast %139 : vector<1x1x512xf32> to vector<1x512xf32>
    %141 = vector.broadcast %140 : vector<1x512xf32> to vector<8x512xf32>
    %142 = arith.addf %138, %141 : vector<8x512xf32>
    %c1_81 = arith.constant 1 : index
    %c0_82 = arith.constant 0 : index
    %c0_83 = arith.constant 0 : index
    %143 = vector.load %arg11[%c1_81, %c0_82, %c0_83] : memref<2x8x128xf32, #tpu.memory_space<vmem>>, vector<1x8x128xf32>
    %144 = vector.shape_cast %143 : vector<1x8x128xf32> to vector<8x128xf32>
    %c1_84 = arith.constant 1 : index
    %c0_85 = arith.constant 0 : index
    %c0_86 = arith.constant 0 : index
    %145 = vector.load %arg12[%c1_84, %c0_85, %c0_86] : memref<2x8x128xf32, #tpu.memory_space<vmem>>, vector<1x8x128xf32>
    %146 = vector.shape_cast %145 : vector<1x8x128xf32> to vector<8x128xf32>
    %c1_87 = arith.constant 1 : index
    %c0_88 = arith.constant 0 : index
    %c0_89 = arith.constant 0 : index
    %147 = vector.load %arg6[%c1_87, %c0_88, %c0_89] : memref<2x128x512xf32, #tpu.memory_space<vmem>>, vector<1x128x512xf32>
    %148 = vector.shape_cast %147 : vector<1x128x512xf32> to vector<128x512xf32>
    %cst_90 = arith.constant dense<0.000000e+00> : vector<8x512xf32>
    %149 = tpu.matmul %144, %148, %cst_90 {dimension_numbers = #tpu.dot_dimension_numbers<[1], [0], [0], [1], [0, 0, 1, 1], [], []>} : vector<8x128xf32>, vector<128x512xf32>, vector<8x512xf32> -> vector<8x512xf32>
    %150 = arith.addf %142, %149 : vector<8x512xf32>
    %151 = vector.extract_strided_slice %150 {offsets = [0, 0], sizes = [8, 128], strides = [1, 1]} : vector<8x512xf32> to vector<8x128xf32>
    %152 = arith.negf %151 : vector<8x128xf32>
    %153 = math.exp %152 : vector<8x128xf32>
    %cst_91 = arith.constant 1.000000e+00 : f32
    %154 = vector.broadcast %cst_91 : f32 to vector<8x128xf32>
    %155 = arith.addf %154, %153 : vector<8x128xf32>
    %156 = arith.divf %154, %155 : vector<8x128xf32>
    %157 = vector.extract_strided_slice %150 {offsets = [0, 128], sizes = [8, 128], strides = [1, 1]} : vector<8x512xf32> to vector<8x128xf32>
    %158 = arith.negf %157 : vector<8x128xf32>
    %159 = math.exp %158 : vector<8x128xf32>
    %cst_92 = arith.constant 1.000000e+00 : f32
    %160 = vector.broadcast %cst_92 : f32 to vector<8x128xf32>
    %161 = arith.addf %160, %159 : vector<8x128xf32>
    %162 = arith.divf %160, %161 : vector<8x128xf32>
    %163 = vector.extract_strided_slice %150 {offsets = [0, 256], sizes = [8, 128], strides = [1, 1]} : vector<8x512xf32> to vector<8x128xf32>
    %164 = math.tanh %163 : vector<8x128xf32>
    %165 = vector.extract_strided_slice %150 {offsets = [0, 384], sizes = [8, 128], strides = [1, 1]} : vector<8x512xf32> to vector<8x128xf32>
    %166 = arith.negf %165 : vector<8x128xf32>
    %167 = math.exp %166 : vector<8x128xf32>
    %cst_93 = arith.constant 1.000000e+00 : f32
    %168 = vector.broadcast %cst_93 : f32 to vector<8x128xf32>
    %169 = arith.addf %168, %167 : vector<8x128xf32>
    %170 = arith.divf %168, %169 : vector<8x128xf32>
    %171 = arith.mulf %162, %146 : vector<8x128xf32>
    %172 = arith.mulf %156, %164 : vector<8x128xf32>
    %173 = arith.addf %171, %172 : vector<8x128xf32>
    %174 = math.tanh %173 : vector<8x128xf32>
    %175 = arith.mulf %170, %174 : vector<8x128xf32>
    %c1_94 = arith.constant 1 : index
    %c0_95 = arith.constant 0 : index
    %c0_96 = arith.constant 0 : index
    %176 = vector.load %arg11[%c1_94, %c0_95, %c0_96] : memref<2x8x128xf32, #tpu.memory_space<vmem>>, vector<1x8x128xf32>
    %177 = vector.shape_cast %176 : vector<1x8x128xf32> to vector<8x128xf32>
    %178 = vector.shape_cast %175 : vector<8x128xf32> to vector<1x8x128xf32>
    tpu.vector_store %arg11[%c1_94, %c0_95, %c0_96], %178 {strides = array<i32>} : memref<2x8x128xf32, #tpu.memory_space<vmem>>, vector<1x8x128xf32>,
    %c1_97 = arith.constant 1 : index
    %c0_98 = arith.constant 0 : index
    %c0_99 = arith.constant 0 : index
    %179 = vector.load %arg12[%c1_97, %c0_98, %c0_99] : memref<2x8x128xf32, #tpu.memory_space<vmem>>, vector<1x8x128xf32>
    %180 = vector.shape_cast %179 : vector<1x8x128xf32> to vector<8x128xf32>
    %181 = vector.shape_cast %173 : vector<8x128xf32> to vector<1x8x128xf32>
    tpu.vector_store %arg12[%c1_97, %c0_98, %c0_99], %181 {strides = array<i32>} : memref<2x8x128xf32, #tpu.memory_space<vmem>>, vector<1x8x128xf32>,
    %c16 = arith.constant 16 : index
    %c0_100 = arith.constant 0 : index
    %182 = vector.load %arg10[%c16, %c0_100] : memref<64x512xf32, #tpu.memory_space<vmem>>, vector<8x512xf32>
    %c0_101 = arith.constant 0 : index
    %c0_102 = arith.constant 0 : index
    %c0_103 = arith.constant 0 : index
    %183 = vector.load %arg11[%c0_101, %c0_102, %c0_103] : memref<2x8x128xf32, #tpu.memory_space<vmem>>, vector<1x8x128xf32>
    %184 = vector.shape_cast %183 : vector<1x8x128xf32> to vector<8x128xf32>
    %c0_104 = arith.constant 0 : index
    %c0_105 = arith.constant 0 : index
    %c0_106 = arith.constant 0 : index
    %185 = vector.load %arg12[%c0_104, %c0_105, %c0_106] : memref<2x8x128xf32, #tpu.memory_space<vmem>>, vector<1x8x128xf32>
    %186 = vector.shape_cast %185 : vector<1x8x128xf32> to vector<8x128xf32>
    %c0_107 = arith.constant 0 : index
    %c0_108 = arith.constant 0 : index
    %c0_109 = arith.constant 0 : index
    %187 = vector.load %arg6[%c0_107, %c0_108, %c0_109] : memref<2x128x512xf32, #tpu.memory_space<vmem>>, vector<1x128x512xf32>
    %188 = vector.shape_cast %187 : vector<1x128x512xf32> to vector<128x512xf32>
    %cst_110 = arith.constant dense<0.000000e+00> : vector<8x512xf32>
    %189 = tpu.matmul %184, %188, %cst_110 {dimension_numbers = #tpu.dot_dimension_numbers<[1], [0], [0], [1], [0, 0, 1, 1], [], []>} : vector<8x128xf32>, vector<128x512xf32>, vector<8x512xf32> -> vector<8x512xf32>
    %190 = arith.addf %182, %189 : vector<8x512xf32>
    %191 = vector.extract_strided_slice %190 {offsets = [0, 0], sizes = [8, 128], strides = [1, 1]} : vector<8x512xf32> to vector<8x128xf32>
    %192 = arith.negf %191 : vector<8x128xf32>
    %193 = math.exp %192 : vector<8x128xf32>
    %cst_111 = arith.constant 1.000000e+00 : f32
    %194 = vector.broadcast %cst_111 : f32 to vector<8x128xf32>
    %195 = arith.addf %194, %193 : vector<8x128xf32>
    %196 = arith.divf %194, %195 : vector<8x128xf32>
    %197 = vector.extract_strided_slice %190 {offsets = [0, 128], sizes = [8, 128], strides = [1, 1]} : vector<8x512xf32> to vector<8x128xf32>
    %198 = arith.negf %197 : vector<8x128xf32>
    %199 = math.exp %198 : vector<8x128xf32>
    %cst_112 = arith.constant 1.000000e+00 : f32
    %200 = vector.broadcast %cst_112 : f32 to vector<8x128xf32>
    %201 = arith.addf %200, %199 : vector<8x128xf32>
    %202 = arith.divf %200, %201 : vector<8x128xf32>
    %203 = vector.extract_strided_slice %190 {offsets = [0, 256], sizes = [8, 128], strides = [1, 1]} : vector<8x512xf32> to vector<8x128xf32>
    %204 = math.tanh %203 : vector<8x128xf32>
    %205 = vector.extract_strided_slice %190 {offsets = [0, 384], sizes = [8, 128], strides = [1, 1]} : vector<8x512xf32> to vector<8x128xf32>
    %206 = arith.negf %205 : vector<8x128xf32>
    %207 = math.exp %206 : vector<8x128xf32>
    %cst_113 = arith.constant 1.000000e+00 : f32
    %208 = vector.broadcast %cst_113 : f32 to vector<8x128xf32>
    %209 = arith.addf %208, %207 : vector<8x128xf32>
    %210 = arith.divf %208, %209 : vector<8x128xf32>
    %211 = arith.mulf %202, %186 : vector<8x128xf32>
    %212 = arith.mulf %196, %204 : vector<8x128xf32>
    %213 = arith.addf %211, %212 : vector<8x128xf32>
    %214 = math.tanh %213 : vector<8x128xf32>
    %215 = arith.mulf %210, %214 : vector<8x128xf32>
    %c0_114 = arith.constant 0 : index
    %c0_115 = arith.constant 0 : index
    %c0_116 = arith.constant 0 : index
    %216 = vector.load %arg11[%c0_114, %c0_115, %c0_116] : memref<2x8x128xf32, #tpu.memory_space<vmem>>, vector<1x8x128xf32>
    %217 = vector.shape_cast %216 : vector<1x8x128xf32> to vector<8x128xf32>
    %218 = vector.shape_cast %215 : vector<8x128xf32> to vector<1x8x128xf32>
    tpu.vector_store %arg11[%c0_114, %c0_115, %c0_116], %218 {strides = array<i32>} : memref<2x8x128xf32, #tpu.memory_space<vmem>>, vector<1x8x128xf32>,
    %c0_117 = arith.constant 0 : index
    %c0_118 = arith.constant 0 : index
    %c0_119 = arith.constant 0 : index
    %219 = vector.load %arg12[%c0_117, %c0_118, %c0_119] : memref<2x8x128xf32, #tpu.memory_space<vmem>>, vector<1x8x128xf32>
    %220 = vector.shape_cast %219 : vector<1x8x128xf32> to vector<8x128xf32>
    %221 = vector.shape_cast %213 : vector<8x128xf32> to vector<1x8x128xf32>
    tpu.vector_store %arg12[%c0_117, %c0_118, %c0_119], %221 {strides = array<i32>} : memref<2x8x128xf32, #tpu.memory_space<vmem>>, vector<1x8x128xf32>,
    %c0_120 = arith.constant 0 : index
    %c0_121 = arith.constant 0 : index
    %c0_122 = arith.constant 0 : index
    %222 = vector.load %arg4[%c0_120, %c0_121, %c0_122] : memref<1x128x512xf32, #tpu.memory_space<vmem>>, vector<1x128x512xf32>
    %223 = vector.shape_cast %222 : vector<1x128x512xf32> to vector<128x512xf32>
    %cst_123 = arith.constant dense<0.000000e+00> : vector<8x512xf32>
    %224 = tpu.matmul %215, %223, %cst_123 {dimension_numbers = #tpu.dot_dimension_numbers<[1], [0], [0], [1], [0, 0, 1, 1], [], []>} : vector<8x128xf32>, vector<128x512xf32>, vector<8x512xf32> -> vector<8x512xf32>
    %c0_124 = arith.constant 0 : index
    %c0_125 = arith.constant 0 : index
    %c0_126 = arith.constant 0 : index
    %225 = vector.load %arg5[%c0_124, %c0_125, %c0_126] : memref<1x1x512xf32, #tpu.memory_space<vmem>>, vector<1x1x512xf32>
    %226 = vector.shape_cast %225 : vector<1x1x512xf32> to vector<1x512xf32>
    %227 = vector.broadcast %226 : vector<1x512xf32> to vector<8x512xf32>
    %228 = arith.addf %224, %227 : vector<8x512xf32>
    %c1_127 = arith.constant 1 : index
    %c0_128 = arith.constant 0 : index
    %c0_129 = arith.constant 0 : index
    %229 = vector.load %arg11[%c1_127, %c0_128, %c0_129] : memref<2x8x128xf32, #tpu.memory_space<vmem>>, vector<1x8x128xf32>
    %230 = vector.shape_cast %229 : vector<1x8x128xf32> to vector<8x128xf32>
    %c1_130 = arith.constant 1 : index
    %c0_131 = arith.constant 0 : index
    %c0_132 = arith.constant 0 : index
    %231 = vector.load %arg12[%c1_130, %c0_131, %c0_132] : memref<2x8x128xf32, #tpu.memory_space<vmem>>, vector<1x8x128xf32>
    %232 = vector.shape_cast %231 : vector<1x8x128xf32> to vector<8x128xf32>
    %c1_133 = arith.constant 1 : index
    %c0_134 = arith.constant 0 : index
    %c0_135 = arith.constant 0 : index
    %233 = vector.load %arg6[%c1_133, %c0_134, %c0_135] : memref<2x128x512xf32, #tpu.memory_space<vmem>>, vector<1x128x512xf32>
    %234 = vector.shape_cast %233 : vector<1x128x512xf32> to vector<128x512xf32>
    %cst_136 = arith.constant dense<0.000000e+00> : vector<8x512xf32>
    %235 = tpu.matmul %230, %234, %cst_136 {dimension_numbers = #tpu.dot_dimension_numbers<[1], [0], [0], [1], [0, 0, 1, 1], [], []>} : vector<8x128xf32>, vector<128x512xf32>, vector<8x512xf32> -> vector<8x512xf32>
    %236 = arith.addf %228, %235 : vector<8x512xf32>
    %237 = vector.extract_strided_slice %236 {offsets = [0, 0], sizes = [8, 128], strides = [1, 1]} : vector<8x512xf32> to vector<8x128xf32>
    %238 = arith.negf %237 : vector<8x128xf32>
    %239 = math.exp %238 : vector<8x128xf32>
    %cst_137 = arith.constant 1.000000e+00 : f32
    %240 = vector.broadcast %cst_137 : f32 to vector<8x128xf32>
    %241 = arith.addf %240, %239 : vector<8x128xf32>
    %242 = arith.divf %240, %241 : vector<8x128xf32>
    %243 = vector.extract_strided_slice %236 {offsets = [0, 128], sizes = [8, 128], strides = [1, 1]} : vector<8x512xf32> to vector<8x128xf32>
    %244 = arith.negf %243 : vector<8x128xf32>
    %245 = math.exp %244 : vector<8x128xf32>
    %cst_138 = arith.constant 1.000000e+00 : f32
    %246 = vector.broadcast %cst_138 : f32 to vector<8x128xf32>
    %247 = arith.addf %246, %245 : vector<8x128xf32>
    %248 = arith.divf %246, %247 : vector<8x128xf32>
    %249 = vector.extract_strided_slice %236 {offsets = [0, 256], sizes = [8, 128], strides = [1, 1]} : vector<8x512xf32> to vector<8x128xf32>
    %250 = math.tanh %249 : vector<8x128xf32>
    %251 = vector.extract_strided_slice %236 {offsets = [0, 384], sizes = [8, 128], strides = [1, 1]} : vector<8x512xf32> to vector<8x128xf32>
    %252 = arith.negf %251 : vector<8x128xf32>
    %253 = math.exp %252 : vector<8x128xf32>
    %cst_139 = arith.constant 1.000000e+00 : f32
    %254 = vector.broadcast %cst_139 : f32 to vector<8x128xf32>
    %255 = arith.addf %254, %253 : vector<8x128xf32>
    %256 = arith.divf %254, %255 : vector<8x128xf32>
    %257 = arith.mulf %248, %232 : vector<8x128xf32>
    %258 = arith.mulf %242, %250 : vector<8x128xf32>
    %259 = arith.addf %257, %258 : vector<8x128xf32>
    %260 = math.tanh %259 : vector<8x128xf32>
    %261 = arith.mulf %256, %260 : vector<8x128xf32>
    %c1_140 = arith.constant 1 : index
    %c0_141 = arith.constant 0 : index
    %c0_142 = arith.constant 0 : index
    %262 = vector.load %arg11[%c1_140, %c0_141, %c0_142] : memref<2x8x128xf32, #tpu.memory_space<vmem>>, vector<1x8x128xf32>
    %263 = vector.shape_cast %262 : vector<1x8x128xf32> to vector<8x128xf32>
    %264 = vector.shape_cast %261 : vector<8x128xf32> to vector<1x8x128xf32>
    tpu.vector_store %arg11[%c1_140, %c0_141, %c0_142], %264 {strides = array<i32>} : memref<2x8x128xf32, #tpu.memory_space<vmem>>, vector<1x8x128xf32>,
    %c1_143 = arith.constant 1 : index
    %c0_144 = arith.constant 0 : index
    %c0_145 = arith.constant 0 : index
    %265 = vector.load %arg12[%c1_143, %c0_144, %c0_145] : memref<2x8x128xf32, #tpu.memory_space<vmem>>, vector<1x8x128xf32>
    %266 = vector.shape_cast %265 : vector<1x8x128xf32> to vector<8x128xf32>
    %267 = vector.shape_cast %259 : vector<8x128xf32> to vector<1x8x128xf32>
    tpu.vector_store %arg12[%c1_143, %c0_144, %c0_145], %267 {strides = array<i32>} : memref<2x8x128xf32, #tpu.memory_space<vmem>>, vector<1x8x128xf32>,
    %c24 = arith.constant 24 : index
    %c0_146 = arith.constant 0 : index
    %268 = vector.load %arg10[%c24, %c0_146] : memref<64x512xf32, #tpu.memory_space<vmem>>, vector<8x512xf32>
    %c0_147 = arith.constant 0 : index
    %c0_148 = arith.constant 0 : index
    %c0_149 = arith.constant 0 : index
    %269 = vector.load %arg11[%c0_147, %c0_148, %c0_149] : memref<2x8x128xf32, #tpu.memory_space<vmem>>, vector<1x8x128xf32>
    %270 = vector.shape_cast %269 : vector<1x8x128xf32> to vector<8x128xf32>
    %c0_150 = arith.constant 0 : index
    %c0_151 = arith.constant 0 : index
    %c0_152 = arith.constant 0 : index
    %271 = vector.load %arg12[%c0_150, %c0_151, %c0_152] : memref<2x8x128xf32, #tpu.memory_space<vmem>>, vector<1x8x128xf32>
    %272 = vector.shape_cast %271 : vector<1x8x128xf32> to vector<8x128xf32>
    %c0_153 = arith.constant 0 : index
    %c0_154 = arith.constant 0 : index
    %c0_155 = arith.constant 0 : index
    %273 = vector.load %arg6[%c0_153, %c0_154, %c0_155] : memref<2x128x512xf32, #tpu.memory_space<vmem>>, vector<1x128x512xf32>
    %274 = vector.shape_cast %273 : vector<1x128x512xf32> to vector<128x512xf32>
    %cst_156 = arith.constant dense<0.000000e+00> : vector<8x512xf32>
    %275 = tpu.matmul %270, %274, %cst_156 {dimension_numbers = #tpu.dot_dimension_numbers<[1], [0], [0], [1], [0, 0, 1, 1], [], []>} : vector<8x128xf32>, vector<128x512xf32>, vector<8x512xf32> -> vector<8x512xf32>
    %276 = arith.addf %268, %275 : vector<8x512xf32>
    %277 = vector.extract_strided_slice %276 {offsets = [0, 0], sizes = [8, 128], strides = [1, 1]} : vector<8x512xf32> to vector<8x128xf32>
    %278 = arith.negf %277 : vector<8x128xf32>
    %279 = math.exp %278 : vector<8x128xf32>
    %cst_157 = arith.constant 1.000000e+00 : f32
    %280 = vector.broadcast %cst_157 : f32 to vector<8x128xf32>
    %281 = arith.addf %280, %279 : vector<8x128xf32>
    %282 = arith.divf %280, %281 : vector<8x128xf32>
    %283 = vector.extract_strided_slice %276 {offsets = [0, 128], sizes = [8, 128], strides = [1, 1]} : vector<8x512xf32> to vector<8x128xf32>
    %284 = arith.negf %283 : vector<8x128xf32>
    %285 = math.exp %284 : vector<8x128xf32>
    %cst_158 = arith.constant 1.000000e+00 : f32
    %286 = vector.broadcast %cst_158 : f32 to vector<8x128xf32>
    %287 = arith.addf %286, %285 : vector<8x128xf32>
    %288 = arith.divf %286, %287 : vector<8x128xf32>
    %289 = vector.extract_strided_slice %276 {offsets = [0, 256], sizes = [8, 128], strides = [1, 1]} : vector<8x512xf32> to vector<8x128xf32>
    %290 = math.tanh %289 : vector<8x128xf32>
    %291 = vector.extract_strided_slice %276 {offsets = [0, 384], sizes = [8, 128], strides = [1, 1]} : vector<8x512xf32> to vector<8x128xf32>
    %292 = arith.negf %291 : vector<8x128xf32>
    %293 = math.exp %292 : vector<8x128xf32>
    %cst_159 = arith.constant 1.000000e+00 : f32
    %294 = vector.broadcast %cst_159 : f32 to vector<8x128xf32>
    %295 = arith.addf %294, %293 : vector<8x128xf32>
    %296 = arith.divf %294, %295 : vector<8x128xf32>
    %297 = arith.mulf %288, %272 : vector<8x128xf32>
    %298 = arith.mulf %282, %290 : vector<8x128xf32>
    %299 = arith.addf %297, %298 : vector<8x128xf32>
    %300 = math.tanh %299 : vector<8x128xf32>
    %301 = arith.mulf %296, %300 : vector<8x128xf32>
    %c0_160 = arith.constant 0 : index
    %c0_161 = arith.constant 0 : index
    %c0_162 = arith.constant 0 : index
    %302 = vector.load %arg11[%c0_160, %c0_161, %c0_162] : memref<2x8x128xf32, #tpu.memory_space<vmem>>, vector<1x8x128xf32>
    %303 = vector.shape_cast %302 : vector<1x8x128xf32> to vector<8x128xf32>
    %304 = vector.shape_cast %301 : vector<8x128xf32> to vector<1x8x128xf32>
    tpu.vector_store %arg11[%c0_160, %c0_161, %c0_162], %304 {strides = array<i32>} : memref<2x8x128xf32, #tpu.memory_space<vmem>>, vector<1x8x128xf32>,
    %c0_163 = arith.constant 0 : index
    %c0_164 = arith.constant 0 : index
    %c0_165 = arith.constant 0 : index
    %305 = vector.load %arg12[%c0_163, %c0_164, %c0_165] : memref<2x8x128xf32, #tpu.memory_space<vmem>>, vector<1x8x128xf32>
    %306 = vector.shape_cast %305 : vector<1x8x128xf32> to vector<8x128xf32>
    %307 = vector.shape_cast %299 : vector<8x128xf32> to vector<1x8x128xf32>
    tpu.vector_store %arg12[%c0_163, %c0_164, %c0_165], %307 {strides = array<i32>} : memref<2x8x128xf32, #tpu.memory_space<vmem>>, vector<1x8x128xf32>,
    %c0_166 = arith.constant 0 : index
    %c0_167 = arith.constant 0 : index
    %c0_168 = arith.constant 0 : index
    %308 = vector.load %arg4[%c0_166, %c0_167, %c0_168] : memref<1x128x512xf32, #tpu.memory_space<vmem>>, vector<1x128x512xf32>
    %309 = vector.shape_cast %308 : vector<1x128x512xf32> to vector<128x512xf32>
    %cst_169 = arith.constant dense<0.000000e+00> : vector<8x512xf32>
    %310 = tpu.matmul %301, %309, %cst_169 {dimension_numbers = #tpu.dot_dimension_numbers<[1], [0], [0], [1], [0, 0, 1, 1], [], []>} : vector<8x128xf32>, vector<128x512xf32>, vector<8x512xf32> -> vector<8x512xf32>
    %c0_170 = arith.constant 0 : index
    %c0_171 = arith.constant 0 : index
    %c0_172 = arith.constant 0 : index
    %311 = vector.load %arg5[%c0_170, %c0_171, %c0_172] : memref<1x1x512xf32, #tpu.memory_space<vmem>>, vector<1x1x512xf32>
    %312 = vector.shape_cast %311 : vector<1x1x512xf32> to vector<1x512xf32>
    %313 = vector.broadcast %312 : vector<1x512xf32> to vector<8x512xf32>
    %314 = arith.addf %310, %313 : vector<8x512xf32>
    %c1_173 = arith.constant 1 : index
    %c0_174 = arith.constant 0 : index
    %c0_175 = arith.constant 0 : index
    %315 = vector.load %arg11[%c1_173, %c0_174, %c0_175] : memref<2x8x128xf32, #tpu.memory_space<vmem>>, vector<1x8x128xf32>
    %316 = vector.shape_cast %315 : vector<1x8x128xf32> to vector<8x128xf32>
    %c1_176 = arith.constant 1 : index
    %c0_177 = arith.constant 0 : index
    %c0_178 = arith.constant 0 : index
    %317 = vector.load %arg12[%c1_176, %c0_177, %c0_178] : memref<2x8x128xf32, #tpu.memory_space<vmem>>, vector<1x8x128xf32>
    %318 = vector.shape_cast %317 : vector<1x8x128xf32> to vector<8x128xf32>
    %c1_179 = arith.constant 1 : index
    %c0_180 = arith.constant 0 : index
    %c0_181 = arith.constant 0 : index
    %319 = vector.load %arg6[%c1_179, %c0_180, %c0_181] : memref<2x128x512xf32, #tpu.memory_space<vmem>>, vector<1x128x512xf32>
    %320 = vector.shape_cast %319 : vector<1x128x512xf32> to vector<128x512xf32>
    %cst_182 = arith.constant dense<0.000000e+00> : vector<8x512xf32>
    %321 = tpu.matmul %316, %320, %cst_182 {dimension_numbers = #tpu.dot_dimension_numbers<[1], [0], [0], [1], [0, 0, 1, 1], [], []>} : vector<8x128xf32>, vector<128x512xf32>, vector<8x512xf32> -> vector<8x512xf32>
    %322 = arith.addf %314, %321 : vector<8x512xf32>
    %323 = vector.extract_strided_slice %322 {offsets = [0, 0], sizes = [8, 128], strides = [1, 1]} : vector<8x512xf32> to vector<8x128xf32>
    %324 = arith.negf %323 : vector<8x128xf32>
    %325 = math.exp %324 : vector<8x128xf32>
    %cst_183 = arith.constant 1.000000e+00 : f32
    %326 = vector.broadcast %cst_183 : f32 to vector<8x128xf32>
    %327 = arith.addf %326, %325 : vector<8x128xf32>
    %328 = arith.divf %326, %327 : vector<8x128xf32>
    %329 = vector.extract_strided_slice %322 {offsets = [0, 128], sizes = [8, 128], strides = [1, 1]} : vector<8x512xf32> to vector<8x128xf32>
    %330 = arith.negf %329 : vector<8x128xf32>
    %331 = math.exp %330 : vector<8x128xf32>
    %cst_184 = arith.constant 1.000000e+00 : f32
    %332 = vector.broadcast %cst_184 : f32 to vector<8x128xf32>
    %333 = arith.addf %332, %331 : vector<8x128xf32>
    %334 = arith.divf %332, %333 : vector<8x128xf32>
    %335 = vector.extract_strided_slice %322 {offsets = [0, 256], sizes = [8, 128], strides = [1, 1]} : vector<8x512xf32> to vector<8x128xf32>
    %336 = math.tanh %335 : vector<8x128xf32>
    %337 = vector.extract_strided_slice %322 {offsets = [0, 384], sizes = [8, 128], strides = [1, 1]} : vector<8x512xf32> to vector<8x128xf32>
    %338 = arith.negf %337 : vector<8x128xf32>
    %339 = math.exp %338 : vector<8x128xf32>
    %cst_185 = arith.constant 1.000000e+00 : f32
    %340 = vector.broadcast %cst_185 : f32 to vector<8x128xf32>
    %341 = arith.addf %340, %339 : vector<8x128xf32>
    %342 = arith.divf %340, %341 : vector<8x128xf32>
    %343 = arith.mulf %334, %318 : vector<8x128xf32>
    %344 = arith.mulf %328, %336 : vector<8x128xf32>
    %345 = arith.addf %343, %344 : vector<8x128xf32>
    %346 = math.tanh %345 : vector<8x128xf32>
    %347 = arith.mulf %342, %346 : vector<8x128xf32>
    %c1_186 = arith.constant 1 : index
    %c0_187 = arith.constant 0 : index
    %c0_188 = arith.constant 0 : index
    %348 = vector.load %arg11[%c1_186, %c0_187, %c0_188] : memref<2x8x128xf32, #tpu.memory_space<vmem>>, vector<1x8x128xf32>
    %349 = vector.shape_cast %348 : vector<1x8x128xf32> to vector<8x128xf32>
    %350 = vector.shape_cast %347 : vector<8x128xf32> to vector<1x8x128xf32>
    tpu.vector_store %arg11[%c1_186, %c0_187, %c0_188], %350 {strides = array<i32>} : memref<2x8x128xf32, #tpu.memory_space<vmem>>, vector<1x8x128xf32>,
    %c1_189 = arith.constant 1 : index
    %c0_190 = arith.constant 0 : index
    %c0_191 = arith.constant 0 : index
    %351 = vector.load %arg12[%c1_189, %c0_190, %c0_191] : memref<2x8x128xf32, #tpu.memory_space<vmem>>, vector<1x8x128xf32>
    %352 = vector.shape_cast %351 : vector<1x8x128xf32> to vector<8x128xf32>
    %353 = vector.shape_cast %345 : vector<8x128xf32> to vector<1x8x128xf32>
    tpu.vector_store %arg12[%c1_189, %c0_190, %c0_191], %353 {strides = array<i32>} : memref<2x8x128xf32, #tpu.memory_space<vmem>>, vector<1x8x128xf32>,
    %c32 = arith.constant 32 : index
    %c0_192 = arith.constant 0 : index
    %354 = vector.load %arg10[%c32, %c0_192] : memref<64x512xf32, #tpu.memory_space<vmem>>, vector<8x512xf32>
    %c0_193 = arith.constant 0 : index
    %c0_194 = arith.constant 0 : index
    %c0_195 = arith.constant 0 : index
    %355 = vector.load %arg11[%c0_193, %c0_194, %c0_195] : memref<2x8x128xf32, #tpu.memory_space<vmem>>, vector<1x8x128xf32>
    %356 = vector.shape_cast %355 : vector<1x8x128xf32> to vector<8x128xf32>
    %c0_196 = arith.constant 0 : index
    %c0_197 = arith.constant 0 : index
    %c0_198 = arith.constant 0 : index
    %357 = vector.load %arg12[%c0_196, %c0_197, %c0_198] : memref<2x8x128xf32, #tpu.memory_space<vmem>>, vector<1x8x128xf32>
    %358 = vector.shape_cast %357 : vector<1x8x128xf32> to vector<8x128xf32>
    %c0_199 = arith.constant 0 : index
    %c0_200 = arith.constant 0 : index
    %c0_201 = arith.constant 0 : index
    %359 = vector.load %arg6[%c0_199, %c0_200, %c0_201] : memref<2x128x512xf32, #tpu.memory_space<vmem>>, vector<1x128x512xf32>
    %360 = vector.shape_cast %359 : vector<1x128x512xf32> to vector<128x512xf32>
    %cst_202 = arith.constant dense<0.000000e+00> : vector<8x512xf32>
    %361 = tpu.matmul %356, %360, %cst_202 {dimension_numbers = #tpu.dot_dimension_numbers<[1], [0], [0], [1], [0, 0, 1, 1], [], []>} : vector<8x128xf32>, vector<128x512xf32>, vector<8x512xf32> -> vector<8x512xf32>
    %362 = arith.addf %354, %361 : vector<8x512xf32>
    %363 = vector.extract_strided_slice %362 {offsets = [0, 0], sizes = [8, 128], strides = [1, 1]} : vector<8x512xf32> to vector<8x128xf32>
    %364 = arith.negf %363 : vector<8x128xf32>
    %365 = math.exp %364 : vector<8x128xf32>
    %cst_203 = arith.constant 1.000000e+00 : f32
    %366 = vector.broadcast %cst_203 : f32 to vector<8x128xf32>
    %367 = arith.addf %366, %365 : vector<8x128xf32>
    %368 = arith.divf %366, %367 : vector<8x128xf32>
    %369 = vector.extract_strided_slice %362 {offsets = [0, 128], sizes = [8, 128], strides = [1, 1]} : vector<8x512xf32> to vector<8x128xf32>
    %370 = arith.negf %369 : vector<8x128xf32>
    %371 = math.exp %370 : vector<8x128xf32>
    %cst_204 = arith.constant 1.000000e+00 : f32
    %372 = vector.broadcast %cst_204 : f32 to vector<8x128xf32>
    %373 = arith.addf %372, %371 : vector<8x128xf32>
    %374 = arith.divf %372, %373 : vector<8x128xf32>
    %375 = vector.extract_strided_slice %362 {offsets = [0, 256], sizes = [8, 128], strides = [1, 1]} : vector<8x512xf32> to vector<8x128xf32>
    %376 = math.tanh %375 : vector<8x128xf32>
    %377 = vector.extract_strided_slice %362 {offsets = [0, 384], sizes = [8, 128], strides = [1, 1]} : vector<8x512xf32> to vector<8x128xf32>
    %378 = arith.negf %377 : vector<8x128xf32>
    %379 = math.exp %378 : vector<8x128xf32>
    %cst_205 = arith.constant 1.000000e+00 : f32
    %380 = vector.broadcast %cst_205 : f32 to vector<8x128xf32>
    %381 = arith.addf %380, %379 : vector<8x128xf32>
    %382 = arith.divf %380, %381 : vector<8x128xf32>
    %383 = arith.mulf %374, %358 : vector<8x128xf32>
    %384 = arith.mulf %368, %376 : vector<8x128xf32>
    %385 = arith.addf %383, %384 : vector<8x128xf32>
    %386 = math.tanh %385 : vector<8x128xf32>
    %387 = arith.mulf %382, %386 : vector<8x128xf32>
    %c0_206 = arith.constant 0 : index
    %c0_207 = arith.constant 0 : index
    %c0_208 = arith.constant 0 : index
    %388 = vector.load %arg11[%c0_206, %c0_207, %c0_208] : memref<2x8x128xf32, #tpu.memory_space<vmem>>, vector<1x8x128xf32>
    %389 = vector.shape_cast %388 : vector<1x8x128xf32> to vector<8x128xf32>
    %390 = vector.shape_cast %387 : vector<8x128xf32> to vector<1x8x128xf32>
    tpu.vector_store %arg11[%c0_206, %c0_207, %c0_208], %390 {strides = array<i32>} : memref<2x8x128xf32, #tpu.memory_space<vmem>>, vector<1x8x128xf32>,
    %c0_209 = arith.constant 0 : index
    %c0_210 = arith.constant 0 : index
    %c0_211 = arith.constant 0 : index
    %391 = vector.load %arg12[%c0_209, %c0_210, %c0_211] : memref<2x8x128xf32, #tpu.memory_space<vmem>>, vector<1x8x128xf32>
    %392 = vector.shape_cast %391 : vector<1x8x128xf32> to vector<8x128xf32>
    %393 = vector.shape_cast %385 : vector<8x128xf32> to vector<1x8x128xf32>
    tpu.vector_store %arg12[%c0_209, %c0_210, %c0_211], %393 {strides = array<i32>} : memref<2x8x128xf32, #tpu.memory_space<vmem>>, vector<1x8x128xf32>,
    %c0_212 = arith.constant 0 : index
    %c0_213 = arith.constant 0 : index
    %c0_214 = arith.constant 0 : index
    %394 = vector.load %arg4[%c0_212, %c0_213, %c0_214] : memref<1x128x512xf32, #tpu.memory_space<vmem>>, vector<1x128x512xf32>
    %395 = vector.shape_cast %394 : vector<1x128x512xf32> to vector<128x512xf32>
    %cst_215 = arith.constant dense<0.000000e+00> : vector<8x512xf32>
    %396 = tpu.matmul %387, %395, %cst_215 {dimension_numbers = #tpu.dot_dimension_numbers<[1], [0], [0], [1], [0, 0, 1, 1], [], []>} : vector<8x128xf32>, vector<128x512xf32>, vector<8x512xf32> -> vector<8x512xf32>
    %c0_216 = arith.constant 0 : index
    %c0_217 = arith.constant 0 : index
    %c0_218 = arith.constant 0 : index
    %397 = vector.load %arg5[%c0_216, %c0_217, %c0_218] : memref<1x1x512xf32, #tpu.memory_space<vmem>>, vector<1x1x512xf32>
    %398 = vector.shape_cast %397 : vector<1x1x512xf32> to vector<1x512xf32>
    %399 = vector.broadcast %398 : vector<1x512xf32> to vector<8x512xf32>
    %400 = arith.addf %396, %399 : vector<8x512xf32>
    %c1_219 = arith.constant 1 : index
    %c0_220 = arith.constant 0 : index
    %c0_221 = arith.constant 0 : index
    %401 = vector.load %arg11[%c1_219, %c0_220, %c0_221] : memref<2x8x128xf32, #tpu.memory_space<vmem>>, vector<1x8x128xf32>
    %402 = vector.shape_cast %401 : vector<1x8x128xf32> to vector<8x128xf32>
    %c1_222 = arith.constant 1 : index
    %c0_223 = arith.constant 0 : index
    %c0_224 = arith.constant 0 : index
    %403 = vector.load %arg12[%c1_222, %c0_223, %c0_224] : memref<2x8x128xf32, #tpu.memory_space<vmem>>, vector<1x8x128xf32>
    %404 = vector.shape_cast %403 : vector<1x8x128xf32> to vector<8x128xf32>
    %c1_225 = arith.constant 1 : index
    %c0_226 = arith.constant 0 : index
    %c0_227 = arith.constant 0 : index
    %405 = vector.load %arg6[%c1_225, %c0_226, %c0_227] : memref<2x128x512xf32, #tpu.memory_space<vmem>>, vector<1x128x512xf32>
    %406 = vector.shape_cast %405 : vector<1x128x512xf32> to vector<128x512xf32>
    %cst_228 = arith.constant dense<0.000000e+00> : vector<8x512xf32>
    %407 = tpu.matmul %402, %406, %cst_228 {dimension_numbers = #tpu.dot_dimension_numbers<[1], [0], [0], [1], [0, 0, 1, 1], [], []>} : vector<8x128xf32>, vector<128x512xf32>, vector<8x512xf32> -> vector<8x512xf32>
    %408 = arith.addf %400, %407 : vector<8x512xf32>
    %409 = vector.extract_strided_slice %408 {offsets = [0, 0], sizes = [8, 128], strides = [1, 1]} : vector<8x512xf32> to vector<8x128xf32>
    %410 = arith.negf %409 : vector<8x128xf32>
    %411 = math.exp %410 : vector<8x128xf32>
    %cst_229 = arith.constant 1.000000e+00 : f32
    %412 = vector.broadcast %cst_229 : f32 to vector<8x128xf32>
    %413 = arith.addf %412, %411 : vector<8x128xf32>
    %414 = arith.divf %412, %413 : vector<8x128xf32>
    %415 = vector.extract_strided_slice %408 {offsets = [0, 128], sizes = [8, 128], strides = [1, 1]} : vector<8x512xf32> to vector<8x128xf32>
    %416 = arith.negf %415 : vector<8x128xf32>
    %417 = math.exp %416 : vector<8x128xf32>
    %cst_230 = arith.constant 1.000000e+00 : f32
    %418 = vector.broadcast %cst_230 : f32 to vector<8x128xf32>
    %419 = arith.addf %418, %417 : vector<8x128xf32>
    %420 = arith.divf %418, %419 : vector<8x128xf32>
    %421 = vector.extract_strided_slice %408 {offsets = [0, 256], sizes = [8, 128], strides = [1, 1]} : vector<8x512xf32> to vector<8x128xf32>
    %422 = math.tanh %421 : vector<8x128xf32>
    %423 = vector.extract_strided_slice %408 {offsets = [0, 384], sizes = [8, 128], strides = [1, 1]} : vector<8x512xf32> to vector<8x128xf32>
    %424 = arith.negf %423 : vector<8x128xf32>
    %425 = math.exp %424 : vector<8x128xf32>
    %cst_231 = arith.constant 1.000000e+00 : f32
    %426 = vector.broadcast %cst_231 : f32 to vector<8x128xf32>
    %427 = arith.addf %426, %425 : vector<8x128xf32>
    %428 = arith.divf %426, %427 : vector<8x128xf32>
    %429 = arith.mulf %420, %404 : vector<8x128xf32>
    %430 = arith.mulf %414, %422 : vector<8x128xf32>
    %431 = arith.addf %429, %430 : vector<8x128xf32>
    %432 = math.tanh %431 : vector<8x128xf32>
    %433 = arith.mulf %428, %432 : vector<8x128xf32>
    %c1_232 = arith.constant 1 : index
    %c0_233 = arith.constant 0 : index
    %c0_234 = arith.constant 0 : index
    %434 = vector.load %arg11[%c1_232, %c0_233, %c0_234] : memref<2x8x128xf32, #tpu.memory_space<vmem>>, vector<1x8x128xf32>
    %435 = vector.shape_cast %434 : vector<1x8x128xf32> to vector<8x128xf32>
    %436 = vector.shape_cast %433 : vector<8x128xf32> to vector<1x8x128xf32>
    tpu.vector_store %arg11[%c1_232, %c0_233, %c0_234], %436 {strides = array<i32>} : memref<2x8x128xf32, #tpu.memory_space<vmem>>, vector<1x8x128xf32>,
    %c1_235 = arith.constant 1 : index
    %c0_236 = arith.constant 0 : index
    %c0_237 = arith.constant 0 : index
    %437 = vector.load %arg12[%c1_235, %c0_236, %c0_237] : memref<2x8x128xf32, #tpu.memory_space<vmem>>, vector<1x8x128xf32>
    %438 = vector.shape_cast %437 : vector<1x8x128xf32> to vector<8x128xf32>
    %439 = vector.shape_cast %431 : vector<8x128xf32> to vector<1x8x128xf32>
    tpu.vector_store %arg12[%c1_235, %c0_236, %c0_237], %439 {strides = array<i32>} : memref<2x8x128xf32, #tpu.memory_space<vmem>>, vector<1x8x128xf32>,
    %c40 = arith.constant 40 : index
    %c0_238 = arith.constant 0 : index
    %440 = vector.load %arg10[%c40, %c0_238] : memref<64x512xf32, #tpu.memory_space<vmem>>, vector<8x512xf32>
    %c0_239 = arith.constant 0 : index
    %c0_240 = arith.constant 0 : index
    %c0_241 = arith.constant 0 : index
    %441 = vector.load %arg11[%c0_239, %c0_240, %c0_241] : memref<2x8x128xf32, #tpu.memory_space<vmem>>, vector<1x8x128xf32>
    %442 = vector.shape_cast %441 : vector<1x8x128xf32> to vector<8x128xf32>
    %c0_242 = arith.constant 0 : index
    %c0_243 = arith.constant 0 : index
    %c0_244 = arith.constant 0 : index
    %443 = vector.load %arg12[%c0_242, %c0_243, %c0_244] : memref<2x8x128xf32, #tpu.memory_space<vmem>>, vector<1x8x128xf32>
    %444 = vector.shape_cast %443 : vector<1x8x128xf32> to vector<8x128xf32>
    %c0_245 = arith.constant 0 : index
    %c0_246 = arith.constant 0 : index
    %c0_247 = arith.constant 0 : index
    %445 = vector.load %arg6[%c0_245, %c0_246, %c0_247] : memref<2x128x512xf32, #tpu.memory_space<vmem>>, vector<1x128x512xf32>
    %446 = vector.shape_cast %445 : vector<1x128x512xf32> to vector<128x512xf32>
    %cst_248 = arith.constant dense<0.000000e+00> : vector<8x512xf32>
    %447 = tpu.matmul %442, %446, %cst_248 {dimension_numbers = #tpu.dot_dimension_numbers<[1], [0], [0], [1], [0, 0, 1, 1], [], []>} : vector<8x128xf32>, vector<128x512xf32>, vector<8x512xf32> -> vector<8x512xf32>
    %448 = arith.addf %440, %447 : vector<8x512xf32>
    %449 = vector.extract_strided_slice %448 {offsets = [0, 0], sizes = [8, 128], strides = [1, 1]} : vector<8x512xf32> to vector<8x128xf32>
    %450 = arith.negf %449 : vector<8x128xf32>
    %451 = math.exp %450 : vector<8x128xf32>
    %cst_249 = arith.constant 1.000000e+00 : f32
    %452 = vector.broadcast %cst_249 : f32 to vector<8x128xf32>
    %453 = arith.addf %452, %451 : vector<8x128xf32>
    %454 = arith.divf %452, %453 : vector<8x128xf32>
    %455 = vector.extract_strided_slice %448 {offsets = [0, 128], sizes = [8, 128], strides = [1, 1]} : vector<8x512xf32> to vector<8x128xf32>
    %456 = arith.negf %455 : vector<8x128xf32>
    %457 = math.exp %456 : vector<8x128xf32>
    %cst_250 = arith.constant 1.000000e+00 : f32
    %458 = vector.broadcast %cst_250 : f32 to vector<8x128xf32>
    %459 = arith.addf %458, %457 : vector<8x128xf32>
    %460 = arith.divf %458, %459 : vector<8x128xf32>
    %461 = vector.extract_strided_slice %448 {offsets = [0, 256], sizes = [8, 128], strides = [1, 1]} : vector<8x512xf32> to vector<8x128xf32>
    %462 = math.tanh %461 : vector<8x128xf32>
    %463 = vector.extract_strided_slice %448 {offsets = [0, 384], sizes = [8, 128], strides = [1, 1]} : vector<8x512xf32> to vector<8x128xf32>
    %464 = arith.negf %463 : vector<8x128xf32>
    %465 = math.exp %464 : vector<8x128xf32>
    %cst_251 = arith.constant 1.000000e+00 : f32
    %466 = vector.broadcast %cst_251 : f32 to vector<8x128xf32>
    %467 = arith.addf %466, %465 : vector<8x128xf32>
    %468 = arith.divf %466, %467 : vector<8x128xf32>
    %469 = arith.mulf %460, %444 : vector<8x128xf32>
    %470 = arith.mulf %454, %462 : vector<8x128xf32>
    %471 = arith.addf %469, %470 : vector<8x128xf32>
    %472 = math.tanh %471 : vector<8x128xf32>
    %473 = arith.mulf %468, %472 : vector<8x128xf32>
    %c0_252 = arith.constant 0 : index
    %c0_253 = arith.constant 0 : index
    %c0_254 = arith.constant 0 : index
    %474 = vector.load %arg11[%c0_252, %c0_253, %c0_254] : memref<2x8x128xf32, #tpu.memory_space<vmem>>, vector<1x8x128xf32>
    %475 = vector.shape_cast %474 : vector<1x8x128xf32> to vector<8x128xf32>
    %476 = vector.shape_cast %473 : vector<8x128xf32> to vector<1x8x128xf32>
    tpu.vector_store %arg11[%c0_252, %c0_253, %c0_254], %476 {strides = array<i32>} : memref<2x8x128xf32, #tpu.memory_space<vmem>>, vector<1x8x128xf32>,
    %c0_255 = arith.constant 0 : index
    %c0_256 = arith.constant 0 : index
    %c0_257 = arith.constant 0 : index
    %477 = vector.load %arg12[%c0_255, %c0_256, %c0_257] : memref<2x8x128xf32, #tpu.memory_space<vmem>>, vector<1x8x128xf32>
    %478 = vector.shape_cast %477 : vector<1x8x128xf32> to vector<8x128xf32>
    %479 = vector.shape_cast %471 : vector<8x128xf32> to vector<1x8x128xf32>
    tpu.vector_store %arg12[%c0_255, %c0_256, %c0_257], %479 {strides = array<i32>} : memref<2x8x128xf32, #tpu.memory_space<vmem>>, vector<1x8x128xf32>,
    %c0_258 = arith.constant 0 : index
    %c0_259 = arith.constant 0 : index
    %c0_260 = arith.constant 0 : index
    %480 = vector.load %arg4[%c0_258, %c0_259, %c0_260] : memref<1x128x512xf32, #tpu.memory_space<vmem>>, vector<1x128x512xf32>
    %481 = vector.shape_cast %480 : vector<1x128x512xf32> to vector<128x512xf32>
    %cst_261 = arith.constant dense<0.000000e+00> : vector<8x512xf32>
    %482 = tpu.matmul %473, %481, %cst_261 {dimension_numbers = #tpu.dot_dimension_numbers<[1], [0], [0], [1], [0, 0, 1, 1], [], []>} : vector<8x128xf32>, vector<128x512xf32>, vector<8x512xf32> -> vector<8x512xf32>
    %c0_262 = arith.constant 0 : index
    %c0_263 = arith.constant 0 : index
    %c0_264 = arith.constant 0 : index
    %483 = vector.load %arg5[%c0_262, %c0_263, %c0_264] : memref<1x1x512xf32, #tpu.memory_space<vmem>>, vector<1x1x512xf32>
    %484 = vector.shape_cast %483 : vector<1x1x512xf32> to vector<1x512xf32>
    %485 = vector.broadcast %484 : vector<1x512xf32> to vector<8x512xf32>
    %486 = arith.addf %482, %485 : vector<8x512xf32>
    %c1_265 = arith.constant 1 : index
    %c0_266 = arith.constant 0 : index
    %c0_267 = arith.constant 0 : index
    %487 = vector.load %arg11[%c1_265, %c0_266, %c0_267] : memref<2x8x128xf32, #tpu.memory_space<vmem>>, vector<1x8x128xf32>
    %488 = vector.shape_cast %487 : vector<1x8x128xf32> to vector<8x128xf32>
    %c1_268 = arith.constant 1 : index
    %c0_269 = arith.constant 0 : index
    %c0_270 = arith.constant 0 : index
    %489 = vector.load %arg12[%c1_268, %c0_269, %c0_270] : memref<2x8x128xf32, #tpu.memory_space<vmem>>, vector<1x8x128xf32>
    %490 = vector.shape_cast %489 : vector<1x8x128xf32> to vector<8x128xf32>
    %c1_271 = arith.constant 1 : index
    %c0_272 = arith.constant 0 : index
    %c0_273 = arith.constant 0 : index
    %491 = vector.load %arg6[%c1_271, %c0_272, %c0_273] : memref<2x128x512xf32, #tpu.memory_space<vmem>>, vector<1x128x512xf32>
    %492 = vector.shape_cast %491 : vector<1x128x512xf32> to vector<128x512xf32>
    %cst_274 = arith.constant dense<0.000000e+00> : vector<8x512xf32>
    %493 = tpu.matmul %488, %492, %cst_274 {dimension_numbers = #tpu.dot_dimension_numbers<[1], [0], [0], [1], [0, 0, 1, 1], [], []>} : vector<8x128xf32>, vector<128x512xf32>, vector<8x512xf32> -> vector<8x512xf32>
    %494 = arith.addf %486, %493 : vector<8x512xf32>
    %495 = vector.extract_strided_slice %494 {offsets = [0, 0], sizes = [8, 128], strides = [1, 1]} : vector<8x512xf32> to vector<8x128xf32>
    %496 = arith.negf %495 : vector<8x128xf32>
    %497 = math.exp %496 : vector<8x128xf32>
    %cst_275 = arith.constant 1.000000e+00 : f32
    %498 = vector.broadcast %cst_275 : f32 to vector<8x128xf32>
    %499 = arith.addf %498, %497 : vector<8x128xf32>
    %500 = arith.divf %498, %499 : vector<8x128xf32>
    %501 = vector.extract_strided_slice %494 {offsets = [0, 128], sizes = [8, 128], strides = [1, 1]} : vector<8x512xf32> to vector<8x128xf32>
    %502 = arith.negf %501 : vector<8x128xf32>
    %503 = math.exp %502 : vector<8x128xf32>
    %cst_276 = arith.constant 1.000000e+00 : f32
    %504 = vector.broadcast %cst_276 : f32 to vector<8x128xf32>
    %505 = arith.addf %504, %503 : vector<8x128xf32>
    %506 = arith.divf %504, %505 : vector<8x128xf32>
    %507 = vector.extract_strided_slice %494 {offsets = [0, 256], sizes = [8, 128], strides = [1, 1]} : vector<8x512xf32> to vector<8x128xf32>
    %508 = math.tanh %507 : vector<8x128xf32>
    %509 = vector.extract_strided_slice %494 {offsets = [0, 384], sizes = [8, 128], strides = [1, 1]} : vector<8x512xf32> to vector<8x128xf32>
    %510 = arith.negf %509 : vector<8x128xf32>
    %511 = math.exp %510 : vector<8x128xf32>
    %cst_277 = arith.constant 1.000000e+00 : f32
    %512 = vector.broadcast %cst_277 : f32 to vector<8x128xf32>
    %513 = arith.addf %512, %511 : vector<8x128xf32>
    %514 = arith.divf %512, %513 : vector<8x128xf32>
    %515 = arith.mulf %506, %490 : vector<8x128xf32>
    %516 = arith.mulf %500, %508 : vector<8x128xf32>
    %517 = arith.addf %515, %516 : vector<8x128xf32>
    %518 = math.tanh %517 : vector<8x128xf32>
    %519 = arith.mulf %514, %518 : vector<8x128xf32>
    %c1_278 = arith.constant 1 : index
    %c0_279 = arith.constant 0 : index
    %c0_280 = arith.constant 0 : index
    %520 = vector.load %arg11[%c1_278, %c0_279, %c0_280] : memref<2x8x128xf32, #tpu.memory_space<vmem>>, vector<1x8x128xf32>
    %521 = vector.shape_cast %520 : vector<1x8x128xf32> to vector<8x128xf32>
    %522 = vector.shape_cast %519 : vector<8x128xf32> to vector<1x8x128xf32>
    tpu.vector_store %arg11[%c1_278, %c0_279, %c0_280], %522 {strides = array<i32>} : memref<2x8x128xf32, #tpu.memory_space<vmem>>, vector<1x8x128xf32>,
    %c1_281 = arith.constant 1 : index
    %c0_282 = arith.constant 0 : index
    %c0_283 = arith.constant 0 : index
    %523 = vector.load %arg12[%c1_281, %c0_282, %c0_283] : memref<2x8x128xf32, #tpu.memory_space<vmem>>, vector<1x8x128xf32>
    %524 = vector.shape_cast %523 : vector<1x8x128xf32> to vector<8x128xf32>
    %525 = vector.shape_cast %517 : vector<8x128xf32> to vector<1x8x128xf32>
    tpu.vector_store %arg12[%c1_281, %c0_282, %c0_283], %525 {strides = array<i32>} : memref<2x8x128xf32, #tpu.memory_space<vmem>>, vector<1x8x128xf32>,
    %c48 = arith.constant 48 : index
    %c0_284 = arith.constant 0 : index
    %526 = vector.load %arg10[%c48, %c0_284] : memref<64x512xf32, #tpu.memory_space<vmem>>, vector<8x512xf32>
    %c0_285 = arith.constant 0 : index
    %c0_286 = arith.constant 0 : index
    %c0_287 = arith.constant 0 : index
    %527 = vector.load %arg11[%c0_285, %c0_286, %c0_287] : memref<2x8x128xf32, #tpu.memory_space<vmem>>, vector<1x8x128xf32>
    %528 = vector.shape_cast %527 : vector<1x8x128xf32> to vector<8x128xf32>
    %c0_288 = arith.constant 0 : index
    %c0_289 = arith.constant 0 : index
    %c0_290 = arith.constant 0 : index
    %529 = vector.load %arg12[%c0_288, %c0_289, %c0_290] : memref<2x8x128xf32, #tpu.memory_space<vmem>>, vector<1x8x128xf32>
    %530 = vector.shape_cast %529 : vector<1x8x128xf32> to vector<8x128xf32>
    %c0_291 = arith.constant 0 : index
    %c0_292 = arith.constant 0 : index
    %c0_293 = arith.constant 0 : index
    %531 = vector.load %arg6[%c0_291, %c0_292, %c0_293] : memref<2x128x512xf32, #tpu.memory_space<vmem>>, vector<1x128x512xf32>
    %532 = vector.shape_cast %531 : vector<1x128x512xf32> to vector<128x512xf32>
    %cst_294 = arith.constant dense<0.000000e+00> : vector<8x512xf32>
    %533 = tpu.matmul %528, %532, %cst_294 {dimension_numbers = #tpu.dot_dimension_numbers<[1], [0], [0], [1], [0, 0, 1, 1], [], []>} : vector<8x128xf32>, vector<128x512xf32>, vector<8x512xf32> -> vector<8x512xf32>
    %534 = arith.addf %526, %533 : vector<8x512xf32>
    %535 = vector.extract_strided_slice %534 {offsets = [0, 0], sizes = [8, 128], strides = [1, 1]} : vector<8x512xf32> to vector<8x128xf32>
    %536 = arith.negf %535 : vector<8x128xf32>
    %537 = math.exp %536 : vector<8x128xf32>
    %cst_295 = arith.constant 1.000000e+00 : f32
    %538 = vector.broadcast %cst_295 : f32 to vector<8x128xf32>
    %539 = arith.addf %538, %537 : vector<8x128xf32>
    %540 = arith.divf %538, %539 : vector<8x128xf32>
    %541 = vector.extract_strided_slice %534 {offsets = [0, 128], sizes = [8, 128], strides = [1, 1]} : vector<8x512xf32> to vector<8x128xf32>
    %542 = arith.negf %541 : vector<8x128xf32>
    %543 = math.exp %542 : vector<8x128xf32>
    %cst_296 = arith.constant 1.000000e+00 : f32
    %544 = vector.broadcast %cst_296 : f32 to vector<8x128xf32>
    %545 = arith.addf %544, %543 : vector<8x128xf32>
    %546 = arith.divf %544, %545 : vector<8x128xf32>
    %547 = vector.extract_strided_slice %534 {offsets = [0, 256], sizes = [8, 128], strides = [1, 1]} : vector<8x512xf32> to vector<8x128xf32>
    %548 = math.tanh %547 : vector<8x128xf32>
    %549 = vector.extract_strided_slice %534 {offsets = [0, 384], sizes = [8, 128], strides = [1, 1]} : vector<8x512xf32> to vector<8x128xf32>
    %550 = arith.negf %549 : vector<8x128xf32>
    %551 = math.exp %550 : vector<8x128xf32>
    %cst_297 = arith.constant 1.000000e+00 : f32
    %552 = vector.broadcast %cst_297 : f32 to vector<8x128xf32>
    %553 = arith.addf %552, %551 : vector<8x128xf32>
    %554 = arith.divf %552, %553 : vector<8x128xf32>
    %555 = arith.mulf %546, %530 : vector<8x128xf32>
    %556 = arith.mulf %540, %548 : vector<8x128xf32>
    %557 = arith.addf %555, %556 : vector<8x128xf32>
    %558 = math.tanh %557 : vector<8x128xf32>
    %559 = arith.mulf %554, %558 : vector<8x128xf32>
    %c0_298 = arith.constant 0 : index
    %c0_299 = arith.constant 0 : index
    %c0_300 = arith.constant 0 : index
    %560 = vector.load %arg11[%c0_298, %c0_299, %c0_300] : memref<2x8x128xf32, #tpu.memory_space<vmem>>, vector<1x8x128xf32>
    %561 = vector.shape_cast %560 : vector<1x8x128xf32> to vector<8x128xf32>
    %562 = vector.shape_cast %559 : vector<8x128xf32> to vector<1x8x128xf32>
    tpu.vector_store %arg11[%c0_298, %c0_299, %c0_300], %562 {strides = array<i32>} : memref<2x8x128xf32, #tpu.memory_space<vmem>>, vector<1x8x128xf32>,
    %c0_301 = arith.constant 0 : index
    %c0_302 = arith.constant 0 : index
    %c0_303 = arith.constant 0 : index
    %563 = vector.load %arg12[%c0_301, %c0_302, %c0_303] : memref<2x8x128xf32, #tpu.memory_space<vmem>>, vector<1x8x128xf32>
    %564 = vector.shape_cast %563 : vector<1x8x128xf32> to vector<8x128xf32>
    %565 = vector.shape_cast %557 : vector<8x128xf32> to vector<1x8x128xf32>
    tpu.vector_store %arg12[%c0_301, %c0_302, %c0_303], %565 {strides = array<i32>} : memref<2x8x128xf32, #tpu.memory_space<vmem>>, vector<1x8x128xf32>,
    %c0_304 = arith.constant 0 : index
    %c0_305 = arith.constant 0 : index
    %c0_306 = arith.constant 0 : index
    %566 = vector.load %arg4[%c0_304, %c0_305, %c0_306] : memref<1x128x512xf32, #tpu.memory_space<vmem>>, vector<1x128x512xf32>
    %567 = vector.shape_cast %566 : vector<1x128x512xf32> to vector<128x512xf32>
    %cst_307 = arith.constant dense<0.000000e+00> : vector<8x512xf32>
    %568 = tpu.matmul %559, %567, %cst_307 {dimension_numbers = #tpu.dot_dimension_numbers<[1], [0], [0], [1], [0, 0, 1, 1], [], []>} : vector<8x128xf32>, vector<128x512xf32>, vector<8x512xf32> -> vector<8x512xf32>
    %c0_308 = arith.constant 0 : index
    %c0_309 = arith.constant 0 : index
    %c0_310 = arith.constant 0 : index
    %569 = vector.load %arg5[%c0_308, %c0_309, %c0_310] : memref<1x1x512xf32, #tpu.memory_space<vmem>>, vector<1x1x512xf32>
    %570 = vector.shape_cast %569 : vector<1x1x512xf32> to vector<1x512xf32>
    %571 = vector.broadcast %570 : vector<1x512xf32> to vector<8x512xf32>
    %572 = arith.addf %568, %571 : vector<8x512xf32>
    %c1_311 = arith.constant 1 : index
    %c0_312 = arith.constant 0 : index
    %c0_313 = arith.constant 0 : index
    %573 = vector.load %arg11[%c1_311, %c0_312, %c0_313] : memref<2x8x128xf32, #tpu.memory_space<vmem>>, vector<1x8x128xf32>
    %574 = vector.shape_cast %573 : vector<1x8x128xf32> to vector<8x128xf32>
    %c1_314 = arith.constant 1 : index
    %c0_315 = arith.constant 0 : index
    %c0_316 = arith.constant 0 : index
    %575 = vector.load %arg12[%c1_314, %c0_315, %c0_316] : memref<2x8x128xf32, #tpu.memory_space<vmem>>, vector<1x8x128xf32>
    %576 = vector.shape_cast %575 : vector<1x8x128xf32> to vector<8x128xf32>
    %c1_317 = arith.constant 1 : index
    %c0_318 = arith.constant 0 : index
    %c0_319 = arith.constant 0 : index
    %577 = vector.load %arg6[%c1_317, %c0_318, %c0_319] : memref<2x128x512xf32, #tpu.memory_space<vmem>>, vector<1x128x512xf32>
    %578 = vector.shape_cast %577 : vector<1x128x512xf32> to vector<128x512xf32>
    %cst_320 = arith.constant dense<0.000000e+00> : vector<8x512xf32>
    %579 = tpu.matmul %574, %578, %cst_320 {dimension_numbers = #tpu.dot_dimension_numbers<[1], [0], [0], [1], [0, 0, 1, 1], [], []>} : vector<8x128xf32>, vector<128x512xf32>, vector<8x512xf32> -> vector<8x512xf32>
    %580 = arith.addf %572, %579 : vector<8x512xf32>
    %581 = vector.extract_strided_slice %580 {offsets = [0, 0], sizes = [8, 128], strides = [1, 1]} : vector<8x512xf32> to vector<8x128xf32>
    %582 = arith.negf %581 : vector<8x128xf32>
    %583 = math.exp %582 : vector<8x128xf32>
    %cst_321 = arith.constant 1.000000e+00 : f32
    %584 = vector.broadcast %cst_321 : f32 to vector<8x128xf32>
    %585 = arith.addf %584, %583 : vector<8x128xf32>
    %586 = arith.divf %584, %585 : vector<8x128xf32>
    %587 = vector.extract_strided_slice %580 {offsets = [0, 128], sizes = [8, 128], strides = [1, 1]} : vector<8x512xf32> to vector<8x128xf32>
    %588 = arith.negf %587 : vector<8x128xf32>
    %589 = math.exp %588 : vector<8x128xf32>
    %cst_322 = arith.constant 1.000000e+00 : f32
    %590 = vector.broadcast %cst_322 : f32 to vector<8x128xf32>
    %591 = arith.addf %590, %589 : vector<8x128xf32>
    %592 = arith.divf %590, %591 : vector<8x128xf32>
    %593 = vector.extract_strided_slice %580 {offsets = [0, 256], sizes = [8, 128], strides = [1, 1]} : vector<8x512xf32> to vector<8x128xf32>
    %594 = math.tanh %593 : vector<8x128xf32>
    %595 = vector.extract_strided_slice %580 {offsets = [0, 384], sizes = [8, 128], strides = [1, 1]} : vector<8x512xf32> to vector<8x128xf32>
    %596 = arith.negf %595 : vector<8x128xf32>
    %597 = math.exp %596 : vector<8x128xf32>
    %cst_323 = arith.constant 1.000000e+00 : f32
    %598 = vector.broadcast %cst_323 : f32 to vector<8x128xf32>
    %599 = arith.addf %598, %597 : vector<8x128xf32>
    %600 = arith.divf %598, %599 : vector<8x128xf32>
    %601 = arith.mulf %592, %576 : vector<8x128xf32>
    %602 = arith.mulf %586, %594 : vector<8x128xf32>
    %603 = arith.addf %601, %602 : vector<8x128xf32>
    %604 = math.tanh %603 : vector<8x128xf32>
    %605 = arith.mulf %600, %604 : vector<8x128xf32>
    %c1_324 = arith.constant 1 : index
    %c0_325 = arith.constant 0 : index
    %c0_326 = arith.constant 0 : index
    %606 = vector.load %arg11[%c1_324, %c0_325, %c0_326] : memref<2x8x128xf32, #tpu.memory_space<vmem>>, vector<1x8x128xf32>
    %607 = vector.shape_cast %606 : vector<1x8x128xf32> to vector<8x128xf32>
    %608 = vector.shape_cast %605 : vector<8x128xf32> to vector<1x8x128xf32>
    tpu.vector_store %arg11[%c1_324, %c0_325, %c0_326], %608 {strides = array<i32>} : memref<2x8x128xf32, #tpu.memory_space<vmem>>, vector<1x8x128xf32>,
    %c1_327 = arith.constant 1 : index
    %c0_328 = arith.constant 0 : index
    %c0_329 = arith.constant 0 : index
    %609 = vector.load %arg12[%c1_327, %c0_328, %c0_329] : memref<2x8x128xf32, #tpu.memory_space<vmem>>, vector<1x8x128xf32>
    %610 = vector.shape_cast %609 : vector<1x8x128xf32> to vector<8x128xf32>
    %611 = vector.shape_cast %603 : vector<8x128xf32> to vector<1x8x128xf32>
    tpu.vector_store %arg12[%c1_327, %c0_328, %c0_329], %611 {strides = array<i32>} : memref<2x8x128xf32, #tpu.memory_space<vmem>>, vector<1x8x128xf32>,
    %c56 = arith.constant 56 : index
    %c0_330 = arith.constant 0 : index
    %612 = vector.load %arg10[%c56, %c0_330] : memref<64x512xf32, #tpu.memory_space<vmem>>, vector<8x512xf32>
    %c0_331 = arith.constant 0 : index
    %c0_332 = arith.constant 0 : index
    %c0_333 = arith.constant 0 : index
    %613 = vector.load %arg11[%c0_331, %c0_332, %c0_333] : memref<2x8x128xf32, #tpu.memory_space<vmem>>, vector<1x8x128xf32>
    %614 = vector.shape_cast %613 : vector<1x8x128xf32> to vector<8x128xf32>
    %c0_334 = arith.constant 0 : index
    %c0_335 = arith.constant 0 : index
    %c0_336 = arith.constant 0 : index
    %615 = vector.load %arg12[%c0_334, %c0_335, %c0_336] : memref<2x8x128xf32, #tpu.memory_space<vmem>>, vector<1x8x128xf32>
    %616 = vector.shape_cast %615 : vector<1x8x128xf32> to vector<8x128xf32>
    %c0_337 = arith.constant 0 : index
    %c0_338 = arith.constant 0 : index
    %c0_339 = arith.constant 0 : index
    %617 = vector.load %arg6[%c0_337, %c0_338, %c0_339] : memref<2x128x512xf32, #tpu.memory_space<vmem>>, vector<1x128x512xf32>
    %618 = vector.shape_cast %617 : vector<1x128x512xf32> to vector<128x512xf32>
    %cst_340 = arith.constant dense<0.000000e+00> : vector<8x512xf32>
    %619 = tpu.matmul %614, %618, %cst_340 {dimension_numbers = #tpu.dot_dimension_numbers<[1], [0], [0], [1], [0, 0, 1, 1], [], []>} : vector<8x128xf32>, vector<128x512xf32>, vector<8x512xf32> -> vector<8x512xf32>
    %620 = arith.addf %612, %619 : vector<8x512xf32>
    %621 = vector.extract_strided_slice %620 {offsets = [0, 0], sizes = [8, 128], strides = [1, 1]} : vector<8x512xf32> to vector<8x128xf32>
    %622 = arith.negf %621 : vector<8x128xf32>
    %623 = math.exp %622 : vector<8x128xf32>
    %cst_341 = arith.constant 1.000000e+00 : f32
    %624 = vector.broadcast %cst_341 : f32 to vector<8x128xf32>
    %625 = arith.addf %624, %623 : vector<8x128xf32>
    %626 = arith.divf %624, %625 : vector<8x128xf32>
    %627 = vector.extract_strided_slice %620 {offsets = [0, 128], sizes = [8, 128], strides = [1, 1]} : vector<8x512xf32> to vector<8x128xf32>
    %628 = arith.negf %627 : vector<8x128xf32>
    %629 = math.exp %628 : vector<8x128xf32>
    %cst_342 = arith.constant 1.000000e+00 : f32
    %630 = vector.broadcast %cst_342 : f32 to vector<8x128xf32>
    %631 = arith.addf %630, %629 : vector<8x128xf32>
    %632 = arith.divf %630, %631 : vector<8x128xf32>
    %633 = vector.extract_strided_slice %620 {offsets = [0, 256], sizes = [8, 128], strides = [1, 1]} : vector<8x512xf32> to vector<8x128xf32>
    %634 = math.tanh %633 : vector<8x128xf32>
    %635 = vector.extract_strided_slice %620 {offsets = [0, 384], sizes = [8, 128], strides = [1, 1]} : vector<8x512xf32> to vector<8x128xf32>
    %636 = arith.negf %635 : vector<8x128xf32>
    %637 = math.exp %636 : vector<8x128xf32>
    %cst_343 = arith.constant 1.000000e+00 : f32
    %638 = vector.broadcast %cst_343 : f32 to vector<8x128xf32>
    %639 = arith.addf %638, %637 : vector<8x128xf32>
    %640 = arith.divf %638, %639 : vector<8x128xf32>
    %641 = arith.mulf %632, %616 : vector<8x128xf32>
    %642 = arith.mulf %626, %634 : vector<8x128xf32>
    %643 = arith.addf %641, %642 : vector<8x128xf32>
    %644 = math.tanh %643 : vector<8x128xf32>
    %645 = arith.mulf %640, %644 : vector<8x128xf32>
    %c0_344 = arith.constant 0 : index
    %c0_345 = arith.constant 0 : index
    %c0_346 = arith.constant 0 : index
    %646 = vector.load %arg11[%c0_344, %c0_345, %c0_346] : memref<2x8x128xf32, #tpu.memory_space<vmem>>, vector<1x8x128xf32>
    %647 = vector.shape_cast %646 : vector<1x8x128xf32> to vector<8x128xf32>
    %648 = vector.shape_cast %645 : vector<8x128xf32> to vector<1x8x128xf32>
    tpu.vector_store %arg11[%c0_344, %c0_345, %c0_346], %648 {strides = array<i32>} : memref<2x8x128xf32, #tpu.memory_space<vmem>>, vector<1x8x128xf32>,
    %c0_347 = arith.constant 0 : index
    %c0_348 = arith.constant 0 : index
    %c0_349 = arith.constant 0 : index
    %649 = vector.load %arg12[%c0_347, %c0_348, %c0_349] : memref<2x8x128xf32, #tpu.memory_space<vmem>>, vector<1x8x128xf32>
    %650 = vector.shape_cast %649 : vector<1x8x128xf32> to vector<8x128xf32>
    %651 = vector.shape_cast %643 : vector<8x128xf32> to vector<1x8x128xf32>
    tpu.vector_store %arg12[%c0_347, %c0_348, %c0_349], %651 {strides = array<i32>} : memref<2x8x128xf32, #tpu.memory_space<vmem>>, vector<1x8x128xf32>,
    %c0_350 = arith.constant 0 : index
    %c0_351 = arith.constant 0 : index
    %c0_352 = arith.constant 0 : index
    %652 = vector.load %arg4[%c0_350, %c0_351, %c0_352] : memref<1x128x512xf32, #tpu.memory_space<vmem>>, vector<1x128x512xf32>
    %653 = vector.shape_cast %652 : vector<1x128x512xf32> to vector<128x512xf32>
    %cst_353 = arith.constant dense<0.000000e+00> : vector<8x512xf32>
    %654 = tpu.matmul %645, %653, %cst_353 {dimension_numbers = #tpu.dot_dimension_numbers<[1], [0], [0], [1], [0, 0, 1, 1], [], []>} : vector<8x128xf32>, vector<128x512xf32>, vector<8x512xf32> -> vector<8x512xf32>
    %c0_354 = arith.constant 0 : index
    %c0_355 = arith.constant 0 : index
    %c0_356 = arith.constant 0 : index
    %655 = vector.load %arg5[%c0_354, %c0_355, %c0_356] : memref<1x1x512xf32, #tpu.memory_space<vmem>>, vector<1x1x512xf32>
    %656 = vector.shape_cast %655 : vector<1x1x512xf32> to vector<1x512xf32>
    %657 = vector.broadcast %656 : vector<1x512xf32> to vector<8x512xf32>
    %658 = arith.addf %654, %657 : vector<8x512xf32>
    %c1_357 = arith.constant 1 : index
    %c0_358 = arith.constant 0 : index
    %c0_359 = arith.constant 0 : index
    %659 = vector.load %arg11[%c1_357, %c0_358, %c0_359] : memref<2x8x128xf32, #tpu.memory_space<vmem>>, vector<1x8x128xf32>
    %660 = vector.shape_cast %659 : vector<1x8x128xf32> to vector<8x128xf32>
    %c1_360 = arith.constant 1 : index
    %c0_361 = arith.constant 0 : index
    %c0_362 = arith.constant 0 : index
    %661 = vector.load %arg12[%c1_360, %c0_361, %c0_362] : memref<2x8x128xf32, #tpu.memory_space<vmem>>, vector<1x8x128xf32>
    %662 = vector.shape_cast %661 : vector<1x8x128xf32> to vector<8x128xf32>
    %c1_363 = arith.constant 1 : index
    %c0_364 = arith.constant 0 : index
    %c0_365 = arith.constant 0 : index
    %663 = vector.load %arg6[%c1_363, %c0_364, %c0_365] : memref<2x128x512xf32, #tpu.memory_space<vmem>>, vector<1x128x512xf32>
    %664 = vector.shape_cast %663 : vector<1x128x512xf32> to vector<128x512xf32>
    %cst_366 = arith.constant dense<0.000000e+00> : vector<8x512xf32>
    %665 = tpu.matmul %660, %664, %cst_366 {dimension_numbers = #tpu.dot_dimension_numbers<[1], [0], [0], [1], [0, 0, 1, 1], [], []>} : vector<8x128xf32>, vector<128x512xf32>, vector<8x512xf32> -> vector<8x512xf32>
    %666 = arith.addf %658, %665 : vector<8x512xf32>
    %667 = vector.extract_strided_slice %666 {offsets = [0, 0], sizes = [8, 128], strides = [1, 1]} : vector<8x512xf32> to vector<8x128xf32>
    %668 = arith.negf %667 : vector<8x128xf32>
    %669 = math.exp %668 : vector<8x128xf32>
    %cst_367 = arith.constant 1.000000e+00 : f32
    %670 = vector.broadcast %cst_367 : f32 to vector<8x128xf32>
    %671 = arith.addf %670, %669 : vector<8x128xf32>
    %672 = arith.divf %670, %671 : vector<8x128xf32>
    %673 = vector.extract_strided_slice %666 {offsets = [0, 128], sizes = [8, 128], strides = [1, 1]} : vector<8x512xf32> to vector<8x128xf32>
    %674 = arith.negf %673 : vector<8x128xf32>
    %675 = math.exp %674 : vector<8x128xf32>
    %cst_368 = arith.constant 1.000000e+00 : f32
    %676 = vector.broadcast %cst_368 : f32 to vector<8x128xf32>
    %677 = arith.addf %676, %675 : vector<8x128xf32>
    %678 = arith.divf %676, %677 : vector<8x128xf32>
    %679 = vector.extract_strided_slice %666 {offsets = [0, 256], sizes = [8, 128], strides = [1, 1]} : vector<8x512xf32> to vector<8x128xf32>
    %680 = math.tanh %679 : vector<8x128xf32>
    %681 = vector.extract_strided_slice %666 {offsets = [0, 384], sizes = [8, 128], strides = [1, 1]} : vector<8x512xf32> to vector<8x128xf32>
    %682 = arith.negf %681 : vector<8x128xf32>
    %683 = math.exp %682 : vector<8x128xf32>
    %cst_369 = arith.constant 1.000000e+00 : f32
    %684 = vector.broadcast %cst_369 : f32 to vector<8x128xf32>
    %685 = arith.addf %684, %683 : vector<8x128xf32>
    %686 = arith.divf %684, %685 : vector<8x128xf32>
    %687 = arith.mulf %678, %662 : vector<8x128xf32>
    %688 = arith.mulf %672, %680 : vector<8x128xf32>
    %689 = arith.addf %687, %688 : vector<8x128xf32>
    %690 = math.tanh %689 : vector<8x128xf32>
    %691 = arith.mulf %686, %690 : vector<8x128xf32>
    %c1_370 = arith.constant 1 : index
    %c0_371 = arith.constant 0 : index
    %c0_372 = arith.constant 0 : index
    %692 = vector.load %arg11[%c1_370, %c0_371, %c0_372] : memref<2x8x128xf32, #tpu.memory_space<vmem>>, vector<1x8x128xf32>
    %693 = vector.shape_cast %692 : vector<1x8x128xf32> to vector<8x128xf32>
    %694 = vector.shape_cast %691 : vector<8x128xf32> to vector<1x8x128xf32>
    tpu.vector_store %arg11[%c1_370, %c0_371, %c0_372], %694 {strides = array<i32>} : memref<2x8x128xf32, #tpu.memory_space<vmem>>, vector<1x8x128xf32>,
    %c1_373 = arith.constant 1 : index
    %c0_374 = arith.constant 0 : index
    %c0_375 = arith.constant 0 : index
    %695 = vector.load %arg12[%c1_373, %c0_374, %c0_375] : memref<2x8x128xf32, #tpu.memory_space<vmem>>, vector<1x8x128xf32>
    %696 = vector.shape_cast %695 : vector<1x8x128xf32> to vector<8x128xf32>
    %697 = vector.shape_cast %689 : vector<8x128xf32> to vector<1x8x128xf32>
    tpu.vector_store %arg12[%c1_373, %c0_374, %c0_375], %697 {strides = array<i32>} : memref<2x8x128xf32, #tpu.memory_space<vmem>>, vector<1x8x128xf32>,
    %c0_i32_376 = arith.constant 0 : i32
    %698 = arith.cmpi eq, %arg0, %c0_i32_376 : i32
    %699 = arith.extui %698 : i1 to i32
    %c0_i32_377 = arith.constant 0 : i32
    %700 = arith.cmpi ne, %699, %c0_i32_377 : i32
    scf.if %700 {
      %c1_378 = arith.constant 1 : index
      %c0_379 = arith.constant 0 : index
      %c0_380 = arith.constant 0 : index
      %701 = vector.load %arg11[%c1_378, %c0_379, %c0_380] : memref<2x8x128xf32, #tpu.memory_space<vmem>>, vector<1x8x128xf32>
      %702 = vector.shape_cast %701 : vector<1x8x128xf32> to vector<8x128xf32>
      %c0_381 = arith.constant 0 : index
      %c0_382 = arith.constant 0 : index
      %703 = vector.load %arg7[%c0_381, %c0_382] : memref<128x128xf32, #tpu.memory_space<vmem>>, vector<128x128xf32>
      %cst_383 = arith.constant dense<0.000000e+00> : vector<8x128xf32>
      %704 = tpu.matmul %702, %703, %cst_383 {dimension_numbers = #tpu.dot_dimension_numbers<[1], [0], [0], [1], [0, 0, 1, 1], [], []>} : vector<8x128xf32>, vector<128x128xf32>, vector<8x128xf32> -> vector<8x128xf32>
      %c0_384 = arith.constant 0 : index
      %c0_385 = arith.constant 0 : index
      %705 = vector.load %arg8[%c0_384, %c0_385] : memref<1x128xf32, #tpu.memory_space<vmem>>, vector<1x128xf32>
      %706 = vector.broadcast %705 : vector<1x128xf32> to vector<8x128xf32>
      %707 = arith.addf %704, %706 : vector<8x128xf32>
      %c0_386 = arith.constant 0 : index
      %c0_387 = arith.constant 0 : index
      %708 = vector.load %arg9[%c0_386, %c0_387] : memref<8x128xf32, #tpu.memory_space<vmem>>, vector<8x128xf32>
      tpu.vector_store %arg9[%c0_386, %c0_387], %707 {strides = array<i32>} : memref<8x128xf32, #tpu.memory_space<vmem>>, vector<8x128xf32>,
    } else {
    }
    return
  }
  func.func @transform_0(%arg0: i32) -> (i32, i32) {
    %c0_i32 = arith.constant 0 : i32
    %c0_i32_0 = arith.constant 0 : i32
    return %arg0, %c0_i32 : i32, i32
  }
  func.func @transform_1(%arg0: i32) -> (i32, i32) {
    %c0_i32 = arith.constant 0 : i32
    %c0_i32_0 = arith.constant 0 : i32
    %c0_i32_1 = arith.constant 0 : i32
    return %c0_i32, %c0_i32_0 : i32, i32
  }
  func.func @transform_2(%arg0: i32) -> (i32, i32) {
    %c0_i32 = arith.constant 0 : i32
    %c0_i32_0 = arith.constant 0 : i32
    %c0_i32_1 = arith.constant 0 : i32
    return %c0_i32, %c0_i32_0 : i32, i32
  }
  func.func @transform_3(%arg0: i32) -> (i32, i32, i32) {
    %c0_i32 = arith.constant 0 : i32
    %c0_i32_0 = arith.constant 0 : i32
    %c0_i32_1 = arith.constant 0 : i32
    %c0_i32_2 = arith.constant 0 : i32
    return %c0_i32, %c0_i32_0, %c0_i32_1 : i32, i32, i32
  }
  func.func @transform_4(%arg0: i32) -> (i32, i32, i32) {
    %c0_i32 = arith.constant 0 : i32
    %c0_i32_0 = arith.constant 0 : i32
    %c0_i32_1 = arith.constant 0 : i32
    %c0_i32_2 = arith.constant 0 : i32
    return %c0_i32, %c0_i32_0, %c0_i32_1 : i32, i32, i32
  }
  func.func @transform_5(%arg0: i32) -> (i32, i32, i32) {
    %c0_i32 = arith.constant 0 : i32
    %c0_i32_0 = arith.constant 0 : i32
    %c0_i32_1 = arith.constant 0 : i32
    %c0_i32_2 = arith.constant 0 : i32
    return %c0_i32, %c0_i32_0, %c0_i32_1 : i32, i32, i32
  }
  func.func @transform_6(%arg0: i32) -> (i32, i32) {
    %c0_i32 = arith.constant 0 : i32
    %c0_i32_0 = arith.constant 0 : i32
    %c0_i32_1 = arith.constant 0 : i32
    return %c0_i32, %c0_i32_0 : i32, i32
  }
  func.func @transform_7(%arg0: i32) -> (i32, i32) {
    %c0_i32 = arith.constant 0 : i32
    %c0_i32_0 = arith.constant 0 : i32
    %c0_i32_1 = arith.constant 0 : i32
    return %c0_i32, %c0_i32_0 : i32, i32
  }
  func.func @transform_8(%arg0: i32) -> (i32, i32) {
    %c0_i32 = arith.constant 0 : i32
    %c0_i32_0 = arith.constant 0 : i32
    %c0_i32_1 = arith.constant 0 : i32
    return %c0_i32, %c0_i32_0 : i32, i32
  }
}

</mosaic_0001>

<llo_original>
// kernel: tile.13
$region0: #{tile.13}
  #allocation0 [shape = 's32[1]{0}', space=sflag, size = 0x4, scoped, tag = 'scoped memory for tile.13']
  %s0 = inlined_call_operand.vmem [shape: f32[8], index: 0, kind: input, shape index: {}]
  %s1 = inlined_call_operand.vmem [shape: f32[4,8], index: 1, kind: output, shape index: {}]
  // Predicated region
  $region2: #{tile.13} parent=0 // pred_check
    _
  $region3: #{tile.13} parent=0 // pred_check_branch
    %3 = sbr.rel (0) target = $region5
  $region4: #{tile.13} parent=0 // pred_region
    _
  $region5: #{tile.13} parent=0 // pred_fallthru
    _
  %v4 = vld [vmem:[%s0] ss:$0 sm:$0xff]
  %5 = vst [vmem:[%s1] sm:$0xf] %v4

// kernel: mul.9
$region0: #{mul.9}
  %s0 = inlined_call_operand.vmem [shape: f32[4,8], index: 0, kind: input, shape index: {}]
  %s1 = inlined_call_operand.vmem [shape: f32[32], index: 1, kind: output, shape index: {}]
  $region1: #{mul.9} parent=0
    #allocation0 [shape = 'u8[4096]{0}', space=vmem, size = 0x1000, scoped, tag = 'scoped mem for output reshape']
    #allocation1 [shape = 'u8[4096]{0}', space=vmem, size = 0x1000, scoped, tag = 'scoped mem for input reshape']
    %s3 = ssub.s32 16, 1
    %v4 = vld [vmem:[%s0] sm:%s3]
    %5 = vst [vmem:[#allocation1] sm:%s3] %v4
    %v6 = vld [vmem:[#allocation1] sm:$0x1]
    %vm7 = vcmask 64512
    %8 = vst.msk [vmem:[#allocation0] sm:$0x1] %vm7, %v6
    %s9 = scalar_lea.vmem [#allocation1], 3
    %v10 = vld [vmem:[%s9] sm:$0x1]
    %11 = vrot.lane.b32.xlu0 %v10, 24
    %v12 = vpop.permute.xlu0 %11
    %vm13 = vcmask 261312
    %14 = vst.msk [vmem:[#allocation0] sm:$0x1] %vm13, %v12
    %s15 = scalar_lea.vmem [#allocation1], 2
    %v16 = vld [vmem:[%s15] sm:$0x1]
    %17 = vrot.lane.b32.xlu0 %v16, 16
    %v18 = vpop.permute.xlu0 %17
    %vm19 = vcmask 195712
    %20 = vst.msk [vmem:[#allocation0] sm:$0x1] %vm19, %v18
    %s21 = scalar_lea.vmem [#allocation1], 1
    %v22 = vld [vmem:[%s21] sm:$0x1]
    %23 = vrot.lane.b32.xlu0 %v22, 8
    %v24 = vpop.permute.xlu0 %23
    %vm25 = vcmask 130112
    %26 = vst.msk [vmem:[#allocation0] sm:$0x1] %vm25, %v24
    %s28 = ssub.s32 2, 1
    %v29 = vld [vmem:[#allocation0] sm:%s28]
    %s31 = ssub.s32 2, 1
    %32 = vst [vmem:[%s1] sm:%s31] %v29

// kernel: rnn_embedding_forward.1
$region0: #{rnn_embedding_forward.1}
  #allocation0 [shape = 'u32[]', space=smem, size = 0x4, offset = 0x4, fixed_abs, tag = 'smem constant byte address 0x4 - core index']
  #allocation1 [shape = 'u32[72,128]{1,0:T(1,128)}', space=vmem, size = 0x9000, scoped, tag = 'internal scratch']
  #allocation2 [shape = 'f32[64,512]{1,0:T(8,128)}', space=vmem, size = 0x20000, scoped, tag = 'scratch operand']
  #allocation3 [shape = 'f32[2,8,128]{2,1,0:T(8,128)}', space=vmem, size = 0x2000, scoped, tag = 'scratch operand']
  #allocation4 [shape = 'f32[2,8,128]{2,1,0:T(8,128)}', space=vmem, size = 0x2000, scoped, tag = 'scratch operand']
  %s0 = inlined_call_operand.vmem [shape: f32[64,32], index: 0, kind: input, shape index: {}]
  %s1 = inlined_call_operand.vmem [shape: f32[32,512], index: 1, kind: input, shape index: {}]
  %s2 = inlined_call_operand.vmem [shape: f32[1,512], index: 2, kind: input, shape index: {}]
  %s3 = inlined_call_operand.vmem [shape: f32[1,128,512], index: 3, kind: input, shape index: {}]
  %s4 = inlined_call_operand.vmem [shape: f32[1,1,512], index: 4, kind: input, shape index: {}]
  %s5 = inlined_call_operand.vmem [shape: f32[2,128,512], index: 5, kind: input, shape index: {}]
  %s6 = inlined_call_operand.vmem [shape: f32[128,128], index: 6, kind: input, shape index: {}]
  %s7 = inlined_call_operand.vmem [shape: f32[1,128], index: 7, kind: input, shape index: {}]
  %s8 = inlined_call_operand.vmem [shape: f32[8,128], index: 8, kind: output, shape index: {}]
  %s9 = sld [smem:[#allocation0]]
  $region50: #{rnn_embedding_forward.1} parent=0
    _
  %s11 = ssub.s32 1, %s9
  %s12 = scalar_select 0, %s11, %s9
  // Predicated region
  $region2: #{rnn_embedding_forward.1} parent=0 // pred_check
    _
  $region3: #{rnn_embedding_forward.1} parent=0 // pred_check_branch
    %14 = sbr.rel (0) target = $region5
  $region4: #{rnn_embedding_forward.1} parent=0 // pred_region
    _
  $region5: #{rnn_embedding_forward.1} parent=0 // pred_fallthru
    _
  // Predicated region
  $region6: #{rnn_embedding_forward.1} parent=0 // pred_check
    _
  $region7: #{rnn_embedding_forward.1} parent=0 // pred_check_branch
    %16 = sbr.rel (0) target = $region9
  $region8: #{rnn_embedding_forward.1} parent=0 // pred_region
    _
  $region9: #{rnn_embedding_forward.1} parent=0 // pred_fallthru
    _
  // Predicated region
  $region10: #{rnn_embedding_forward.1} parent=0 // pred_check
    _
  $region11: #{rnn_embedding_forward.1} parent=0 // pred_check_branch
    %18 = sbr.rel (0) target = $region13
  $region12: #{rnn_embedding_forward.1} parent=0 // pred_region
    _
  $region13: #{rnn_embedding_forward.1} parent=0 // pred_fallthru
    _
  // Predicated region
  $region14: #{rnn_embedding_forward.1} parent=0 // pred_check
    _
  $region15: #{rnn_embedding_forward.1} parent=0 // pred_check_branch
    %20 = sbr.rel (0) target = $region17
  $region16: #{rnn_embedding_forward.1} parent=0 // pred_region
    _
  $region17: #{rnn_embedding_forward.1} parent=0 // pred_fallthru
    _
  // Predicated region
  $region18: #{rnn_embedding_forward.1} parent=0 // pred_check
    _
  $region19: #{rnn_embedding_forward.1} parent=0 // pred_check_branch
    %22 = sbr.rel (0) target = $region21
  $region20: #{rnn_embedding_forward.1} parent=0 // pred_region
    _
  $region21: #{rnn_embedding_forward.1} parent=0 // pred_fallthru
    _
  // Predicated region
  $region22: #{rnn_embedding_forward.1} parent=0 // pred_check
    _
  $region23: #{rnn_embedding_forward.1} parent=0 // pred_check_branch
    %24 = sbr.rel (0) target = $region25
  $region24: #{rnn_embedding_forward.1} parent=0 // pred_region
    _
  $region25: #{rnn_embedding_forward.1} parent=0 // pred_fallthru
    _
  // Predicated region
  $region26: #{rnn_embedding_forward.1} parent=0 // pred_check
    _
  $region27: #{rnn_embedding_forward.1} parent=0 // pred_check_branch
    %26 = sbr.rel (0) target = $region29
  $region28: #{rnn_embedding_forward.1} parent=0 // pred_region
    _
  $region29: #{rnn_embedding_forward.1} parent=0 // pred_fallthru
    _
  // Predicated region
  $region30: #{rnn_embedding_forward.1} parent=0 // pred_check
    _
  $region31: #{rnn_embedding_forward.1} parent=0 // pred_check_branch
    %28 = sbr.rel (0) target = $region33
  $region32: #{rnn_embedding_forward.1} parent=0 // pred_region
    _
  $region33: #{rnn_embedding_forward.1} parent=0 // pred_fallthru
    _
  %p29 = scmp.eq.s32.totalorder 0, 0
  // Predicated region
  $region34: #{rnn_embedding_forward.1} parent=0 // pred_check
    %p30 = pneg %p29
  $region35: #{rnn_embedding_forward.1} parent=0 // pred_check_branch
    %32 = sbr.rel (%p30) target = $region37
  $region36: #{rnn_embedding_forward.1} parent=0 // pred_region
    %33 = vst [vmem:[#allocation3] sm:$0xff] 0.0
    %34 = vst [vmem:[#allocation3 + $0x8] sm:$0xff] 0.0
    %35 = vst [vmem:[#allocation4] sm:$0xff] 0.0
    %36 = vst [vmem:[#allocation4 + $0x8] sm:$0xff] 0.0
  $region37: #{rnn_embedding_forward.1} parent=0 // pred_fallthru
    _
  %v37 = vld [vmem:[%s0] sm:$0xff]
  %v38 = vld [vmem:[%s0 + $0x8] sm:$0xff]
  %v39 = vld [vmem:[%s0 + $0x10] sm:$0xff]
  %v40 = vld [vmem:[%s0 + $0x18] sm:$0xff]
  %v41 = vld [vmem:[%s0 + $0x20] sm:$0xff]
  %v42 = vld [vmem:[%s0 + $0x28] sm:$0xff]
  %v43 = vld [vmem:[%s0 + $0x30] sm:$0xff]
  %v44 = vld [vmem:[%s0 + $0x38] sm:$0xff]
  %v45 = vld [vmem:[%s1] sm:$0xff]
  %v46 = vld [vmem:[%s1 + $0x8] sm:$0xff]
  %v47 = vld [vmem:[%s1 + $0x10] sm:$0xff]
  %v48 = vld [vmem:[%s1 + $0x18] sm:$0xff]
  %v49 = vld [vmem:[%s1 + $0x20] sm:$0xff]
  %v50 = vld [vmem:[%s1 + $0x28] sm:$0xff]
  %v51 = vld [vmem:[%s1 + $0x30] sm:$0xff]
  %v52 = vld [vmem:[%s1 + $0x38] sm:$0xff]
  %v53 = vld [vmem:[%s1 + $0x40] sm:$0xff]
  %v54 = vld [vmem:[%s1 + $0x48] sm:$0xff]
  %v55 = vld [vmem:[%s1 + $0x50] sm:$0xff]
  %v56 = vld [vmem:[%s1 + $0x58] sm:$0xff]
  %v57 = vld [vmem:[%s1 + $0x60] sm:$0xff]
  %v58 = vld [vmem:[%s1 + $0x68] sm:$0xff]
  %v59 = vld [vmem:[%s1 + $0x70] sm:$0xff]
  %v60 = vld [vmem:[%s1 + $0x78] sm:$0xff]
  %v61 = vld [vmem:[%s2] sm:$0xf]
  %v63 = vperm.slane %v61, 0
  %v64 = vperm.slane %v61, 1
  %v65 = vperm.slane %v61, 2
  %v66 = vperm.slane %v61, 3
  %vm71 = vcmask 261120
  %v73 = vsel %vm71, %v37, 0
  %v76 = vsel %vm71, %v38, 0
  %v79 = vsel %vm71, %v39, 0
  %v82 = vsel %vm71, %v40, 0
  %v85 = vsel %vm71, %v41, 0
  %v88 = vsel %vm71, %v42, 0
  %v91 = vsel %vm71, %v43, 0
  %v94 = vsel %vm71, %v44, 0
  %96 = vmatpush.msra.mxu0 0.0
  %97 = vmatpush.msra.mxu0 0.0
  %98 = vmatpush.msra.mxu0 0.0
  %99 = vmatpush.msra.mxu0 0.0
  %100 = vmatpush.msra.mxu0 0.0
  %101 = vmatpush.msra.mxu0 0.0
  %102 = vmatpush.msra.mxu0 0.0
  %103 = vmatpush.msra.mxu0 0.0
  %104 = vmatpush.msra.mxu0 0.0
  %105 = vmatpush.msra.mxu0 0.0
  %106 = vmatpush.msra.mxu0 0.0
  %107 = vmatpush.msra.mxu0 0.0
  %108 = vmatpush.msra.mxu0 %v57
  %109 = vmatpush.msra.mxu0 %v53
  %110 = vmatpush.msra.mxu0 %v49
  %111 = vmatpush.msra.mxu0 %v45
  %112 = vmatmul.f32.gmra.mxu0 %v73
  %v113 = vpop.f32.mrf.mxu0
  %v114 = vadd.f32 %v63, %v113
  %115 = vmatmul.f32.gmra.mxu0 %v76
  %v116 = vpop.f32.mrf.mxu0
  %v117 = vadd.f32 %v63, %v116
  %118 = vmatmul.f32.gmra.mxu0 %v79
  %v119 = vpop.f32.mrf.mxu0
  %v120 = vadd.f32 %v63, %v119
  %121 = vmatmul.f32.gmra.mxu0 %v82
  %v122 = vpop.f32.mrf.mxu0
  %v123 = vadd.f32 %v63, %v122
  %124 = vmatmul.f32.gmra.mxu0 %v85
  %v125 = vpop.f32.mrf.mxu0
  %v126 = vadd.f32 %v63, %v125
  %127 = vmatmul.f32.gmra.mxu0 %v88
  %v128 = vpop.f32.mrf.mxu0
  %v129 = vadd.f32 %v63, %v128
  %130 = vmatmul.f32.gmra.mxu0 %v91
  %v131 = vpop.f32.mrf.mxu0
  %v132 = vadd.f32 %v63, %v131
  %133 = vmatmul.f32.gmra.mxu0 %v94
  %v134 = vpop.f32.mrf.mxu0
  %v135 = vadd.f32 %v63, %v134
  %136 = vdwg.mxu0
  %137 = vmatpush.msra.mxu0 0.0
  %138 = vmatpush.msra.mxu0 0.0
  %139 = vmatpush.msra.mxu0 0.0
  %140 = vmatpush.msra.mxu0 0.0
  %141 = vmatpush.msra.mxu0 0.0
  %142 = vmatpush.msra.mxu0 0.0
  %143 = vmatpush.msra.mxu0 0.0
  %144 = vmatpush.msra.mxu0 0.0
  %145 = vmatpush.msra.mxu0 0.0
  %146 = vmatpush.msra.mxu0 0.0
  %147 = vmatpush.msra.mxu0 0.0
  %148 = vmatpush.msra.mxu0 0.0
  %149 = vmatpush.msra.mxu0 %v58
  %150 = vmatpush.msra.mxu0 %v54
  %151 = vmatpush.msra.mxu0 %v50
  %152 = vmatpush.msra.mxu0 %v46
  %153 = vmatmul.f32.gmra.mxu0 %v73
  %v154 = vpop.f32.mrf.mxu0
  %v155 = vadd.f32 %v64, %v154
  %156 = vmatmul.f32.gmra.mxu0 %v76
  %v157 = vpop.f32.mrf.mxu0
  %v158 = vadd.f32 %v64, %v157
  %159 = vmatmul.f32.gmra.mxu0 %v79
  %v160 = vpop.f32.mrf.mxu0
  %v161 = vadd.f32 %v64, %v160
  %162 = vmatmul.f32.gmra.mxu0 %v82
  %v163 = vpop.f32.mrf.mxu0
  %v164 = vadd.f32 %v64, %v163
  %165 = vmatmul.f32.gmra.mxu0 %v85
  %v166 = vpop.f32.mrf.mxu0
  %v167 = vadd.f32 %v64, %v166
  %168 = vmatmul.f32.gmra.mxu0 %v88
  %v169 = vpop.f32.mrf.mxu0
  %v170 = vadd.f32 %v64, %v169
  %171 = vmatmul.f32.gmra.mxu0 %v91
  %v172 = vpop.f32.mrf.mxu0
  %v173 = vadd.f32 %v64, %v172
  %174 = vmatmul.f32.gmra.mxu0 %v94
  %v175 = vpop.f32.mrf.mxu0
  %v176 = vadd.f32 %v64, %v175
  %177 = vdwg.mxu0
  %178 = vmatpush.msra.mxu0 0.0
  %179 = vmatpush.msra.mxu0 0.0
  %180 = vmatpush.msra.mxu0 0.0
  %181 = vmatpush.msra.mxu0 0.0
  %182 = vmatpush.msra.mxu0 0.0
  %183 = vmatpush.msra.mxu0 0.0
  %184 = vmatpush.msra.mxu0 0.0
  %185 = vmatpush.msra.mxu0 0.0
  %186 = vmatpush.msra.mxu0 0.0
  %187 = vmatpush.msra.mxu0 0.0
  %188 = vmatpush.msra.mxu0 0.0
  %189 = vmatpush.msra.mxu0 0.0
  %190 = vmatpush.msra.mxu0 %v59
  %191 = vmatpush.msra.mxu0 %v55
  %192 = vmatpush.msra.mxu0 %v51
  %193 = vmatpush.msra.mxu0 %v47
  %194 = vmatmul.f32.gmra.mxu0 %v73
  %v195 = vpop.f32.mrf.mxu0
  %v196 = vadd.f32 %v65, %v195
  %197 = vmatmul.f32.gmra.mxu0 %v76
  %v198 = vpop.f32.mrf.mxu0
  %v199 = vadd.f32 %v65, %v198
  %200 = vmatmul.f32.gmra.mxu0 %v79
  %v201 = vpop.f32.mrf.mxu0
  %v202 = vadd.f32 %v65, %v201
  %203 = vmatmul.f32.gmra.mxu0 %v82
  %v204 = vpop.f32.mrf.mxu0
  %v205 = vadd.f32 %v65, %v204
  %206 = vmatmul.f32.gmra.mxu0 %v85
  %v207 = vpop.f32.mrf.mxu0
  %v208 = vadd.f32 %v65, %v207
  %209 = vmatmul.f32.gmra.mxu0 %v88
  %v210 = vpop.f32.mrf.mxu0
  %v211 = vadd.f32 %v65, %v210
  %212 = vmatmul.f32.gmra.mxu0 %v91
  %v213 = vpop.f32.mrf.mxu0
  %v214 = vadd.f32 %v65, %v213
  %215 = vmatmul.f32.gmra.mxu0 %v94
  %v216 = vpop.f32.mrf.mxu0
  %v217 = vadd.f32 %v65, %v216
  %218 = vdwg.mxu0
  %219 = vmatpush.msra.mxu0 0.0
  %220 = vmatpush.msra.mxu0 0.0
  %221 = vmatpush.msra.mxu0 0.0
  %222 = vmatpush.msra.mxu0 0.0
  %223 = vmatpush.msra.mxu0 0.0
  %224 = vmatpush.msra.mxu0 0.0
  %225 = vmatpush.msra.mxu0 0.0
  %226 = vmatpush.msra.mxu0 0.0
  %227 = vmatpush.msra.mxu0 0.0
  %228 = vmatpush.msra.mxu0 0.0
  %229 = vmatpush.msra.mxu0 0.0
  %230 = vmatpush.msra.mxu0 0.0
  %231 = vmatpush.msra.mxu0 %v60
  %232 = vmatpush.msra.mxu0 %v56
  %233 = vmatpush.msra.mxu0 %v52
  %234 = vmatpush.msra.mxu0 %v48
  %235 = vmatmul.f32.gmra.mxu0 %v73
  %v236 = vpop.f32.mrf.mxu0
  %v237 = vadd.f32 %v66, %v236
  %238 = vmatmul.f32.gmra.mxu0 %v76
  %v239 = vpop.f32.mrf.mxu0
  %v240 = vadd.f32 %v66, %v239
  %241 = vmatmul.f32.gmra.mxu0 %v79
  %v242 = vpop.f32.mrf.mxu0
  %v243 = vadd.f32 %v66, %v242
  %244 = vmatmul.f32.gmra.mxu0 %v82
  %v245 = vpop.f32.mrf.mxu0
  %v246 = vadd.f32 %v66, %v245
  %247 = vmatmul.f32.gmra.mxu0 %v85
  %v248 = vpop.f32.mrf.mxu0
  %v249 = vadd.f32 %v66, %v248
  %250 = vmatmul.f32.gmra.mxu0 %v88
  %v251 = vpop.f32.mrf.mxu0
  %v252 = vadd.f32 %v66, %v251
  %253 = vmatmul.f32.gmra.mxu0 %v91
  %v254 = vpop.f32.mrf.mxu0
  %v255 = vadd.f32 %v66, %v254
  %256 = vmatmul.f32.gmra.mxu0 %v94
  %v257 = vpop.f32.mrf.mxu0
  %v258 = vadd.f32 %v66, %v257
  %259 = vdwg.mxu0
  %260 = vst [vmem:[#allocation2] sm:$0xff] %v114
  %261 = vst [vmem:[#allocation2 + $0x8] sm:$0xff] %v155
  %262 = vst [vmem:[#allocation2 + $0x10] sm:$0xff] %v196
  %263 = vst [vmem:[#allocation2 + $0x18] sm:$0xff] %v237
  %264 = vst [vmem:[#allocation2 + $0x20] sm:$0xff] %v117
  %265 = vst [vmem:[#allocation2 + $0x28] sm:$0xff] %v158
  %266 = vst [vmem:[#allocation2 + $0x30] sm:$0xff] %v199
  %267 = vst [vmem:[#allocation2 + $0x38] sm:$0xff] %v240
  %268 = vst [vmem:[#allocation2 + $0x40] sm:$0xff] %v120
  %269 = vst [vmem:[#allocation2 + $0x48] sm:$0xff] %v161
  %270 = vst [vmem:[#allocation2 + $0x50] sm:$0xff] %v202
  %271 = vst [vmem:[#allocation2 + $0x58] sm:$0xff] %v243
  %272 = vst [vmem:[#allocation2 + $0x60] sm:$0xff] %v123
  %273 = vst [vmem:[#allocation2 + $0x68] sm:$0xff] %v164
  %274 = vst [vmem:[#allocation2 + $0x70] sm:$0xff] %v205
  %275 = vst [vmem:[#allocation2 + $0x78] sm:$0xff] %v246
  %276 = vst [vmem:[#allocation2 + $0x80] sm:$0xff] %v126
  %277 = vst [vmem:[#allocation2 + $0x88] sm:$0xff] %v167
  %278 = vst [vmem:[#allocation2 + $0x90] sm:$0xff] %v208
  %279 = vst [vmem:[#allocation2 + $0x98] sm:$0xff] %v249
  %280 = vst [vmem:[#allocation2 + $0xa0] sm:$0xff] %v129
  %281 = vst [vmem:[#allocation2 + $0xa8] sm:$0xff] %v170
  %282 = vst [vmem:[#allocation2 + $0xb0] sm:$0xff] %v211
  %283 = vst [vmem:[#allocation2 + $0xb8] sm:$0xff] %v252
  %284 = vst [vmem:[#allocation2 + $0xc0] sm:$0xff] %v132
  %285 = vst [vmem:[#allocation2 + $0xc8] sm:$0xff] %v173
  %286 = vst [vmem:[#allocation2 + $0xd0] sm:$0xff] %v214
  %287 = vst [vmem:[#allocation2 + $0xd8] sm:$0xff] %v255
  %288 = vst [vmem:[#allocation2 + $0xe0] sm:$0xff] %v135
  %289 = vst [vmem:[#allocation2 + $0xe8] sm:$0xff] %v176
  %290 = vst [vmem:[#allocation2 + $0xf0] sm:$0xff] %v217
  %291 = vst [vmem:[#allocation2 + $0xf8] sm:$0xff] %v258
  %v292 = vld [vmem:[#allocation2] sm:$0xff]
  %v293 = vld [vmem:[#allocation2 + $0x8] sm:$0xff]
  %v294 = vld [vmem:[#allocation2 + $0x10] sm:$0xff]
  %v295 = vld [vmem:[#allocation2 + $0x18] sm:$0xff]
  %v296 = vld [vmem:[#allocation3] sm:$0xff]
  %v297 = vld [vmem:[#allocation4] sm:$0xff]
  %v298 = vld [vmem:[%s5] sm:$0xff]
  %v299 = vld [vmem:[%s5 + $0x8] sm:$0xff]
  %v300 = vld [vmem:[%s5 + $0x10] sm:$0xff]
  %v301 = vld [vmem:[%s5 + $0x18] sm:$0xff]
  %v302 = vld [vmem:[%s5 + $0x20] sm:$0xff]
  %v303 = vld [vmem:[%s5 + $0x28] sm:$0xff]
  %v304 = vld [vmem:[%s5 + $0x30] sm:$0xff]
  %v305 = vld [vmem:[%s5 + $0x38] sm:$0xff]
  %v306 = vld [vmem:[%s5 + $0x40] sm:$0xff]
  %v307 = vld [vmem:[%s5 + $0x48] sm:$0xff]
  %v308 = vld [vmem:[%s5 + $0x50] sm:$0xff]
  %v309 = vld [vmem:[%s5 + $0x58] sm:$0xff]
  %v310 = vld [vmem:[%s5 + $0x60] sm:$0xff]
  %v311 = vld [vmem:[%s5 + $0x68] sm:$0xff]
  %v312 = vld [vmem:[%s5 + $0x70] sm:$0xff]
  %v313 = vld [vmem:[%s5 + $0x78] sm:$0xff]
  %v314 = vld [vmem:[%s5 + $0x80] sm:$0xff]
  %v315 = vld [vmem:[%s5 + $0x88] sm:$0xff]
  %v316 = vld [vmem:[%s5 + $0x90] sm:$0xff]
  %v317 = vld [vmem:[%s5 + $0x98] sm:$0xff]
  %v318 = vld [vmem:[%s5 + $0xa0] sm:$0xff]
  %v319 = vld [vmem:[%s5 + $0xa8] sm:$0xff]
  %v320 = vld [vmem:[%s5 + $0xb0] sm:$0xff]
  %v321 = vld [vmem:[%s5 + $0xb8] sm:$0xff]
  %v322 = vld [vmem:[%s5 + $0xc0] sm:$0xff]
  %v323 = vld [vmem:[%s5 + $0xc8] sm:$0xff]
  %v324 = vld [vmem:[%s5 + $0xd0] sm:$0xff]
  %v325 = vld [vmem:[%s5 + $0xd8] sm:$0xff]
  %v326 = vld [vmem:[%s5 + $0xe0] sm:$0xff]
  %v327 = vld [vmem:[%s5 + $0xe8] sm:$0xff]
  %v328 = vld [vmem:[%s5 + $0xf0] sm:$0xff]
  %v329 = vld [vmem:[%s5 + $0xf8] sm:$0xff]
  %v330 = vld [vmem:[%s5 + $0x100] sm:$0xff]
  %v331 = vld [vmem:[%s5 + $0x108] sm:$0xff]
  %v332 = vld [vmem:[%s5 + $0x110] sm:$0xff]
  %v333 = vld [vmem:[%s5 + $0x118] sm:$0xff]
  %v334 = vld [vmem:[%s5 + $0x120] sm:$0xff]
  %v335 = vld [vmem:[%s5 + $0x128] sm:$0xff]
  %v336 = vld [vmem:[%s5 + $0x130] sm:$0xff]
  %v337 = vld [vmem:[%s5 + $0x138] sm:$0xff]
  %v338 = vld [vmem:[%s5 + $0x140] sm:$0xff]
  %v339 = vld [vmem:[%s5 + $0x148] sm:$0xff]
  %v340 = vld [vmem:[%s5 + $0x150] sm:$0xff]
  %v341 = vld [vmem:[%s5 + $0x158] sm:$0xff]
  %v342 = vld [vmem:[%s5 + $0x160] sm:$0xff]
  %v343 = vld [vmem:[%s5 + $0x168] sm:$0xff]
  %v344 = vld [vmem:[%s5 + $0x170] sm:$0xff]
  %v345 = vld [vmem:[%s5 + $0x178] sm:$0xff]
  %v346 = vld [vmem:[%s5 + $0x180] sm:$0xff]
  %v347 = vld [vmem:[%s5 + $0x188] sm:$0xff]
  %v348 = vld [vmem:[%s5 + $0x190] sm:$0xff]
  %v349 = vld [vmem:[%s5 + $0x198] sm:$0xff]
  %v350 = vld [vmem:[%s5 + $0x1a0] sm:$0xff]
  %v351 = vld [vmem:[%s5 + $0x1a8] sm:$0xff]
  %v352 = vld [vmem:[%s5 + $0x1b0] sm:$0xff]
  %v353 = vld [vmem:[%s5 + $0x1b8] sm:$0xff]
  %v354 = vld [vmem:[%s5 + $0x1c0] sm:$0xff]
  %v355 = vld [vmem:[%s5 + $0x1c8] sm:$0xff]
  %v356 = vld [vmem:[%s5 + $0x1d0] sm:$0xff]
  %v357 = vld [vmem:[%s5 + $0x1d8] sm:$0xff]
  %v358 = vld [vmem:[%s5 + $0x1e0] sm:$0xff]
  %v359 = vld [vmem:[%s5 + $0x1e8] sm:$0xff]
  %v360 = vld [vmem:[%s5 + $0x1f0] sm:$0xff]
  %v361 = vld [vmem:[%s5 + $0x1f8] sm:$0xff]
  %362 = vmatpush.msra.mxu0 %v358
  %363 = vmatpush.msra.mxu0 %v354
  %364 = vmatpush.msra.mxu0 %v350
  %365 = vmatpush.msra.mxu0 %v346
  %366 = vmatpush.msra.mxu0 %v342
  %367 = vmatpush.msra.mxu0 %v338
  %368 = vmatpush.msra.mxu0 %v334
  %369 = vmatpush.msra.mxu0 %v330
  %370 = vmatpush.msra.mxu0 %v326
  %371 = vmatpush.msra.mxu0 %v322
  %372 = vmatpush.msra.mxu0 %v318
  %373 = vmatpush.msra.mxu0 %v314
  %374 = vmatpush.msra.mxu0 %v310
  %375 = vmatpush.msra.mxu0 %v306
  %376 = vmatpush.msra.mxu0 %v302
  %377 = vmatpush.msra.mxu0 %v298
  %378 = vmatmul.f32.gmra.mxu0 %v296
  %v379 = vpop.f32.mrf.mxu0
  %v380 = vadd.f32 0.0, %v379
  %381 = vdwg.mxu0
  %382 = vmatpush.msra.mxu0 %v359
  %383 = vmatpush.msra.mxu0 %v355
  %384 = vmatpush.msra.mxu0 %v351
  %385 = vmatpush.msra.mxu0 %v347
  %386 = vmatpush.msra.mxu0 %v343
  %387 = vmatpush.msra.mxu0 %v339
  %388 = vmatpush.msra.mxu0 %v335
  %389 = vmatpush.msra.mxu0 %v331
  %390 = vmatpush.msra.mxu0 %v327
  %391 = vmatpush.msra.mxu0 %v323
  %392 = vmatpush.msra.mxu0 %v319
  %393 = vmatpush.msra.mxu0 %v315
  %394 = vmatpush.msra.mxu0 %v311
  %395 = vmatpush.msra.mxu0 %v307
  %396 = vmatpush.msra.mxu0 %v303
  %397 = vmatpush.msra.mxu0 %v299
  %398 = vmatmul.f32.gmra.mxu0 %v296
  %v399 = vpop.f32.mrf.mxu0
  %v400 = vadd.f32 0.0, %v399
  %401 = vdwg.mxu0
  %402 = vmatpush.msra.mxu0 %v360
  %403 = vmatpush.msra.mxu0 %v356
  %404 = vmatpush.msra.mxu0 %v352
  %405 = vmatpush.msra.mxu0 %v348
  %406 = vmatpush.msra.mxu0 %v344
  %407 = vmatpush.msra.mxu0 %v340
  %408 = vmatpush.msra.mxu0 %v336
  %409 = vmatpush.msra.mxu0 %v332
  %410 = vmatpush.msra.mxu0 %v328
  %411 = vmatpush.msra.mxu0 %v324
  %412 = vmatpush.msra.mxu0 %v320
  %413 = vmatpush.msra.mxu0 %v316
  %414 = vmatpush.msra.mxu0 %v312
  %415 = vmatpush.msra.mxu0 %v308
  %416 = vmatpush.msra.mxu0 %v304
  %417 = vmatpush.msra.mxu0 %v300
  %418 = vmatmul.f32.gmra.mxu0 %v296
  %v419 = vpop.f32.mrf.mxu0
  %v420 = vadd.f32 0.0, %v419
  %421 = vdwg.mxu0
  %422 = vmatpush.msra.mxu0 %v361
  %423 = vmatpush.msra.mxu0 %v357
  %424 = vmatpush.msra.mxu0 %v353
  %425 = vmatpush.msra.mxu0 %v349
  %426 = vmatpush.msra.mxu0 %v345
  %427 = vmatpush.msra.mxu0 %v341
  %428 = vmatpush.msra.mxu0 %v337
  %429 = vmatpush.msra.mxu0 %v333
  %430 = vmatpush.msra.mxu0 %v329
  %431 = vmatpush.msra.mxu0 %v325
  %432 = vmatpush.msra.mxu0 %v321
  %433 = vmatpush.msra.mxu0 %v317
  %434 = vmatpush.msra.mxu0 %v313
  %435 = vmatpush.msra.mxu0 %v309
  %436 = vmatpush.msra.mxu0 %v305
  %437 = vmatpush.msra.mxu0 %v301
  %438 = vmatmul.f32.gmra.mxu0 %v296
  %v439 = vpop.f32.mrf.mxu0
  %v440 = vadd.f32 0.0, %v439
  %441 = vdwg.mxu0
  %v442 = vadd.f32 %v292, %v380
  %v443 = vadd.f32 %v293, %v400
  %v444 = vadd.f32 %v294, %v420
  %v445 = vadd.f32 %v295, %v440
  %v446 = vxor.u32 %v442, 2147483648
  %v447 = vmul.f32 %v446, 1.442695
  %v448 = vpow.pop %v447
  %v449 = vadd.f32 %v448, 1.0
  %v450 = vrcp.pop %v449
  %v451 = vmul.f32 %v449, %v450
  %v452 = vsub.f32 1.0, %v451
  %v453 = vmul.f32 %v450, %v452
  %v454 = vadd.f32 %v450, %v453
  %vm455 = vweird.f32 %v449
  %vm456 = vweird.f32 %v450
  %vm457 = vmor %vm455, %vm456
  %v458 = vsel %vm457, %v450, %v454
  %v459 = vand.u32 2147483647, %v449
  %vm460 = vcmp.eq.f32.partialorder %v459, 8.507059e+37
  %v461 = vand.u32 %v449, 2147483648
  %v462 = vor.u32 1.1754944e-38, %v461
  %v463 = vsel %vm460, %v462, %v458
  %v464 = vmul.f32 1.0, %v463
  %v465 = vxor.u32 %v443, 2147483648
  %v466 = vmul.f32 %v465, 1.442695
  %v467 = vpow.pop %v466
  %v468 = vadd.f32 %v467, 1.0
  %v469 = vrcp.pop %v468
  %v470 = vmul.f32 %v468, %v469
  %v471 = vsub.f32 1.0, %v470
  %v472 = vmul.f32 %v469, %v471
  %v473 = vadd.f32 %v469, %v472
  %vm474 = vweird.f32 %v468
  %vm475 = vweird.f32 %v469
  %vm476 = vmor %vm474, %vm475
  %v477 = vsel %vm476, %v469, %v473
  %v478 = vand.u32 2147483647, %v468
  %vm479 = vcmp.eq.f32.partialorder %v478, 8.507059e+37
  %v480 = vand.u32 %v468, 2147483648
  %v481 = vor.u32 1.1754944e-38, %v480
  %v482 = vsel %vm479, %v481, %v477
  %v483 = vmul.f32 1.0, %v482
  %v484 = vtanh.pop %v444
  %v485 = vxor.u32 %v445, 2147483648
  %v486 = vmul.f32 %v485, 1.442695
  %v487 = vpow.pop %v486
  %v488 = vadd.f32 %v487, 1.0
  %v489 = vrcp.pop %v488
  %v490 = vmul.f32 %v488, %v489
  %v491 = vsub.f32 1.0, %v490
  %v492 = vmul.f32 %v489, %v491
  %v493 = vadd.f32 %v489, %v492
  %vm494 = vweird.f32 %v488
  %vm495 = vweird.f32 %v489
  %vm496 = vmor %vm494, %vm495
  %v497 = vsel %vm496, %v489, %v493
  %v498 = vand.u32 2147483647, %v488
  %vm499 = vcmp.eq.f32.partialorder %v498, 8.507059e+37
  %v500 = vand.u32 %v488, 2147483648
  %v501 = vor.u32 1.1754944e-38, %v500
  %v502 = vsel %vm499, %v501, %v497
  %v503 = vmul.f32 1.0, %v502
  %v504 = vmul.f32 %v483, %v297
  %v505 = vmul.f32 %v464, %v484
  %v506 = vadd.f32 %v504, %v505
  %v507 = vtanh.pop %v506
  %v508 = vmul.f32 %v503, %v507
  %509 = vst [vmem:[#allocation3] sm:$0xff] %v508
  %510 = vst [vmem:[#allocation4] sm:$0xff] %v506
  %v511 = vld [vmem:[%s3] sm:$0xff]
  %v512 = vld [vmem:[%s3 + $0x8] sm:$0xff]
  %v513 = vld [vmem:[%s3 + $0x10] sm:$0xff]
  %v514 = vld [vmem:[%s3 + $0x18] sm:$0xff]
  %v515 = vld [vmem:[%s3 + $0x20] sm:$0xff]
  %v516 = vld [vmem:[%s3 + $0x28] sm:$0xff]
  %v517 = vld [vmem:[%s3 + $0x30] sm:$0xff]
  %v518 = vld [vmem:[%s3 + $0x38] sm:$0xff]
  %v519 = vld [vmem:[%s3 + $0x40] sm:$0xff]
  %v520 = vld [vmem:[%s3 + $0x48] sm:$0xff]
  %v521 = vld [vmem:[%s3 + $0x50] sm:$0xff]
  %v522 = vld [vmem:[%s3 + $0x58] sm:$0xff]
  %v523 = vld [vmem:[%s3 + $0x60] sm:$0xff]
  %v524 = vld [vmem:[%s3 + $0x68] sm:$0xff]
  %v525 = vld [vmem:[%s3 + $0x70] sm:$0xff]
  %v526 = vld [vmem:[%s3 + $0x78] sm:$0xff]
  %v527 = vld [vmem:[%s3 + $0x80] sm:$0xff]
  %v528 = vld [vmem:[%s3 + $0x88] sm:$0xff]
  %v529 = vld [vmem:[%s3 + $0x90] sm:$0xff]
  %v530 = vld [vmem:[%s3 + $0x98] sm:$0xff]
  %v531 = vld [vmem:[%s3 + $0xa0] sm:$0xff]
  %v532 = vld [vmem:[%s3 + $0xa8] sm:$0xff]
  %v533 = vld [vmem:[%s3 + $0xb0] sm:$0xff]
  %v534 = vld [vmem:[%s3 + $0xb8] sm:$0xff]
  %v535 = vld [vmem:[%s3 + $0xc0] sm:$0xff]
  %v536 = vld [vmem:[%s3 + $0xc8] sm:$0xff]
  %v537 = vld [vmem:[%s3 + $0xd0] sm:$0xff]
  %v538 = vld [vmem:[%s3 + $0xd8] sm:$0xff]
  %v539 = vld [vmem:[%s3 + $0xe0] sm:$0xff]
  %v540 = vld [vmem:[%s3 + $0xe8] sm:$0xff]
  %v541 = vld [vmem:[%s3 + $0xf0] sm:$0xff]
  %v542 = vld [vmem:[%s3 + $0xf8] sm:$0xff]
  %v543 = vld [vmem:[%s3 + $0x100] sm:$0xff]
  %v544 = vld [vmem:[%s3 + $0x108] sm:$0xff]
  %v545 = vld [vmem:[%s3 + $0x110] sm:$0xff]
  %v546 = vld [vmem:[%s3 + $0x118] sm:$0xff]
  %v547 = vld [vmem:[%s3 + $0x120] sm:$0xff]
  %v548 = vld [vmem:[%s3 + $0x128] sm:$0xff]
  %v549 = vld [vmem:[%s3 + $0x130] sm:$0xff]
  %v550 = vld [vmem:[%s3 + $0x138] sm:$0xff]
  %v551 = vld [vmem:[%s3 + $0x140] sm:$0xff]
  %v552 = vld [vmem:[%s3 + $0x148] sm:$0xff]
  %v553 = vld [vmem:[%s3 + $0x150] sm:$0xff]
  %v554 = vld [vmem:[%s3 + $0x158] sm:$0xff]
  %v555 = vld [vmem:[%s3 + $0x160] sm:$0xff]
  %v556 = vld [vmem:[%s3 + $0x168] sm:$0xff]
  %v557 = vld [vmem:[%s3 + $0x170] sm:$0xff]
  %v558 = vld [vmem:[%s3 + $0x178] sm:$0xff]
  %v559 = vld [vmem:[%s3 + $0x180] sm:$0xff]
  %v560 = vld [vmem:[%s3 + $0x188] sm:$0xff]
  %v561 = vld [vmem:[%s3 + $0x190] sm:$0xff]
  %v562 = vld [vmem:[%s3 + $0x198] sm:$0xff]
  %v563 = vld [vmem:[%s3 + $0x1a0] sm:$0xff]
  %v564 = vld [vmem:[%s3 + $0x1a8] sm:$0xff]
  %v565 = vld [vmem:[%s3 + $0x1b0] sm:$0xff]
  %v566 = vld [vmem:[%s3 + $0x1b8] sm:$0xff]
  %v567 = vld [vmem:[%s3 + $0x1c0] sm:$0xff]
  %v568 = vld [vmem:[%s3 + $0x1c8] sm:$0xff]
  %v569 = vld [vmem:[%s3 + $0x1d0] sm:$0xff]
  %v570 = vld [vmem:[%s3 + $0x1d8] sm:$0xff]
  %v571 = vld [vmem:[%s3 + $0x1e0] sm:$0xff]
  %v572 = vld [vmem:[%s3 + $0x1e8] sm:$0xff]
  %v573 = vld [vmem:[%s3 + $0x1f0] sm:$0xff]
  %v574 = vld [vmem:[%s3 + $0x1f8] sm:$0xff]
  %v575 = vld [vmem:[%s4] sm:$0xf]
  %v577 = vperm.slane %v575, 0
  %v578 = vperm.slane %v575, 1
  %v579 = vperm.slane %v575, 2
  %v580 = vperm.slane %v575, 3
  %585 = vmatpush.msra.mxu0 %v571
  %586 = vmatpush.msra.mxu0 %v567
  %587 = vmatpush.msra.mxu0 %v563
  %588 = vmatpush.msra.mxu0 %v559
  %589 = vmatpush.msra.mxu0 %v555
  %590 = vmatpush.msra.mxu0 %v551
  %591 = vmatpush.msra.mxu0 %v547
  %592 = vmatpush.msra.mxu0 %v543
  %593 = vmatpush.msra.mxu0 %v539
  %594 = vmatpush.msra.mxu0 %v535
  %595 = vmatpush.msra.mxu0 %v531
  %596 = vmatpush.msra.mxu0 %v527
  %597 = vmatpush.msra.mxu0 %v523
  %598 = vmatpush.msra.mxu0 %v519
  %599 = vmatpush.msra.mxu0 %v515
  %600 = vmatpush.msra.mxu0 %v511
  %601 = vmatmul.f32.gmra.mxu0 %v508
  %v602 = vpop.f32.mrf.mxu0
  %v603 = vadd.f32 %v577, %v602
  %604 = vdwg.mxu0
  %605 = vmatpush.msra.mxu0 %v572
  %606 = vmatpush.msra.mxu0 %v568
  %607 = vmatpush.msra.mxu0 %v564
  %608 = vmatpush.msra.mxu0 %v560
  %609 = vmatpush.msra.mxu0 %v556
  %610 = vmatpush.msra.mxu0 %v552
  %611 = vmatpush.msra.mxu0 %v548
  %612 = vmatpush.msra.mxu0 %v544
  %613 = vmatpush.msra.mxu0 %v540
  %614 = vmatpush.msra.mxu0 %v536
  %615 = vmatpush.msra.mxu0 %v532
  %616 = vmatpush.msra.mxu0 %v528
  %617 = vmatpush.msra.mxu0 %v524
  %618 = vmatpush.msra.mxu0 %v520
  %619 = vmatpush.msra.mxu0 %v516
  %620 = vmatpush.msra.mxu0 %v512
  %621 = vmatmul.f32.gmra.mxu0 %v508
  %v622 = vpop.f32.mrf.mxu0
  %v623 = vadd.f32 %v578, %v622
  %624 = vdwg.mxu0
  %625 = vmatpush.msra.mxu0 %v573
  %626 = vmatpush.msra.mxu0 %v569
  %627 = vmatpush.msra.mxu0 %v565
  %628 = vmatpush.msra.mxu0 %v561
  %629 = vmatpush.msra.mxu0 %v557
  %630 = vmatpush.msra.mxu0 %v553
  %631 = vmatpush.msra.mxu0 %v549
  %632 = vmatpush.msra.mxu0 %v545
  %633 = vmatpush.msra.mxu0 %v541
  %634 = vmatpush.msra.mxu0 %v537
  %635 = vmatpush.msra.mxu0 %v533
  %636 = vmatpush.msra.mxu0 %v529
  %637 = vmatpush.msra.mxu0 %v525
  %638 = vmatpush.msra.mxu0 %v521
  %639 = vmatpush.msra.mxu0 %v517
  %640 = vmatpush.msra.mxu0 %v513
  %641 = vmatmul.f32.gmra.mxu0 %v508
  %v642 = vpop.f32.mrf.mxu0
  %v643 = vadd.f32 %v579, %v642
  %644 = vdwg.mxu0
  %645 = vmatpush.msra.mxu0 %v574
  %646 = vmatpush.msra.mxu0 %v570
  %647 = vmatpush.msra.mxu0 %v566
  %648 = vmatpush.msra.mxu0 %v562
  %649 = vmatpush.msra.mxu0 %v558
  %650 = vmatpush.msra.mxu0 %v554
  %651 = vmatpush.msra.mxu0 %v550
  %652 = vmatpush.msra.mxu0 %v546
  %653 = vmatpush.msra.mxu0 %v542
  %654 = vmatpush.msra.mxu0 %v538
  %655 = vmatpush.msra.mxu0 %v534
  %656 = vmatpush.msra.mxu0 %v530
  %657 = vmatpush.msra.mxu0 %v526
  %658 = vmatpush.msra.mxu0 %v522
  %659 = vmatpush.msra.mxu0 %v518
  %660 = vmatpush.msra.mxu0 %v514
  %661 = vmatmul.f32.gmra.mxu0 %v508
  %v662 = vpop.f32.mrf.mxu0
  %v663 = vadd.f32 %v580, %v662
  %664 = vdwg.mxu0
  %s665 = scalar_lea.vmem [#allocation3], 8
  %v666 = vld [vmem:[%s665] sm:$0xff]
  %s667 = scalar_lea.vmem [#allocation4], 8
  %v668 = vld [vmem:[%s667] sm:$0xff]
  %s669 = scalar_lea.vmem %s5, 512
  %v670 = vld [vmem:[%s669] sm:$0xff]
  %v671 = vld [vmem:[%s669 + $0x8] sm:$0xff]
  %v672 = vld [vmem:[%s669 + $0x10] sm:$0xff]
  %v673 = vld [vmem:[%s669 + $0x18] sm:$0xff]
  %v674 = vld [vmem:[%s669 + $0x20] sm:$0xff]
  %v675 = vld [vmem:[%s669 + $0x28] sm:$0xff]
  %v676 = vld [vmem:[%s669 + $0x30] sm:$0xff]
  %v677 = vld [vmem:[%s669 + $0x38] sm:$0xff]
  %v678 = vld [vmem:[%s669 + $0x40] sm:$0xff]
  %v679 = vld [vmem:[%s669 + $0x48] sm:$0xff]
  %v680 = vld [vmem:[%s669 + $0x50] sm:$0xff]
  %v681 = vld [vmem:[%s669 + $0x58] sm:$0xff]
  %v682 = vld [vmem:[%s669 + $0x60] sm:$0xff]
  %v683 = vld [vmem:[%s669 + $0x68] sm:$0xff]
  %v684 = vld [vmem:[%s669 + $0x70] sm:$0xff]
  %v685 = vld [vmem:[%s669 + $0x78] sm:$0xff]
  %v686 = vld [vmem:[%s669 + $0x80] sm:$0xff]
  %v687 = vld [vmem:[%s669 + $0x88] sm:$0xff]
  %v688 = vld [vmem:[%s669 + $0x90] sm:$0xff]
  %v689 = vld [vmem:[%s669 + $0x98] sm:$0xff]
  %v690 = vld [vmem:[%s669 + $0xa0] sm:$0xff]
  %v691 = vld [vmem:[%s669 + $0xa8] sm:$0xff]
  %v692 = vld [vmem:[%s669 + $0xb0] sm:$0xff]
  %v693 = vld [vmem:[%s669 + $0xb8] sm:$0xff]
  %v694 = vld [vmem:[%s669 + $0xc0] sm:$0xff]
  %v695 = vld [vmem:[%s669 + $0xc8] sm:$0xff]
  %v696 = vld [vmem:[%s669 + $0xd0] sm:$0xff]
  %v697 = vld [vmem:[%s669 + $0xd8] sm:$0xff]
  %v698 = vld [vmem:[%s669 + $0xe0] sm:$0xff]
  %v699 = vld [vmem:[%s669 + $0xe8] sm:$0xff]
  %v700 = vld [vmem:[%s669 + $0xf0] sm:$0xff]
  %v701 = vld [vmem:[%s669 + $0xf8] sm:$0xff]
  %v702 = vld [vmem:[%s669 + $0x100] sm:$0xff]
  %v703 = vld [vmem:[%s669 + $0x108] sm:$0xff]
  %v704 = vld [vmem:[%s669 + $0x110] sm:$0xff]
  %v705 = vld [vmem:[%s669 + $0x118] sm:$0xff]
  %v706 = vld [vmem:[%s669 + $0x120] sm:$0xff]
  %v707 = vld [vmem:[%s669 + $0x128] sm:$0xff]
  %v708 = vld [vmem:[%s669 + $0x130] sm:$0xff]
  %v709 = vld [vmem:[%s669 + $0x138] sm:$0xff]
  %v710 = vld [vmem:[%s669 + $0x140] sm:$0xff]
  %v711 = vld [vmem:[%s669 + $0x148] sm:$0xff]
  %v712 = vld [vmem:[%s669 + $0x150] sm:$0xff]
  %v713 = vld [vmem:[%s669 + $0x158] sm:$0xff]
  %v714 = vld [vmem:[%s669 + $0x160] sm:$0xff]
  %v715 = vld [vmem:[%s669 + $0x168] sm:$0xff]
  %v716 = vld [vmem:[%s669 + $0x170] sm:$0xff]
  %v717 = vld [vmem:[%s669 + $0x178] sm:$0xff]
  %v718 = vld [vmem:[%s669 + $0x180] sm:$0xff]
  %v719 = vld [vmem:[%s669 + $0x188] sm:$0xff]
  %v720 = vld [vmem:[%s669 + $0x190] sm:$0xff]
  %v721 = vld [vmem:[%s669 + $0x198] sm:$0xff]
  %v722 = vld [vmem:[%s669 + $0x1a0] sm:$0xff]
  %v723 = vld [vmem:[%s669 + $0x1a8] sm:$0xff]
  %v724 = vld [vmem:[%s669 + $0x1b0] sm:$0xff]
  %v725 = vld [vmem:[%s669 + $0x1b8] sm:$0xff]
  %v726 = vld [vmem:[%s669 + $0x1c0] sm:$0xff]
  %v727 = vld [vmem:[%s669 + $0x1c8] sm:$0xff]
  %v728 = vld [vmem:[%s669 + $0x1d0] sm:$0xff]
  %v729 = vld [vmem:[%s669 + $0x1d8] sm:$0xff]
  %v730 = vld [vmem:[%s669 + $0x1e0] sm:$0xff]
  %v731 = vld [vmem:[%s669 + $0x1e8] sm:$0xff]
  %v732 = vld [vmem:[%s669 + $0x1f0] sm:$0xff]
  %v733 = vld [vmem:[%s669 + $0x1f8] sm:$0xff]
  %734 = vmatpush.msra.mxu0 %v730
  %735 = vmatpush.msra.mxu0 %v726
  %736 = vmatpush.msra.mxu0 %v722
  %737 = vmatpush.msra.mxu0 %v718
  %738 = vmatpush.msra.mxu0 %v714
  %739 = vmatpush.msra.mxu0 %v710
  %740 = vmatpush.msra.mxu0 %v706
  %741 = vmatpush.msra.mxu0 %v702
  %742 = vmatpush.msra.mxu0 %v698
  %743 = vmatpush.msra.mxu0 %v694
  %744 = vmatpush.msra.mxu0 %v690
  %745 = vmatpush.msra.mxu0 %v686
  %746 = vmatpush.msra.mxu0 %v682
  %747 = vmatpush.msra.mxu0 %v678
  %748 = vmatpush.msra.mxu0 %v674
  %749 = vmatpush.msra.mxu0 %v670
  %750 = vmatmul.f32.gmra.mxu0 %v666
  %v751 = vpop.f32.mrf.mxu0
  %v752 = vadd.f32 0.0, %v751
  %753 = vdwg.mxu0
  %754 = vmatpush.msra.mxu0 %v731
  %755 = vmatpush.msra.mxu0 %v727
  %756 = vmatpush.msra.mxu0 %v723
  %757 = vmatpush.msra.mxu0 %v719
  %758 = vmatpush.msra.mxu0 %v715
  %759 = vmatpush.msra.mxu0 %v711
  %760 = vmatpush.msra.mxu0 %v707
  %761 = vmatpush.msra.mxu0 %v703
  %762 = vmatpush.msra.mxu0 %v699
  %763 = vmatpush.msra.mxu0 %v695
  %764 = vmatpush.msra.mxu0 %v691
  %765 = vmatpush.msra.mxu0 %v687
  %766 = vmatpush.msra.mxu0 %v683
  %767 = vmatpush.msra.mxu0 %v679
  %768 = vmatpush.msra.mxu0 %v675
  %769 = vmatpush.msra.mxu0 %v671
  %770 = vmatmul.f32.gmra.mxu0 %v666
  %v771 = vpop.f32.mrf.mxu0
  %v772 = vadd.f32 0.0, %v771
  %773 = vdwg.mxu0
  %774 = vmatpush.msra.mxu0 %v732
  %775 = vmatpush.msra.mxu0 %v728
  %776 = vmatpush.msra.mxu0 %v724
  %777 = vmatpush.msra.mxu0 %v720
  %778 = vmatpush.msra.mxu0 %v716
  %779 = vmatpush.msra.mxu0 %v712
  %780 = vmatpush.msra.mxu0 %v708
  %781 = vmatpush.msra.mxu0 %v704
  %782 = vmatpush.msra.mxu0 %v700
  %783 = vmatpush.msra.mxu0 %v696
  %784 = vmatpush.msra.mxu0 %v692
  %785 = vmatpush.msra.mxu0 %v688
  %786 = vmatpush.msra.mxu0 %v684
  %787 = vmatpush.msra.mxu0 %v680
  %788 = vmatpush.msra.mxu0 %v676
  %789 = vmatpush.msra.mxu0 %v672
  %790 = vmatmul.f32.gmra.mxu0 %v666
  %v791 = vpop.f32.mrf.mxu0
  %v792 = vadd.f32 0.0, %v791
  %793 = vdwg.mxu0
  %794 = vmatpush.msra.mxu0 %v733
  %795 = vmatpush.msra.mxu0 %v729
  %796 = vmatpush.msra.mxu0 %v725
  %797 = vmatpush.msra.mxu0 %v721
  %798 = vmatpush.msra.mxu0 %v717
  %799 = vmatpush.msra.mxu0 %v713
  %800 = vmatpush.msra.mxu0 %v709
  %801 = vmatpush.msra.mxu0 %v705
  %802 = vmatpush.msra.mxu0 %v701
  %803 = vmatpush.msra.mxu0 %v697
  %804 = vmatpush.msra.mxu0 %v693
  %805 = vmatpush.msra.mxu0 %v689
  %806 = vmatpush.msra.mxu0 %v685
  %807 = vmatpush.msra.mxu0 %v681
  %808 = vmatpush.msra.mxu0 %v677
  %809 = vmatpush.msra.mxu0 %v673
  %810 = vmatmul.f32.gmra.mxu0 %v666
  %v811 = vpop.f32.mrf.mxu0
  %v812 = vadd.f32 0.0, %v811
  %813 = vdwg.mxu0
  %v814 = vadd.f32 %v603, %v752
  %v815 = vadd.f32 %v623, %v772
  %v816 = vadd.f32 %v643, %v792
  %v817 = vadd.f32 %v663, %v812
  %v818 = vxor.u32 %v814, 2147483648
  %v819 = vmul.f32 %v818, 1.442695
  %v820 = vpow.pop %v819
  %v821 = vadd.f32 %v820, 1.0
  %v822 = vrcp.pop %v821
  %v823 = vmul.f32 %v821, %v822
  %v824 = vsub.f32 1.0, %v823
  %v825 = vmul.f32 %v822, %v824
  %v826 = vadd.f32 %v822, %v825
  %vm827 = vweird.f32 %v821
  %vm828 = vweird.f32 %v822
  %vm829 = vmor %vm827, %vm828
  %v830 = vsel %vm829, %v822, %v826
  %v831 = vand.u32 2147483647, %v821
  %vm832 = vcmp.eq.f32.partialorder %v831, 8.507059e+37
  %v833 = vand.u32 %v821, 2147483648
  %v834 = vor.u32 1.1754944e-38, %v833
  %v835 = vsel %vm832, %v834, %v830
  %v836 = vmul.f32 1.0, %v835
  %v837 = vxor.u32 %v815, 2147483648
  %v838 = vmul.f32 %v837, 1.442695
  %v839 = vpow.pop %v838
  %v840 = vadd.f32 %v839, 1.0
  %v841 = vrcp.pop %v840
  %v842 = vmul.f32 %v840, %v841
  %v843 = vsub.f32 1.0, %v842
  %v844 = vmul.f32 %v841, %v843
  %v845 = vadd.f32 %v841, %v844
  %vm846 = vweird.f32 %v840
  %vm847 = vweird.f32 %v841
  %vm848 = vmor %vm846, %vm847
  %v849 = vsel %vm848, %v841, %v845
  %v850 = vand.u32 2147483647, %v840
  %vm851 = vcmp.eq.f32.partialorder %v850, 8.507059e+37
  %v852 = vand.u32 %v840, 2147483648
  %v853 = vor.u32 1.1754944e-38, %v852
  %v854 = vsel %vm851, %v853, %v849
  %v855 = vmul.f32 1.0, %v854
  %v856 = vtanh.pop %v816
  %v857 = vxor.u32 %v817, 2147483648
  %v858 = vmul.f32 %v857, 1.442695
  %v859 = vpow.pop %v858
  %v860 = vadd.f32 %v859, 1.0
  %v861 = vrcp.pop %v860
  %v862 = vmul.f32 %v860, %v861
  %v863 = vsub.f32 1.0, %v862
  %v864 = vmul.f32 %v861, %v863
  %v865 = vadd.f32 %v861, %v864
  %vm866 = vweird.f32 %v860
  %vm867 = vweird.f32 %v861
  %vm868 = vmor %vm866, %vm867
  %v869 = vsel %vm868, %v861, %v865
  %v870 = vand.u32 2147483647, %v860
  %vm871 = vcmp.eq.f32.partialorder %v870, 8.507059e+37
  %v872 = vand.u32 %v860, 2147483648
  %v873 = vor.u32 1.1754944e-38, %v872
  %v874 = vsel %vm871, %v873, %v869
  %v875 = vmul.f32 1.0, %v874
  %v876 = vmul.f32 %v855, %v668
  %v877 = vmul.f32 %v836, %v856
  %v878 = vadd.f32 %v876, %v877
  %v879 = vtanh.pop %v878
  %v880 = vmul.f32 %v875, %v879
  %881 = vst [vmem:[%s665] sm:$0xff] %v880
  %882 = vst [vmem:[%s667] sm:$0xff] %v878
  %v883 = vld [vmem:[#allocation2 + $0x20] sm:$0xff]
  %v884 = vld [vmem:[#allocation2 + $0x28] sm:$0xff]
  %v885 = vld [vmem:[#allocation2 + $0x30] sm:$0xff]
  %v886 = vld [vmem:[#allocation2 + $0x38] sm:$0xff]
  %v887 = vld [vmem:[#allocation3] sm:$0xff]
  %v888 = vld [vmem:[#allocation4] sm:$0xff]
  %v889 = vld [vmem:[%s5] sm:$0xff]
  %v890 = vld [vmem:[%s5 + $0x8] sm:$0xff]
  %v891 = vld [vmem:[%s5 + $0x10] sm:$0xff]
  %v892 = vld [vmem:[%s5 + $0x18] sm:$0xff]
  %v893 = vld [vmem:[%s5 + $0x20] sm:$0xff]
  %v894 = vld [vmem:[%s5 + $0x28] sm:$0xff]
  %v895 = vld [vmem:[%s5 + $0x30] sm:$0xff]
  %v896 = vld [vmem:[%s5 + $0x38] sm:$0xff]
  %v897 = vld [vmem:[%s5 + $0x40] sm:$0xff]
  %v898 = vld [vmem:[%s5 + $0x48] sm:$0xff]
  %v899 = vld [vmem:[%s5 + $0x50] sm:$0xff]
  %v900 = vld [vmem:[%s5 + $0x58] sm:$0xff]
  %v901 = vld [vmem:[%s5 + $0x60] sm:$0xff]
  %v902 = vld [vmem:[%s5 + $0x68] sm:$0xff]
  %v903 = vld [vmem:[%s5 + $0x70] sm:$0xff]
  %v904 = vld [vmem:[%s5 + $0x78] sm:$0xff]
  %v905 = vld [vmem:[%s5 + $0x80] sm:$0xff]
  %v906 = vld [vmem:[%s5 + $0x88] sm:$0xff]
  %v907 = vld [vmem:[%s5 + $0x90] sm:$0xff]
  %v908 = vld [vmem:[%s5 + $0x98] sm:$0xff]
  %v909 = vld [vmem:[%s5 + $0xa0] sm:$0xff]
  %v910 = vld [vmem:[%s5 + $0xa8] sm:$0xff]
  %v911 = vld [vmem:[%s5 + $0xb0] sm:$0xff]
  %v912 = vld [vmem:[%s5 + $0xb8] sm:$0xff]
  %v913 = vld [vmem:[%s5 + $0xc0] sm:$0xff]
  %v914 = vld [vmem:[%s5 + $0xc8] sm:$0xff]
  %v915 = vld [vmem:[%s5 + $0xd0] sm:$0xff]
  %v916 = vld [vmem:[%s5 + $0xd8] sm:$0xff]
  %v917 = vld [vmem:[%s5 + $0xe0] sm:$0xff]
  %v918 = vld [vmem:[%s5 + $0xe8] sm:$0xff]
  %v919 = vld [vmem:[%s5 + $0xf0] sm:$0xff]
  %v920 = vld [vmem:[%s5 + $0xf8] sm:$0xff]
  %v921 = vld [vmem:[%s5 + $0x100] sm:$0xff]
  %v922 = vld [vmem:[%s5 + $0x108] sm:$0xff]
  %v923 = vld [vmem:[%s5 + $0x110] sm:$0xff]
  %v924 = vld [vmem:[%s5 + $0x118] sm:$0xff]
  %v925 = vld [vmem:[%s5 + $0x120] sm:$0xff]
  %v926 = vld [vmem:[%s5 + $0x128] sm:$0xff]
  %v927 = vld [vmem:[%s5 + $0x130] sm:$0xff]
  %v928 = vld [vmem:[%s5 + $0x138] sm:$0xff]
  %v929 = vld [vmem:[%s5 + $0x140] sm:$0xff]
  %v930 = vld [vmem:[%s5 + $0x148] sm:$0xff]
  %v931 = vld [vmem:[%s5 + $0x150] sm:$0xff]
  %v932 = vld [vmem:[%s5 + $0x158] sm:$0xff]
  %v933 = vld [vmem:[%s5 + $0x160] sm:$0xff]
  %v934 = vld [vmem:[%s5 + $0x168] sm:$0xff]
  %v935 = vld [vmem:[%s5 + $0x170] sm:$0xff]
  %v936 = vld [vmem:[%s5 + $0x178] sm:$0xff]
  %v937 = vld [vmem:[%s5 + $0x180] sm:$0xff]
  %v938 = vld [vmem:[%s5 + $0x188] sm:$0xff]
  %v939 = vld [vmem:[%s5 + $0x190] sm:$0xff]
  %v940 = vld [vmem:[%s5 + $0x198] sm:$0xff]
  %v941 = vld [vmem:[%s5 + $0x1a0] sm:$0xff]
  %v942 = vld [vmem:[%s5 + $0x1a8] sm:$0xff]
  %v943 = vld [vmem:[%s5 + $0x1b0] sm:$0xff]
  %v944 = vld [vmem:[%s5 + $0x1b8] sm:$0xff]
  %v945 = vld [vmem:[%s5 + $0x1c0] sm:$0xff]
  %v946 = vld [vmem:[%s5 + $0x1c8] sm:$0xff]
  %v947 = vld [vmem:[%s5 + $0x1d0] sm:$0xff]
  %v948 = vld [vmem:[%s5 + $0x1d8] sm:$0xff]
  %v949 = vld [vmem:[%s5 + $0x1e0] sm:$0xff]
  %v950 = vld [vmem:[%s5 + $0x1e8] sm:$0xff]
  %v951 = vld [vmem:[%s5 + $0x1f0] sm:$0xff]
  %v952 = vld [vmem:[%s5 + $0x1f8] sm:$0xff]
  %953 = vmatpush.msra.mxu0 %v949
  %954 = vmatpush.msra.mxu0 %v945
  %955 = vmatpush.msra.mxu0 %v941
  %956 = vmatpush.msra.mxu0 %v937
  %957 = vmatpush.msra.mxu0 %v933
  %958 = vmatpush.msra.mxu0 %v929
  %959 = vmatpush.msra.mxu0 %v925
  %960 = vmatpush.msra.mxu0 %v921
  %961 = vmatpush.msra.mxu0 %v917
  %962 = vmatpush.msra.mxu0 %v913
  %963 = vmatpush.msra.mxu0 %v909
  %964 = vmatpush.msra.mxu0 %v905
  %965 = vmatpush.msra.mxu0 %v901
  %966 = vmatpush.msra.mxu0 %v897
  %967 = vmatpush.msra.mxu0 %v893
  %968 = vmatpush.msra.mxu0 %v889
  %969 = vmatmul.f32.gmra.mxu0 %v887
  %v970 = vpop.f32.mrf.mxu0
  %v971 = vadd.f32 0.0, %v970
  %972 = vdwg.mxu0
  %973 = vmatpush.msra.mxu0 %v950
  %974 = vmatpush.msra.mxu0 %v946
  %975 = vmatpush.msra.mxu0 %v942
  %976 = vmatpush.msra.mxu0 %v938
  %977 = vmatpush.msra.mxu0 %v934
  %978 = vmatpush.msra.mxu0 %v930
  %979 = vmatpush.msra.mxu0 %v926
  %980 = vmatpush.msra.mxu0 %v922
  %981 = vmatpush.msra.mxu0 %v918
  %982 = vmatpush.msra.mxu0 %v914
  %983 = vmatpush.msra.mxu0 %v910
  %984 = vmatpush.msra.mxu0 %v906
  %985 = vmatpush.msra.mxu0 %v902
  %986 = vmatpush.msra.mxu0 %v898
  %987 = vmatpush.msra.mxu0 %v894
  %988 = vmatpush.msra.mxu0 %v890
  %989 = vmatmul.f32.gmra.mxu0 %v887
  %v990 = vpop.f32.mrf.mxu0
  %v991 = vadd.f32 0.0, %v990
  %992 = vdwg.mxu0
  %993 = vmatpush.msra.mxu0 %v951
  %994 = vmatpush.msra.mxu0 %v947
  %995 = vmatpush.msra.mxu0 %v943
  %996 = vmatpush.msra.mxu0 %v939
  %997 = vmatpush.msra.mxu0 %v935
  %998 = vmatpush.msra.mxu0 %v931
  %999 = vmatpush.msra.mxu0 %v927
  %1000 = vmatpush.msra.mxu0 %v923
  %1001 = vmatpush.msra.mxu0 %v919
  %1002 = vmatpush.msra.mxu0 %v915
  %1003 = vmatpush.msra.mxu0 %v911
  %1004 = vmatpush.msra.mxu0 %v907
  %1005 = vmatpush.msra.mxu0 %v903
  %1006 = vmatpush.msra.mxu0 %v899
  %1007 = vmatpush.msra.mxu0 %v895
  %1008 = vmatpush.msra.mxu0 %v891
  %1009 = vmatmul.f32.gmra.mxu0 %v887
  %v1010 = vpop.f32.mrf.mxu0
  %v1011 = vadd.f32 0.0, %v1010
  %1012 = vdwg.mxu0
  %1013 = vmatpush.msra.mxu0 %v952
  %1014 = vmatpush.msra.mxu0 %v948
  %1015 = vmatpush.msra.mxu0 %v944
  %1016 = vmatpush.msra.mxu0 %v940
  %1017 = vmatpush.msra.mxu0 %v936
  %1018 = vmatpush.msra.mxu0 %v932
  %1019 = vmatpush.msra.mxu0 %v928
  %1020 = vmatpush.msra.mxu0 %v924
  %1021 = vmatpush.msra.mxu0 %v920
  %1022 = vmatpush.msra.mxu0 %v916
  %1023 = vmatpush.msra.mxu0 %v912
  %1024 = vmatpush.msra.mxu0 %v908
  %1025 = vmatpush.msra.mxu0 %v904
  %1026 = vmatpush.msra.mxu0 %v900
  %1027 = vmatpush.msra.mxu0 %v896
  %1028 = vmatpush.msra.mxu0 %v892
  %1029 = vmatmul.f32.gmra.mxu0 %v887
  %v1030 = vpop.f32.mrf.mxu0
  %v1031 = vadd.f32 0.0, %v1030
  %1032 = vdwg.mxu0
  %v1033 = vadd.f32 %v883, %v971
  %v1034 = vadd.f32 %v884, %v991
  %v1035 = vadd.f32 %v885, %v1011
  %v1036 = vadd.f32 %v886, %v1031
  %v1037 = vxor.u32 %v1033, 2147483648
  %v1038 = vmul.f32 %v1037, 1.442695
  %v1039 = vpow.pop %v1038
  %v1040 = vadd.f32 %v1039, 1.0
  %v1041 = vrcp.pop %v1040
  %v1042 = vmul.f32 %v1040, %v1041
  %v1043 = vsub.f32 1.0, %v1042
  %v1044 = vmul.f32 %v1041, %v1043
  %v1045 = vadd.f32 %v1041, %v1044
  %vm1046 = vweird.f32 %v1040
  %vm1047 = vweird.f32 %v1041
  %vm1048 = vmor %vm1046, %vm1047
  %v1049 = vsel %vm1048, %v1041, %v1045
  %v1050 = vand.u32 2147483647, %v1040
  %vm1051 = vcmp.eq.f32.partialorder %v1050, 8.507059e+37
  %v1052 = vand.u32 %v1040, 2147483648
  %v1053 = vor.u32 1.1754944e-38, %v1052
  %v1054 = vsel %vm1051, %v1053, %v1049
  %v1055 = vmul.f32 1.0, %v1054
  %v1056 = vxor.u32 %v1034, 2147483648
  %v1057 = vmul.f32 %v1056, 1.442695
  %v1058 = vpow.pop %v1057
  %v1059 = vadd.f32 %v1058, 1.0
  %v1060 = vrcp.pop %v1059
  %v1061 = vmul.f32 %v1059, %v1060
  %v1062 = vsub.f32 1.0, %v1061
  %v1063 = vmul.f32 %v1060, %v1062
  %v1064 = vadd.f32 %v1060, %v1063
  %vm1065 = vweird.f32 %v1059
  %vm1066 = vweird.f32 %v1060
  %vm1067 = vmor %vm1065, %vm1066
  %v1068 = vsel %vm1067, %v1060, %v1064
  %v1069 = vand.u32 2147483647, %v1059
  %vm1070 = vcmp.eq.f32.partialorder %v1069, 8.507059e+37
  %v1071 = vand.u32 %v1059, 2147483648
  %v1072 = vor.u32 1.1754944e-38, %v1071
  %v1073 = vsel %vm1070, %v1072, %v1068
  %v1074 = vmul.f32 1.0, %v1073
  %v1075 = vtanh.pop %v1035
  %v1076 = vxor.u32 %v1036, 2147483648
  %v1077 = vmul.f32 %v1076, 1.442695
  %v1078 = vpow.pop %v1077
  %v1079 = vadd.f32 %v1078, 1.0
  %v1080 = vrcp.pop %v1079
  %v1081 = vmul.f32 %v1079, %v1080
  %v1082 = vsub.f32 1.0, %v1081
  %v1083 = vmul.f32 %v1080, %v1082
  %v1084 = vadd.f32 %v1080, %v1083
  %vm1085 = vweird.f32 %v1079
  %vm1086 = vweird.f32 %v1080
  %vm1087 = vmor %vm1085, %vm1086
  %v1088 = vsel %vm1087, %v1080, %v1084
  %v1089 = vand.u32 2147483647, %v1079
  %vm1090 = vcmp.eq.f32.partialorder %v1089, 8.507059e+37
  %v1091 = vand.u32 %v1079, 2147483648
  %v1092 = vor.u32 1.1754944e-38, %v1091
  %v1093 = vsel %vm1090, %v1092, %v1088
  %v1094 = vmul.f32 1.0, %v1093
  %v1095 = vmul.f32 %v1074, %v888
  %v1096 = vmul.f32 %v1055, %v1075
  %v1097 = vadd.f32 %v1095, %v1096
  %v1098 = vtanh.pop %v1097
  %v1099 = vmul.f32 %v1094, %v1098
  %1100 = vst [vmem:[#allocation3] sm:$0xff] %v1099
  %1101 = vst [vmem:[#allocation4] sm:$0xff] %v1097
  %v1102 = vld [vmem:[%s3] sm:$0xff]
  %v1103 = vld [vmem:[%s3 + $0x8] sm:$0xff]
  %v1104 = vld [vmem:[%s3 + $0x10] sm:$0xff]
  %v1105 = vld [vmem:[%s3 + $0x18] sm:$0xff]
  %v1106 = vld [vmem:[%s3 + $0x20] sm:$0xff]
  %v1107 = vld [vmem:[%s3 + $0x28] sm:$0xff]
  %v1108 = vld [vmem:[%s3 + $0x30] sm:$0xff]
  %v1109 = vld [vmem:[%s3 + $0x38] sm:$0xff]
  %v1110 = vld [vmem:[%s3 + $0x40] sm:$0xff]
  %v1111 = vld [vmem:[%s3 + $0x48] sm:$0xff]
  %v1112 = vld [vmem:[%s3 + $0x50] sm:$0xff]
  %v1113 = vld [vmem:[%s3 + $0x58] sm:$0xff]
  %v1114 = vld [vmem:[%s3 + $0x60] sm:$0xff]
  %v1115 = vld [vmem:[%s3 + $0x68] sm:$0xff]
  %v1116 = vld [vmem:[%s3 + $0x70] sm:$0xff]
  %v1117 = vld [vmem:[%s3 + $0x78] sm:$0xff]
  %v1118 = vld [vmem:[%s3 + $0x80] sm:$0xff]
  %v1119 = vld [vmem:[%s3 + $0x88] sm:$0xff]
  %v1120 = vld [vmem:[%s3 + $0x90] sm:$0xff]
  %v1121 = vld [vmem:[%s3 + $0x98] sm:$0xff]
  %v1122 = vld [vmem:[%s3 + $0xa0] sm:$0xff]
  %v1123 = vld [vmem:[%s3 + $0xa8] sm:$0xff]
  %v1124 = vld [vmem:[%s3 + $0xb0] sm:$0xff]
  %v1125 = vld [vmem:[%s3 + $0xb8] sm:$0xff]
  %v1126 = vld [vmem:[%s3 + $0xc0] sm:$0xff]
  %v1127 = vld [vmem:[%s3 + $0xc8] sm:$0xff]
  %v1128 = vld [vmem:[%s3 + $0xd0] sm:$0xff]
  %v1129 = vld [vmem:[%s3 + $0xd8] sm:$0xff]
  %v1130 = vld [vmem:[%s3 + $0xe0] sm:$0xff]
  %v1131 = vld [vmem:[%s3 + $0xe8] sm:$0xff]
  %v1132 = vld [vmem:[%s3 + $0xf0] sm:$0xff]
  %v1133 = vld [vmem:[%s3 + $0xf8] sm:$0xff]
  %v1134 = vld [vmem:[%s3 + $0x100] sm:$0xff]
  %v1135 = vld [vmem:[%s3 + $0x108] sm:$0xff]
  %v1136 = vld [vmem:[%s3 + $0x110] sm:$0xff]
  %v1137 = vld [vmem:[%s3 + $0x118] sm:$0xff]
  %v1138 = vld [vmem:[%s3 + $0x120] sm:$0xff]
  %v1139 = vld [vmem:[%s3 + $0x128] sm:$0xff]
  %v1140 = vld [vmem:[%s3 + $0x130] sm:$0xff]
  %v1141 = vld [vmem:[%s3 + $0x138] sm:$0xff]
  %v1142 = vld [vmem:[%s3 + $0x140] sm:$0xff]
  %v1143 = vld [vmem:[%s3 + $0x148] sm:$0xff]
  %v1144 = vld [vmem:[%s3 + $0x150] sm:$0xff]
  %v1145 = vld [vmem:[%s3 + $0x158] sm:$0xff]
  %v1146 = vld [vmem:[%s3 + $0x160] sm:$0xff]
  %v1147 = vld [vmem:[%s3 + $0x168] sm:$0xff]
  %v1148 = vld [vmem:[%s3 + $0x170] sm:$0xff]
  %v1149 = vld [vmem:[%s3 + $0x178] sm:$0xff]
  %v1150 = vld [vmem:[%s3 + $0x180] sm:$0xff]
  %v1151 = vld [vmem:[%s3 + $0x188] sm:$0xff]
  %v1152 = vld [vmem:[%s3 + $0x190] sm:$0xff]
  %v1153 = vld [vmem:[%s3 + $0x198] sm:$0xff]
  %v1154 = vld [vmem:[%s3 + $0x1a0] sm:$0xff]
  %v1155 = vld [vmem:[%s3 + $0x1a8] sm:$0xff]
  %v1156 = vld [vmem:[%s3 + $0x1b0] sm:$0xff]
  %v1157 = vld [vmem:[%s3 + $0x1b8] sm:$0xff]
  %v1158 = vld [vmem:[%s3 + $0x1c0] sm:$0xff]
  %v1159 = vld [vmem:[%s3 + $0x1c8] sm:$0xff]
  %v1160 = vld [vmem:[%s3 + $0x1d0] sm:$0xff]
  %v1161 = vld [vmem:[%s3 + $0x1d8] sm:$0xff]
  %v1162 = vld [vmem:[%s3 + $0x1e0] sm:$0xff]
  %v1163 = vld [vmem:[%s3 + $0x1e8] sm:$0xff]
  %v1164 = vld [vmem:[%s3 + $0x1f0] sm:$0xff]
  %v1165 = vld [vmem:[%s3 + $0x1f8] sm:$0xff]
  %v1166 = vld [vmem:[%s4] sm:$0xf]
  %v1168 = vperm.slane %v1166, 0
  %v1169 = vperm.slane %v1166, 1
  %v1170 = vperm.slane %v1166, 2
  %v1171 = vperm.slane %v1166, 3
  %1176 = vmatpush.msra.mxu0 %v1162
  %1177 = vmatpush.msra.mxu0 %v1158
  %1178 = vmatpush.msra.mxu0 %v1154
  %1179 = vmatpush.msra.mxu0 %v1150
  %1180 = vmatpush.msra.mxu0 %v1146
  %1181 = vmatpush.msra.mxu0 %v1142
  %1182 = vmatpush.msra.mxu0 %v1138
  %1183 = vmatpush.msra.mxu0 %v1134
  %1184 = vmatpush.msra.mxu0 %v1130
  %1185 = vmatpush.msra.mxu0 %v1126
  %1186 = vmatpush.msra.mxu0 %v1122
  %1187 = vmatpush.msra.mxu0 %v1118
  %1188 = vmatpush.msra.mxu0 %v1114
  %1189 = vmatpush.msra.mxu0 %v1110
  %1190 = vmatpush.msra.mxu0 %v1106
  %1191 = vmatpush.msra.mxu0 %v1102
  %1192 = vmatmul.f32.gmra.mxu0 %v1099
  %v1193 = vpop.f32.mrf.mxu0
  %v1194 = vadd.f32 %v1168, %v1193
  %1195 = vdwg.mxu0
  %1196 = vmatpush.msra.mxu0 %v1163
  %1197 = vmatpush.msra.mxu0 %v1159
  %1198 = vmatpush.msra.mxu0 %v1155
  %1199 = vmatpush.msra.mxu0 %v1151
  %1200 = vmatpush.msra.mxu0 %v1147
  %1201 = vmatpush.msra.mxu0 %v1143
  %1202 = vmatpush.msra.mxu0 %v1139
  %1203 = vmatpush.msra.mxu0 %v1135
  %1204 = vmatpush.msra.mxu0 %v1131
  %1205 = vmatpush.msra.mxu0 %v1127
  %1206 = vmatpush.msra.mxu0 %v1123
  %1207 = vmatpush.msra.mxu0 %v1119
  %1208 = vmatpush.msra.mxu0 %v1115
  %1209 = vmatpush.msra.mxu0 %v1111
  %1210 = vmatpush.msra.mxu0 %v1107
  %1211 = vmatpush.msra.mxu0 %v1103
  %1212 = vmatmul.f32.gmra.mxu0 %v1099
  %v1213 = vpop.f32.mrf.mxu0
  %v1214 = vadd.f32 %v1169, %v1213
  %1215 = vdwg.mxu0
  %1216 = vmatpush.msra.mxu0 %v1164
  %1217 = vmatpush.msra.mxu0 %v1160
  %1218 = vmatpush.msra.mxu0 %v1156
  %1219 = vmatpush.msra.mxu0 %v1152
  %1220 = vmatpush.msra.mxu0 %v1148
  %1221 = vmatpush.msra.mxu0 %v1144
  %1222 = vmatpush.msra.mxu0 %v1140
  %1223 = vmatpush.msra.mxu0 %v1136
  %1224 = vmatpush.msra.mxu0 %v1132
  %1225 = vmatpush.msra.mxu0 %v1128
  %1226 = vmatpush.msra.mxu0 %v1124
  %1227 = vmatpush.msra.mxu0 %v1120
  %1228 = vmatpush.msra.mxu0 %v1116
  %1229 = vmatpush.msra.mxu0 %v1112
  %1230 = vmatpush.msra.mxu0 %v1108
  %1231 = vmatpush.msra.mxu0 %v1104
  %1232 = vmatmul.f32.gmra.mxu0 %v1099
  %v1233 = vpop.f32.mrf.mxu0
  %v1234 = vadd.f32 %v1170, %v1233
  %1235 = vdwg.mxu0
  %1236 = vmatpush.msra.mxu0 %v1165
  %1237 = vmatpush.msra.mxu0 %v1161
  %1238 = vmatpush.msra.mxu0 %v1157
  %1239 = vmatpush.msra.mxu0 %v1153
  %1240 = vmatpush.msra.mxu0 %v1149
  %1241 = vmatpush.msra.mxu0 %v1145
  %1242 = vmatpush.msra.mxu0 %v1141
  %1243 = vmatpush.msra.mxu0 %v1137
  %1244 = vmatpush.msra.mxu0 %v1133
  %1245 = vmatpush.msra.mxu0 %v1129
  %1246 = vmatpush.msra.mxu0 %v1125
  %1247 = vmatpush.msra.mxu0 %v1121
  %1248 = vmatpush.msra.mxu0 %v1117
  %1249 = vmatpush.msra.mxu0 %v1113
  %1250 = vmatpush.msra.mxu0 %v1109
  %1251 = vmatpush.msra.mxu0 %v1105
  %1252 = vmatmul.f32.gmra.mxu0 %v1099
  %v1253 = vpop.f32.mrf.mxu0
  %v1254 = vadd.f32 %v1171, %v1253
  %1255 = vdwg.mxu0
  %v1256 = vld [vmem:[%s665] sm:$0xff]
  %v1257 = vld [vmem:[%s667] sm:$0xff]
  %v1258 = vld [vmem:[%s669] sm:$0xff]
  %v1259 = vld [vmem:[%s669 + $0x8] sm:$0xff]
  %v1260 = vld [vmem:[%s669 + $0x10] sm:$0xff]
  %v1261 = vld [vmem:[%s669 + $0x18] sm:$0xff]
  %v1262 = vld [vmem:[%s669 + $0x20] sm:$0xff]
  %v1263 = vld [vmem:[%s669 + $0x28] sm:$0xff]
  %v1264 = vld [vmem:[%s669 + $0x30] sm:$0xff]
  %v1265 = vld [vmem:[%s669 + $0x38] sm:$0xff]
  %v1266 = vld [vmem:[%s669 + $0x40] sm:$0xff]
  %v1267 = vld [vmem:[%s669 + $0x48] sm:$0xff]
  %v1268 = vld [vmem:[%s669 + $0x50] sm:$0xff]
  %v1269 = vld [vmem:[%s669 + $0x58] sm:$0xff]
  %v1270 = vld [vmem:[%s669 + $0x60] sm:$0xff]
  %v1271 = vld [vmem:[%s669 + $0x68] sm:$0xff]
  %v1272 = vld [vmem:[%s669 + $0x70] sm:$0xff]
  %v1273 = vld [vmem:[%s669 + $0x78] sm:$0xff]
  %v1274 = vld [vmem:[%s669 + $0x80] sm:$0xff]
  %v1275 = vld [vmem:[%s669 + $0x88] sm:$0xff]
  %v1276 = vld [vmem:[%s669 + $0x90] sm:$0xff]
  %v1277 = vld [vmem:[%s669 + $0x98] sm:$0xff]
  %v1278 = vld [vmem:[%s669 + $0xa0] sm:$0xff]
  %v1279 = vld [vmem:[%s669 + $0xa8] sm:$0xff]
  %v1280 = vld [vmem:[%s669 + $0xb0] sm:$0xff]
  %v1281 = vld [vmem:[%s669 + $0xb8] sm:$0xff]
  %v1282 = vld [vmem:[%s669 + $0xc0] sm:$0xff]
  %v1283 = vld [vmem:[%s669 + $0xc8] sm:$0xff]
  %v1284 = vld [vmem:[%s669 + $0xd0] sm:$0xff]
  %v1285 = vld [vmem:[%s669 + $0xd8] sm:$0xff]
  %v1286 = vld [vmem:[%s669 + $0xe0] sm:$0xff]
  %v1287 = vld [vmem:[%s669 + $0xe8] sm:$0xff]
  %v1288 = vld [vmem:[%s669 + $0xf0] sm:$0xff]
  %v1289 = vld [vmem:[%s669 + $0xf8] sm:$0xff]
  %v1290 = vld [vmem:[%s669 + $0x100] sm:$0xff]
  %v1291 = vld [vmem:[%s669 + $0x108] sm:$0xff]
  %v1292 = vld [vmem:[%s669 + $0x110] sm:$0xff]
  %v1293 = vld [vmem:[%s669 + $0x118] sm:$0xff]
  %v1294 = vld [vmem:[%s669 + $0x120] sm:$0xff]
  %v1295 = vld [vmem:[%s669 + $0x128] sm:$0xff]
  %v1296 = vld [vmem:[%s669 + $0x130] sm:$0xff]
  %v1297 = vld [vmem:[%s669 + $0x138] sm:$0xff]
  %v1298 = vld [vmem:[%s669 + $0x140] sm:$0xff]
  %v1299 = vld [vmem:[%s669 + $0x148] sm:$0xff]
  %v1300 = vld [vmem:[%s669 + $0x150] sm:$0xff]
  %v1301 = vld [vmem:[%s669 + $0x158] sm:$0xff]
  %v1302 = vld [vmem:[%s669 + $0x160] sm:$0xff]
  %v1303 = vld [vmem:[%s669 + $0x168] sm:$0xff]
  %v1304 = vld [vmem:[%s669 + $0x170] sm:$0xff]
  %v1305 = vld [vmem:[%s669 + $0x178] sm:$0xff]
  %v1306 = vld [vmem:[%s669 + $0x180] sm:$0xff]
  %v1307 = vld [vmem:[%s669 + $0x188] sm:$0xff]
  %v1308 = vld [vmem:[%s669 + $0x190] sm:$0xff]
  %v1309 = vld [vmem:[%s669 + $0x198] sm:$0xff]
  %v1310 = vld [vmem:[%s669 + $0x1a0] sm:$0xff]
  %v1311 = vld [vmem:[%s669 + $0x1a8] sm:$0xff]
  %v1312 = vld [vmem:[%s669 + $0x1b0] sm:$0xff]
  %v1313 = vld [vmem:[%s669 + $0x1b8] sm:$0xff]
  %v1314 = vld [vmem:[%s669 + $0x1c0] sm:$0xff]
  %v1315 = vld [vmem:[%s669 + $0x1c8] sm:$0xff]
  %v1316 = vld [vmem:[%s669 + $0x1d0] sm:$0xff]
  %v1317 = vld [vmem:[%s669 + $0x1d8] sm:$0xff]
  %v1318 = vld [vmem:[%s669 + $0x1e0] sm:$0xff]
  %v1319 = vld [vmem:[%s669 + $0x1e8] sm:$0xff]
  %v1320 = vld [vmem:[%s669 + $0x1f0] sm:$0xff]
  %v1321 = vld [vmem:[%s669 + $0x1f8] sm:$0xff]
  %1322 = vmatpush.msra.mxu0 %v1318
  %1323 = vmatpush.msra.mxu0 %v1314
  %1324 = vmatpush.msra.mxu0 %v1310
  %1325 = vmatpush.msra.mxu0 %v1306
  %1326 = vmatpush.msra.mxu0 %v1302
  %1327 = vmatpush.msra.mxu0 %v1298
  %1328 = vmatpush.msra.mxu0 %v1294
  %1329 = vmatpush.msra.mxu0 %v1290
  %1330 = vmatpush.msra.mxu0 %v1286
  %1331 = vmatpush.msra.mxu0 %v1282
  %1332 = vmatpush.msra.mxu0 %v1278
  %1333 = vmatpush.msra.mxu0 %v1274
  %1334 = vmatpush.msra.mxu0 %v1270
  %1335 = vmatpush.msra.mxu0 %v1266
  %1336 = vmatpush.msra.mxu0 %v1262
  %1337 = vmatpush.msra.mxu0 %v1258
  %1338 = vmatmul.f32.gmra.mxu0 %v1256
  %v1339 = vpop.f32.mrf.mxu0
  %v1340 = vadd.f32 0.0, %v1339
  %1341 = vdwg.mxu0
  %1342 = vmatpush.msra.mxu0 %v1319
  %1343 = vmatpush.msra.mxu0 %v1315
  %1344 = vmatpush.msra.mxu0 %v1311
  %1345 = vmatpush.msra.mxu0 %v1307
  %1346 = vmatpush.msra.mxu0 %v1303
  %1347 = vmatpush.msra.mxu0 %v1299
  %1348 = vmatpush.msra.mxu0 %v1295
  %1349 = vmatpush.msra.mxu0 %v1291
  %1350 = vmatpush.msra.mxu0 %v1287
  %1351 = vmatpush.msra.mxu0 %v1283
  %1352 = vmatpush.msra.mxu0 %v1279
  %1353 = vmatpush.msra.mxu0 %v1275
  %1354 = vmatpush.msra.mxu0 %v1271
  %1355 = vmatpush.msra.mxu0 %v1267
  %1356 = vmatpush.msra.mxu0 %v1263
  %1357 = vmatpush.msra.mxu0 %v1259
  %1358 = vmatmul.f32.gmra.mxu0 %v1256
  %v1359 = vpop.f32.mrf.mxu0
  %v1360 = vadd.f32 0.0, %v1359
  %1361 = vdwg.mxu0
  %1362 = vmatpush.msra.mxu0 %v1320
  %1363 = vmatpush.msra.mxu0 %v1316
  %1364 = vmatpush.msra.mxu0 %v1312
  %1365 = vmatpush.msra.mxu0 %v1308
  %1366 = vmatpush.msra.mxu0 %v1304
  %1367 = vmatpush.msra.mxu0 %v1300
  %1368 = vmatpush.msra.mxu0 %v1296
  %1369 = vmatpush.msra.mxu0 %v1292
  %1370 = vmatpush.msra.mxu0 %v1288
  %1371 = vmatpush.msra.mxu0 %v1284
  %1372 = vmatpush.msra.mxu0 %v1280
  %1373 = vmatpush.msra.mxu0 %v1276
  %1374 = vmatpush.msra.mxu0 %v1272
  %1375 = vmatpush.msra.mxu0 %v1268
  %1376 = vmatpush.msra.mxu0 %v1264
  %1377 = vmatpush.msra.mxu0 %v1260
  %1378 = vmatmul.f32.gmra.mxu0 %v1256
  %v1379 = vpop.f32.mrf.mxu0
  %v1380 = vadd.f32 0.0, %v1379
  %1381 = vdwg.mxu0
  %1382 = vmatpush.msra.mxu0 %v1321
  %1383 = vmatpush.msra.mxu0 %v1317
  %1384 = vmatpush.msra.mxu0 %v1313
  %1385 = vmatpush.msra.mxu0 %v1309
  %1386 = vmatpush.msra.mxu0 %v1305
  %1387 = vmatpush.msra.mxu0 %v1301
  %1388 = vmatpush.msra.mxu0 %v1297
  %1389 = vmatpush.msra.mxu0 %v1293
  %1390 = vmatpush.msra.mxu0 %v1289
  %1391 = vmatpush.msra.mxu0 %v1285
  %1392 = vmatpush.msra.mxu0 %v1281
  %1393 = vmatpush.msra.mxu0 %v1277
  %1394 = vmatpush.msra.mxu0 %v1273
  %1395 = vmatpush.msra.mxu0 %v1269
  %1396 = vmatpush.msra.mxu0 %v1265
  %1397 = vmatpush.msra.mxu0 %v1261
  %1398 = vmatmul.f32.gmra.mxu0 %v1256
  %v1399 = vpop.f32.mrf.mxu0
  %v1400 = vadd.f32 0.0, %v1399
  %1401 = vdwg.mxu0
  %v1402 = vadd.f32 %v1194, %v1340
  %v1403 = vadd.f32 %v1214, %v1360
  %v1404 = vadd.f32 %v1234, %v1380
  %v1405 = vadd.f32 %v1254, %v1400
  %v1406 = vxor.u32 %v1402, 2147483648
  %v1407 = vmul.f32 %v1406, 1.442695
  %v1408 = vpow.pop %v1407
  %v1409 = vadd.f32 %v1408, 1.0
  %v1410 = vrcp.pop %v1409
  %v1411 = vmul.f32 %v1409, %v1410
  %v1412 = vsub.f32 1.0, %v1411
  %v1413 = vmul.f32 %v1410, %v1412
  %v1414 = vadd.f32 %v1410, %v1413
  %vm1415 = vweird.f32 %v1409
  %vm1416 = vweird.f32 %v1410
  %vm1417 = vmor %vm1415, %vm1416
  %v1418 = vsel %vm1417, %v1410, %v1414
  %v1419 = vand.u32 2147483647, %v1409
  %vm1420 = vcmp.eq.f32.partialorder %v1419, 8.507059e+37
  %v1421 = vand.u32 %v1409, 2147483648
  %v1422 = vor.u32 1.1754944e-38, %v1421
  %v1423 = vsel %vm1420, %v1422, %v1418
  %v1424 = vmul.f32 1.0, %v1423
  %v1425 = vxor.u32 %v1403, 2147483648
  %v1426 = vmul.f32 %v1425, 1.442695
  %v1427 = vpow.pop %v1426
  %v1428 = vadd.f32 %v1427, 1.0
  %v1429 = vrcp.pop %v1428
  %v1430 = vmul.f32 %v1428, %v1429
  %v1431 = vsub.f32 1.0, %v1430
  %v1432 = vmul.f32 %v1429, %v1431
  %v1433 = vadd.f32 %v1429, %v1432
  %vm1434 = vweird.f32 %v1428
  %vm1435 = vweird.f32 %v1429
  %vm1436 = vmor %vm1434, %vm1435
  %v1437 = vsel %vm1436, %v1429, %v1433
  %v1438 = vand.u32 2147483647, %v1428
  %vm1439 = vcmp.eq.f32.partialorder %v1438, 8.507059e+37
  %v1440 = vand.u32 %v1428, 2147483648
  %v1441 = vor.u32 1.1754944e-38, %v1440
  %v1442 = vsel %vm1439, %v1441, %v1437
  %v1443 = vmul.f32 1.0, %v1442
  %v1444 = vtanh.pop %v1404
  %v1445 = vxor.u32 %v1405, 2147483648
  %v1446 = vmul.f32 %v1445, 1.442695
  %v1447 = vpow.pop %v1446
  %v1448 = vadd.f32 %v1447, 1.0
  %v1449 = vrcp.pop %v1448
  %v1450 = vmul.f32 %v1448, %v1449
  %v1451 = vsub.f32 1.0, %v1450
  %v1452 = vmul.f32 %v1449, %v1451
  %v1453 = vadd.f32 %v1449, %v1452
  %vm1454 = vweird.f32 %v1448
  %vm1455 = vweird.f32 %v1449
  %vm1456 = vmor %vm1454, %vm1455
  %v1457 = vsel %vm1456, %v1449, %v1453
  %v1458 = vand.u32 2147483647, %v1448
  %vm1459 = vcmp.eq.f32.partialorder %v1458, 8.507059e+37
  %v1460 = vand.u32 %v1448, 2147483648
  %v1461 = vor.u32 1.1754944e-38, %v1460
  %v1462 = vsel %vm1459, %v1461, %v1457
  %v1463 = vmul.f32 1.0, %v1462
  %v1464 = vmul.f32 %v1443, %v1257
  %v1465 = vmul.f32 %v1424, %v1444
  %v1466 = vadd.f32 %v1464, %v1465
  %v1467 = vtanh.pop %v1466
  %v1468 = vmul.f32 %v1463, %v1467
  %1469 = vst [vmem:[%s665] sm:$0xff] %v1468
  %1470 = vst [vmem:[%s667] sm:$0xff] %v1466
  %v1471 = vld [vmem:[#allocation2 + $0x40] sm:$0xff]
  %v1472 = vld [vmem:[#allocation2 + $0x48] sm:$0xff]
  %v1473 = vld [vmem:[#allocation2 + $0x50] sm:$0xff]
  %v1474 = vld [vmem:[#allocation2 + $0x58] sm:$0xff]
  %v1475 = vld [vmem:[#allocation3] sm:$0xff]
  %v1476 = vld [vmem:[#allocation4] sm:$0xff]
  %v1477 = vld [vmem:[%s5] sm:$0xff]
  %v1478 = vld [vmem:[%s5 + $0x8] sm:$0xff]
  %v1479 = vld [vmem:[%s5 + $0x10] sm:$0xff]
  %v1480 = vld [vmem:[%s5 + $0x18] sm:$0xff]
  %v1481 = vld [vmem:[%s5 + $0x20] sm:$0xff]
  %v1482 = vld [vmem:[%s5 + $0x28] sm:$0xff]
  %v1483 = vld [vmem:[%s5 + $0x30] sm:$0xff]
  %v1484 = vld [vmem:[%s5 + $0x38] sm:$0xff]
  %v1485 = vld [vmem:[%s5 + $0x40] sm:$0xff]
  %v1486 = vld [vmem:[%s5 + $0x48] sm:$0xff]
  %v1487 = vld [vmem:[%s5 + $0x50] sm:$0xff]
  %v1488 = vld [vmem:[%s5 + $0x58] sm:$0xff]
  %v1489 = vld [vmem:[%s5 + $0x60] sm:$0xff]
  %v1490 = vld [vmem:[%s5 + $0x68] sm:$0xff]
  %v1491 = vld [vmem:[%s5 + $0x70] sm:$0xff]
  %v1492 = vld [vmem:[%s5 + $0x78] sm:$0xff]
  %v1493 = vld [vmem:[%s5 + $0x80] sm:$0xff]
  %v1494 = vld [vmem:[%s5 + $0x88] sm:$0xff]
  %v1495 = vld [vmem:[%s5 + $0x90] sm:$0xff]
  %v1496 = vld [vmem:[%s5 + $0x98] sm:$0xff]
  %v1497 = vld [vmem:[%s5 + $0xa0] sm:$0xff]
  %v1498 = vld [vmem:[%s5 + $0xa8] sm:$0xff]
  %v1499 = vld [vmem:[%s5 + $0xb0] sm:$0xff]
  %v1500 = vld [vmem:[%s5 + $0xb8] sm:$0xff]
  %v1501 = vld [vmem:[%s5 + $0xc0] sm:$0xff]
  %v1502 = vld [vmem:[%s5 + $0xc8] sm:$0xff]
  %v1503 = vld [vmem:[%s5 + $0xd0] sm:$0xff]
  %v1504 = vld [vmem:[%s5 + $0xd8] sm:$0xff]
  %v1505 = vld [vmem:[%s5 + $0xe0] sm:$0xff]
  %v1506 = vld [vmem:[%s5 + $0xe8] sm:$0xff]
  %v1507 = vld [vmem:[%s5 + $0xf0] sm:$0xff]
  %v1508 = vld [vmem:[%s5 + $0xf8] sm:$0xff]
  %v1509 = vld [vmem:[%s5 + $0x100] sm:$0xff]
  %v1510 = vld [vmem:[%s5 + $0x108] sm:$0xff]
  %v1511 = vld [vmem:[%s5 + $0x110] sm:$0xff]
  %v1512 = vld [vmem:[%s5 + $0x118] sm:$0xff]
  %v1513 = vld [vmem:[%s5 + $0x120] sm:$0xff]
  %v1514 = vld [vmem:[%s5 + $0x128] sm:$0xff]
  %v1515 = vld [vmem:[%s5 + $0x130] sm:$0xff]
  %v1516 = vld [vmem:[%s5 + $0x138] sm:$0xff]
  %v1517 = vld [vmem:[%s5 + $0x140] sm:$0xff]
  %v1518 = vld [vmem:[%s5 + $0x148] sm:$0xff]
  %v1519 = vld [vmem:[%s5 + $0x150] sm:$0xff]
  %v1520 = vld [vmem:[%s5 + $0x158] sm:$0xff]
  %v1521 = vld [vmem:[%s5 + $0x160] sm:$0xff]
  %v1522 = vld [vmem:[%s5 + $0x168] sm:$0xff]
  %v1523 = vld [vmem:[%s5 + $0x170] sm:$0xff]
  %v1524 = vld [vmem:[%s5 + $0x178] sm:$0xff]
  %v1525 = vld [vmem:[%s5 + $0x180] sm:$0xff]
  %v1526 = vld [vmem:[%s5 + $0x188] sm:$0xff]
  %v1527 = vld [vmem:[%s5 + $0x190] sm:$0xff]
  %v1528 = vld [vmem:[%s5 + $0x198] sm:$0xff]
  %v1529 = vld [vmem:[%s5 + $0x1a0] sm:$0xff]
  %v1530 = vld [vmem:[%s5 + $0x1a8] sm:$0xff]
  %v1531 = vld [vmem:[%s5 + $0x1b0] sm:$0xff]
  %v1532 = vld [vmem:[%s5 + $0x1b8] sm:$0xff]
  %v1533 = vld [vmem:[%s5 + $0x1c0] sm:$0xff]
  %v1534 = vld [vmem:[%s5 + $0x1c8] sm:$0xff]
  %v1535 = vld [vmem:[%s5 + $0x1d0] sm:$0xff]
  %v1536 = vld [vmem:[%s5 + $0x1d8] sm:$0xff]
  %v1537 = vld [vmem:[%s5 + $0x1e0] sm:$0xff]
  %v1538 = vld [vmem:[%s5 + $0x1e8] sm:$0xff]
  %v1539 = vld [vmem:[%s5 + $0x1f0] sm:$0xff]
  %v1540 = vld [vmem:[%s5 + $0x1f8] sm:$0xff]
  %1541 = vmatpush.msra.mxu0 %v1537
  %1542 = vmatpush.msra.mxu0 %v1533
  %1543 = vmatpush.msra.mxu0 %v1529
  %1544 = vmatpush.msra.mxu0 %v1525
  %1545 = vmatpush.msra.mxu0 %v1521
  %1546 = vmatpush.msra.mxu0 %v1517
  %1547 = vmatpush.msra.mxu0 %v1513
  %1548 = vmatpush.msra.mxu0 %v1509
  %1549 = vmatpush.msra.mxu0 %v1505
  %1550 = vmatpush.msra.mxu0 %v1501
  %1551 = vmatpush.msra.mxu0 %v1497
  %1552 = vmatpush.msra.mxu0 %v1493
  %1553 = vmatpush.msra.mxu0 %v1489
  %1554 = vmatpush.msra.mxu0 %v1485
  %1555 = vmatpush.msra.mxu0 %v1481
  %1556 = vmatpush.msra.mxu0 %v1477
  %1557 = vmatmul.f32.gmra.mxu0 %v1475
  %v1558 = vpop.f32.mrf.mxu0
  %v1559 = vadd.f32 0.0, %v1558
  %1560 = vdwg.mxu0
  %1561 = vmatpush.msra.mxu0 %v1538
  %1562 = vmatpush.msra.mxu0 %v1534
  %1563 = vmatpush.msra.mxu0 %v1530
  %1564 = vmatpush.msra.mxu0 %v1526
  %1565 = vmatpush.msra.mxu0 %v1522
  %1566 = vmatpush.msra.mxu0 %v1518
  %1567 = vmatpush.msra.mxu0 %v1514
  %1568 = vmatpush.msra.mxu0 %v1510
  %1569 = vmatpush.msra.mxu0 %v1506
  %1570 = vmatpush.msra.mxu0 %v1502
  %1571 = vmatpush.msra.mxu0 %v1498
  %1572 = vmatpush.msra.mxu0 %v1494
  %1573 = vmatpush.msra.mxu0 %v1490
  %1574 = vmatpush.msra.mxu0 %v1486
  %1575 = vmatpush.msra.mxu0 %v1482
  %1576 = vmatpush.msra.mxu0 %v1478
  %1577 = vmatmul.f32.gmra.mxu0 %v1475
  %v1578 = vpop.f32.mrf.mxu0
  %v1579 = vadd.f32 0.0, %v1578
  %1580 = vdwg.mxu0
  %1581 = vmatpush.msra.mxu0 %v1539
  %1582 = vmatpush.msra.mxu0 %v1535
  %1583 = vmatpush.msra.mxu0 %v1531
  %1584 = vmatpush.msra.mxu0 %v1527
  %1585 = vmatpush.msra.mxu0 %v1523
  %1586 = vmatpush.msra.mxu0 %v1519
  %1587 = vmatpush.msra.mxu0 %v1515
  %1588 = vmatpush.msra.mxu0 %v1511
  %1589 = vmatpush.msra.mxu0 %v1507
  %1590 = vmatpush.msra.mxu0 %v1503
  %1591 = vmatpush.msra.mxu0 %v1499
  %1592 = vmatpush.msra.mxu0 %v1495
  %1593 = vmatpush.msra.mxu0 %v1491
  %1594 = vmatpush.msra.mxu0 %v1487
  %1595 = vmatpush.msra.mxu0 %v1483
  %1596 = vmatpush.msra.mxu0 %v1479
  %1597 = vmatmul.f32.gmra.mxu0 %v1475
  %v1598 = vpop.f32.mrf.mxu0
  %v1599 = vadd.f32 0.0, %v1598
  %1600 = vdwg.mxu0
  %1601 = vmatpush.msra.mxu0 %v1540
  %1602 = vmatpush.msra.mxu0 %v1536
  %1603 = vmatpush.msra.mxu0 %v1532
  %1604 = vmatpush.msra.mxu0 %v1528
  %1605 = vmatpush.msra.mxu0 %v1524
  %1606 = vmatpush.msra.mxu0 %v1520
  %1607 = vmatpush.msra.mxu0 %v1516
  %1608 = vmatpush.msra.mxu0 %v1512
  %1609 = vmatpush.msra.mxu0 %v1508
  %1610 = vmatpush.msra.mxu0 %v1504
  %1611 = vmatpush.msra.mxu0 %v1500
  %1612 = vmatpush.msra.mxu0 %v1496
  %1613 = vmatpush.msra.mxu0 %v1492
  %1614 = vmatpush.msra.mxu0 %v1488
  %1615 = vmatpush.msra.mxu0 %v1484
  %1616 = vmatpush.msra.mxu0 %v1480
  %1617 = vmatmul.f32.gmra.mxu0 %v1475
  %v1618 = vpop.f32.mrf.mxu0
  %v1619 = vadd.f32 0.0, %v1618
  %1620 = vdwg.mxu0
  %v1621 = vadd.f32 %v1471, %v1559
  %v1622 = vadd.f32 %v1472, %v1579
  %v1623 = vadd.f32 %v1473, %v1599
  %v1624 = vadd.f32 %v1474, %v1619
  %v1625 = vxor.u32 %v1621, 2147483648
  %v1626 = vmul.f32 %v1625, 1.442695
  %v1627 = vpow.pop %v1626
  %v1628 = vadd.f32 %v1627, 1.0
  %v1629 = vrcp.pop %v1628
  %v1630 = vmul.f32 %v1628, %v1629
  %v1631 = vsub.f32 1.0, %v1630
  %v1632 = vmul.f32 %v1629, %v1631
  %v1633 = vadd.f32 %v1629, %v1632
  %vm1634 = vweird.f32 %v1628
  %vm1635 = vweird.f32 %v1629
  %vm1636 = vmor %vm1634, %vm1635
  %v1637 = vsel %vm1636, %v1629, %v1633
  %v1638 = vand.u32 2147483647, %v1628
  %vm1639 = vcmp.eq.f32.partialorder %v1638, 8.507059e+37
  %v1640 = vand.u32 %v1628, 2147483648
  %v1641 = vor.u32 1.1754944e-38, %v1640
  %v1642 = vsel %vm1639, %v1641, %v1637
  %v1643 = vmul.f32 1.0, %v1642
  %v1644 = vxor.u32 %v1622, 2147483648
  %v1645 = vmul.f32 %v1644, 1.442695
  %v1646 = vpow.pop %v1645
  %v1647 = vadd.f32 %v1646, 1.0
  %v1648 = vrcp.pop %v1647
  %v1649 = vmul.f32 %v1647, %v1648
  %v1650 = vsub.f32 1.0, %v1649
  %v1651 = vmul.f32 %v1648, %v1650
  %v1652 = vadd.f32 %v1648, %v1651
  %vm1653 = vweird.f32 %v1647
  %vm1654 = vweird.f32 %v1648
  %vm1655 = vmor %vm1653, %vm1654
  %v1656 = vsel %vm1655, %v1648, %v1652
  %v1657 = vand.u32 2147483647, %v1647
  %vm1658 = vcmp.eq.f32.partialorder %v1657, 8.507059e+37
  %v1659 = vand.u32 %v1647, 2147483648
  %v1660 = vor.u32 1.1754944e-38, %v1659
  %v1661 = vsel %vm1658, %v1660, %v1656
  %v1662 = vmul.f32 1.0, %v1661
  %v1663 = vtanh.pop %v1623
  %v1664 = vxor.u32 %v1624, 2147483648
  %v1665 = vmul.f32 %v1664, 1.442695
  %v1666 = vpow.pop %v1665
  %v1667 = vadd.f32 %v1666, 1.0
  %v1668 = vrcp.pop %v1667
  %v1669 = vmul.f32 %v1667, %v1668
  %v1670 = vsub.f32 1.0, %v1669
  %v1671 = vmul.f32 %v1668, %v1670
  %v1672 = vadd.f32 %v1668, %v1671
  %vm1673 = vweird.f32 %v1667
  %vm1674 = vweird.f32 %v1668
  %vm1675 = vmor %vm1673, %vm1674
  %v1676 = vsel %vm1675, %v1668, %v1672
  %v1677 = vand.u32 2147483647, %v1667
  %vm1678 = vcmp.eq.f32.partialorder %v1677, 8.507059e+37
  %v1679 = vand.u32 %v1667, 2147483648
  %v1680 = vor.u32 1.1754944e-38, %v1679
  %v1681 = vsel %vm1678, %v1680, %v1676
  %v1682 = vmul.f32 1.0, %v1681
  %v1683 = vmul.f32 %v1662, %v1476
  %v1684 = vmul.f32 %v1643, %v1663
  %v1685 = vadd.f32 %v1683, %v1684
  %v1686 = vtanh.pop %v1685
  %v1687 = vmul.f32 %v1682, %v1686
  %1688 = vst [vmem:[#allocation3] sm:$0xff] %v1687
  %1689 = vst [vmem:[#allocation4] sm:$0xff] %v1685
  %v1690 = vld [vmem:[%s3] sm:$0xff]
  %v1691 = vld [vmem:[%s3 + $0x8] sm:$0xff]
  %v1692 = vld [vmem:[%s3 + $0x10] sm:$0xff]
  %v1693 = vld [vmem:[%s3 + $0x18] sm:$0xff]
  %v1694 = vld [vmem:[%s3 + $0x20] sm:$0xff]
  %v1695 = vld [vmem:[%s3 + $0x28] sm:$0xff]
  %v1696 = vld [vmem:[%s3 + $0x30] sm:$0xff]
  %v1697 = vld [vmem:[%s3 + $0x38] sm:$0xff]
  %v1698 = vld [vmem:[%s3 + $0x40] sm:$0xff]
  %v1699 = vld [vmem:[%s3 + $0x48] sm:$0xff]
  %v1700 = vld [vmem:[%s3 + $0x50] sm:$0xff]
  %v1701 = vld [vmem:[%s3 + $0x58] sm:$0xff]
  %v1702 = vld [vmem:[%s3 + $0x60] sm:$0xff]
  %v1703 = vld [vmem:[%s3 + $0x68] sm:$0xff]
  %v1704 = vld [vmem:[%s3 + $0x70] sm:$0xff]
  %v1705 = vld [vmem:[%s3 + $0x78] sm:$0xff]
  %v1706 = vld [vmem:[%s3 + $0x80] sm:$0xff]
  %v1707 = vld [vmem:[%s3 + $0x88] sm:$0xff]
  %v1708 = vld [vmem:[%s3 + $0x90] sm:$0xff]
  %v1709 = vld [vmem:[%s3 + $0x98] sm:$0xff]
  %v1710 = vld [vmem:[%s3 + $0xa0] sm:$0xff]
  %v1711 = vld [vmem:[%s3 + $0xa8] sm:$0xff]
  %v1712 = vld [vmem:[%s3 + $0xb0] sm:$0xff]
  %v1713 = vld [vmem:[%s3 + $0xb8] sm:$0xff]
  %v1714 = vld [vmem:[%s3 + $0xc0] sm:$0xff]
  %v1715 = vld [vmem:[%s3 + $0xc8] sm:$0xff]
  %v1716 = vld [vmem:[%s3 + $0xd0] sm:$0xff]
  %v1717 = vld [vmem:[%s3 + $0xd8] sm:$0xff]
  %v1718 = vld [vmem:[%s3 + $0xe0] sm:$0xff]
  %v1719 = vld [vmem:[%s3 + $0xe8] sm:$0xff]
  %v1720 = vld [vmem:[%s3 + $0xf0] sm:$0xff]
  %v1721 = vld [vmem:[%s3 + $0xf8] sm:$0xff]
  %v1722 = vld [vmem:[%s3 + $0x100] sm:$0xff]
  %v1723 = vld [vmem:[%s3 + $0x108] sm:$0xff]
  %v1724 = vld [vmem:[%s3 + $0x110] sm:$0xff]
  %v1725 = vld [vmem:[%s3 + $0x118] sm:$0xff]
  %v1726 = vld [vmem:[%s3 + $0x120] sm:$0xff]
  %v1727 = vld [vmem:[%s3 + $0x128] sm:$0xff]
  %v1728 = vld [vmem:[%s3 + $0x130] sm:$0xff]
  %v1729 = vld [vmem:[%s3 + $0x138] sm:$0xff]
  %v1730 = vld [vmem:[%s3 + $0x140] sm:$0xff]
  %v1731 = vld [vmem:[%s3 + $0x148] sm:$0xff]
  %v1732 = vld [vmem:[%s3 + $0x150] sm:$0xff]
  %v1733 = vld [vmem:[%s3 + $0x158] sm:$0xff]
  %v1734 = vld [vmem:[%s3 + $0x160] sm:$0xff]
  %v1735 = vld [vmem:[%s3 + $0x168] sm:$0xff]
  %v1736 = vld [vmem:[%s3 + $0x170] sm:$0xff]
  %v1737 = vld [vmem:[%s3 + $0x178] sm:$0xff]
  %v1738 = vld [vmem:[%s3 + $0x180] sm:$0xff]
  %v1739 = vld [vmem:[%s3 + $0x188] sm:$0xff]
  %v1740 = vld [vmem:[%s3 + $0x190] sm:$0xff]
  %v1741 = vld [vmem:[%s3 + $0x198] sm:$0xff]
  %v1742 = vld [vmem:[%s3 + $0x1a0] sm:$0xff]
  %v1743 = vld [vmem:[%s3 + $0x1a8] sm:$0xff]
  %v1744 = vld [vmem:[%s3 + $0x1b0] sm:$0xff]
  %v1745 = vld [vmem:[%s3 + $0x1b8] sm:$0xff]
  %v1746 = vld [vmem:[%s3 + $0x1c0] sm:$0xff]
  %v1747 = vld [vmem:[%s3 + $0x1c8] sm:$0xff]
  %v1748 = vld [vmem:[%s3 + $0x1d0] sm:$0xff]
  %v1749 = vld [vmem:[%s3 + $0x1d8] sm:$0xff]
  %v1750 = vld [vmem:[%s3 + $0x1e0] sm:$0xff]
  %v1751 = vld [vmem:[%s3 + $0x1e8] sm:$0xff]
  %v1752 = vld [vmem:[%s3 + $0x1f0] sm:$0xff]
  %v1753 = vld [vmem:[%s3 + $0x1f8] sm:$0xff]
  %v1754 = vld [vmem:[%s4] sm:$0xf]
  %v1756 = vperm.slane %v1754, 0
  %v1757 = vperm.slane %v1754, 1
  %v1758 = vperm.slane %v1754, 2
  %v1759 = vperm.slane %v1754, 3
  %1764 = vmatpush.msra.mxu0 %v1750
  %1765 = vmatpush.msra.mxu0 %v1746
  %1766 = vmatpush.msra.mxu0 %v1742
  %1767 = vmatpush.msra.mxu0 %v1738
  %1768 = vmatpush.msra.mxu0 %v1734
  %1769 = vmatpush.msra.mxu0 %v1730
  %1770 = vmatpush.msra.mxu0 %v1726
  %1771 = vmatpush.msra.mxu0 %v1722
  %1772 = vmatpush.msra.mxu0 %v1718
  %1773 = vmatpush.msra.mxu0 %v1714
  %1774 = vmatpush.msra.mxu0 %v1710
  %1775 = vmatpush.msra.mxu0 %v1706
  %1776 = vmatpush.msra.mxu0 %v1702
  %1777 = vmatpush.msra.mxu0 %v1698
  %1778 = vmatpush.msra.mxu0 %v1694
  %1779 = vmatpush.msra.mxu0 %v1690
  %1780 = vmatmul.f32.gmra.mxu0 %v1687
  %v1781 = vpop.f32.mrf.mxu0
  %v1782 = vadd.f32 %v1756, %v1781
  %1783 = vdwg.mxu0
  %1784 = vmatpush.msra.mxu0 %v1751
  %1785 = vmatpush.msra.mxu0 %v1747
  %1786 = vmatpush.msra.mxu0 %v1743
  %1787 = vmatpush.msra.mxu0 %v1739
  %1788 = vmatpush.msra.mxu0 %v1735
  %1789 = vmatpush.msra.mxu0 %v1731
  %1790 = vmatpush.msra.mxu0 %v1727
  %1791 = vmatpush.msra.mxu0 %v1723
  %1792 = vmatpush.msra.mxu0 %v1719
  %1793 = vmatpush.msra.mxu0 %v1715
  %1794 = vmatpush.msra.mxu0 %v1711
  %1795 = vmatpush.msra.mxu0 %v1707
  %1796 = vmatpush.msra.mxu0 %v1703
  %1797 = vmatpush.msra.mxu0 %v1699
  %1798 = vmatpush.msra.mxu0 %v1695
  %1799 = vmatpush.msra.mxu0 %v1691
  %1800 = vmatmul.f32.gmra.mxu0 %v1687
  %v1801 = vpop.f32.mrf.mxu0
  %v1802 = vadd.f32 %v1757, %v1801
  %1803 = vdwg.mxu0
  %1804 = vmatpush.msra.mxu0 %v1752
  %1805 = vmatpush.msra.mxu0 %v1748
  %1806 = vmatpush.msra.mxu0 %v1744
  %1807 = vmatpush.msra.mxu0 %v1740
  %1808 = vmatpush.msra.mxu0 %v1736
  %1809 = vmatpush.msra.mxu0 %v1732
  %1810 = vmatpush.msra.mxu0 %v1728
  %1811 = vmatpush.msra.mxu0 %v1724
  %1812 = vmatpush.msra.mxu0 %v1720
  %1813 = vmatpush.msra.mxu0 %v1716
  %1814 = vmatpush.msra.mxu0 %v1712
  %1815 = vmatpush.msra.mxu0 %v1708
  %1816 = vmatpush.msra.mxu0 %v1704
  %1817 = vmatpush.msra.mxu0 %v1700
  %1818 = vmatpush.msra.mxu0 %v1696
  %1819 = vmatpush.msra.mxu0 %v1692
  %1820 = vmatmul.f32.gmra.mxu0 %v1687
  %v1821 = vpop.f32.mrf.mxu0
  %v1822 = vadd.f32 %v1758, %v1821
  %1823 = vdwg.mxu0
  %1824 = vmatpush.msra.mxu0 %v1753
  %1825 = vmatpush.msra.mxu0 %v1749
  %1826 = vmatpush.msra.mxu0 %v1745
  %1827 = vmatpush.msra.mxu0 %v1741
  %1828 = vmatpush.msra.mxu0 %v1737
  %1829 = vmatpush.msra.mxu0 %v1733
  %1830 = vmatpush.msra.mxu0 %v1729
  %1831 = vmatpush.msra.mxu0 %v1725
  %1832 = vmatpush.msra.mxu0 %v1721
  %1833 = vmatpush.msra.mxu0 %v1717
  %1834 = vmatpush.msra.mxu0 %v1713
  %1835 = vmatpush.msra.mxu0 %v1709
  %1836 = vmatpush.msra.mxu0 %v1705
  %1837 = vmatpush.msra.mxu0 %v1701
  %1838 = vmatpush.msra.mxu0 %v1697
  %1839 = vmatpush.msra.mxu0 %v1693
  %1840 = vmatmul.f32.gmra.mxu0 %v1687
  %v1841 = vpop.f32.mrf.mxu0
  %v1842 = vadd.f32 %v1759, %v1841
  %1843 = vdwg.mxu0
  %v1844 = vld [vmem:[%s665] sm:$0xff]
  %v1845 = vld [vmem:[%s667] sm:$0xff]
  %v1846 = vld [vmem:[%s669] sm:$0xff]
  %v1847 = vld [vmem:[%s669 + $0x8] sm:$0xff]
  %v1848 = vld [vmem:[%s669 + $0x10] sm:$0xff]
  %v1849 = vld [vmem:[%s669 + $0x18] sm:$0xff]
  %v1850 = vld [vmem:[%s669 + $0x20] sm:$0xff]
  %v1851 = vld [vmem:[%s669 + $0x28] sm:$0xff]
  %v1852 = vld [vmem:[%s669 + $0x30] sm:$0xff]
  %v1853 = vld [vmem:[%s669 + $0x38] sm:$0xff]
  %v1854 = vld [vmem:[%s669 + $0x40] sm:$0xff]
  %v1855 = vld [vmem:[%s669 + $0x48] sm:$0xff]
  %v1856 = vld [vmem:[%s669 + $0x50] sm:$0xff]
  %v1857 = vld [vmem:[%s669 + $0x58] sm:$0xff]
  %v1858 = vld [vmem:[%s669 + $0x60] sm:$0xff]
  %v1859 = vld [vmem:[%s669 + $0x68] sm:$0xff]
  %v1860 = vld [vmem:[%s669 + $0x70] sm:$0xff]
  %v1861 = vld [vmem:[%s669 + $0x78] sm:$0xff]
  %v1862 = vld [vmem:[%s669 + $0x80] sm:$0xff]
  %v1863 = vld [vmem:[%s669 + $0x88] sm:$0xff]
  %v1864 = vld [vmem:[%s669 + $0x90] sm:$0xff]
  %v1865 = vld [vmem:[%s669 + $0x98] sm:$0xff]
  %v1866 = vld [vmem:[%s669 + $0xa0] sm:$0xff]
  %v1867 = vld [vmem:[%s669 + $0xa8] sm:$0xff]
  %v1868 = vld [vmem:[%s669 + $0xb0] sm:$0xff]
  %v1869 = vld [vmem:[%s669 + $0xb8] sm:$0xff]
  %v1870 = vld [vmem:[%s669 + $0xc0] sm:$0xff]
  %v1871 = vld [vmem:[%s669 + $0xc8] sm:$0xff]
  %v1872 = vld [vmem:[%s669 + $0xd0] sm:$0xff]
  %v1873 = vld [vmem:[%s669 + $0xd8] sm:$0xff]
  %v1874 = vld [vmem:[%s669 + $0xe0] sm:$0xff]
  %v1875 = vld [vmem:[%s669 + $0xe8] sm:$0xff]
  %v1876 = vld [vmem:[%s669 + $0xf0] sm:$0xff]
  %v1877 = vld [vmem:[%s669 + $0xf8] sm:$0xff]
  %v1878 = vld [vmem:[%s669 + $0x100] sm:$0xff]
  %v1879 = vld [vmem:[%s669 + $0x108] sm:$0xff]
  %v1880 = vld [vmem:[%s669 + $0x110] sm:$0xff]
  %v1881 = vld [vmem:[%s669 + $0x118] sm:$0xff]
  %v1882 = vld [vmem:[%s669 + $0x120] sm:$0xff]
  %v1883 = vld [vmem:[%s669 + $0x128] sm:$0xff]
  %v1884 = vld [vmem:[%s669 + $0x130] sm:$0xff]
  %v1885 = vld [vmem:[%s669 + $0x138] sm:$0xff]
  %v1886 = vld [vmem:[%s669 + $0x140] sm:$0xff]
  %v1887 = vld [vmem:[%s669 + $0x148] sm:$0xff]
  %v1888 = vld [vmem:[%s669 + $0x150] sm:$0xff]
  %v1889 = vld [vmem:[%s669 + $0x158] sm:$0xff]
  %v1890 = vld [vmem:[%s669 + $0x160] sm:$0xff]
  %v1891 = vld [vmem:[%s669 + $0x168] sm:$0xff]
  %v1892 = vld [vmem:[%s669 + $0x170] sm:$0xff]
  %v1893 = vld [vmem:[%s669 + $0x178] sm:$0xff]
  %v1894 = vld [vmem:[%s669 + $0x180] sm:$0xff]
  %v1895 = vld [vmem:[%s669 + $0x188] sm:$0xff]
  %v1896 = vld [vmem:[%s669 + $0x190] sm:$0xff]
  %v1897 = vld [vmem:[%s669 + $0x198] sm:$0xff]
  %v1898 = vld [vmem:[%s669 + $0x1a0] sm:$0xff]
  %v1899 = vld [vmem:[%s669 + $0x1a8] sm:$0xff]
  %v1900 = vld [vmem:[%s669 + $0x1b0] sm:$0xff]
  %v1901 = vld [vmem:[%s669 + $0x1b8] sm:$0xff]
  %v1902 = vld [vmem:[%s669 + $0x1c0] sm:$0xff]
  %v1903 = vld [vmem:[%s669 + $0x1c8] sm:$0xff]
  %v1904 = vld [vmem:[%s669 + $0x1d0] sm:$0xff]
  %v1905 = vld [vmem:[%s669 + $0x1d8] sm:$0xff]
  %v1906 = vld [vmem:[%s669 + $0x1e0] sm:$0xff]
  %v1907 = vld [vmem:[%s669 + $0x1e8] sm:$0xff]
  %v1908 = vld [vmem:[%s669 + $0x1f0] sm:$0xff]
  %v1909 = vld [vmem:[%s669 + $0x1f8] sm:$0xff]
  %1910 = vmatpush.msra.mxu0 %v1906
  %1911 = vmatpush.msra.mxu0 %v1902
  %1912 = vmatpush.msra.mxu0 %v1898
  %1913 = vmatpush.msra.mxu0 %v1894
  %1914 = vmatpush.msra.mxu0 %v1890
  %1915 = vmatpush.msra.mxu0 %v1886
  %1916 = vmatpush.msra.mxu0 %v1882
  %1917 = vmatpush.msra.mxu0 %v1878
  %1918 = vmatpush.msra.mxu0 %v1874
  %1919 = vmatpush.msra.mxu0 %v1870
  %1920 = vmatpush.msra.mxu0 %v1866
  %1921 = vmatpush.msra.mxu0 %v1862
  %1922 = vmatpush.msra.mxu0 %v1858
  %1923 = vmatpush.msra.mxu0 %v1854
  %1924 = vmatpush.msra.mxu0 %v1850
  %1925 = vmatpush.msra.mxu0 %v1846
  %1926 = vmatmul.f32.gmra.mxu0 %v1844
  %v1927 = vpop.f32.mrf.mxu0
  %v1928 = vadd.f32 0.0, %v1927
  %1929 = vdwg.mxu0
  %1930 = vmatpush.msra.mxu0 %v1907
  %1931 = vmatpush.msra.mxu0 %v1903
  %1932 = vmatpush.msra.mxu0 %v1899
  %1933 = vmatpush.msra.mxu0 %v1895
  %1934 = vmatpush.msra.mxu0 %v1891
  %1935 = vmatpush.msra.mxu0 %v1887
  %1936 = vmatpush.msra.mxu0 %v1883
  %1937 = vmatpush.msra.mxu0 %v1879
  %1938 = vmatpush.msra.mxu0 %v1875
  %1939 = vmatpush.msra.mxu0 %v1871
  %1940 = vmatpush.msra.mxu0 %v1867
  %1941 = vmatpush.msra.mxu0 %v1863
  %1942 = vmatpush.msra.mxu0 %v1859
  %1943 = vmatpush.msra.mxu0 %v1855
  %1944 = vmatpush.msra.mxu0 %v1851
  %1945 = vmatpush.msra.mxu0 %v1847
  %1946 = vmatmul.f32.gmra.mxu0 %v1844
  %v1947 = vpop.f32.mrf.mxu0
  %v1948 = vadd.f32 0.0, %v1947
  %1949 = vdwg.mxu0
  %1950 = vmatpush.msra.mxu0 %v1908
  %1951 = vmatpush.msra.mxu0 %v1904
  %1952 = vmatpush.msra.mxu0 %v1900
  %1953 = vmatpush.msra.mxu0 %v1896
  %1954 = vmatpush.msra.mxu0 %v1892
  %1955 = vmatpush.msra.mxu0 %v1888
  %1956 = vmatpush.msra.mxu0 %v1884
  %1957 = vmatpush.msra.mxu0 %v1880
  %1958 = vmatpush.msra.mxu0 %v1876
  %1959 = vmatpush.msra.mxu0 %v1872
  %1960 = vmatpush.msra.mxu0 %v1868
  %1961 = vmatpush.msra.mxu0 %v1864
  %1962 = vmatpush.msra.mxu0 %v1860
  %1963 = vmatpush.msra.mxu0 %v1856
  %1964 = vmatpush.msra.mxu0 %v1852
  %1965 = vmatpush.msra.mxu0 %v1848
  %1966 = vmatmul.f32.gmra.mxu0 %v1844
  %v1967 = vpop.f32.mrf.mxu0
  %v1968 = vadd.f32 0.0, %v1967
  %1969 = vdwg.mxu0
  %1970 = vmatpush.msra.mxu0 %v1909
  %1971 = vmatpush.msra.mxu0 %v1905
  %1972 = vmatpush.msra.mxu0 %v1901
  %1973 = vmatpush.msra.mxu0 %v1897
  %1974 = vmatpush.msra.mxu0 %v1893
  %1975 = vmatpush.msra.mxu0 %v1889
  %1976 = vmatpush.msra.mxu0 %v1885
  %1977 = vmatpush.msra.mxu0 %v1881
  %1978 = vmatpush.msra.mxu0 %v1877
  %1979 = vmatpush.msra.mxu0 %v1873
  %1980 = vmatpush.msra.mxu0 %v1869
  %1981 = vmatpush.msra.mxu0 %v1865
  %1982 = vmatpush.msra.mxu0 %v1861
  %1983 = vmatpush.msra.mxu0 %v1857
  %1984 = vmatpush.msra.mxu0 %v1853
  %1985 = vmatpush.msra.mxu0 %v1849
  %1986 = vmatmul.f32.gmra.mxu0 %v1844
  %v1987 = vpop.f32.mrf.mxu0
  %v1988 = vadd.f32 0.0, %v1987
  %1989 = vdwg.mxu0
  %v1990 = vadd.f32 %v1782, %v1928
  %v1991 = vadd.f32 %v1802, %v1948
  %v1992 = vadd.f32 %v1822, %v1968
  %v1993 = vadd.f32 %v1842, %v1988
  %v1994 = vxor.u32 %v1990, 2147483648
  %v1995 = vmul.f32 %v1994, 1.442695
  %v1996 = vpow.pop %v1995
  %v1997 = vadd.f32 %v1996, 1.0
  %v1998 = vrcp.pop %v1997
  %v1999 = vmul.f32 %v1997, %v1998
  %v2000 = vsub.f32 1.0, %v1999
  %v2001 = vmul.f32 %v1998, %v2000
  %v2002 = vadd.f32 %v1998, %v2001
  %vm2003 = vweird.f32 %v1997
  %vm2004 = vweird.f32 %v1998
  %vm2005 = vmor %vm2003, %vm2004
  %v2006 = vsel %vm2005, %v1998, %v2002
  %v2007 = vand.u32 2147483647, %v1997
  %vm2008 = vcmp.eq.f32.partialorder %v2007, 8.507059e+37
  %v2009 = vand.u32 %v1997, 2147483648
  %v2010 = vor.u32 1.1754944e-38, %v2009
  %v2011 = vsel %vm2008, %v2010, %v2006
  %v2012 = vmul.f32 1.0, %v2011
  %v2013 = vxor.u32 %v1991, 2147483648
  %v2014 = vmul.f32 %v2013, 1.442695
  %v2015 = vpow.pop %v2014
  %v2016 = vadd.f32 %v2015, 1.0
  %v2017 = vrcp.pop %v2016
  %v2018 = vmul.f32 %v2016, %v2017
  %v2019 = vsub.f32 1.0, %v2018
  %v2020 = vmul.f32 %v2017, %v2019
  %v2021 = vadd.f32 %v2017, %v2020
  %vm2022 = vweird.f32 %v2016
  %vm2023 = vweird.f32 %v2017
  %vm2024 = vmor %vm2022, %vm2023
  %v2025 = vsel %vm2024, %v2017, %v2021
  %v2026 = vand.u32 2147483647, %v2016
  %vm2027 = vcmp.eq.f32.partialorder %v2026, 8.507059e+37
  %v2028 = vand.u32 %v2016, 2147483648
  %v2029 = vor.u32 1.1754944e-38, %v2028
  %v2030 = vsel %vm2027, %v2029, %v2025
  %v2031 = vmul.f32 1.0, %v2030
  %v2032 = vtanh.pop %v1992
  %v2033 = vxor.u32 %v1993, 2147483648
  %v2034 = vmul.f32 %v2033, 1.442695
  %v2035 = vpow.pop %v2034
  %v2036 = vadd.f32 %v2035, 1.0
  %v2037 = vrcp.pop %v2036
  %v2038 = vmul.f32 %v2036, %v2037
  %v2039 = vsub.f32 1.0, %v2038
  %v2040 = vmul.f32 %v2037, %v2039
  %v2041 = vadd.f32 %v2037, %v2040
  %vm2042 = vweird.f32 %v2036
  %vm2043 = vweird.f32 %v2037
  %vm2044 = vmor %vm2042, %vm2043
  %v2045 = vsel %vm2044, %v2037, %v2041
  %v2046 = vand.u32 2147483647, %v2036
  %vm2047 = vcmp.eq.f32.partialorder %v2046, 8.507059e+37
  %v2048 = vand.u32 %v2036, 2147483648
  %v2049 = vor.u32 1.1754944e-38, %v2048
  %v2050 = vsel %vm2047, %v2049, %v2045
  %v2051 = vmul.f32 1.0, %v2050
  %v2052 = vmul.f32 %v2031, %v1845
  %v2053 = vmul.f32 %v2012, %v2032
  %v2054 = vadd.f32 %v2052, %v2053
  %v2055 = vtanh.pop %v2054
  %v2056 = vmul.f32 %v2051, %v2055
  %2057 = vst [vmem:[%s665] sm:$0xff] %v2056
  %2058 = vst [vmem:[%s667] sm:$0xff] %v2054
  %v2059 = vld [vmem:[#allocation2 + $0x60] sm:$0xff]
  %v2060 = vld [vmem:[#allocation2 + $0x68] sm:$0xff]
  %v2061 = vld [vmem:[#allocation2 + $0x70] sm:$0xff]
  %v2062 = vld [vmem:[#allocation2 + $0x78] sm:$0xff]
  %v2063 = vld [vmem:[#allocation3] sm:$0xff]
  %v2064 = vld [vmem:[#allocation4] sm:$0xff]
  %v2065 = vld [vmem:[%s5] sm:$0xff]
  %v2066 = vld [vmem:[%s5 + $0x8] sm:$0xff]
  %v2067 = vld [vmem:[%s5 + $0x10] sm:$0xff]
  %v2068 = vld [vmem:[%s5 + $0x18] sm:$0xff]
  %v2069 = vld [vmem:[%s5 + $0x20] sm:$0xff]
  %v2070 = vld [vmem:[%s5 + $0x28] sm:$0xff]
  %v2071 = vld [vmem:[%s5 + $0x30] sm:$0xff]
  %v2072 = vld [vmem:[%s5 + $0x38] sm:$0xff]
  %v2073 = vld [vmem:[%s5 + $0x40] sm:$0xff]
  %v2074 = vld [vmem:[%s5 + $0x48] sm:$0xff]
  %v2075 = vld [vmem:[%s5 + $0x50] sm:$0xff]
  %v2076 = vld [vmem:[%s5 + $0x58] sm:$0xff]
  %v2077 = vld [vmem:[%s5 + $0x60] sm:$0xff]
  %v2078 = vld [vmem:[%s5 + $0x68] sm:$0xff]
  %v2079 = vld [vmem:[%s5 + $0x70] sm:$0xff]
  %v2080 = vld [vmem:[%s5 + $0x78] sm:$0xff]
  %v2081 = vld [vmem:[%s5 + $0x80] sm:$0xff]
  %v2082 = vld [vmem:[%s5 + $0x88] sm:$0xff]
  %v2083 = vld [vmem:[%s5 + $0x90] sm:$0xff]
  %v2084 = vld [vmem:[%s5 + $0x98] sm:$0xff]
  %v2085 = vld [vmem:[%s5 + $0xa0] sm:$0xff]
  %v2086 = vld [vmem:[%s5 + $0xa8] sm:$0xff]
  %v2087 = vld [vmem:[%s5 + $0xb0] sm:$0xff]
  %v2088 = vld [vmem:[%s5 + $0xb8] sm:$0xff]
  %v2089 = vld [vmem:[%s5 + $0xc0] sm:$0xff]
  %v2090 = vld [vmem:[%s5 + $0xc8] sm:$0xff]
  %v2091 = vld [vmem:[%s5 + $0xd0] sm:$0xff]
  %v2092 = vld [vmem:[%s5 + $0xd8] sm:$0xff]
  %v2093 = vld [vmem:[%s5 + $0xe0] sm:$0xff]
  %v2094 = vld [vmem:[%s5 + $0xe8] sm:$0xff]
  %v2095 = vld [vmem:[%s5 + $0xf0] sm:$0xff]
  %v2096 = vld [vmem:[%s5 + $0xf8] sm:$0xff]
  %v2097 = vld [vmem:[%s5 + $0x100] sm:$0xff]
  %v2098 = vld [vmem:[%s5 + $0x108] sm:$0xff]
  %v2099 = vld [vmem:[%s5 + $0x110] sm:$0xff]
  %v2100 = vld [vmem:[%s5 + $0x118] sm:$0xff]
  %v2101 = vld [vmem:[%s5 + $0x120] sm:$0xff]
  %v2102 = vld [vmem:[%s5 + $0x128] sm:$0xff]
  %v2103 = vld [vmem:[%s5 + $0x130] sm:$0xff]
  %v2104 = vld [vmem:[%s5 + $0x138] sm:$0xff]
  %v2105 = vld [vmem:[%s5 + $0x140] sm:$0xff]
  %v2106 = vld [vmem:[%s5 + $0x148] sm:$0xff]
  %v2107 = vld [vmem:[%s5 + $0x150] sm:$0xff]
  %v2108 = vld [vmem:[%s5 + $0x158] sm:$0xff]
  %v2109 = vld [vmem:[%s5 + $0x160] sm:$0xff]
  %v2110 = vld [vmem:[%s5 + $0x168] sm:$0xff]
  %v2111 = vld [vmem:[%s5 + $0x170] sm:$0xff]
  %v2112 = vld [vmem:[%s5 + $0x178] sm:$0xff]
  %v2113 = vld [vmem:[%s5 + $0x180] sm:$0xff]
  %v2114 = vld [vmem:[%s5 + $0x188] sm:$0xff]
  %v2115 = vld [vmem:[%s5 + $0x190] sm:$0xff]
  %v2116 = vld [vmem:[%s5 + $0x198] sm:$0xff]
  %v2117 = vld [vmem:[%s5 + $0x1a0] sm:$0xff]
  %v2118 = vld [vmem:[%s5 + $0x1a8] sm:$0xff]
  %v2119 = vld [vmem:[%s5 + $0x1b0] sm:$0xff]
  %v2120 = vld [vmem:[%s5 + $0x1b8] sm:$0xff]
  %v2121 = vld [vmem:[%s5 + $0x1c0] sm:$0xff]
  %v2122 = vld [vmem:[%s5 + $0x1c8] sm:$0xff]
  %v2123 = vld [vmem:[%s5 + $0x1d0] sm:$0xff]
  %v2124 = vld [vmem:[%s5 + $0x1d8] sm:$0xff]
  %v2125 = vld [vmem:[%s5 + $0x1e0] sm:$0xff]
  %v2126 = vld [vmem:[%s5 + $0x1e8] sm:$0xff]
  %v2127 = vld [vmem:[%s5 + $0x1f0] sm:$0xff]
  %v2128 = vld [vmem:[%s5 + $0x1f8] sm:$0xff]
  %2129 = vmatpush.msra.mxu0 %v2125
  %2130 = vmatpush.msra.mxu0 %v2121
  %2131 = vmatpush.msra.mxu0 %v2117
  %2132 = vmatpush.msra.mxu0 %v2113
  %2133 = vmatpush.msra.mxu0 %v2109
  %2134 = vmatpush.msra.mxu0 %v2105
  %2135 = vmatpush.msra.mxu0 %v2101
  %2136 = vmatpush.msra.mxu0 %v2097
  %2137 = vmatpush.msra.mxu0 %v2093
  %2138 = vmatpush.msra.mxu0 %v2089
  %2139 = vmatpush.msra.mxu0 %v2085
  %2140 = vmatpush.msra.mxu0 %v2081
  %2141 = vmatpush.msra.mxu0 %v2077
  %2142 = vmatpush.msra.mxu0 %v2073
  %2143 = vmatpush.msra.mxu0 %v2069
  %2144 = vmatpush.msra.mxu0 %v2065
  %2145 = vmatmul.f32.gmra.mxu0 %v2063
  %v2146 = vpop.f32.mrf.mxu0
  %v2147 = vadd.f32 0.0, %v2146
  %2148 = vdwg.mxu0
  %2149 = vmatpush.msra.mxu0 %v2126
  %2150 = vmatpush.msra.mxu0 %v2122
  %2151 = vmatpush.msra.mxu0 %v2118
  %2152 = vmatpush.msra.mxu0 %v2114
  %2153 = vmatpush.msra.mxu0 %v2110
  %2154 = vmatpush.msra.mxu0 %v2106
  %2155 = vmatpush.msra.mxu0 %v2102
  %2156 = vmatpush.msra.mxu0 %v2098
  %2157 = vmatpush.msra.mxu0 %v2094
  %2158 = vmatpush.msra.mxu0 %v2090
  %2159 = vmatpush.msra.mxu0 %v2086
  %2160 = vmatpush.msra.mxu0 %v2082
  %2161 = vmatpush.msra.mxu0 %v2078
  %2162 = vmatpush.msra.mxu0 %v2074
  %2163 = vmatpush.msra.mxu0 %v2070
  %2164 = vmatpush.msra.mxu0 %v2066
  %2165 = vmatmul.f32.gmra.mxu0 %v2063
  %v2166 = vpop.f32.mrf.mxu0
  %v2167 = vadd.f32 0.0, %v2166
  %2168 = vdwg.mxu0
  %2169 = vmatpush.msra.mxu0 %v2127
  %2170 = vmatpush.msra.mxu0 %v2123
  %2171 = vmatpush.msra.mxu0 %v2119
  %2172 = vmatpush.msra.mxu0 %v2115
  %2173 = vmatpush.msra.mxu0 %v2111
  %2174 = vmatpush.msra.mxu0 %v2107
  %2175 = vmatpush.msra.mxu0 %v2103
  %2176 = vmatpush.msra.mxu0 %v2099
  %2177 = vmatpush.msra.mxu0 %v2095
  %2178 = vmatpush.msra.mxu0 %v2091
  %2179 = vmatpush.msra.mxu0 %v2087
  %2180 = vmatpush.msra.mxu0 %v2083
  %2181 = vmatpush.msra.mxu0 %v2079
  %2182 = vmatpush.msra.mxu0 %v2075
  %2183 = vmatpush.msra.mxu0 %v2071
  %2184 = vmatpush.msra.mxu0 %v2067
  %2185 = vmatmul.f32.gmra.mxu0 %v2063
  %v2186 = vpop.f32.mrf.mxu0
  %v2187 = vadd.f32 0.0, %v2186
  %2188 = vdwg.mxu0
  %2189 = vmatpush.msra.mxu0 %v2128
  %2190 = vmatpush.msra.mxu0 %v2124
  %2191 = vmatpush.msra.mxu0 %v2120
  %2192 = vmatpush.msra.mxu0 %v2116
  %2193 = vmatpush.msra.mxu0 %v2112
  %2194 = vmatpush.msra.mxu0 %v2108
  %2195 = vmatpush.msra.mxu0 %v2104
  %2196 = vmatpush.msra.mxu0 %v2100
  %2197 = vmatpush.msra.mxu0 %v2096
  %2198 = vmatpush.msra.mxu0 %v2092
  %2199 = vmatpush.msra.mxu0 %v2088
  %2200 = vmatpush.msra.mxu0 %v2084
  %2201 = vmatpush.msra.mxu0 %v2080
  %2202 = vmatpush.msra.mxu0 %v2076
  %2203 = vmatpush.msra.mxu0 %v2072
  %2204 = vmatpush.msra.mxu0 %v2068
  %2205 = vmatmul.f32.gmra.mxu0 %v2063
  %v2206 = vpop.f32.mrf.mxu0
  %v2207 = vadd.f32 0.0, %v2206
  %2208 = vdwg.mxu0
  %v2209 = vadd.f32 %v2059, %v2147
  %v2210 = vadd.f32 %v2060, %v2167
  %v2211 = vadd.f32 %v2061, %v2187
  %v2212 = vadd.f32 %v2062, %v2207
  %v2213 = vxor.u32 %v2209, 2147483648
  %v2214 = vmul.f32 %v2213, 1.442695
  %v2215 = vpow.pop %v2214
  %v2216 = vadd.f32 %v2215, 1.0
  %v2217 = vrcp.pop %v2216
  %v2218 = vmul.f32 %v2216, %v2217
  %v2219 = vsub.f32 1.0, %v2218
  %v2220 = vmul.f32 %v2217, %v2219
  %v2221 = vadd.f32 %v2217, %v2220
  %vm2222 = vweird.f32 %v2216
  %vm2223 = vweird.f32 %v2217
  %vm2224 = vmor %vm2222, %vm2223
  %v2225 = vsel %vm2224, %v2217, %v2221
  %v2226 = vand.u32 2147483647, %v2216
  %vm2227 = vcmp.eq.f32.partialorder %v2226, 8.507059e+37
  %v2228 = vand.u32 %v2216, 2147483648
  %v2229 = vor.u32 1.1754944e-38, %v2228
  %v2230 = vsel %vm2227, %v2229, %v2225
  %v2231 = vmul.f32 1.0, %v2230
  %v2232 = vxor.u32 %v2210, 2147483648
  %v2233 = vmul.f32 %v2232, 1.442695
  %v2234 = vpow.pop %v2233
  %v2235 = vadd.f32 %v2234, 1.0
  %v2236 = vrcp.pop %v2235
  %v2237 = vmul.f32 %v2235, %v2236
  %v2238 = vsub.f32 1.0, %v2237
  %v2239 = vmul.f32 %v2236, %v2238
  %v2240 = vadd.f32 %v2236, %v2239
  %vm2241 = vweird.f32 %v2235
  %vm2242 = vweird.f32 %v2236
  %vm2243 = vmor %vm2241, %vm2242
  %v2244 = vsel %vm2243, %v2236, %v2240
  %v2245 = vand.u32 2147483647, %v2235
  %vm2246 = vcmp.eq.f32.partialorder %v2245, 8.507059e+37
  %v2247 = vand.u32 %v2235, 2147483648
  %v2248 = vor.u32 1.1754944e-38, %v2247
  %v2249 = vsel %vm2246, %v2248, %v2244
  %v2250 = vmul.f32 1.0, %v2249
  %v2251 = vtanh.pop %v2211
  %v2252 = vxor.u32 %v2212, 2147483648
  %v2253 = vmul.f32 %v2252, 1.442695
  %v2254 = vpow.pop %v2253
  %v2255 = vadd.f32 %v2254, 1.0
  %v2256 = vrcp.pop %v2255
  %v2257 = vmul.f32 %v2255, %v2256
  %v2258 = vsub.f32 1.0, %v2257
  %v2259 = vmul.f32 %v2256, %v2258
  %v2260 = vadd.f32 %v2256, %v2259
  %vm2261 = vweird.f32 %v2255
  %vm2262 = vweird.f32 %v2256
  %vm2263 = vmor %vm2261, %vm2262
  %v2264 = vsel %vm2263, %v2256, %v2260
  %v2265 = vand.u32 2147483647, %v2255
  %vm2266 = vcmp.eq.f32.partialorder %v2265, 8.507059e+37
  %v2267 = vand.u32 %v2255, 2147483648
  %v2268 = vor.u32 1.1754944e-38, %v2267
  %v2269 = vsel %vm2266, %v2268, %v2264
  %v2270 = vmul.f32 1.0, %v2269
  %v2271 = vmul.f32 %v2250, %v2064
  %v2272 = vmul.f32 %v2231, %v2251
  %v2273 = vadd.f32 %v2271, %v2272
  %v2274 = vtanh.pop %v2273
  %v2275 = vmul.f32 %v2270, %v2274
  %2276 = vst [vmem:[#allocation3] sm:$0xff] %v2275
  %2277 = vst [vmem:[#allocation4] sm:$0xff] %v2273
  %v2278 = vld [vmem:[%s3] sm:$0xff]
  %v2279 = vld [vmem:[%s3 + $0x8] sm:$0xff]
  %v2280 = vld [vmem:[%s3 + $0x10] sm:$0xff]
  %v2281 = vld [vmem:[%s3 + $0x18] sm:$0xff]
  %v2282 = vld [vmem:[%s3 + $0x20] sm:$0xff]
  %v2283 = vld [vmem:[%s3 + $0x28] sm:$0xff]
  %v2284 = vld [vmem:[%s3 + $0x30] sm:$0xff]
  %v2285 = vld [vmem:[%s3 + $0x38] sm:$0xff]
  %v2286 = vld [vmem:[%s3 + $0x40] sm:$0xff]
  %v2287 = vld [vmem:[%s3 + $0x48] sm:$0xff]
  %v2288 = vld [vmem:[%s3 + $0x50] sm:$0xff]
  %v2289 = vld [vmem:[%s3 + $0x58] sm:$0xff]
  %v2290 = vld [vmem:[%s3 + $0x60] sm:$0xff]
  %v2291 = vld [vmem:[%s3 + $0x68] sm:$0xff]
  %v2292 = vld [vmem:[%s3 + $0x70] sm:$0xff]
  %v2293 = vld [vmem:[%s3 + $0x78] sm:$0xff]
  %v2294 = vld [vmem:[%s3 + $0x80] sm:$0xff]
  %v2295 = vld [vmem:[%s3 + $0x88] sm:$0xff]
  %v2296 = vld [vmem:[%s3 + $0x90] sm:$0xff]
  %v2297 = vld [vmem:[%s3 + $0x98] sm:$0xff]
  %v2298 = vld [vmem:[%s3 + $0xa0] sm:$0xff]
  %v2299 = vld [vmem:[%s3 + $0xa8] sm:$0xff]
  %v2300 = vld [vmem:[%s3 + $0xb0] sm:$0xff]
  %v2301 = vld [vmem:[%s3 + $0xb8] sm:$0xff]
  %v2302 = vld [vmem:[%s3 + $0xc0] sm:$0xff]
  %v2303 = vld [vmem:[%s3 + $0xc8] sm:$0xff]
  %v2304 = vld [vmem:[%s3 + $0xd0] sm:$0xff]
  %v2305 = vld [vmem:[%s3 + $0xd8] sm:$0xff]
  %v2306 = vld [vmem:[%s3 + $0xe0] sm:$0xff]
  %v2307 = vld [vmem:[%s3 + $0xe8] sm:$0xff]
  %v2308 = vld [vmem:[%s3 + $0xf0] sm:$0xff]
  %v2309 = vld [vmem:[%s3 + $0xf8] sm:$0xff]
  %v2310 = vld [vmem:[%s3 + $0x100] sm:$0xff]
  %v2311 = vld [vmem:[%s3 + $0x108] sm:$0xff]
  %v2312 = vld [vmem:[%s3 + $0x110] sm:$0xff]
  %v2313 = vld [vmem:[%s3 + $0x118] sm:$0xff]
  %v2314 = vld [vmem:[%s3 + $0x120] sm:$0xff]
  %v2315 = vld [vmem:[%s3 + $0x128] sm:$0xff]
  %v2316 = vld [vmem:[%s3 + $0x130] sm:$0xff]
  %v2317 = vld [vmem:[%s3 + $0x138] sm:$0xff]
  %v2318 = vld [vmem:[%s3 + $0x140] sm:$0xff]
  %v2319 = vld [vmem:[%s3 + $0x148] sm:$0xff]
  %v2320 = vld [vmem:[%s3 + $0x150] sm:$0xff]
  %v2321 = vld [vmem:[%s3 + $0x158] sm:$0xff]
  %v2322 = vld [vmem:[%s3 + $0x160] sm:$0xff]
  %v2323 = vld [vmem:[%s3 + $0x168] sm:$0xff]
  %v2324 = vld [vmem:[%s3 + $0x170] sm:$0xff]
  %v2325 = vld [vmem:[%s3 + $0x178] sm:$0xff]
  %v2326 = vld [vmem:[%s3 + $0x180] sm:$0xff]
  %v2327 = vld [vmem:[%s3 + $0x188] sm:$0xff]
  %v2328 = vld [vmem:[%s3 + $0x190] sm:$0xff]
  %v2329 = vld [vmem:[%s3 + $0x198] sm:$0xff]
  %v2330 = vld [vmem:[%s3 + $0x1a0] sm:$0xff]
  %v2331 = vld [vmem:[%s3 + $0x1a8] sm:$0xff]
  %v2332 = vld [vmem:[%s3 + $0x1b0] sm:$0xff]
  %v2333 = vld [vmem:[%s3 + $0x1b8] sm:$0xff]
  %v2334 = vld [vmem:[%s3 + $0x1c0] sm:$0xff]
  %v2335 = vld [vmem:[%s3 + $0x1c8] sm:$0xff]
  %v2336 = vld [vmem:[%s3 + $0x1d0] sm:$0xff]
  %v2337 = vld [vmem:[%s3 + $0x1d8] sm:$0xff]
  %v2338 = vld [vmem:[%s3 + $0x1e0] sm:$0xff]
  %v2339 = vld [vmem:[%s3 + $0x1e8] sm:$0xff]
  %v2340 = vld [vmem:[%s3 + $0x1f0] sm:$0xff]
  %v2341 = vld [vmem:[%s3 + $0x1f8] sm:$0xff]
  %v2342 = vld [vmem:[%s4] sm:$0xf]
  %v2344 = vperm.slane %v2342, 0
  %v2345 = vperm.slane %v2342, 1
  %v2346 = vperm.slane %v2342, 2
  %v2347 = vperm.slane %v2342, 3
  %2352 = vmatpush.msra.mxu0 %v2338
  %2353 = vmatpush.msra.mxu0 %v2334
  %2354 = vmatpush.msra.mxu0 %v2330
  %2355 = vmatpush.msra.mxu0 %v2326
  %2356 = vmatpush.msra.mxu0 %v2322
  %2357 = vmatpush.msra.mxu0 %v2318
  %2358 = vmatpush.msra.mxu0 %v2314
  %2359 = vmatpush.msra.mxu0 %v2310
  %2360 = vmatpush.msra.mxu0 %v2306
  %2361 = vmatpush.msra.mxu0 %v2302
  %2362 = vmatpush.msra.mxu0 %v2298
  %2363 = vmatpush.msra.mxu0 %v2294
  %2364 = vmatpush.msra.mxu0 %v2290
  %2365 = vmatpush.msra.mxu0 %v2286
  %2366 = vmatpush.msra.mxu0 %v2282
  %2367 = vmatpush.msra.mxu0 %v2278
  %2368 = vmatmul.f32.gmra.mxu0 %v2275
  %v2369 = vpop.f32.mrf.mxu0
  %v2370 = vadd.f32 %v2344, %v2369
  %2371 = vdwg.mxu0
  %2372 = vmatpush.msra.mxu0 %v2339
  %2373 = vmatpush.msra.mxu0 %v2335
  %2374 = vmatpush.msra.mxu0 %v2331
  %2375 = vmatpush.msra.mxu0 %v2327
  %2376 = vmatpush.msra.mxu0 %v2323
  %2377 = vmatpush.msra.mxu0 %v2319
  %2378 = vmatpush.msra.mxu0 %v2315
  %2379 = vmatpush.msra.mxu0 %v2311
  %2380 = vmatpush.msra.mxu0 %v2307
  %2381 = vmatpush.msra.mxu0 %v2303
  %2382 = vmatpush.msra.mxu0 %v2299
  %2383 = vmatpush.msra.mxu0 %v2295
  %2384 = vmatpush.msra.mxu0 %v2291
  %2385 = vmatpush.msra.mxu0 %v2287
  %2386 = vmatpush.msra.mxu0 %v2283
  %2387 = vmatpush.msra.mxu0 %v2279
  %2388 = vmatmul.f32.gmra.mxu0 %v2275
  %v2389 = vpop.f32.mrf.mxu0
  %v2390 = vadd.f32 %v2345, %v2389
  %2391 = vdwg.mxu0
  %2392 = vmatpush.msra.mxu0 %v2340
  %2393 = vmatpush.msra.mxu0 %v2336
  %2394 = vmatpush.msra.mxu0 %v2332
  %2395 = vmatpush.msra.mxu0 %v2328
  %2396 = vmatpush.msra.mxu0 %v2324
  %2397 = vmatpush.msra.mxu0 %v2320
  %2398 = vmatpush.msra.mxu0 %v2316
  %2399 = vmatpush.msra.mxu0 %v2312
  %2400 = vmatpush.msra.mxu0 %v2308
  %2401 = vmatpush.msra.mxu0 %v2304
  %2402 = vmatpush.msra.mxu0 %v2300
  %2403 = vmatpush.msra.mxu0 %v2296
  %2404 = vmatpush.msra.mxu0 %v2292
  %2405 = vmatpush.msra.mxu0 %v2288
  %2406 = vmatpush.msra.mxu0 %v2284
  %2407 = vmatpush.msra.mxu0 %v2280
  %2408 = vmatmul.f32.gmra.mxu0 %v2275
  %v2409 = vpop.f32.mrf.mxu0
  %v2410 = vadd.f32 %v2346, %v2409
  %2411 = vdwg.mxu0
  %2412 = vmatpush.msra.mxu0 %v2341
  %2413 = vmatpush.msra.mxu0 %v2337
  %2414 = vmatpush.msra.mxu0 %v2333
  %2415 = vmatpush.msra.mxu0 %v2329
  %2416 = vmatpush.msra.mxu0 %v2325
  %2417 = vmatpush.msra.mxu0 %v2321
  %2418 = vmatpush.msra.mxu0 %v2317
  %2419 = vmatpush.msra.mxu0 %v2313
  %2420 = vmatpush.msra.mxu0 %v2309
  %2421 = vmatpush.msra.mxu0 %v2305
  %2422 = vmatpush.msra.mxu0 %v2301
  %2423 = vmatpush.msra.mxu0 %v2297
  %2424 = vmatpush.msra.mxu0 %v2293
  %2425 = vmatpush.msra.mxu0 %v2289
  %2426 = vmatpush.msra.mxu0 %v2285
  %2427 = vmatpush.msra.mxu0 %v2281
  %2428 = vmatmul.f32.gmra.mxu0 %v2275
  %v2429 = vpop.f32.mrf.mxu0
  %v2430 = vadd.f32 %v2347, %v2429
  %2431 = vdwg.mxu0
  %v2432 = vld [vmem:[%s665] sm:$0xff]
  %v2433 = vld [vmem:[%s667] sm:$0xff]
  %v2434 = vld [vmem:[%s669] sm:$0xff]
  %v2435 = vld [vmem:[%s669 + $0x8] sm:$0xff]
  %v2436 = vld [vmem:[%s669 + $0x10] sm:$0xff]
  %v2437 = vld [vmem:[%s669 + $0x18] sm:$0xff]
  %v2438 = vld [vmem:[%s669 + $0x20] sm:$0xff]
  %v2439 = vld [vmem:[%s669 + $0x28] sm:$0xff]
  %v2440 = vld [vmem:[%s669 + $0x30] sm:$0xff]
  %v2441 = vld [vmem:[%s669 + $0x38] sm:$0xff]
  %v2442 = vld [vmem:[%s669 + $0x40] sm:$0xff]
  %v2443 = vld [vmem:[%s669 + $0x48] sm:$0xff]
  %v2444 = vld [vmem:[%s669 + $0x50] sm:$0xff]
  %v2445 = vld [vmem:[%s669 + $0x58] sm:$0xff]
  %v2446 = vld [vmem:[%s669 + $0x60] sm:$0xff]
  %v2447 = vld [vmem:[%s669 + $0x68] sm:$0xff]
  %v2448 = vld [vmem:[%s669 + $0x70] sm:$0xff]
  %v2449 = vld [vmem:[%s669 + $0x78] sm:$0xff]
  %v2450 = vld [vmem:[%s669 + $0x80] sm:$0xff]
  %v2451 = vld [vmem:[%s669 + $0x88] sm:$0xff]
  %v2452 = vld [vmem:[%s669 + $0x90] sm:$0xff]
  %v2453 = vld [vmem:[%s669 + $0x98] sm:$0xff]
  %v2454 = vld [vmem:[%s669 + $0xa0] sm:$0xff]
  %v2455 = vld [vmem:[%s669 + $0xa8] sm:$0xff]
  %v2456 = vld [vmem:[%s669 + $0xb0] sm:$0xff]
  %v2457 = vld [vmem:[%s669 + $0xb8] sm:$0xff]
  %v2458 = vld [vmem:[%s669 + $0xc0] sm:$0xff]
  %v2459 = vld [vmem:[%s669 + $0xc8] sm:$0xff]
  %v2460 = vld [vmem:[%s669 + $0xd0] sm:$0xff]
  %v2461 = vld [vmem:[%s669 + $0xd8] sm:$0xff]
  %v2462 = vld [vmem:[%s669 + $0xe0] sm:$0xff]
  %v2463 = vld [vmem:[%s669 + $0xe8] sm:$0xff]
  %v2464 = vld [vmem:[%s669 + $0xf0] sm:$0xff]
  %v2465 = vld [vmem:[%s669 + $0xf8] sm:$0xff]
  %v2466 = vld [vmem:[%s669 + $0x100] sm:$0xff]
  %v2467 = vld [vmem:[%s669 + $0x108] sm:$0xff]
  %v2468 = vld [vmem:[%s669 + $0x110] sm:$0xff]
  %v2469 = vld [vmem:[%s669 + $0x118] sm:$0xff]
  %v2470 = vld [vmem:[%s669 + $0x120] sm:$0xff]
  %v2471 = vld [vmem:[%s669 + $0x128] sm:$0xff]
  %v2472 = vld [vmem:[%s669 + $0x130] sm:$0xff]
  %v2473 = vld [vmem:[%s669 + $0x138] sm:$0xff]
  %v2474 = vld [vmem:[%s669 + $0x140] sm:$0xff]
  %v2475 = vld [vmem:[%s669 + $0x148] sm:$0xff]
  %v2476 = vld [vmem:[%s669 + $0x150] sm:$0xff]
  %v2477 = vld [vmem:[%s669 + $0x158] sm:$0xff]
  %v2478 = vld [vmem:[%s669 + $0x160] sm:$0xff]
  %v2479 = vld [vmem:[%s669 + $0x168] sm:$0xff]
  %v2480 = vld [vmem:[%s669 + $0x170] sm:$0xff]
  %v2481 = vld [vmem:[%s669 + $0x178] sm:$0xff]
  %v2482 = vld [vmem:[%s669 + $0x180] sm:$0xff]
  %v2483 = vld [vmem:[%s669 + $0x188] sm:$0xff]
  %v2484 = vld [vmem:[%s669 + $0x190] sm:$0xff]
  %v2485 = vld [vmem:[%s669 + $0x198] sm:$0xff]
  %v2486 = vld [vmem:[%s669 + $0x1a0] sm:$0xff]
  %v2487 = vld [vmem:[%s669 + $0x1a8] sm:$0xff]
  %v2488 = vld [vmem:[%s669 + $0x1b0] sm:$0xff]
  %v2489 = vld [vmem:[%s669 + $0x1b8] sm:$0xff]
  %v2490 = vld [vmem:[%s669 + $0x1c0] sm:$0xff]
  %v2491 = vld [vmem:[%s669 + $0x1c8] sm:$0xff]
  %v2492 = vld [vmem:[%s669 + $0x1d0] sm:$0xff]
  %v2493 = vld [vmem:[%s669 + $0x1d8] sm:$0xff]
  %v2494 = vld [vmem:[%s669 + $0x1e0] sm:$0xff]
  %v2495 = vld [vmem:[%s669 + $0x1e8] sm:$0xff]
  %v2496 = vld [vmem:[%s669 + $0x1f0] sm:$0xff]
  %v2497 = vld [vmem:[%s669 + $0x1f8] sm:$0xff]
  %2498 = vmatpush.msra.mxu0 %v2494
  %2499 = vmatpush.msra.mxu0 %v2490
  %2500 = vmatpush.msra.mxu0 %v2486
  %2501 = vmatpush.msra.mxu0 %v2482
  %2502 = vmatpush.msra.mxu0 %v2478
  %2503 = vmatpush.msra.mxu0 %v2474
  %2504 = vmatpush.msra.mxu0 %v2470
  %2505 = vmatpush.msra.mxu0 %v2466
  %2506 = vmatpush.msra.mxu0 %v2462
  %2507 = vmatpush.msra.mxu0 %v2458
  %2508 = vmatpush.msra.mxu0 %v2454
  %2509 = vmatpush.msra.mxu0 %v2450
  %2510 = vmatpush.msra.mxu0 %v2446
  %2511 = vmatpush.msra.mxu0 %v2442
  %2512 = vmatpush.msra.mxu0 %v2438
  %2513 = vmatpush.msra.mxu0 %v2434
  %2514 = vmatmul.f32.gmra.mxu0 %v2432
  %v2515 = vpop.f32.mrf.mxu0
  %v2516 = vadd.f32 0.0, %v2515
  %2517 = vdwg.mxu0
  %2518 = vmatpush.msra.mxu0 %v2495
  %2519 = vmatpush.msra.mxu0 %v2491
  %2520 = vmatpush.msra.mxu0 %v2487
  %2521 = vmatpush.msra.mxu0 %v2483
  %2522 = vmatpush.msra.mxu0 %v2479
  %2523 = vmatpush.msra.mxu0 %v2475
  %2524 = vmatpush.msra.mxu0 %v2471
  %2525 = vmatpush.msra.mxu0 %v2467
  %2526 = vmatpush.msra.mxu0 %v2463
  %2527 = vmatpush.msra.mxu0 %v2459
  %2528 = vmatpush.msra.mxu0 %v2455
  %2529 = vmatpush.msra.mxu0 %v2451
  %2530 = vmatpush.msra.mxu0 %v2447
  %2531 = vmatpush.msra.mxu0 %v2443
  %2532 = vmatpush.msra.mxu0 %v2439
  %2533 = vmatpush.msra.mxu0 %v2435
  %2534 = vmatmul.f32.gmra.mxu0 %v2432
  %v2535 = vpop.f32.mrf.mxu0
  %v2536 = vadd.f32 0.0, %v2535
  %2537 = vdwg.mxu0
  %2538 = vmatpush.msra.mxu0 %v2496
  %2539 = vmatpush.msra.mxu0 %v2492
  %2540 = vmatpush.msra.mxu0 %v2488
  %2541 = vmatpush.msra.mxu0 %v2484
  %2542 = vmatpush.msra.mxu0 %v2480
  %2543 = vmatpush.msra.mxu0 %v2476
  %2544 = vmatpush.msra.mxu0 %v2472
  %2545 = vmatpush.msra.mxu0 %v2468
  %2546 = vmatpush.msra.mxu0 %v2464
  %2547 = vmatpush.msra.mxu0 %v2460
  %2548 = vmatpush.msra.mxu0 %v2456
  %2549 = vmatpush.msra.mxu0 %v2452
  %2550 = vmatpush.msra.mxu0 %v2448
  %2551 = vmatpush.msra.mxu0 %v2444
  %2552 = vmatpush.msra.mxu0 %v2440
  %2553 = vmatpush.msra.mxu0 %v2436
  %2554 = vmatmul.f32.gmra.mxu0 %v2432
  %v2555 = vpop.f32.mrf.mxu0
  %v2556 = vadd.f32 0.0, %v2555
  %2557 = vdwg.mxu0
  %2558 = vmatpush.msra.mxu0 %v2497
  %2559 = vmatpush.msra.mxu0 %v2493
  %2560 = vmatpush.msra.mxu0 %v2489
  %2561 = vmatpush.msra.mxu0 %v2485
  %2562 = vmatpush.msra.mxu0 %v2481
  %2563 = vmatpush.msra.mxu0 %v2477
  %2564 = vmatpush.msra.mxu0 %v2473
  %2565 = vmatpush.msra.mxu0 %v2469
  %2566 = vmatpush.msra.mxu0 %v2465
  %2567 = vmatpush.msra.mxu0 %v2461
  %2568 = vmatpush.msra.mxu0 %v2457
  %2569 = vmatpush.msra.mxu0 %v2453
  %2570 = vmatpush.msra.mxu0 %v2449
  %2571 = vmatpush.msra.mxu0 %v2445
  %2572 = vmatpush.msra.mxu0 %v2441
  %2573 = vmatpush.msra.mxu0 %v2437
  %2574 = vmatmul.f32.gmra.mxu0 %v2432
  %v2575 = vpop.f32.mrf.mxu0
  %v2576 = vadd.f32 0.0, %v2575
  %2577 = vdwg.mxu0
  %v2578 = vadd.f32 %v2370, %v2516
  %v2579 = vadd.f32 %v2390, %v2536
  %v2580 = vadd.f32 %v2410, %v2556
  %v2581 = vadd.f32 %v2430, %v2576
  %v2582 = vxor.u32 %v2578, 2147483648
  %v2583 = vmul.f32 %v2582, 1.442695
  %v2584 = vpow.pop %v2583
  %v2585 = vadd.f32 %v2584, 1.0
  %v2586 = vrcp.pop %v2585
  %v2587 = vmul.f32 %v2585, %v2586
  %v2588 = vsub.f32 1.0, %v2587
  %v2589 = vmul.f32 %v2586, %v2588
  %v2590 = vadd.f32 %v2586, %v2589
  %vm2591 = vweird.f32 %v2585
  %vm2592 = vweird.f32 %v2586
  %vm2593 = vmor %vm2591, %vm2592
  %v2594 = vsel %vm2593, %v2586, %v2590
  %v2595 = vand.u32 2147483647, %v2585
  %vm2596 = vcmp.eq.f32.partialorder %v2595, 8.507059e+37
  %v2597 = vand.u32 %v2585, 2147483648
  %v2598 = vor.u32 1.1754944e-38, %v2597
  %v2599 = vsel %vm2596, %v2598, %v2594
  %v2600 = vmul.f32 1.0, %v2599
  %v2601 = vxor.u32 %v2579, 2147483648
  %v2602 = vmul.f32 %v2601, 1.442695
  %v2603 = vpow.pop %v2602
  %v2604 = vadd.f32 %v2603, 1.0
  %v2605 = vrcp.pop %v2604
  %v2606 = vmul.f32 %v2604, %v2605
  %v2607 = vsub.f32 1.0, %v2606
  %v2608 = vmul.f32 %v2605, %v2607
  %v2609 = vadd.f32 %v2605, %v2608
  %vm2610 = vweird.f32 %v2604
  %vm2611 = vweird.f32 %v2605
  %vm2612 = vmor %vm2610, %vm2611
  %v2613 = vsel %vm2612, %v2605, %v2609
  %v2614 = vand.u32 2147483647, %v2604
  %vm2615 = vcmp.eq.f32.partialorder %v2614, 8.507059e+37
  %v2616 = vand.u32 %v2604, 2147483648
  %v2617 = vor.u32 1.1754944e-38, %v2616
  %v2618 = vsel %vm2615, %v2617, %v2613
  %v2619 = vmul.f32 1.0, %v2618
  %v2620 = vtanh.pop %v2580
  %v2621 = vxor.u32 %v2581, 2147483648
  %v2622 = vmul.f32 %v2621, 1.442695
  %v2623 = vpow.pop %v2622
  %v2624 = vadd.f32 %v2623, 1.0
  %v2625 = vrcp.pop %v2624
  %v2626 = vmul.f32 %v2624, %v2625
  %v2627 = vsub.f32 1.0, %v2626
  %v2628 = vmul.f32 %v2625, %v2627
  %v2629 = vadd.f32 %v2625, %v2628
  %vm2630 = vweird.f32 %v2624
  %vm2631 = vweird.f32 %v2625
  %vm2632 = vmor %vm2630, %vm2631
  %v2633 = vsel %vm2632, %v2625, %v2629
  %v2634 = vand.u32 2147483647, %v2624
  %vm2635 = vcmp.eq.f32.partialorder %v2634, 8.507059e+37
  %v2636 = vand.u32 %v2624, 2147483648
  %v2637 = vor.u32 1.1754944e-38, %v2636
  %v2638 = vsel %vm2635, %v2637, %v2633
  %v2639 = vmul.f32 1.0, %v2638
  %v2640 = vmul.f32 %v2619, %v2433
  %v2641 = vmul.f32 %v2600, %v2620
  %v2642 = vadd.f32 %v2640, %v2641
  %v2643 = vtanh.pop %v2642
  %v2644 = vmul.f32 %v2639, %v2643
  %2645 = vst [vmem:[%s665] sm:$0xff] %v2644
  %2646 = vst [vmem:[%s667] sm:$0xff] %v2642
  %v2647 = vld [vmem:[#allocation2 + $0x80] sm:$0xff]
  %v2648 = vld [vmem:[#allocation2 + $0x88] sm:$0xff]
  %v2649 = vld [vmem:[#allocation2 + $0x90] sm:$0xff]
  %v2650 = vld [vmem:[#allocation2 + $0x98] sm:$0xff]
  %v2651 = vld [vmem:[#allocation3] sm:$0xff]
  %v2652 = vld [vmem:[#allocation4] sm:$0xff]
  %v2653 = vld [vmem:[%s5] sm:$0xff]
  %v2654 = vld [vmem:[%s5 + $0x8] sm:$0xff]
  %v2655 = vld [vmem:[%s5 + $0x10] sm:$0xff]
  %v2656 = vld [vmem:[%s5 + $0x18] sm:$0xff]
  %v2657 = vld [vmem:[%s5 + $0x20] sm:$0xff]
  %v2658 = vld [vmem:[%s5 + $0x28] sm:$0xff]
  %v2659 = vld [vmem:[%s5 + $0x30] sm:$0xff]
  %v2660 = vld [vmem:[%s5 + $0x38] sm:$0xff]
  %v2661 = vld [vmem:[%s5 + $0x40] sm:$0xff]
  %v2662 = vld [vmem:[%s5 + $0x48] sm:$0xff]
  %v2663 = vld [vmem:[%s5 + $0x50] sm:$0xff]
  %v2664 = vld [vmem:[%s5 + $0x58] sm:$0xff]
  %v2665 = vld [vmem:[%s5 + $0x60] sm:$0xff]
  %v2666 = vld [vmem:[%s5 + $0x68] sm:$0xff]
  %v2667 = vld [vmem:[%s5 + $0x70] sm:$0xff]
  %v2668 = vld [vmem:[%s5 + $0x78] sm:$0xff]
  %v2669 = vld [vmem:[%s5 + $0x80] sm:$0xff]
  %v2670 = vld [vmem:[%s5 + $0x88] sm:$0xff]
  %v2671 = vld [vmem:[%s5 + $0x90] sm:$0xff]
  %v2672 = vld [vmem:[%s5 + $0x98] sm:$0xff]
  %v2673 = vld [vmem:[%s5 + $0xa0] sm:$0xff]
  %v2674 = vld [vmem:[%s5 + $0xa8] sm:$0xff]
  %v2675 = vld [vmem:[%s5 + $0xb0] sm:$0xff]
  %v2676 = vld [vmem:[%s5 + $0xb8] sm:$0xff]
  %v2677 = vld [vmem:[%s5 + $0xc0] sm:$0xff]
  %v2678 = vld [vmem:[%s5 + $0xc8] sm:$0xff]
  %v2679 = vld [vmem:[%s5 + $0xd0] sm:$0xff]
  %v2680 = vld [vmem:[%s5 + $0xd8] sm:$0xff]
  %v2681 = vld [vmem:[%s5 + $0xe0] sm:$0xff]
  %v2682 = vld [vmem:[%s5 + $0xe8] sm:$0xff]
  %v2683 = vld [vmem:[%s5 + $0xf0] sm:$0xff]
  %v2684 = vld [vmem:[%s5 + $0xf8] sm:$0xff]
  %v2685 = vld [vmem:[%s5 + $0x100] sm:$0xff]
  %v2686 = vld [vmem:[%s5 + $0x108] sm:$0xff]
  %v2687 = vld [vmem:[%s5 + $0x110] sm:$0xff]
  %v2688 = vld [vmem:[%s5 + $0x118] sm:$0xff]
  %v2689 = vld [vmem:[%s5 + $0x120] sm:$0xff]
  %v2690 = vld [vmem:[%s5 + $0x128] sm:$0xff]
  %v2691 = vld [vmem:[%s5 + $0x130] sm:$0xff]
  %v2692 = vld [vmem:[%s5 + $0x138] sm:$0xff]
  %v2693 = vld [vmem:[%s5 + $0x140] sm:$0xff]
  %v2694 = vld [vmem:[%s5 + $0x148] sm:$0xff]
  %v2695 = vld [vmem:[%s5 + $0x150] sm:$0xff]
  %v2696 = vld [vmem:[%s5 + $0x158] sm:$0xff]
  %v2697 = vld [vmem:[%s5 + $0x160] sm:$0xff]
  %v2698 = vld [vmem:[%s5 + $0x168] sm:$0xff]
  %v2699 = vld [vmem:[%s5 + $0x170] sm:$0xff]
  %v2700 = vld [vmem:[%s5 + $0x178] sm:$0xff]
  %v2701 = vld [vmem:[%s5 + $0x180] sm:$0xff]
  %v2702 = vld [vmem:[%s5 + $0x188] sm:$0xff]
  %v2703 = vld [vmem:[%s5 + $0x190] sm:$0xff]
  %v2704 = vld [vmem:[%s5 + $0x198] sm:$0xff]
  %v2705 = vld [vmem:[%s5 + $0x1a0] sm:$0xff]
  %v2706 = vld [vmem:[%s5 + $0x1a8] sm:$0xff]
  %v2707 = vld [vmem:[%s5 + $0x1b0] sm:$0xff]
  %v2708 = vld [vmem:[%s5 + $0x1b8] sm:$0xff]
  %v2709 = vld [vmem:[%s5 + $0x1c0] sm:$0xff]
  %v2710 = vld [vmem:[%s5 + $0x1c8] sm:$0xff]
  %v2711 = vld [vmem:[%s5 + $0x1d0] sm:$0xff]
  %v2712 = vld [vmem:[%s5 + $0x1d8] sm:$0xff]
  %v2713 = vld [vmem:[%s5 + $0x1e0] sm:$0xff]
  %v2714 = vld [vmem:[%s5 + $0x1e8] sm:$0xff]
  %v2715 = vld [vmem:[%s5 + $0x1f0] sm:$0xff]
  %v2716 = vld [vmem:[%s5 + $0x1f8] sm:$0xff]
  %2717 = vmatpush.msra.mxu0 %v2713
  %2718 = vmatpush.msra.mxu0 %v2709
  %2719 = vmatpush.msra.mxu0 %v2705
  %2720 = vmatpush.msra.mxu0 %v2701
  %2721 = vmatpush.msra.mxu0 %v2697
  %2722 = vmatpush.msra.mxu0 %v2693
  %2723 = vmatpush.msra.mxu0 %v2689
  %2724 = vmatpush.msra.mxu0 %v2685
  %2725 = vmatpush.msra.mxu0 %v2681
  %2726 = vmatpush.msra.mxu0 %v2677
  %2727 = vmatpush.msra.mxu0 %v2673
  %2728 = vmatpush.msra.mxu0 %v2669
  %2729 = vmatpush.msra.mxu0 %v2665
  %2730 = vmatpush.msra.mxu0 %v2661
  %2731 = vmatpush.msra.mxu0 %v2657
  %2732 = vmatpush.msra.mxu0 %v2653
  %2733 = vmatmul.f32.gmra.mxu0 %v2651
  %v2734 = vpop.f32.mrf.mxu0
  %v2735 = vadd.f32 0.0, %v2734
  %2736 = vdwg.mxu0
  %2737 = vmatpush.msra.mxu0 %v2714
  %2738 = vmatpush.msra.mxu0 %v2710
  %2739 = vmatpush.msra.mxu0 %v2706
  %2740 = vmatpush.msra.mxu0 %v2702
  %2741 = vmatpush.msra.mxu0 %v2698
  %2742 = vmatpush.msra.mxu0 %v2694
  %2743 = vmatpush.msra.mxu0 %v2690
  %2744 = vmatpush.msra.mxu0 %v2686
  %2745 = vmatpush.msra.mxu0 %v2682
  %2746 = vmatpush.msra.mxu0 %v2678
  %2747 = vmatpush.msra.mxu0 %v2674
  %2748 = vmatpush.msra.mxu0 %v2670
  %2749 = vmatpush.msra.mxu0 %v2666
  %2750 = vmatpush.msra.mxu0 %v2662
  %2751 = vmatpush.msra.mxu0 %v2658
  %2752 = vmatpush.msra.mxu0 %v2654
  %2753 = vmatmul.f32.gmra.mxu0 %v2651
  %v2754 = vpop.f32.mrf.mxu0
  %v2755 = vadd.f32 0.0, %v2754
  %2756 = vdwg.mxu0
  %2757 = vmatpush.msra.mxu0 %v2715
  %2758 = vmatpush.msra.mxu0 %v2711
  %2759 = vmatpush.msra.mxu0 %v2707
  %2760 = vmatpush.msra.mxu0 %v2703
  %2761 = vmatpush.msra.mxu0 %v2699
  %2762 = vmatpush.msra.mxu0 %v2695
  %2763 = vmatpush.msra.mxu0 %v2691
  %2764 = vmatpush.msra.mxu0 %v2687
  %2765 = vmatpush.msra.mxu0 %v2683
  %2766 = vmatpush.msra.mxu0 %v2679
  %2767 = vmatpush.msra.mxu0 %v2675
  %2768 = vmatpush.msra.mxu0 %v2671
  %2769 = vmatpush.msra.mxu0 %v2667
  %2770 = vmatpush.msra.mxu0 %v2663
  %2771 = vmatpush.msra.mxu0 %v2659
  %2772 = vmatpush.msra.mxu0 %v2655
  %2773 = vmatmul.f32.gmra.mxu0 %v2651
  %v2774 = vpop.f32.mrf.mxu0
  %v2775 = vadd.f32 0.0, %v2774
  %2776 = vdwg.mxu0
  %2777 = vmatpush.msra.mxu0 %v2716
  %2778 = vmatpush.msra.mxu0 %v2712
  %2779 = vmatpush.msra.mxu0 %v2708
  %2780 = vmatpush.msra.mxu0 %v2704
  %2781 = vmatpush.msra.mxu0 %v2700
  %2782 = vmatpush.msra.mxu0 %v2696
  %2783 = vmatpush.msra.mxu0 %v2692
  %2784 = vmatpush.msra.mxu0 %v2688
  %2785 = vmatpush.msra.mxu0 %v2684
  %2786 = vmatpush.msra.mxu0 %v2680
  %2787 = vmatpush.msra.mxu0 %v2676
  %2788 = vmatpush.msra.mxu0 %v2672
  %2789 = vmatpush.msra.mxu0 %v2668
  %2790 = vmatpush.msra.mxu0 %v2664
  %2791 = vmatpush.msra.mxu0 %v2660
  %2792 = vmatpush.msra.mxu0 %v2656
  %2793 = vmatmul.f32.gmra.mxu0 %v2651
  %v2794 = vpop.f32.mrf.mxu0
  %v2795 = vadd.f32 0.0, %v2794
  %2796 = vdwg.mxu0
  %v2797 = vadd.f32 %v2647, %v2735
  %v2798 = vadd.f32 %v2648, %v2755
  %v2799 = vadd.f32 %v2649, %v2775
  %v2800 = vadd.f32 %v2650, %v2795
  %v2801 = vxor.u32 %v2797, 2147483648
  %v2802 = vmul.f32 %v2801, 1.442695
  %v2803 = vpow.pop %v2802
  %v2804 = vadd.f32 %v2803, 1.0
  %v2805 = vrcp.pop %v2804
  %v2806 = vmul.f32 %v2804, %v2805
  %v2807 = vsub.f32 1.0, %v2806
  %v2808 = vmul.f32 %v2805, %v2807
  %v2809 = vadd.f32 %v2805, %v2808
  %vm2810 = vweird.f32 %v2804
  %vm2811 = vweird.f32 %v2805
  %vm2812 = vmor %vm2810, %vm2811
  %v2813 = vsel %vm2812, %v2805, %v2809
  %v2814 = vand.u32 2147483647, %v2804
  %vm2815 = vcmp.eq.f32.partialorder %v2814, 8.507059e+37
  %v2816 = vand.u32 %v2804, 2147483648
  %v2817 = vor.u32 1.1754944e-38, %v2816
  %v2818 = vsel %vm2815, %v2817, %v2813
  %v2819 = vmul.f32 1.0, %v2818
  %v2820 = vxor.u32 %v2798, 2147483648
  %v2821 = vmul.f32 %v2820, 1.442695
  %v2822 = vpow.pop %v2821
  %v2823 = vadd.f32 %v2822, 1.0
  %v2824 = vrcp.pop %v2823
  %v2825 = vmul.f32 %v2823, %v2824
  %v2826 = vsub.f32 1.0, %v2825
  %v2827 = vmul.f32 %v2824, %v2826
  %v2828 = vadd.f32 %v2824, %v2827
  %vm2829 = vweird.f32 %v2823
  %vm2830 = vweird.f32 %v2824
  %vm2831 = vmor %vm2829, %vm2830
  %v2832 = vsel %vm2831, %v2824, %v2828
  %v2833 = vand.u32 2147483647, %v2823
  %vm2834 = vcmp.eq.f32.partialorder %v2833, 8.507059e+37
  %v2835 = vand.u32 %v2823, 2147483648
  %v2836 = vor.u32 1.1754944e-38, %v2835
  %v2837 = vsel %vm2834, %v2836, %v2832
  %v2838 = vmul.f32 1.0, %v2837
  %v2839 = vtanh.pop %v2799
  %v2840 = vxor.u32 %v2800, 2147483648
  %v2841 = vmul.f32 %v2840, 1.442695
  %v2842 = vpow.pop %v2841
  %v2843 = vadd.f32 %v2842, 1.0
  %v2844 = vrcp.pop %v2843
  %v2845 = vmul.f32 %v2843, %v2844
  %v2846 = vsub.f32 1.0, %v2845
  %v2847 = vmul.f32 %v2844, %v2846
  %v2848 = vadd.f32 %v2844, %v2847
  %vm2849 = vweird.f32 %v2843
  %vm2850 = vweird.f32 %v2844
  %vm2851 = vmor %vm2849, %vm2850
  %v2852 = vsel %vm2851, %v2844, %v2848
  %v2853 = vand.u32 2147483647, %v2843
  %vm2854 = vcmp.eq.f32.partialorder %v2853, 8.507059e+37
  %v2855 = vand.u32 %v2843, 2147483648
  %v2856 = vor.u32 1.1754944e-38, %v2855
  %v2857 = vsel %vm2854, %v2856, %v2852
  %v2858 = vmul.f32 1.0, %v2857
  %v2859 = vmul.f32 %v2838, %v2652
  %v2860 = vmul.f32 %v2819, %v2839
  %v2861 = vadd.f32 %v2859, %v2860
  %v2862 = vtanh.pop %v2861
  %v2863 = vmul.f32 %v2858, %v2862
  %2864 = vst [vmem:[#allocation3] sm:$0xff] %v2863
  %2865 = vst [vmem:[#allocation4] sm:$0xff] %v2861
  %v2866 = vld [vmem:[%s3] sm:$0xff]
  %v2867 = vld [vmem:[%s3 + $0x8] sm:$0xff]
  %v2868 = vld [vmem:[%s3 + $0x10] sm:$0xff]
  %v2869 = vld [vmem:[%s3 + $0x18] sm:$0xff]
  %v2870 = vld [vmem:[%s3 + $0x20] sm:$0xff]
  %v2871 = vld [vmem:[%s3 + $0x28] sm:$0xff]
  %v2872 = vld [vmem:[%s3 + $0x30] sm:$0xff]
  %v2873 = vld [vmem:[%s3 + $0x38] sm:$0xff]
  %v2874 = vld [vmem:[%s3 + $0x40] sm:$0xff]
  %v2875 = vld [vmem:[%s3 + $0x48] sm:$0xff]
  %v2876 = vld [vmem:[%s3 + $0x50] sm:$0xff]
  %v2877 = vld [vmem:[%s3 + $0x58] sm:$0xff]
  %v2878 = vld [vmem:[%s3 + $0x60] sm:$0xff]
  %v2879 = vld [vmem:[%s3 + $0x68] sm:$0xff]
  %v2880 = vld [vmem:[%s3 + $0x70] sm:$0xff]
  %v2881 = vld [vmem:[%s3 + $0x78] sm:$0xff]
  %v2882 = vld [vmem:[%s3 + $0x80] sm:$0xff]
  %v2883 = vld [vmem:[%s3 + $0x88] sm:$0xff]
  %v2884 = vld [vmem:[%s3 + $0x90] sm:$0xff]
  %v2885 = vld [vmem:[%s3 + $0x98] sm:$0xff]
  %v2886 = vld [vmem:[%s3 + $0xa0] sm:$0xff]
  %v2887 = vld [vmem:[%s3 + $0xa8] sm:$0xff]
  %v2888 = vld [vmem:[%s3 + $0xb0] sm:$0xff]
  %v2889 = vld [vmem:[%s3 + $0xb8] sm:$0xff]
  %v2890 = vld [vmem:[%s3 + $0xc0] sm:$0xff]
  %v2891 = vld [vmem:[%s3 + $0xc8] sm:$0xff]
  %v2892 = vld [vmem:[%s3 + $0xd0] sm:$0xff]
  %v2893 = vld [vmem:[%s3 + $0xd8] sm:$0xff]
  %v2894 = vld [vmem:[%s3 + $0xe0] sm:$0xff]
  %v2895 = vld [vmem:[%s3 + $0xe8] sm:$0xff]
  %v2896 = vld [vmem:[%s3 + $0xf0] sm:$0xff]
  %v2897 = vld [vmem:[%s3 + $0xf8] sm:$0xff]
  %v2898 = vld [vmem:[%s3 + $0x100] sm:$0xff]
  %v2899 = vld [vmem:[%s3 + $0x108] sm:$0xff]
  %v2900 = vld [vmem:[%s3 + $0x110] sm:$0xff]
  %v2901 = vld [vmem:[%s3 + $0x118] sm:$0xff]
  %v2902 = vld [vmem:[%s3 + $0x120] sm:$0xff]
  %v2903 = vld [vmem:[%s3 + $0x128] sm:$0xff]
  %v2904 = vld [vmem:[%s3 + $0x130] sm:$0xff]
  %v2905 = vld [vmem:[%s3 + $0x138] sm:$0xff]
  %v2906 = vld [vmem:[%s3 + $0x140] sm:$0xff]
  %v2907 = vld [vmem:[%s3 + $0x148] sm:$0xff]
  %v2908 = vld [vmem:[%s3 + $0x150] sm:$0xff]
  %v2909 = vld [vmem:[%s3 + $0x158] sm:$0xff]
  %v2910 = vld [vmem:[%s3 + $0x160] sm:$0xff]
  %v2911 = vld [vmem:[%s3 + $0x168] sm:$0xff]
  %v2912 = vld [vmem:[%s3 + $0x170] sm:$0xff]
  %v2913 = vld [vmem:[%s3 + $0x178] sm:$0xff]
  %v2914 = vld [vmem:[%s3 + $0x180] sm:$0xff]
  %v2915 = vld [vmem:[%s3 + $0x188] sm:$0xff]
  %v2916 = vld [vmem:[%s3 + $0x190] sm:$0xff]
  %v2917 = vld [vmem:[%s3 + $0x198] sm:$0xff]
  %v2918 = vld [vmem:[%s3 + $0x1a0] sm:$0xff]
  %v2919 = vld [vmem:[%s3 + $0x1a8] sm:$0xff]
  %v2920 = vld [vmem:[%s3 + $0x1b0] sm:$0xff]
  %v2921 = vld [vmem:[%s3 + $0x1b8] sm:$0xff]
  %v2922 = vld [vmem:[%s3 + $0x1c0] sm:$0xff]
  %v2923 = vld [vmem:[%s3 + $0x1c8] sm:$0xff]
  %v2924 = vld [vmem:[%s3 + $0x1d0] sm:$0xff]
  %v2925 = vld [vmem:[%s3 + $0x1d8] sm:$0xff]
  %v2926 = vld [vmem:[%s3 + $0x1e0] sm:$0xff]
  %v2927 = vld [vmem:[%s3 + $0x1e8] sm:$0xff]
  %v2928 = vld [vmem:[%s3 + $0x1f0] sm:$0xff]
  %v2929 = vld [vmem:[%s3 + $0x1f8] sm:$0xff]
  %v2930 = vld [vmem:[%s4] sm:$0xf]
  %v2932 = vperm.slane %v2930, 0
  %v2933 = vperm.slane %v2930, 1
  %v2934 = vperm.slane %v2930, 2
  %v2935 = vperm.slane %v2930, 3
  %2940 = vmatpush.msra.mxu0 %v2926
  %2941 = vmatpush.msra.mxu0 %v2922
  %2942 = vmatpush.msra.mxu0 %v2918
  %2943 = vmatpush.msra.mxu0 %v2914
  %2944 = vmatpush.msra.mxu0 %v2910
  %2945 = vmatpush.msra.mxu0 %v2906
  %2946 = vmatpush.msra.mxu0 %v2902
  %2947 = vmatpush.msra.mxu0 %v2898
  %2948 = vmatpush.msra.mxu0 %v2894
  %2949 = vmatpush.msra.mxu0 %v2890
  %2950 = vmatpush.msra.mxu0 %v2886
  %2951 = vmatpush.msra.mxu0 %v2882
  %2952 = vmatpush.msra.mxu0 %v2878
  %2953 = vmatpush.msra.mxu0 %v2874
  %2954 = vmatpush.msra.mxu0 %v2870
  %2955 = vmatpush.msra.mxu0 %v2866
  %2956 = vmatmul.f32.gmra.mxu0 %v2863
  %v2957 = vpop.f32.mrf.mxu0
  %v2958 = vadd.f32 %v2932, %v2957
  %2959 = vdwg.mxu0
  %2960 = vmatpush.msra.mxu0 %v2927
  %2961 = vmatpush.msra.mxu0 %v2923
  %2962 = vmatpush.msra.mxu0 %v2919
  %2963 = vmatpush.msra.mxu0 %v2915
  %2964 = vmatpush.msra.mxu0 %v2911
  %2965 = vmatpush.msra.mxu0 %v2907
  %2966 = vmatpush.msra.mxu0 %v2903
  %2967 = vmatpush.msra.mxu0 %v2899
  %2968 = vmatpush.msra.mxu0 %v2895
  %2969 = vmatpush.msra.mxu0 %v2891
  %2970 = vmatpush.msra.mxu0 %v2887
  %2971 = vmatpush.msra.mxu0 %v2883
  %2972 = vmatpush.msra.mxu0 %v2879
  %2973 = vmatpush.msra.mxu0 %v2875
  %2974 = vmatpush.msra.mxu0 %v2871
  %2975 = vmatpush.msra.mxu0 %v2867
  %2976 = vmatmul.f32.gmra.mxu0 %v2863
  %v2977 = vpop.f32.mrf.mxu0
  %v2978 = vadd.f32 %v2933, %v2977
  %2979 = vdwg.mxu0
  %2980 = vmatpush.msra.mxu0 %v2928
  %2981 = vmatpush.msra.mxu0 %v2924
  %2982 = vmatpush.msra.mxu0 %v2920
  %2983 = vmatpush.msra.mxu0 %v2916
  %2984 = vmatpush.msra.mxu0 %v2912
  %2985 = vmatpush.msra.mxu0 %v2908
  %2986 = vmatpush.msra.mxu0 %v2904
  %2987 = vmatpush.msra.mxu0 %v2900
  %2988 = vmatpush.msra.mxu0 %v2896
  %2989 = vmatpush.msra.mxu0 %v2892
  %2990 = vmatpush.msra.mxu0 %v2888
  %2991 = vmatpush.msra.mxu0 %v2884
  %2992 = vmatpush.msra.mxu0 %v2880
  %2993 = vmatpush.msra.mxu0 %v2876
  %2994 = vmatpush.msra.mxu0 %v2872
  %2995 = vmatpush.msra.mxu0 %v2868
  %2996 = vmatmul.f32.gmra.mxu0 %v2863
  %v2997 = vpop.f32.mrf.mxu0
  %v2998 = vadd.f32 %v2934, %v2997
  %2999 = vdwg.mxu0
  %3000 = vmatpush.msra.mxu0 %v2929
  %3001 = vmatpush.msra.mxu0 %v2925
  %3002 = vmatpush.msra.mxu0 %v2921
  %3003 = vmatpush.msra.mxu0 %v2917
  %3004 = vmatpush.msra.mxu0 %v2913
  %3005 = vmatpush.msra.mxu0 %v2909
  %3006 = vmatpush.msra.mxu0 %v2905
  %3007 = vmatpush.msra.mxu0 %v2901
  %3008 = vmatpush.msra.mxu0 %v2897
  %3009 = vmatpush.msra.mxu0 %v2893
  %3010 = vmatpush.msra.mxu0 %v2889
  %3011 = vmatpush.msra.mxu0 %v2885
  %3012 = vmatpush.msra.mxu0 %v2881
  %3013 = vmatpush.msra.mxu0 %v2877
  %3014 = vmatpush.msra.mxu0 %v2873
  %3015 = vmatpush.msra.mxu0 %v2869
  %3016 = vmatmul.f32.gmra.mxu0 %v2863
  %v3017 = vpop.f32.mrf.mxu0
  %v3018 = vadd.f32 %v2935, %v3017
  %3019 = vdwg.mxu0
  %v3020 = vld [vmem:[%s665] sm:$0xff]
  %v3021 = vld [vmem:[%s667] sm:$0xff]
  %v3022 = vld [vmem:[%s669] sm:$0xff]
  %v3023 = vld [vmem:[%s669 + $0x8] sm:$0xff]
  %v3024 = vld [vmem:[%s669 + $0x10] sm:$0xff]
  %v3025 = vld [vmem:[%s669 + $0x18] sm:$0xff]
  %v3026 = vld [vmem:[%s669 + $0x20] sm:$0xff]
  %v3027 = vld [vmem:[%s669 + $0x28] sm:$0xff]
  %v3028 = vld [vmem:[%s669 + $0x30] sm:$0xff]
  %v3029 = vld [vmem:[%s669 + $0x38] sm:$0xff]
  %v3030 = vld [vmem:[%s669 + $0x40] sm:$0xff]
  %v3031 = vld [vmem:[%s669 + $0x48] sm:$0xff]
  %v3032 = vld [vmem:[%s669 + $0x50] sm:$0xff]
  %v3033 = vld [vmem:[%s669 + $0x58] sm:$0xff]
  %v3034 = vld [vmem:[%s669 + $0x60] sm:$0xff]
  %v3035 = vld [vmem:[%s669 + $0x68] sm:$0xff]
  %v3036 = vld [vmem:[%s669 + $0x70] sm:$0xff]
  %v3037 = vld [vmem:[%s669 + $0x78] sm:$0xff]
  %v3038 = vld [vmem:[%s669 + $0x80] sm:$0xff]
  %v3039 = vld [vmem:[%s669 + $0x88] sm:$0xff]
  %v3040 = vld [vmem:[%s669 + $0x90] sm:$0xff]
  %v3041 = vld [vmem:[%s669 + $0x98] sm:$0xff]
  %v3042 = vld [vmem:[%s669 + $0xa0] sm:$0xff]
  %v3043 = vld [vmem:[%s669 + $0xa8] sm:$0xff]
  %v3044 = vld [vmem:[%s669 + $0xb0] sm:$0xff]
  %v3045 = vld [vmem:[%s669 + $0xb8] sm:$0xff]
  %v3046 = vld [vmem:[%s669 + $0xc0] sm:$0xff]
  %v3047 = vld [vmem:[%s669 + $0xc8] sm:$0xff]
  %v3048 = vld [vmem:[%s669 + $0xd0] sm:$0xff]
  %v3049 = vld [vmem:[%s669 + $0xd8] sm:$0xff]
  %v3050 = vld [vmem:[%s669 + $0xe0] sm:$0xff]
  %v3051 = vld [vmem:[%s669 + $0xe8] sm:$0xff]
  %v3052 = vld [vmem:[%s669 + $0xf0] sm:$0xff]
  %v3053 = vld [vmem:[%s669 + $0xf8] sm:$0xff]
  %v3054 = vld [vmem:[%s669 + $0x100] sm:$0xff]
  %v3055 = vld [vmem:[%s669 + $0x108] sm:$0xff]
  %v3056 = vld [vmem:[%s669 + $0x110] sm:$0xff]
  %v3057 = vld [vmem:[%s669 + $0x118] sm:$0xff]
  %v3058 = vld [vmem:[%s669 + $0x120] sm:$0xff]
  %v3059 = vld [vmem:[%s669 + $0x128] sm:$0xff]
  %v3060 = vld [vmem:[%s669 + $0x130] sm:$0xff]
  %v3061 = vld [vmem:[%s669 + $0x138] sm:$0xff]
  %v3062 = vld [vmem:[%s669 + $0x140] sm:$0xff]
  %v3063 = vld [vmem:[%s669 + $0x148] sm:$0xff]
  %v3064 = vld [vmem:[%s669 + $0x150] sm:$0xff]
  %v3065 = vld [vmem:[%s669 + $0x158] sm:$0xff]
  %v3066 = vld [vmem:[%s669 + $0x160] sm:$0xff]
  %v3067 = vld [vmem:[%s669 + $0x168] sm:$0xff]
  %v3068 = vld [vmem:[%s669 + $0x170] sm:$0xff]
  %v3069 = vld [vmem:[%s669 + $0x178] sm:$0xff]
  %v3070 = vld [vmem:[%s669 + $0x180] sm:$0xff]
  %v3071 = vld [vmem:[%s669 + $0x188] sm:$0xff]
  %v3072 = vld [vmem:[%s669 + $0x190] sm:$0xff]
  %v3073 = vld [vmem:[%s669 + $0x198] sm:$0xff]
  %v3074 = vld [vmem:[%s669 + $0x1a0] sm:$0xff]
  %v3075 = vld [vmem:[%s669 + $0x1a8] sm:$0xff]
  %v3076 = vld [vmem:[%s669 + $0x1b0] sm:$0xff]
  %v3077 = vld [vmem:[%s669 + $0x1b8] sm:$0xff]
  %v3078 = vld [vmem:[%s669 + $0x1c0] sm:$0xff]
  %v3079 = vld [vmem:[%s669 + $0x1c8] sm:$0xff]
  %v3080 = vld [vmem:[%s669 + $0x1d0] sm:$0xff]
  %v3081 = vld [vmem:[%s669 + $0x1d8] sm:$0xff]
  %v3082 = vld [vmem:[%s669 + $0x1e0] sm:$0xff]
  %v3083 = vld [vmem:[%s669 + $0x1e8] sm:$0xff]
  %v3084 = vld [vmem:[%s669 + $0x1f0] sm:$0xff]
  %v3085 = vld [vmem:[%s669 + $0x1f8] sm:$0xff]
  %3086 = vmatpush.msra.mxu0 %v3082
  %3087 = vmatpush.msra.mxu0 %v3078
  %3088 = vmatpush.msra.mxu0 %v3074
  %3089 = vmatpush.msra.mxu0 %v3070
  %3090 = vmatpush.msra.mxu0 %v3066
  %3091 = vmatpush.msra.mxu0 %v3062
  %3092 = vmatpush.msra.mxu0 %v3058
  %3093 = vmatpush.msra.mxu0 %v3054
  %3094 = vmatpush.msra.mxu0 %v3050
  %3095 = vmatpush.msra.mxu0 %v3046
  %3096 = vmatpush.msra.mxu0 %v3042
  %3097 = vmatpush.msra.mxu0 %v3038
  %3098 = vmatpush.msra.mxu0 %v3034
  %3099 = vmatpush.msra.mxu0 %v3030
  %3100 = vmatpush.msra.mxu0 %v3026
  %3101 = vmatpush.msra.mxu0 %v3022
  %3102 = vmatmul.f32.gmra.mxu0 %v3020
  %v3103 = vpop.f32.mrf.mxu0
  %v3104 = vadd.f32 0.0, %v3103
  %3105 = vdwg.mxu0
  %3106 = vmatpush.msra.mxu0 %v3083
  %3107 = vmatpush.msra.mxu0 %v3079
  %3108 = vmatpush.msra.mxu0 %v3075
  %3109 = vmatpush.msra.mxu0 %v3071
  %3110 = vmatpush.msra.mxu0 %v3067
  %3111 = vmatpush.msra.mxu0 %v3063
  %3112 = vmatpush.msra.mxu0 %v3059
  %3113 = vmatpush.msra.mxu0 %v3055
  %3114 = vmatpush.msra.mxu0 %v3051
  %3115 = vmatpush.msra.mxu0 %v3047
  %3116 = vmatpush.msra.mxu0 %v3043
  %3117 = vmatpush.msra.mxu0 %v3039
  %3118 = vmatpush.msra.mxu0 %v3035
  %3119 = vmatpush.msra.mxu0 %v3031
  %3120 = vmatpush.msra.mxu0 %v3027
  %3121 = vmatpush.msra.mxu0 %v3023
  %3122 = vmatmul.f32.gmra.mxu0 %v3020
  %v3123 = vpop.f32.mrf.mxu0
  %v3124 = vadd.f32 0.0, %v3123
  %3125 = vdwg.mxu0
  %3126 = vmatpush.msra.mxu0 %v3084
  %3127 = vmatpush.msra.mxu0 %v3080
  %3128 = vmatpush.msra.mxu0 %v3076
  %3129 = vmatpush.msra.mxu0 %v3072
  %3130 = vmatpush.msra.mxu0 %v3068
  %3131 = vmatpush.msra.mxu0 %v3064
  %3132 = vmatpush.msra.mxu0 %v3060
  %3133 = vmatpush.msra.mxu0 %v3056
  %3134 = vmatpush.msra.mxu0 %v3052
  %3135 = vmatpush.msra.mxu0 %v3048
  %3136 = vmatpush.msra.mxu0 %v3044
  %3137 = vmatpush.msra.mxu0 %v3040
  %3138 = vmatpush.msra.mxu0 %v3036
  %3139 = vmatpush.msra.mxu0 %v3032
  %3140 = vmatpush.msra.mxu0 %v3028
  %3141 = vmatpush.msra.mxu0 %v3024
  %3142 = vmatmul.f32.gmra.mxu0 %v3020
  %v3143 = vpop.f32.mrf.mxu0
  %v3144 = vadd.f32 0.0, %v3143
  %3145 = vdwg.mxu0
  %3146 = vmatpush.msra.mxu0 %v3085
  %3147 = vmatpush.msra.mxu0 %v3081
  %3148 = vmatpush.msra.mxu0 %v3077
  %3149 = vmatpush.msra.mxu0 %v3073
  %3150 = vmatpush.msra.mxu0 %v3069
  %3151 = vmatpush.msra.mxu0 %v3065
  %3152 = vmatpush.msra.mxu0 %v3061
  %3153 = vmatpush.msra.mxu0 %v3057
  %3154 = vmatpush.msra.mxu0 %v3053
  %3155 = vmatpush.msra.mxu0 %v3049
  %3156 = vmatpush.msra.mxu0 %v3045
  %3157 = vmatpush.msra.mxu0 %v3041
  %3158 = vmatpush.msra.mxu0 %v3037
  %3159 = vmatpush.msra.mxu0 %v3033
  %3160 = vmatpush.msra.mxu0 %v3029
  %3161 = vmatpush.msra.mxu0 %v3025
  %3162 = vmatmul.f32.gmra.mxu0 %v3020
  %v3163 = vpop.f32.mrf.mxu0
  %v3164 = vadd.f32 0.0, %v3163
  %3165 = vdwg.mxu0
  %v3166 = vadd.f32 %v2958, %v3104
  %v3167 = vadd.f32 %v2978, %v3124
  %v3168 = vadd.f32 %v2998, %v3144
  %v3169 = vadd.f32 %v3018, %v3164
  %v3170 = vxor.u32 %v3166, 2147483648
  %v3171 = vmul.f32 %v3170, 1.442695
  %v3172 = vpow.pop %v3171
  %v3173 = vadd.f32 %v3172, 1.0
  %v3174 = vrcp.pop %v3173
  %v3175 = vmul.f32 %v3173, %v3174
  %v3176 = vsub.f32 1.0, %v3175
  %v3177 = vmul.f32 %v3174, %v3176
  %v3178 = vadd.f32 %v3174, %v3177
  %vm3179 = vweird.f32 %v3173
  %vm3180 = vweird.f32 %v3174
  %vm3181 = vmor %vm3179, %vm3180
  %v3182 = vsel %vm3181, %v3174, %v3178
  %v3183 = vand.u32 2147483647, %v3173
  %vm3184 = vcmp.eq.f32.partialorder %v3183, 8.507059e+37
  %v3185 = vand.u32 %v3173, 2147483648
  %v3186 = vor.u32 1.1754944e-38, %v3185
  %v3187 = vsel %vm3184, %v3186, %v3182
  %v3188 = vmul.f32 1.0, %v3187
  %v3189 = vxor.u32 %v3167, 2147483648
  %v3190 = vmul.f32 %v3189, 1.442695
  %v3191 = vpow.pop %v3190
  %v3192 = vadd.f32 %v3191, 1.0
  %v3193 = vrcp.pop %v3192
  %v3194 = vmul.f32 %v3192, %v3193
  %v3195 = vsub.f32 1.0, %v3194
  %v3196 = vmul.f32 %v3193, %v3195
  %v3197 = vadd.f32 %v3193, %v3196
  %vm3198 = vweird.f32 %v3192
  %vm3199 = vweird.f32 %v3193
  %vm3200 = vmor %vm3198, %vm3199
  %v3201 = vsel %vm3200, %v3193, %v3197
  %v3202 = vand.u32 2147483647, %v3192
  %vm3203 = vcmp.eq.f32.partialorder %v3202, 8.507059e+37
  %v3204 = vand.u32 %v3192, 2147483648
  %v3205 = vor.u32 1.1754944e-38, %v3204
  %v3206 = vsel %vm3203, %v3205, %v3201
  %v3207 = vmul.f32 1.0, %v3206
  %v3208 = vtanh.pop %v3168
  %v3209 = vxor.u32 %v3169, 2147483648
  %v3210 = vmul.f32 %v3209, 1.442695
  %v3211 = vpow.pop %v3210
  %v3212 = vadd.f32 %v3211, 1.0
  %v3213 = vrcp.pop %v3212
  %v3214 = vmul.f32 %v3212, %v3213
  %v3215 = vsub.f32 1.0, %v3214
  %v3216 = vmul.f32 %v3213, %v3215
  %v3217 = vadd.f32 %v3213, %v3216
  %vm3218 = vweird.f32 %v3212
  %vm3219 = vweird.f32 %v3213
  %vm3220 = vmor %vm3218, %vm3219
  %v3221 = vsel %vm3220, %v3213, %v3217
  %v3222 = vand.u32 2147483647, %v3212
  %vm3223 = vcmp.eq.f32.partialorder %v3222, 8.507059e+37
  %v3224 = vand.u32 %v3212, 2147483648
  %v3225 = vor.u32 1.1754944e-38, %v3224
  %v3226 = vsel %vm3223, %v3225, %v3221
  %v3227 = vmul.f32 1.0, %v3226
  %v3228 = vmul.f32 %v3207, %v3021
  %v3229 = vmul.f32 %v3188, %v3208
  %v3230 = vadd.f32 %v3228, %v3229
  %v3231 = vtanh.pop %v3230
  %v3232 = vmul.f32 %v3227, %v3231
  %3233 = vst [vmem:[%s665] sm:$0xff] %v3232
  %3234 = vst [vmem:[%s667] sm:$0xff] %v3230
  %v3235 = vld [vmem:[#allocation2 + $0xa0] sm:$0xff]
  %v3236 = vld [vmem:[#allocation2 + $0xa8] sm:$0xff]
  %v3237 = vld [vmem:[#allocation2 + $0xb0] sm:$0xff]
  %v3238 = vld [vmem:[#allocation2 + $0xb8] sm:$0xff]
  %v3239 = vld [vmem:[#allocation3] sm:$0xff]
  %v3240 = vld [vmem:[#allocation4] sm:$0xff]
  %v3241 = vld [vmem:[%s5] sm:$0xff]
  %v3242 = vld [vmem:[%s5 + $0x8] sm:$0xff]
  %v3243 = vld [vmem:[%s5 + $0x10] sm:$0xff]
  %v3244 = vld [vmem:[%s5 + $0x18] sm:$0xff]
  %v3245 = vld [vmem:[%s5 + $0x20] sm:$0xff]
  %v3246 = vld [vmem:[%s5 + $0x28] sm:$0xff]
  %v3247 = vld [vmem:[%s5 + $0x30] sm:$0xff]
  %v3248 = vld [vmem:[%s5 + $0x38] sm:$0xff]
  %v3249 = vld [vmem:[%s5 + $0x40] sm:$0xff]
  %v3250 = vld [vmem:[%s5 + $0x48] sm:$0xff]
  %v3251 = vld [vmem:[%s5 + $0x50] sm:$0xff]
  %v3252 = vld [vmem:[%s5 + $0x58] sm:$0xff]
  %v3253 = vld [vmem:[%s5 + $0x60] sm:$0xff]
  %v3254 = vld [vmem:[%s5 + $0x68] sm:$0xff]
  %v3255 = vld [vmem:[%s5 + $0x70] sm:$0xff]
  %v3256 = vld [vmem:[%s5 + $0x78] sm:$0xff]
  %v3257 = vld [vmem:[%s5 + $0x80] sm:$0xff]
  %v3258 = vld [vmem:[%s5 + $0x88] sm:$0xff]
  %v3259 = vld [vmem:[%s5 + $0x90] sm:$0xff]
  %v3260 = vld [vmem:[%s5 + $0x98] sm:$0xff]
  %v3261 = vld [vmem:[%s5 + $0xa0] sm:$0xff]
  %v3262 = vld [vmem:[%s5 + $0xa8] sm:$0xff]
  %v3263 = vld [vmem:[%s5 + $0xb0] sm:$0xff]
  %v3264 = vld [vmem:[%s5 + $0xb8] sm:$0xff]
  %v3265 = vld [vmem:[%s5 + $0xc0] sm:$0xff]
  %v3266 = vld [vmem:[%s5 + $0xc8] sm:$0xff]
  %v3267 = vld [vmem:[%s5 + $0xd0] sm:$0xff]
  %v3268 = vld [vmem:[%s5 + $0xd8] sm:$0xff]
  %v3269 = vld [vmem:[%s5 + $0xe0] sm:$0xff]
  %v3270 = vld [vmem:[%s5 + $0xe8] sm:$0xff]
  %v3271 = vld [vmem:[%s5 + $0xf0] sm:$0xff]
  %v3272 = vld [vmem:[%s5 + $0xf8] sm:$0xff]
  %v3273 = vld [vmem:[%s5 + $0x100] sm:$0xff]
  %v3274 = vld [vmem:[%s5 + $0x108] sm:$0xff]
  %v3275 = vld [vmem:[%s5 + $0x110] sm:$0xff]
  %v3276 = vld [vmem:[%s5 + $0x118] sm:$0xff]
  %v3277 = vld [vmem:[%s5 + $0x120] sm:$0xff]
  %v3278 = vld [vmem:[%s5 + $0x128] sm:$0xff]
  %v3279 = vld [vmem:[%s5 + $0x130] sm:$0xff]
  %v3280 = vld [vmem:[%s5 + $0x138] sm:$0xff]
  %v3281 = vld [vmem:[%s5 + $0x140] sm:$0xff]
  %v3282 = vld [vmem:[%s5 + $0x148] sm:$0xff]
  %v3283 = vld [vmem:[%s5 + $0x150] sm:$0xff]
  %v3284 = vld [vmem:[%s5 + $0x158] sm:$0xff]
  %v3285 = vld [vmem:[%s5 + $0x160] sm:$0xff]
  %v3286 = vld [vmem:[%s5 + $0x168] sm:$0xff]
  %v3287 = vld [vmem:[%s5 + $0x170] sm:$0xff]
  %v3288 = vld [vmem:[%s5 + $0x178] sm:$0xff]
  %v3289 = vld [vmem:[%s5 + $0x180] sm:$0xff]
  %v3290 = vld [vmem:[%s5 + $0x188] sm:$0xff]
  %v3291 = vld [vmem:[%s5 + $0x190] sm:$0xff]
  %v3292 = vld [vmem:[%s5 + $0x198] sm:$0xff]
  %v3293 = vld [vmem:[%s5 + $0x1a0] sm:$0xff]
  %v3294 = vld [vmem:[%s5 + $0x1a8] sm:$0xff]
  %v3295 = vld [vmem:[%s5 + $0x1b0] sm:$0xff]
  %v3296 = vld [vmem:[%s5 + $0x1b8] sm:$0xff]
  %v3297 = vld [vmem:[%s5 + $0x1c0] sm:$0xff]
  %v3298 = vld [vmem:[%s5 + $0x1c8] sm:$0xff]
  %v3299 = vld [vmem:[%s5 + $0x1d0] sm:$0xff]
  %v3300 = vld [vmem:[%s5 + $0x1d8] sm:$0xff]
  %v3301 = vld [vmem:[%s5 + $0x1e0] sm:$0xff]
  %v3302 = vld [vmem:[%s5 + $0x1e8] sm:$0xff]
  %v3303 = vld [vmem:[%s5 + $0x1f0] sm:$0xff]
  %v3304 = vld [vmem:[%s5 + $0x1f8] sm:$0xff]
  %3305 = vmatpush.msra.mxu0 %v3301
  %3306 = vmatpush.msra.mxu0 %v3297
  %3307 = vmatpush.msra.mxu0 %v3293
  %3308 = vmatpush.msra.mxu0 %v3289
  %3309 = vmatpush.msra.mxu0 %v3285
  %3310 = vmatpush.msra.mxu0 %v3281
  %3311 = vmatpush.msra.mxu0 %v3277
  %3312 = vmatpush.msra.mxu0 %v3273
  %3313 = vmatpush.msra.mxu0 %v3269
  %3314 = vmatpush.msra.mxu0 %v3265
  %3315 = vmatpush.msra.mxu0 %v3261
  %3316 = vmatpush.msra.mxu0 %v3257
  %3317 = vmatpush.msra.mxu0 %v3253
  %3318 = vmatpush.msra.mxu0 %v3249
  %3319 = vmatpush.msra.mxu0 %v3245
  %3320 = vmatpush.msra.mxu0 %v3241
  %3321 = vmatmul.f32.gmra.mxu0 %v3239
  %v3322 = vpop.f32.mrf.mxu0
  %v3323 = vadd.f32 0.0, %v3322
  %3324 = vdwg.mxu0
  %3325 = vmatpush.msra.mxu0 %v3302
  %3326 = vmatpush.msra.mxu0 %v3298
  %3327 = vmatpush.msra.mxu0 %v3294
  %3328 = vmatpush.msra.mxu0 %v3290
  %3329 = vmatpush.msra.mxu0 %v3286
  %3330 = vmatpush.msra.mxu0 %v3282
  %3331 = vmatpush.msra.mxu0 %v3278
  %3332 = vmatpush.msra.mxu0 %v3274
  %3333 = vmatpush.msra.mxu0 %v3270
  %3334 = vmatpush.msra.mxu0 %v3266
  %3335 = vmatpush.msra.mxu0 %v3262
  %3336 = vmatpush.msra.mxu0 %v3258
  %3337 = vmatpush.msra.mxu0 %v3254
  %3338 = vmatpush.msra.mxu0 %v3250
  %3339 = vmatpush.msra.mxu0 %v3246
  %3340 = vmatpush.msra.mxu0 %v3242
  %3341 = vmatmul.f32.gmra.mxu0 %v3239
  %v3342 = vpop.f32.mrf.mxu0
  %v3343 = vadd.f32 0.0, %v3342
  %3344 = vdwg.mxu0
  %3345 = vmatpush.msra.mxu0 %v3303
  %3346 = vmatpush.msra.mxu0 %v3299
  %3347 = vmatpush.msra.mxu0 %v3295
  %3348 = vmatpush.msra.mxu0 %v3291
  %3349 = vmatpush.msra.mxu0 %v3287
  %3350 = vmatpush.msra.mxu0 %v3283
  %3351 = vmatpush.msra.mxu0 %v3279
  %3352 = vmatpush.msra.mxu0 %v3275
  %3353 = vmatpush.msra.mxu0 %v3271
  %3354 = vmatpush.msra.mxu0 %v3267
  %3355 = vmatpush.msra.mxu0 %v3263
  %3356 = vmatpush.msra.mxu0 %v3259
  %3357 = vmatpush.msra.mxu0 %v3255
  %3358 = vmatpush.msra.mxu0 %v3251
  %3359 = vmatpush.msra.mxu0 %v3247
  %3360 = vmatpush.msra.mxu0 %v3243
  %3361 = vmatmul.f32.gmra.mxu0 %v3239
  %v3362 = vpop.f32.mrf.mxu0
  %v3363 = vadd.f32 0.0, %v3362
  %3364 = vdwg.mxu0
  %3365 = vmatpush.msra.mxu0 %v3304
  %3366 = vmatpush.msra.mxu0 %v3300
  %3367 = vmatpush.msra.mxu0 %v3296
  %3368 = vmatpush.msra.mxu0 %v3292
  %3369 = vmatpush.msra.mxu0 %v3288
  %3370 = vmatpush.msra.mxu0 %v3284
  %3371 = vmatpush.msra.mxu0 %v3280
  %3372 = vmatpush.msra.mxu0 %v3276
  %3373 = vmatpush.msra.mxu0 %v3272
  %3374 = vmatpush.msra.mxu0 %v3268
  %3375 = vmatpush.msra.mxu0 %v3264
  %3376 = vmatpush.msra.mxu0 %v3260
  %3377 = vmatpush.msra.mxu0 %v3256
  %3378 = vmatpush.msra.mxu0 %v3252
  %3379 = vmatpush.msra.mxu0 %v3248
  %3380 = vmatpush.msra.mxu0 %v3244
  %3381 = vmatmul.f32.gmra.mxu0 %v3239
  %v3382 = vpop.f32.mrf.mxu0
  %v3383 = vadd.f32 0.0, %v3382
  %3384 = vdwg.mxu0
  %v3385 = vadd.f32 %v3235, %v3323
  %v3386 = vadd.f32 %v3236, %v3343
  %v3387 = vadd.f32 %v3237, %v3363
  %v3388 = vadd.f32 %v3238, %v3383
  %v3389 = vxor.u32 %v3385, 2147483648
  %v3390 = vmul.f32 %v3389, 1.442695
  %v3391 = vpow.pop %v3390
  %v3392 = vadd.f32 %v3391, 1.0
  %v3393 = vrcp.pop %v3392
  %v3394 = vmul.f32 %v3392, %v3393
  %v3395 = vsub.f32 1.0, %v3394
  %v3396 = vmul.f32 %v3393, %v3395
  %v3397 = vadd.f32 %v3393, %v3396
  %vm3398 = vweird.f32 %v3392
  %vm3399 = vweird.f32 %v3393
  %vm3400 = vmor %vm3398, %vm3399
  %v3401 = vsel %vm3400, %v3393, %v3397
  %v3402 = vand.u32 2147483647, %v3392
  %vm3403 = vcmp.eq.f32.partialorder %v3402, 8.507059e+37
  %v3404 = vand.u32 %v3392, 2147483648
  %v3405 = vor.u32 1.1754944e-38, %v3404
  %v3406 = vsel %vm3403, %v3405, %v3401
  %v3407 = vmul.f32 1.0, %v3406
  %v3408 = vxor.u32 %v3386, 2147483648
  %v3409 = vmul.f32 %v3408, 1.442695
  %v3410 = vpow.pop %v3409
  %v3411 = vadd.f32 %v3410, 1.0
  %v3412 = vrcp.pop %v3411
  %v3413 = vmul.f32 %v3411, %v3412
  %v3414 = vsub.f32 1.0, %v3413
  %v3415 = vmul.f32 %v3412, %v3414
  %v3416 = vadd.f32 %v3412, %v3415
  %vm3417 = vweird.f32 %v3411
  %vm3418 = vweird.f32 %v3412
  %vm3419 = vmor %vm3417, %vm3418
  %v3420 = vsel %vm3419, %v3412, %v3416
  %v3421 = vand.u32 2147483647, %v3411
  %vm3422 = vcmp.eq.f32.partialorder %v3421, 8.507059e+37
  %v3423 = vand.u32 %v3411, 2147483648
  %v3424 = vor.u32 1.1754944e-38, %v3423
  %v3425 = vsel %vm3422, %v3424, %v3420
  %v3426 = vmul.f32 1.0, %v3425
  %v3427 = vtanh.pop %v3387
  %v3428 = vxor.u32 %v3388, 2147483648
  %v3429 = vmul.f32 %v3428, 1.442695
  %v3430 = vpow.pop %v3429
  %v3431 = vadd.f32 %v3430, 1.0
  %v3432 = vrcp.pop %v3431
  %v3433 = vmul.f32 %v3431, %v3432
  %v3434 = vsub.f32 1.0, %v3433
  %v3435 = vmul.f32 %v3432, %v3434
  %v3436 = vadd.f32 %v3432, %v3435
  %vm3437 = vweird.f32 %v3431
  %vm3438 = vweird.f32 %v3432
  %vm3439 = vmor %vm3437, %vm3438
  %v3440 = vsel %vm3439, %v3432, %v3436
  %v3441 = vand.u32 2147483647, %v3431
  %vm3442 = vcmp.eq.f32.partialorder %v3441, 8.507059e+37
  %v3443 = vand.u32 %v3431, 2147483648
  %v3444 = vor.u32 1.1754944e-38, %v3443
  %v3445 = vsel %vm3442, %v3444, %v3440
  %v3446 = vmul.f32 1.0, %v3445
  %v3447 = vmul.f32 %v3426, %v3240
  %v3448 = vmul.f32 %v3407, %v3427
  %v3449 = vadd.f32 %v3447, %v3448
  %v3450 = vtanh.pop %v3449
  %v3451 = vmul.f32 %v3446, %v3450
  %3452 = vst [vmem:[#allocation3] sm:$0xff] %v3451
  %3453 = vst [vmem:[#allocation4] sm:$0xff] %v3449
  %v3454 = vld [vmem:[%s3] sm:$0xff]
  %v3455 = vld [vmem:[%s3 + $0x8] sm:$0xff]
  %v3456 = vld [vmem:[%s3 + $0x10] sm:$0xff]
  %v3457 = vld [vmem:[%s3 + $0x18] sm:$0xff]
  %v3458 = vld [vmem:[%s3 + $0x20] sm:$0xff]
  %v3459 = vld [vmem:[%s3 + $0x28] sm:$0xff]
  %v3460 = vld [vmem:[%s3 + $0x30] sm:$0xff]
  %v3461 = vld [vmem:[%s3 + $0x38] sm:$0xff]
  %v3462 = vld [vmem:[%s3 + $0x40] sm:$0xff]
  %v3463 = vld [vmem:[%s3 + $0x48] sm:$0xff]
  %v3464 = vld [vmem:[%s3 + $0x50] sm:$0xff]
  %v3465 = vld [vmem:[%s3 + $0x58] sm:$0xff]
  %v3466 = vld [vmem:[%s3 + $0x60] sm:$0xff]
  %v3467 = vld [vmem:[%s3 + $0x68] sm:$0xff]
  %v3468 = vld [vmem:[%s3 + $0x70] sm:$0xff]
  %v3469 = vld [vmem:[%s3 + $0x78] sm:$0xff]
  %v3470 = vld [vmem:[%s3 + $0x80] sm:$0xff]
  %v3471 = vld [vmem:[%s3 + $0x88] sm:$0xff]
  %v3472 = vld [vmem:[%s3 + $0x90] sm:$0xff]
  %v3473 = vld [vmem:[%s3 + $0x98] sm:$0xff]
  %v3474 = vld [vmem:[%s3 + $0xa0] sm:$0xff]
  %v3475 = vld [vmem:[%s3 + $0xa8] sm:$0xff]
  %v3476 = vld [vmem:[%s3 + $0xb0] sm:$0xff]
  %v3477 = vld [vmem:[%s3 + $0xb8] sm:$0xff]
  %v3478 = vld [vmem:[%s3 + $0xc0] sm:$0xff]
  %v3479 = vld [vmem:[%s3 + $0xc8] sm:$0xff]
  %v3480 = vld [vmem:[%s3 + $0xd0] sm:$0xff]
  %v3481 = vld [vmem:[%s3 + $0xd8] sm:$0xff]
  %v3482 = vld [vmem:[%s3 + $0xe0] sm:$0xff]
  %v3483 = vld [vmem:[%s3 + $0xe8] sm:$0xff]
  %v3484 = vld [vmem:[%s3 + $0xf0] sm:$0xff]
  %v3485 = vld [vmem:[%s3 + $0xf8] sm:$0xff]
  %v3486 = vld [vmem:[%s3 + $0x100] sm:$0xff]
  %v3487 = vld [vmem:[%s3 + $0x108] sm:$0xff]
  %v3488 = vld [vmem:[%s3 + $0x110] sm:$0xff]
  %v3489 = vld [vmem:[%s3 + $0x118] sm:$0xff]
  %v3490 = vld [vmem:[%s3 + $0x120] sm:$0xff]
  %v3491 = vld [vmem:[%s3 + $0x128] sm:$0xff]
  %v3492 = vld [vmem:[%s3 + $0x130] sm:$0xff]
  %v3493 = vld [vmem:[%s3 + $0x138] sm:$0xff]
  %v3494 = vld [vmem:[%s3 + $0x140] sm:$0xff]
  %v3495 = vld [vmem:[%s3 + $0x148] sm:$0xff]
  %v3496 = vld [vmem:[%s3 + $0x150] sm:$0xff]
  %v3497 = vld [vmem:[%s3 + $0x158] sm:$0xff]
  %v3498 = vld [vmem:[%s3 + $0x160] sm:$0xff]
  %v3499 = vld [vmem:[%s3 + $0x168] sm:$0xff]
  %v3500 = vld [vmem:[%s3 + $0x170] sm:$0xff]
  %v3501 = vld [vmem:[%s3 + $0x178] sm:$0xff]
  %v3502 = vld [vmem:[%s3 + $0x180] sm:$0xff]
  %v3503 = vld [vmem:[%s3 + $0x188] sm:$0xff]
  %v3504 = vld [vmem:[%s3 + $0x190] sm:$0xff]
  %v3505 = vld [vmem:[%s3 + $0x198] sm:$0xff]
  %v3506 = vld [vmem:[%s3 + $0x1a0] sm:$0xff]
  %v3507 = vld [vmem:[%s3 + $0x1a8] sm:$0xff]
  %v3508 = vld [vmem:[%s3 + $0x1b0] sm:$0xff]
  %v3509 = vld [vmem:[%s3 + $0x1b8] sm:$0xff]
  %v3510 = vld [vmem:[%s3 + $0x1c0] sm:$0xff]
  %v3511 = vld [vmem:[%s3 + $0x1c8] sm:$0xff]
  %v3512 = vld [vmem:[%s3 + $0x1d0] sm:$0xff]
  %v3513 = vld [vmem:[%s3 + $0x1d8] sm:$0xff]
  %v3514 = vld [vmem:[%s3 + $0x1e0] sm:$0xff]
  %v3515 = vld [vmem:[%s3 + $0x1e8] sm:$0xff]
  %v3516 = vld [vmem:[%s3 + $0x1f0] sm:$0xff]
  %v3517 = vld [vmem:[%s3 + $0x1f8] sm:$0xff]
  %v3518 = vld [vmem:[%s4] sm:$0xf]
  %v3520 = vperm.slane %v3518, 0
  %v3521 = vperm.slane %v3518, 1
  %v3522 = vperm.slane %v3518, 2
  %v3523 = vperm.slane %v3518, 3
  %3528 = vmatpush.msra.mxu0 %v3514
  %3529 = vmatpush.msra.mxu0 %v3510
  %3530 = vmatpush.msra.mxu0 %v3506
  %3531 = vmatpush.msra.mxu0 %v3502
  %3532 = vmatpush.msra.mxu0 %v3498
  %3533 = vmatpush.msra.mxu0 %v3494
  %3534 = vmatpush.msra.mxu0 %v3490
  %3535 = vmatpush.msra.mxu0 %v3486
  %3536 = vmatpush.msra.mxu0 %v3482
  %3537 = vmatpush.msra.mxu0 %v3478
  %3538 = vmatpush.msra.mxu0 %v3474
  %3539 = vmatpush.msra.mxu0 %v3470
  %3540 = vmatpush.msra.mxu0 %v3466
  %3541 = vmatpush.msra.mxu0 %v3462
  %3542 = vmatpush.msra.mxu0 %v3458
  %3543 = vmatpush.msra.mxu0 %v3454
  %3544 = vmatmul.f32.gmra.mxu0 %v3451
  %v3545 = vpop.f32.mrf.mxu0
  %v3546 = vadd.f32 %v3520, %v3545
  %3547 = vdwg.mxu0
  %3548 = vmatpush.msra.mxu0 %v3515
  %3549 = vmatpush.msra.mxu0 %v3511
  %3550 = vmatpush.msra.mxu0 %v3507
  %3551 = vmatpush.msra.mxu0 %v3503
  %3552 = vmatpush.msra.mxu0 %v3499
  %3553 = vmatpush.msra.mxu0 %v3495
  %3554 = vmatpush.msra.mxu0 %v3491
  %3555 = vmatpush.msra.mxu0 %v3487
  %3556 = vmatpush.msra.mxu0 %v3483
  %3557 = vmatpush.msra.mxu0 %v3479
  %3558 = vmatpush.msra.mxu0 %v3475
  %3559 = vmatpush.msra.mxu0 %v3471
  %3560 = vmatpush.msra.mxu0 %v3467
  %3561 = vmatpush.msra.mxu0 %v3463
  %3562 = vmatpush.msra.mxu0 %v3459
  %3563 = vmatpush.msra.mxu0 %v3455
  %3564 = vmatmul.f32.gmra.mxu0 %v3451
  %v3565 = vpop.f32.mrf.mxu0
  %v3566 = vadd.f32 %v3521, %v3565
  %3567 = vdwg.mxu0
  %3568 = vmatpush.msra.mxu0 %v3516
  %3569 = vmatpush.msra.mxu0 %v3512
  %3570 = vmatpush.msra.mxu0 %v3508
  %3571 = vmatpush.msra.mxu0 %v3504
  %3572 = vmatpush.msra.mxu0 %v3500
  %3573 = vmatpush.msra.mxu0 %v3496
  %3574 = vmatpush.msra.mxu0 %v3492
  %3575 = vmatpush.msra.mxu0 %v3488
  %3576 = vmatpush.msra.mxu0 %v3484
  %3577 = vmatpush.msra.mxu0 %v3480
  %3578 = vmatpush.msra.mxu0 %v3476
  %3579 = vmatpush.msra.mxu0 %v3472
  %3580 = vmatpush.msra.mxu0 %v3468
  %3581 = vmatpush.msra.mxu0 %v3464
  %3582 = vmatpush.msra.mxu0 %v3460
  %3583 = vmatpush.msra.mxu0 %v3456
  %3584 = vmatmul.f32.gmra.mxu0 %v3451
  %v3585 = vpop.f32.mrf.mxu0
  %v3586 = vadd.f32 %v3522, %v3585
  %3587 = vdwg.mxu0
  %3588 = vmatpush.msra.mxu0 %v3517
  %3589 = vmatpush.msra.mxu0 %v3513
  %3590 = vmatpush.msra.mxu0 %v3509
  %3591 = vmatpush.msra.mxu0 %v3505
  %3592 = vmatpush.msra.mxu0 %v3501
  %3593 = vmatpush.msra.mxu0 %v3497
  %3594 = vmatpush.msra.mxu0 %v3493
  %3595 = vmatpush.msra.mxu0 %v3489
  %3596 = vmatpush.msra.mxu0 %v3485
  %3597 = vmatpush.msra.mxu0 %v3481
  %3598 = vmatpush.msra.mxu0 %v3477
  %3599 = vmatpush.msra.mxu0 %v3473
  %3600 = vmatpush.msra.mxu0 %v3469
  %3601 = vmatpush.msra.mxu0 %v3465
  %3602 = vmatpush.msra.mxu0 %v3461
  %3603 = vmatpush.msra.mxu0 %v3457
  %3604 = vmatmul.f32.gmra.mxu0 %v3451
  %v3605 = vpop.f32.mrf.mxu0
  %v3606 = vadd.f32 %v3523, %v3605
  %3607 = vdwg.mxu0
  %v3608 = vld [vmem:[%s665] sm:$0xff]
  %v3609 = vld [vmem:[%s667] sm:$0xff]
  %v3610 = vld [vmem:[%s669] sm:$0xff]
  %v3611 = vld [vmem:[%s669 + $0x8] sm:$0xff]
  %v3612 = vld [vmem:[%s669 + $0x10] sm:$0xff]
  %v3613 = vld [vmem:[%s669 + $0x18] sm:$0xff]
  %v3614 = vld [vmem:[%s669 + $0x20] sm:$0xff]
  %v3615 = vld [vmem:[%s669 + $0x28] sm:$0xff]
  %v3616 = vld [vmem:[%s669 + $0x30] sm:$0xff]
  %v3617 = vld [vmem:[%s669 + $0x38] sm:$0xff]
  %v3618 = vld [vmem:[%s669 + $0x40] sm:$0xff]
  %v3619 = vld [vmem:[%s669 + $0x48] sm:$0xff]
  %v3620 = vld [vmem:[%s669 + $0x50] sm:$0xff]
  %v3621 = vld [vmem:[%s669 + $0x58] sm:$0xff]
  %v3622 = vld [vmem:[%s669 + $0x60] sm:$0xff]
  %v3623 = vld [vmem:[%s669 + $0x68] sm:$0xff]
  %v3624 = vld [vmem:[%s669 + $0x70] sm:$0xff]
  %v3625 = vld [vmem:[%s669 + $0x78] sm:$0xff]
  %v3626 = vld [vmem:[%s669 + $0x80] sm:$0xff]
  %v3627 = vld [vmem:[%s669 + $0x88] sm:$0xff]
  %v3628 = vld [vmem:[%s669 + $0x90] sm:$0xff]
  %v3629 = vld [vmem:[%s669 + $0x98] sm:$0xff]
  %v3630 = vld [vmem:[%s669 + $0xa0] sm:$0xff]
  %v3631 = vld [vmem:[%s669 + $0xa8] sm:$0xff]
  %v3632 = vld [vmem:[%s669 + $0xb0] sm:$0xff]
  %v3633 = vld [vmem:[%s669 + $0xb8] sm:$0xff]
  %v3634 = vld [vmem:[%s669 + $0xc0] sm:$0xff]
  %v3635 = vld [vmem:[%s669 + $0xc8] sm:$0xff]
  %v3636 = vld [vmem:[%s669 + $0xd0] sm:$0xff]
  %v3637 = vld [vmem:[%s669 + $0xd8] sm:$0xff]
  %v3638 = vld [vmem:[%s669 + $0xe0] sm:$0xff]
  %v3639 = vld [vmem:[%s669 + $0xe8] sm:$0xff]
  %v3640 = vld [vmem:[%s669 + $0xf0] sm:$0xff]
  %v3641 = vld [vmem:[%s669 + $0xf8] sm:$0xff]
  %v3642 = vld [vmem:[%s669 + $0x100] sm:$0xff]
  %v3643 = vld [vmem:[%s669 + $0x108] sm:$0xff]
  %v3644 = vld [vmem:[%s669 + $0x110] sm:$0xff]
  %v3645 = vld [vmem:[%s669 + $0x118] sm:$0xff]
  %v3646 = vld [vmem:[%s669 + $0x120] sm:$0xff]
  %v3647 = vld [vmem:[%s669 + $0x128] sm:$0xff]
  %v3648 = vld [vmem:[%s669 + $0x130] sm:$0xff]
  %v3649 = vld [vmem:[%s669 + $0x138] sm:$0xff]
  %v3650 = vld [vmem:[%s669 + $0x140] sm:$0xff]
  %v3651 = vld [vmem:[%s669 + $0x148] sm:$0xff]
  %v3652 = vld [vmem:[%s669 + $0x150] sm:$0xff]
  %v3653 = vld [vmem:[%s669 + $0x158] sm:$0xff]
  %v3654 = vld [vmem:[%s669 + $0x160] sm:$0xff]
  %v3655 = vld [vmem:[%s669 + $0x168] sm:$0xff]
  %v3656 = vld [vmem:[%s669 + $0x170] sm:$0xff]
  %v3657 = vld [vmem:[%s669 + $0x178] sm:$0xff]
  %v3658 = vld [vmem:[%s669 + $0x180] sm:$0xff]
  %v3659 = vld [vmem:[%s669 + $0x188] sm:$0xff]
  %v3660 = vld [vmem:[%s669 + $0x190] sm:$0xff]
  %v3661 = vld [vmem:[%s669 + $0x198] sm:$0xff]
  %v3662 = vld [vmem:[%s669 + $0x1a0] sm:$0xff]
  %v3663 = vld [vmem:[%s669 + $0x1a8] sm:$0xff]
  %v3664 = vld [vmem:[%s669 + $0x1b0] sm:$0xff]
  %v3665 = vld [vmem:[%s669 + $0x1b8] sm:$0xff]
  %v3666 = vld [vmem:[%s669 + $0x1c0] sm:$0xff]
  %v3667 = vld [vmem:[%s669 + $0x1c8] sm:$0xff]
  %v3668 = vld [vmem:[%s669 + $0x1d0] sm:$0xff]
  %v3669 = vld [vmem:[%s669 + $0x1d8] sm:$0xff]
  %v3670 = vld [vmem:[%s669 + $0x1e0] sm:$0xff]
  %v3671 = vld [vmem:[%s669 + $0x1e8] sm:$0xff]
  %v3672 = vld [vmem:[%s669 + $0x1f0] sm:$0xff]
  %v3673 = vld [vmem:[%s669 + $0x1f8] sm:$0xff]
  %3674 = vmatpush.msra.mxu0 %v3670
  %3675 = vmatpush.msra.mxu0 %v3666
  %3676 = vmatpush.msra.mxu0 %v3662
  %3677 = vmatpush.msra.mxu0 %v3658
  %3678 = vmatpush.msra.mxu0 %v3654
  %3679 = vmatpush.msra.mxu0 %v3650
  %3680 = vmatpush.msra.mxu0 %v3646
  %3681 = vmatpush.msra.mxu0 %v3642
  %3682 = vmatpush.msra.mxu0 %v3638
  %3683 = vmatpush.msra.mxu0 %v3634
  %3684 = vmatpush.msra.mxu0 %v3630
  %3685 = vmatpush.msra.mxu0 %v3626
  %3686 = vmatpush.msra.mxu0 %v3622
  %3687 = vmatpush.msra.mxu0 %v3618
  %3688 = vmatpush.msra.mxu0 %v3614
  %3689 = vmatpush.msra.mxu0 %v3610
  %3690 = vmatmul.f32.gmra.mxu0 %v3608
  %v3691 = vpop.f32.mrf.mxu0
  %v3692 = vadd.f32 0.0, %v3691
  %3693 = vdwg.mxu0
  %3694 = vmatpush.msra.mxu0 %v3671
  %3695 = vmatpush.msra.mxu0 %v3667
  %3696 = vmatpush.msra.mxu0 %v3663
  %3697 = vmatpush.msra.mxu0 %v3659
  %3698 = vmatpush.msra.mxu0 %v3655
  %3699 = vmatpush.msra.mxu0 %v3651
  %3700 = vmatpush.msra.mxu0 %v3647
  %3701 = vmatpush.msra.mxu0 %v3643
  %3702 = vmatpush.msra.mxu0 %v3639
  %3703 = vmatpush.msra.mxu0 %v3635
  %3704 = vmatpush.msra.mxu0 %v3631
  %3705 = vmatpush.msra.mxu0 %v3627
  %3706 = vmatpush.msra.mxu0 %v3623
  %3707 = vmatpush.msra.mxu0 %v3619
  %3708 = vmatpush.msra.mxu0 %v3615
  %3709 = vmatpush.msra.mxu0 %v3611
  %3710 = vmatmul.f32.gmra.mxu0 %v3608
  %v3711 = vpop.f32.mrf.mxu0
  %v3712 = vadd.f32 0.0, %v3711
  %3713 = vdwg.mxu0
  %3714 = vmatpush.msra.mxu0 %v3672
  %3715 = vmatpush.msra.mxu0 %v3668
  %3716 = vmatpush.msra.mxu0 %v3664
  %3717 = vmatpush.msra.mxu0 %v3660
  %3718 = vmatpush.msra.mxu0 %v3656
  %3719 = vmatpush.msra.mxu0 %v3652
  %3720 = vmatpush.msra.mxu0 %v3648
  %3721 = vmatpush.msra.mxu0 %v3644
  %3722 = vmatpush.msra.mxu0 %v3640
  %3723 = vmatpush.msra.mxu0 %v3636
  %3724 = vmatpush.msra.mxu0 %v3632
  %3725 = vmatpush.msra.mxu0 %v3628
  %3726 = vmatpush.msra.mxu0 %v3624
  %3727 = vmatpush.msra.mxu0 %v3620
  %3728 = vmatpush.msra.mxu0 %v3616
  %3729 = vmatpush.msra.mxu0 %v3612
  %3730 = vmatmul.f32.gmra.mxu0 %v3608
  %v3731 = vpop.f32.mrf.mxu0
  %v3732 = vadd.f32 0.0, %v3731
  %3733 = vdwg.mxu0
  %3734 = vmatpush.msra.mxu0 %v3673
  %3735 = vmatpush.msra.mxu0 %v3669
  %3736 = vmatpush.msra.mxu0 %v3665
  %3737 = vmatpush.msra.mxu0 %v3661
  %3738 = vmatpush.msra.mxu0 %v3657
  %3739 = vmatpush.msra.mxu0 %v3653
  %3740 = vmatpush.msra.mxu0 %v3649
  %3741 = vmatpush.msra.mxu0 %v3645
  %3742 = vmatpush.msra.mxu0 %v3641
  %3743 = vmatpush.msra.mxu0 %v3637
  %3744 = vmatpush.msra.mxu0 %v3633
  %3745 = vmatpush.msra.mxu0 %v3629
  %3746 = vmatpush.msra.mxu0 %v3625
  %3747 = vmatpush.msra.mxu0 %v3621
  %3748 = vmatpush.msra.mxu0 %v3617
  %3749 = vmatpush.msra.mxu0 %v3613
  %3750 = vmatmul.f32.gmra.mxu0 %v3608
  %v3751 = vpop.f32.mrf.mxu0
  %v3752 = vadd.f32 0.0, %v3751
  %3753 = vdwg.mxu0
  %v3754 = vadd.f32 %v3546, %v3692
  %v3755 = vadd.f32 %v3566, %v3712
  %v3756 = vadd.f32 %v3586, %v3732
  %v3757 = vadd.f32 %v3606, %v3752
  %v3758 = vxor.u32 %v3754, 2147483648
  %v3759 = vmul.f32 %v3758, 1.442695
  %v3760 = vpow.pop %v3759
  %v3761 = vadd.f32 %v3760, 1.0
  %v3762 = vrcp.pop %v3761
  %v3763 = vmul.f32 %v3761, %v3762
  %v3764 = vsub.f32 1.0, %v3763
  %v3765 = vmul.f32 %v3762, %v3764
  %v3766 = vadd.f32 %v3762, %v3765
  %vm3767 = vweird.f32 %v3761
  %vm3768 = vweird.f32 %v3762
  %vm3769 = vmor %vm3767, %vm3768
  %v3770 = vsel %vm3769, %v3762, %v3766
  %v3771 = vand.u32 2147483647, %v3761
  %vm3772 = vcmp.eq.f32.partialorder %v3771, 8.507059e+37
  %v3773 = vand.u32 %v3761, 2147483648
  %v3774 = vor.u32 1.1754944e-38, %v3773
  %v3775 = vsel %vm3772, %v3774, %v3770
  %v3776 = vmul.f32 1.0, %v3775
  %v3777 = vxor.u32 %v3755, 2147483648
  %v3778 = vmul.f32 %v3777, 1.442695
  %v3779 = vpow.pop %v3778
  %v3780 = vadd.f32 %v3779, 1.0
  %v3781 = vrcp.pop %v3780
  %v3782 = vmul.f32 %v3780, %v3781
  %v3783 = vsub.f32 1.0, %v3782
  %v3784 = vmul.f32 %v3781, %v3783
  %v3785 = vadd.f32 %v3781, %v3784
  %vm3786 = vweird.f32 %v3780
  %vm3787 = vweird.f32 %v3781
  %vm3788 = vmor %vm3786, %vm3787
  %v3789 = vsel %vm3788, %v3781, %v3785
  %v3790 = vand.u32 2147483647, %v3780
  %vm3791 = vcmp.eq.f32.partialorder %v3790, 8.507059e+37
  %v3792 = vand.u32 %v3780, 2147483648
  %v3793 = vor.u32 1.1754944e-38, %v3792
  %v3794 = vsel %vm3791, %v3793, %v3789
  %v3795 = vmul.f32 1.0, %v3794
  %v3796 = vtanh.pop %v3756
  %v3797 = vxor.u32 %v3757, 2147483648
  %v3798 = vmul.f32 %v3797, 1.442695
  %v3799 = vpow.pop %v3798
  %v3800 = vadd.f32 %v3799, 1.0
  %v3801 = vrcp.pop %v3800
  %v3802 = vmul.f32 %v3800, %v3801
  %v3803 = vsub.f32 1.0, %v3802
  %v3804 = vmul.f32 %v3801, %v3803
  %v3805 = vadd.f32 %v3801, %v3804
  %vm3806 = vweird.f32 %v3800
  %vm3807 = vweird.f32 %v3801
  %vm3808 = vmor %vm3806, %vm3807
  %v3809 = vsel %vm3808, %v3801, %v3805
  %v3810 = vand.u32 2147483647, %v3800
  %vm3811 = vcmp.eq.f32.partialorder %v3810, 8.507059e+37
  %v3812 = vand.u32 %v3800, 2147483648
  %v3813 = vor.u32 1.1754944e-38, %v3812
  %v3814 = vsel %vm3811, %v3813, %v3809
  %v3815 = vmul.f32 1.0, %v3814
  %v3816 = vmul.f32 %v3795, %v3609
  %v3817 = vmul.f32 %v3776, %v3796
  %v3818 = vadd.f32 %v3816, %v3817
  %v3819 = vtanh.pop %v3818
  %v3820 = vmul.f32 %v3815, %v3819
  %3821 = vst [vmem:[%s665] sm:$0xff] %v3820
  %3822 = vst [vmem:[%s667] sm:$0xff] %v3818
  %v3823 = vld [vmem:[#allocation2 + $0xc0] sm:$0xff]
  %v3824 = vld [vmem:[#allocation2 + $0xc8] sm:$0xff]
  %v3825 = vld [vmem:[#allocation2 + $0xd0] sm:$0xff]
  %v3826 = vld [vmem:[#allocation2 + $0xd8] sm:$0xff]
  %v3827 = vld [vmem:[#allocation3] sm:$0xff]
  %v3828 = vld [vmem:[#allocation4] sm:$0xff]
  %v3829 = vld [vmem:[%s5] sm:$0xff]
  %v3830 = vld [vmem:[%s5 + $0x8] sm:$0xff]
  %v3831 = vld [vmem:[%s5 + $0x10] sm:$0xff]
  %v3832 = vld [vmem:[%s5 + $0x18] sm:$0xff]
  %v3833 = vld [vmem:[%s5 + $0x20] sm:$0xff]
  %v3834 = vld [vmem:[%s5 + $0x28] sm:$0xff]
  %v3835 = vld [vmem:[%s5 + $0x30] sm:$0xff]
  %v3836 = vld [vmem:[%s5 + $0x38] sm:$0xff]
  %v3837 = vld [vmem:[%s5 + $0x40] sm:$0xff]
  %v3838 = vld [vmem:[%s5 + $0x48] sm:$0xff]
  %v3839 = vld [vmem:[%s5 + $0x50] sm:$0xff]
  %v3840 = vld [vmem:[%s5 + $0x58] sm:$0xff]
  %v3841 = vld [vmem:[%s5 + $0x60] sm:$0xff]
  %v3842 = vld [vmem:[%s5 + $0x68] sm:$0xff]
  %v3843 = vld [vmem:[%s5 + $0x70] sm:$0xff]
  %v3844 = vld [vmem:[%s5 + $0x78] sm:$0xff]
  %v3845 = vld [vmem:[%s5 + $0x80] sm:$0xff]
  %v3846 = vld [vmem:[%s5 + $0x88] sm:$0xff]
  %v3847 = vld [vmem:[%s5 + $0x90] sm:$0xff]
  %v3848 = vld [vmem:[%s5 + $0x98] sm:$0xff]
  %v3849 = vld [vmem:[%s5 + $0xa0] sm:$0xff]
  %v3850 = vld [vmem:[%s5 + $0xa8] sm:$0xff]
  %v3851 = vld [vmem:[%s5 + $0xb0] sm:$0xff]
  %v3852 = vld [vmem:[%s5 + $0xb8] sm:$0xff]
  %v3853 = vld [vmem:[%s5 + $0xc0] sm:$0xff]
  %v3854 = vld [vmem:[%s5 + $0xc8] sm:$0xff]
  %v3855 = vld [vmem:[%s5 + $0xd0] sm:$0xff]
  %v3856 = vld [vmem:[%s5 + $0xd8] sm:$0xff]
  %v3857 = vld [vmem:[%s5 + $0xe0] sm:$0xff]
  %v3858 = vld [vmem:[%s5 + $0xe8] sm:$0xff]
  %v3859 = vld [vmem:[%s5 + $0xf0] sm:$0xff]
  %v3860 = vld [vmem:[%s5 + $0xf8] sm:$0xff]
  %v3861 = vld [vmem:[%s5 + $0x100] sm:$0xff]
  %v3862 = vld [vmem:[%s5 + $0x108] sm:$0xff]
  %v3863 = vld [vmem:[%s5 + $0x110] sm:$0xff]
  %v3864 = vld [vmem:[%s5 + $0x118] sm:$0xff]
  %v3865 = vld [vmem:[%s5 + $0x120] sm:$0xff]
  %v3866 = vld [vmem:[%s5 + $0x128] sm:$0xff]
  %v3867 = vld [vmem:[%s5 + $0x130] sm:$0xff]
  %v3868 = vld [vmem:[%s5 + $0x138] sm:$0xff]
  %v3869 = vld [vmem:[%s5 + $0x140] sm:$0xff]
  %v3870 = vld [vmem:[%s5 + $0x148] sm:$0xff]
  %v3871 = vld [vmem:[%s5 + $0x150] sm:$0xff]
  %v3872 = vld [vmem:[%s5 + $0x158] sm:$0xff]
  %v3873 = vld [vmem:[%s5 + $0x160] sm:$0xff]
  %v3874 = vld [vmem:[%s5 + $0x168] sm:$0xff]
  %v3875 = vld [vmem:[%s5 + $0x170] sm:$0xff]
  %v3876 = vld [vmem:[%s5 + $0x178] sm:$0xff]
  %v3877 = vld [vmem:[%s5 + $0x180] sm:$0xff]
  %v3878 = vld [vmem:[%s5 + $0x188] sm:$0xff]
  %v3879 = vld [vmem:[%s5 + $0x190] sm:$0xff]
  %v3880 = vld [vmem:[%s5 + $0x198] sm:$0xff]
  %v3881 = vld [vmem:[%s5 + $0x1a0] sm:$0xff]
  %v3882 = vld [vmem:[%s5 + $0x1a8] sm:$0xff]
  %v3883 = vld [vmem:[%s5 + $0x1b0] sm:$0xff]
  %v3884 = vld [vmem:[%s5 + $0x1b8] sm:$0xff]
  %v3885 = vld [vmem:[%s5 + $0x1c0] sm:$0xff]
  %v3886 = vld [vmem:[%s5 + $0x1c8] sm:$0xff]
  %v3887 = vld [vmem:[%s5 + $0x1d0] sm:$0xff]
  %v3888 = vld [vmem:[%s5 + $0x1d8] sm:$0xff]
  %v3889 = vld [vmem:[%s5 + $0x1e0] sm:$0xff]
  %v3890 = vld [vmem:[%s5 + $0x1e8] sm:$0xff]
  %v3891 = vld [vmem:[%s5 + $0x1f0] sm:$0xff]
  %v3892 = vld [vmem:[%s5 + $0x1f8] sm:$0xff]
  %3893 = vmatpush.msra.mxu0 %v3889
  %3894 = vmatpush.msra.mxu0 %v3885
  %3895 = vmatpush.msra.mxu0 %v3881
  %3896 = vmatpush.msra.mxu0 %v3877
  %3897 = vmatpush.msra.mxu0 %v3873
  %3898 = vmatpush.msra.mxu0 %v3869
  %3899 = vmatpush.msra.mxu0 %v3865
  %3900 = vmatpush.msra.mxu0 %v3861
  %3901 = vmatpush.msra.mxu0 %v3857
  %3902 = vmatpush.msra.mxu0 %v3853
  %3903 = vmatpush.msra.mxu0 %v3849
  %3904 = vmatpush.msra.mxu0 %v3845
  %3905 = vmatpush.msra.mxu0 %v3841
  %3906 = vmatpush.msra.mxu0 %v3837
  %3907 = vmatpush.msra.mxu0 %v3833
  %3908 = vmatpush.msra.mxu0 %v3829
  %3909 = vmatmul.f32.gmra.mxu0 %v3827
  %v3910 = vpop.f32.mrf.mxu0
  %v3911 = vadd.f32 0.0, %v3910
  %3912 = vdwg.mxu0
  %3913 = vmatpush.msra.mxu0 %v3890
  %3914 = vmatpush.msra.mxu0 %v3886
  %3915 = vmatpush.msra.mxu0 %v3882
  %3916 = vmatpush.msra.mxu0 %v3878
  %3917 = vmatpush.msra.mxu0 %v3874
  %3918 = vmatpush.msra.mxu0 %v3870
  %3919 = vmatpush.msra.mxu0 %v3866
  %3920 = vmatpush.msra.mxu0 %v3862
  %3921 = vmatpush.msra.mxu0 %v3858
  %3922 = vmatpush.msra.mxu0 %v3854
  %3923 = vmatpush.msra.mxu0 %v3850
  %3924 = vmatpush.msra.mxu0 %v3846
  %3925 = vmatpush.msra.mxu0 %v3842
  %3926 = vmatpush.msra.mxu0 %v3838
  %3927 = vmatpush.msra.mxu0 %v3834
  %3928 = vmatpush.msra.mxu0 %v3830
  %3929 = vmatmul.f32.gmra.mxu0 %v3827
  %v3930 = vpop.f32.mrf.mxu0
  %v3931 = vadd.f32 0.0, %v3930
  %3932 = vdwg.mxu0
  %3933 = vmatpush.msra.mxu0 %v3891
  %3934 = vmatpush.msra.mxu0 %v3887
  %3935 = vmatpush.msra.mxu0 %v3883
  %3936 = vmatpush.msra.mxu0 %v3879
  %3937 = vmatpush.msra.mxu0 %v3875
  %3938 = vmatpush.msra.mxu0 %v3871
  %3939 = vmatpush.msra.mxu0 %v3867
  %3940 = vmatpush.msra.mxu0 %v3863
  %3941 = vmatpush.msra.mxu0 %v3859
  %3942 = vmatpush.msra.mxu0 %v3855
  %3943 = vmatpush.msra.mxu0 %v3851
  %3944 = vmatpush.msra.mxu0 %v3847
  %3945 = vmatpush.msra.mxu0 %v3843
  %3946 = vmatpush.msra.mxu0 %v3839
  %3947 = vmatpush.msra.mxu0 %v3835
  %3948 = vmatpush.msra.mxu0 %v3831
  %3949 = vmatmul.f32.gmra.mxu0 %v3827
  %v3950 = vpop.f32.mrf.mxu0
  %v3951 = vadd.f32 0.0, %v3950
  %3952 = vdwg.mxu0
  %3953 = vmatpush.msra.mxu0 %v3892
  %3954 = vmatpush.msra.mxu0 %v3888
  %3955 = vmatpush.msra.mxu0 %v3884
  %3956 = vmatpush.msra.mxu0 %v3880
  %3957 = vmatpush.msra.mxu0 %v3876
  %3958 = vmatpush.msra.mxu0 %v3872
  %3959 = vmatpush.msra.mxu0 %v3868
  %3960 = vmatpush.msra.mxu0 %v3864
  %3961 = vmatpush.msra.mxu0 %v3860
  %3962 = vmatpush.msra.mxu0 %v3856
  %3963 = vmatpush.msra.mxu0 %v3852
  %3964 = vmatpush.msra.mxu0 %v3848
  %3965 = vmatpush.msra.mxu0 %v3844
  %3966 = vmatpush.msra.mxu0 %v3840
  %3967 = vmatpush.msra.mxu0 %v3836
  %3968 = vmatpush.msra.mxu0 %v3832
  %3969 = vmatmul.f32.gmra.mxu0 %v3827
  %v3970 = vpop.f32.mrf.mxu0
  %v3971 = vadd.f32 0.0, %v3970
  %3972 = vdwg.mxu0
  %v3973 = vadd.f32 %v3823, %v3911
  %v3974 = vadd.f32 %v3824, %v3931
  %v3975 = vadd.f32 %v3825, %v3951
  %v3976 = vadd.f32 %v3826, %v3971
  %v3977 = vxor.u32 %v3973, 2147483648
  %v3978 = vmul.f32 %v3977, 1.442695
  %v3979 = vpow.pop %v3978
  %v3980 = vadd.f32 %v3979, 1.0
  %v3981 = vrcp.pop %v3980
  %v3982 = vmul.f32 %v3980, %v3981
  %v3983 = vsub.f32 1.0, %v3982
  %v3984 = vmul.f32 %v3981, %v3983
  %v3985 = vadd.f32 %v3981, %v3984
  %vm3986 = vweird.f32 %v3980
  %vm3987 = vweird.f32 %v3981
  %vm3988 = vmor %vm3986, %vm3987
  %v3989 = vsel %vm3988, %v3981, %v3985
  %v3990 = vand.u32 2147483647, %v3980
  %vm3991 = vcmp.eq.f32.partialorder %v3990, 8.507059e+37
  %v3992 = vand.u32 %v3980, 2147483648
  %v3993 = vor.u32 1.1754944e-38, %v3992
  %v3994 = vsel %vm3991, %v3993, %v3989
  %v3995 = vmul.f32 1.0, %v3994
  %v3996 = vxor.u32 %v3974, 2147483648
  %v3997 = vmul.f32 %v3996, 1.442695
  %v3998 = vpow.pop %v3997
  %v3999 = vadd.f32 %v3998, 1.0
  %v4000 = vrcp.pop %v3999
  %v4001 = vmul.f32 %v3999, %v4000
  %v4002 = vsub.f32 1.0, %v4001
  %v4003 = vmul.f32 %v4000, %v4002
  %v4004 = vadd.f32 %v4000, %v4003
  %vm4005 = vweird.f32 %v3999
  %vm4006 = vweird.f32 %v4000
  %vm4007 = vmor %vm4005, %vm4006
  %v4008 = vsel %vm4007, %v4000, %v4004
  %v4009 = vand.u32 2147483647, %v3999
  %vm4010 = vcmp.eq.f32.partialorder %v4009, 8.507059e+37
  %v4011 = vand.u32 %v3999, 2147483648
  %v4012 = vor.u32 1.1754944e-38, %v4011
  %v4013 = vsel %vm4010, %v4012, %v4008
  %v4014 = vmul.f32 1.0, %v4013
  %v4015 = vtanh.pop %v3975
  %v4016 = vxor.u32 %v3976, 2147483648
  %v4017 = vmul.f32 %v4016, 1.442695
  %v4018 = vpow.pop %v4017
  %v4019 = vadd.f32 %v4018, 1.0
  %v4020 = vrcp.pop %v4019
  %v4021 = vmul.f32 %v4019, %v4020
  %v4022 = vsub.f32 1.0, %v4021
  %v4023 = vmul.f32 %v4020, %v4022
  %v4024 = vadd.f32 %v4020, %v4023
  %vm4025 = vweird.f32 %v4019
  %vm4026 = vweird.f32 %v4020
  %vm4027 = vmor %vm4025, %vm4026
  %v4028 = vsel %vm4027, %v4020, %v4024
  %v4029 = vand.u32 2147483647, %v4019
  %vm4030 = vcmp.eq.f32.partialorder %v4029, 8.507059e+37
  %v4031 = vand.u32 %v4019, 2147483648
  %v4032 = vor.u32 1.1754944e-38, %v4031
  %v4033 = vsel %vm4030, %v4032, %v4028
  %v4034 = vmul.f32 1.0, %v4033
  %v4035 = vmul.f32 %v4014, %v3828
  %v4036 = vmul.f32 %v3995, %v4015
  %v4037 = vadd.f32 %v4035, %v4036
  %v4038 = vtanh.pop %v4037
  %v4039 = vmul.f32 %v4034, %v4038
  %4040 = vst [vmem:[#allocation3] sm:$0xff] %v4039
  %4041 = vst [vmem:[#allocation4] sm:$0xff] %v4037
  %v4042 = vld [vmem:[%s3] sm:$0xff]
  %v4043 = vld [vmem:[%s3 + $0x8] sm:$0xff]
  %v4044 = vld [vmem:[%s3 + $0x10] sm:$0xff]
  %v4045 = vld [vmem:[%s3 + $0x18] sm:$0xff]
  %v4046 = vld [vmem:[%s3 + $0x20] sm:$0xff]
  %v4047 = vld [vmem:[%s3 + $0x28] sm:$0xff]
  %v4048 = vld [vmem:[%s3 + $0x30] sm:$0xff]
  %v4049 = vld [vmem:[%s3 + $0x38] sm:$0xff]
  %v4050 = vld [vmem:[%s3 + $0x40] sm:$0xff]
  %v4051 = vld [vmem:[%s3 + $0x48] sm:$0xff]
  %v4052 = vld [vmem:[%s3 + $0x50] sm:$0xff]
  %v4053 = vld [vmem:[%s3 + $0x58] sm:$0xff]
  %v4054 = vld [vmem:[%s3 + $0x60] sm:$0xff]
  %v4055 = vld [vmem:[%s3 + $0x68] sm:$0xff]
  %v4056 = vld [vmem:[%s3 + $0x70] sm:$0xff]
  %v4057 = vld [vmem:[%s3 + $0x78] sm:$0xff]
  %v4058 = vld [vmem:[%s3 + $0x80] sm:$0xff]
  %v4059 = vld [vmem:[%s3 + $0x88] sm:$0xff]
  %v4060 = vld [vmem:[%s3 + $0x90] sm:$0xff]
  %v4061 = vld [vmem:[%s3 + $0x98] sm:$0xff]
  %v4062 = vld [vmem:[%s3 + $0xa0] sm:$0xff]
  %v4063 = vld [vmem:[%s3 + $0xa8] sm:$0xff]
  %v4064 = vld [vmem:[%s3 + $0xb0] sm:$0xff]
  %v4065 = vld [vmem:[%s3 + $0xb8] sm:$0xff]
  %v4066 = vld [vmem:[%s3 + $0xc0] sm:$0xff]
  %v4067 = vld [vmem:[%s3 + $0xc8] sm:$0xff]
  %v4068 = vld [vmem:[%s3 + $0xd0] sm:$0xff]
  %v4069 = vld [vmem:[%s3 + $0xd8] sm:$0xff]
  %v4070 = vld [vmem:[%s3 + $0xe0] sm:$0xff]
  %v4071 = vld [vmem:[%s3 + $0xe8] sm:$0xff]
  %v4072 = vld [vmem:[%s3 + $0xf0] sm:$0xff]
  %v4073 = vld [vmem:[%s3 + $0xf8] sm:$0xff]
  %v4074 = vld [vmem:[%s3 + $0x100] sm:$0xff]
  %v4075 = vld [vmem:[%s3 + $0x108] sm:$0xff]
  %v4076 = vld [vmem:[%s3 + $0x110] sm:$0xff]
  %v4077 = vld [vmem:[%s3 + $0x118] sm:$0xff]
  %v4078 = vld [vmem:[%s3 + $0x120] sm:$0xff]
  %v4079 = vld [vmem:[%s3 + $0x128] sm:$0xff]
  %v4080 = vld [vmem:[%s3 + $0x130] sm:$0xff]
  %v4081 = vld [vmem:[%s3 + $0x138] sm:$0xff]
  %v4082 = vld [vmem:[%s3 + $0x140] sm:$0xff]
  %v4083 = vld [vmem:[%s3 + $0x148] sm:$0xff]
  %v4084 = vld [vmem:[%s3 + $0x150] sm:$0xff]
  %v4085 = vld [vmem:[%s3 + $0x158] sm:$0xff]
  %v4086 = vld [vmem:[%s3 + $0x160] sm:$0xff]
  %v4087 = vld [vmem:[%s3 + $0x168] sm:$0xff]
  %v4088 = vld [vmem:[%s3 + $0x170] sm:$0xff]
  %v4089 = vld [vmem:[%s3 + $0x178] sm:$0xff]
  %v4090 = vld [vmem:[%s3 + $0x180] sm:$0xff]
  %v4091 = vld [vmem:[%s3 + $0x188] sm:$0xff]
  %v4092 = vld [vmem:[%s3 + $0x190] sm:$0xff]
  %v4093 = vld [vmem:[%s3 + $0x198] sm:$0xff]
  %v4094 = vld [vmem:[%s3 + $0x1a0] sm:$0xff]
  %v4095 = vld [vmem:[%s3 + $0x1a8] sm:$0xff]
  %v4096 = vld [vmem:[%s3 + $0x1b0] sm:$0xff]
  %v4097 = vld [vmem:[%s3 + $0x1b8] sm:$0xff]
  %v4098 = vld [vmem:[%s3 + $0x1c0] sm:$0xff]
  %v4099 = vld [vmem:[%s3 + $0x1c8] sm:$0xff]
  %v4100 = vld [vmem:[%s3 + $0x1d0] sm:$0xff]
  %v4101 = vld [vmem:[%s3 + $0x1d8] sm:$0xff]
  %v4102 = vld [vmem:[%s3 + $0x1e0] sm:$0xff]
  %v4103 = vld [vmem:[%s3 + $0x1e8] sm:$0xff]
  %v4104 = vld [vmem:[%s3 + $0x1f0] sm:$0xff]
  %v4105 = vld [vmem:[%s3 + $0x1f8] sm:$0xff]
  %v4106 = vld [vmem:[%s4] sm:$0xf]
  %v4108 = vperm.slane %v4106, 0
  %v4109 = vperm.slane %v4106, 1
  %v4110 = vperm.slane %v4106, 2
  %v4111 = vperm.slane %v4106, 3
  %4116 = vmatpush.msra.mxu0 %v4102
  %4117 = vmatpush.msra.mxu0 %v4098
  %4118 = vmatpush.msra.mxu0 %v4094
  %4119 = vmatpush.msra.mxu0 %v4090
  %4120 = vmatpush.msra.mxu0 %v4086
  %4121 = vmatpush.msra.mxu0 %v4082
  %4122 = vmatpush.msra.mxu0 %v4078
  %4123 = vmatpush.msra.mxu0 %v4074
  %4124 = vmatpush.msra.mxu0 %v4070
  %4125 = vmatpush.msra.mxu0 %v4066
  %4126 = vmatpush.msra.mxu0 %v4062
  %4127 = vmatpush.msra.mxu0 %v4058
  %4128 = vmatpush.msra.mxu0 %v4054
  %4129 = vmatpush.msra.mxu0 %v4050
  %4130 = vmatpush.msra.mxu0 %v4046
  %4131 = vmatpush.msra.mxu0 %v4042
  %4132 = vmatmul.f32.gmra.mxu0 %v4039
  %v4133 = vpop.f32.mrf.mxu0
  %v4134 = vadd.f32 %v4108, %v4133
  %4135 = vdwg.mxu0
  %4136 = vmatpush.msra.mxu0 %v4103
  %4137 = vmatpush.msra.mxu0 %v4099
  %4138 = vmatpush.msra.mxu0 %v4095
  %4139 = vmatpush.msra.mxu0 %v4091
  %4140 = vmatpush.msra.mxu0 %v4087
  %4141 = vmatpush.msra.mxu0 %v4083
  %4142 = vmatpush.msra.mxu0 %v4079
  %4143 = vmatpush.msra.mxu0 %v4075
  %4144 = vmatpush.msra.mxu0 %v4071
  %4145 = vmatpush.msra.mxu0 %v4067
  %4146 = vmatpush.msra.mxu0 %v4063
  %4147 = vmatpush.msra.mxu0 %v4059
  %4148 = vmatpush.msra.mxu0 %v4055
  %4149 = vmatpush.msra.mxu0 %v4051
  %4150 = vmatpush.msra.mxu0 %v4047
  %4151 = vmatpush.msra.mxu0 %v4043
  %4152 = vmatmul.f32.gmra.mxu0 %v4039
  %v4153 = vpop.f32.mrf.mxu0
  %v4154 = vadd.f32 %v4109, %v4153
  %4155 = vdwg.mxu0
  %4156 = vmatpush.msra.mxu0 %v4104
  %4157 = vmatpush.msra.mxu0 %v4100
  %4158 = vmatpush.msra.mxu0 %v4096
  %4159 = vmatpush.msra.mxu0 %v4092
  %4160 = vmatpush.msra.mxu0 %v4088
  %4161 = vmatpush.msra.mxu0 %v4084
  %4162 = vmatpush.msra.mxu0 %v4080
  %4163 = vmatpush.msra.mxu0 %v4076
  %4164 = vmatpush.msra.mxu0 %v4072
  %4165 = vmatpush.msra.mxu0 %v4068
  %4166 = vmatpush.msra.mxu0 %v4064
  %4167 = vmatpush.msra.mxu0 %v4060
  %4168 = vmatpush.msra.mxu0 %v4056
  %4169 = vmatpush.msra.mxu0 %v4052
  %4170 = vmatpush.msra.mxu0 %v4048
  %4171 = vmatpush.msra.mxu0 %v4044
  %4172 = vmatmul.f32.gmra.mxu0 %v4039
  %v4173 = vpop.f32.mrf.mxu0
  %v4174 = vadd.f32 %v4110, %v4173
  %4175 = vdwg.mxu0
  %4176 = vmatpush.msra.mxu0 %v4105
  %4177 = vmatpush.msra.mxu0 %v4101
  %4178 = vmatpush.msra.mxu0 %v4097
  %4179 = vmatpush.msra.mxu0 %v4093
  %4180 = vmatpush.msra.mxu0 %v4089
  %4181 = vmatpush.msra.mxu0 %v4085
  %4182 = vmatpush.msra.mxu0 %v4081
  %4183 = vmatpush.msra.mxu0 %v4077
  %4184 = vmatpush.msra.mxu0 %v4073
  %4185 = vmatpush.msra.mxu0 %v4069
  %4186 = vmatpush.msra.mxu0 %v4065
  %4187 = vmatpush.msra.mxu0 %v4061
  %4188 = vmatpush.msra.mxu0 %v4057
  %4189 = vmatpush.msra.mxu0 %v4053
  %4190 = vmatpush.msra.mxu0 %v4049
  %4191 = vmatpush.msra.mxu0 %v4045
  %4192 = vmatmul.f32.gmra.mxu0 %v4039
  %v4193 = vpop.f32.mrf.mxu0
  %v4194 = vadd.f32 %v4111, %v4193
  %4195 = vdwg.mxu0
  %v4196 = vld [vmem:[%s665] sm:$0xff]
  %v4197 = vld [vmem:[%s667] sm:$0xff]
  %v4198 = vld [vmem:[%s669] sm:$0xff]
  %v4199 = vld [vmem:[%s669 + $0x8] sm:$0xff]
  %v4200 = vld [vmem:[%s669 + $0x10] sm:$0xff]
  %v4201 = vld [vmem:[%s669 + $0x18] sm:$0xff]
  %v4202 = vld [vmem:[%s669 + $0x20] sm:$0xff]
  %v4203 = vld [vmem:[%s669 + $0x28] sm:$0xff]
  %v4204 = vld [vmem:[%s669 + $0x30] sm:$0xff]
  %v4205 = vld [vmem:[%s669 + $0x38] sm:$0xff]
  %v4206 = vld [vmem:[%s669 + $0x40] sm:$0xff]
  %v4207 = vld [vmem:[%s669 + $0x48] sm:$0xff]
  %v4208 = vld [vmem:[%s669 + $0x50] sm:$0xff]
  %v4209 = vld [vmem:[%s669 + $0x58] sm:$0xff]
  %v4210 = vld [vmem:[%s669 + $0x60] sm:$0xff]
  %v4211 = vld [vmem:[%s669 + $0x68] sm:$0xff]
  %v4212 = vld [vmem:[%s669 + $0x70] sm:$0xff]
  %v4213 = vld [vmem:[%s669 + $0x78] sm:$0xff]
  %v4214 = vld [vmem:[%s669 + $0x80] sm:$0xff]
  %v4215 = vld [vmem:[%s669 + $0x88] sm:$0xff]
  %v4216 = vld [vmem:[%s669 + $0x90] sm:$0xff]
  %v4217 = vld [vmem:[%s669 + $0x98] sm:$0xff]
  %v4218 = vld [vmem:[%s669 + $0xa0] sm:$0xff]
  %v4219 = vld [vmem:[%s669 + $0xa8] sm:$0xff]
  %v4220 = vld [vmem:[%s669 + $0xb0] sm:$0xff]
  %v4221 = vld [vmem:[%s669 + $0xb8] sm:$0xff]
  %v4222 = vld [vmem:[%s669 + $0xc0] sm:$0xff]
  %v4223 = vld [vmem:[%s669 + $0xc8] sm:$0xff]
  %v4224 = vld [vmem:[%s669 + $0xd0] sm:$0xff]
  %v4225 = vld [vmem:[%s669 + $0xd8] sm:$0xff]
  %v4226 = vld [vmem:[%s669 + $0xe0] sm:$0xff]
  %v4227 = vld [vmem:[%s669 + $0xe8] sm:$0xff]
  %v4228 = vld [vmem:[%s669 + $0xf0] sm:$0xff]
  %v4229 = vld [vmem:[%s669 + $0xf8] sm:$0xff]
  %v4230 = vld [vmem:[%s669 + $0x100] sm:$0xff]
  %v4231 = vld [vmem:[%s669 + $0x108] sm:$0xff]
  %v4232 = vld [vmem:[%s669 + $0x110] sm:$0xff]
  %v4233 = vld [vmem:[%s669 + $0x118] sm:$0xff]
  %v4234 = vld [vmem:[%s669 + $0x120] sm:$0xff]
  %v4235 = vld [vmem:[%s669 + $0x128] sm:$0xff]
  %v4236 = vld [vmem:[%s669 + $0x130] sm:$0xff]
  %v4237 = vld [vmem:[%s669 + $0x138] sm:$0xff]
  %v4238 = vld [vmem:[%s669 + $0x140] sm:$0xff]
  %v4239 = vld [vmem:[%s669 + $0x148] sm:$0xff]
  %v4240 = vld [vmem:[%s669 + $0x150] sm:$0xff]
  %v4241 = vld [vmem:[%s669 + $0x158] sm:$0xff]
  %v4242 = vld [vmem:[%s669 + $0x160] sm:$0xff]
  %v4243 = vld [vmem:[%s669 + $0x168] sm:$0xff]
  %v4244 = vld [vmem:[%s669 + $0x170] sm:$0xff]
  %v4245 = vld [vmem:[%s669 + $0x178] sm:$0xff]
  %v4246 = vld [vmem:[%s669 + $0x180] sm:$0xff]
  %v4247 = vld [vmem:[%s669 + $0x188] sm:$0xff]
  %v4248 = vld [vmem:[%s669 + $0x190] sm:$0xff]
  %v4249 = vld [vmem:[%s669 + $0x198] sm:$0xff]
  %v4250 = vld [vmem:[%s669 + $0x1a0] sm:$0xff]
  %v4251 = vld [vmem:[%s669 + $0x1a8] sm:$0xff]
  %v4252 = vld [vmem:[%s669 + $0x1b0] sm:$0xff]
  %v4253 = vld [vmem:[%s669 + $0x1b8] sm:$0xff]
  %v4254 = vld [vmem:[%s669 + $0x1c0] sm:$0xff]
  %v4255 = vld [vmem:[%s669 + $0x1c8] sm:$0xff]
  %v4256 = vld [vmem:[%s669 + $0x1d0] sm:$0xff]
  %v4257 = vld [vmem:[%s669 + $0x1d8] sm:$0xff]
  %v4258 = vld [vmem:[%s669 + $0x1e0] sm:$0xff]
  %v4259 = vld [vmem:[%s669 + $0x1e8] sm:$0xff]
  %v4260 = vld [vmem:[%s669 + $0x1f0] sm:$0xff]
  %v4261 = vld [vmem:[%s669 + $0x1f8] sm:$0xff]
  %4262 = vmatpush.msra.mxu0 %v4258
  %4263 = vmatpush.msra.mxu0 %v4254
  %4264 = vmatpush.msra.mxu0 %v4250
  %4265 = vmatpush.msra.mxu0 %v4246
  %4266 = vmatpush.msra.mxu0 %v4242
  %4267 = vmatpush.msra.mxu0 %v4238
  %4268 = vmatpush.msra.mxu0 %v4234
  %4269 = vmatpush.msra.mxu0 %v4230
  %4270 = vmatpush.msra.mxu0 %v4226
  %4271 = vmatpush.msra.mxu0 %v4222
  %4272 = vmatpush.msra.mxu0 %v4218
  %4273 = vmatpush.msra.mxu0 %v4214
  %4274 = vmatpush.msra.mxu0 %v4210
  %4275 = vmatpush.msra.mxu0 %v4206
  %4276 = vmatpush.msra.mxu0 %v4202
  %4277 = vmatpush.msra.mxu0 %v4198
  %4278 = vmatmul.f32.gmra.mxu0 %v4196
  %v4279 = vpop.f32.mrf.mxu0
  %v4280 = vadd.f32 0.0, %v4279
  %4281 = vdwg.mxu0
  %4282 = vmatpush.msra.mxu0 %v4259
  %4283 = vmatpush.msra.mxu0 %v4255
  %4284 = vmatpush.msra.mxu0 %v4251
  %4285 = vmatpush.msra.mxu0 %v4247
  %4286 = vmatpush.msra.mxu0 %v4243
  %4287 = vmatpush.msra.mxu0 %v4239
  %4288 = vmatpush.msra.mxu0 %v4235
  %4289 = vmatpush.msra.mxu0 %v4231
  %4290 = vmatpush.msra.mxu0 %v4227
  %4291 = vmatpush.msra.mxu0 %v4223
  %4292 = vmatpush.msra.mxu0 %v4219
  %4293 = vmatpush.msra.mxu0 %v4215
  %4294 = vmatpush.msra.mxu0 %v4211
  %4295 = vmatpush.msra.mxu0 %v4207
  %4296 = vmatpush.msra.mxu0 %v4203
  %4297 = vmatpush.msra.mxu0 %v4199
  %4298 = vmatmul.f32.gmra.mxu0 %v4196
  %v4299 = vpop.f32.mrf.mxu0
  %v4300 = vadd.f32 0.0, %v4299
  %4301 = vdwg.mxu0
  %4302 = vmatpush.msra.mxu0 %v4260
  %4303 = vmatpush.msra.mxu0 %v4256
  %4304 = vmatpush.msra.mxu0 %v4252
  %4305 = vmatpush.msra.mxu0 %v4248
  %4306 = vmatpush.msra.mxu0 %v4244
  %4307 = vmatpush.msra.mxu0 %v4240
  %4308 = vmatpush.msra.mxu0 %v4236
  %4309 = vmatpush.msra.mxu0 %v4232
  %4310 = vmatpush.msra.mxu0 %v4228
  %4311 = vmatpush.msra.mxu0 %v4224
  %4312 = vmatpush.msra.mxu0 %v4220
  %4313 = vmatpush.msra.mxu0 %v4216
  %4314 = vmatpush.msra.mxu0 %v4212
  %4315 = vmatpush.msra.mxu0 %v4208
  %4316 = vmatpush.msra.mxu0 %v4204
  %4317 = vmatpush.msra.mxu0 %v4200
  %4318 = vmatmul.f32.gmra.mxu0 %v4196
  %v4319 = vpop.f32.mrf.mxu0
  %v4320 = vadd.f32 0.0, %v4319
  %4321 = vdwg.mxu0
  %4322 = vmatpush.msra.mxu0 %v4261
  %4323 = vmatpush.msra.mxu0 %v4257
  %4324 = vmatpush.msra.mxu0 %v4253
  %4325 = vmatpush.msra.mxu0 %v4249
  %4326 = vmatpush.msra.mxu0 %v4245
  %4327 = vmatpush.msra.mxu0 %v4241
  %4328 = vmatpush.msra.mxu0 %v4237
  %4329 = vmatpush.msra.mxu0 %v4233
  %4330 = vmatpush.msra.mxu0 %v4229
  %4331 = vmatpush.msra.mxu0 %v4225
  %4332 = vmatpush.msra.mxu0 %v4221
  %4333 = vmatpush.msra.mxu0 %v4217
  %4334 = vmatpush.msra.mxu0 %v4213
  %4335 = vmatpush.msra.mxu0 %v4209
  %4336 = vmatpush.msra.mxu0 %v4205
  %4337 = vmatpush.msra.mxu0 %v4201
  %4338 = vmatmul.f32.gmra.mxu0 %v4196
  %v4339 = vpop.f32.mrf.mxu0
  %v4340 = vadd.f32 0.0, %v4339
  %4341 = vdwg.mxu0
  %v4342 = vadd.f32 %v4134, %v4280
  %v4343 = vadd.f32 %v4154, %v4300
  %v4344 = vadd.f32 %v4174, %v4320
  %v4345 = vadd.f32 %v4194, %v4340
  %v4346 = vxor.u32 %v4342, 2147483648
  %v4347 = vmul.f32 %v4346, 1.442695
  %v4348 = vpow.pop %v4347
  %v4349 = vadd.f32 %v4348, 1.0
  %v4350 = vrcp.pop %v4349
  %v4351 = vmul.f32 %v4349, %v4350
  %v4352 = vsub.f32 1.0, %v4351
  %v4353 = vmul.f32 %v4350, %v4352
  %v4354 = vadd.f32 %v4350, %v4353
  %vm4355 = vweird.f32 %v4349
  %vm4356 = vweird.f32 %v4350
  %vm4357 = vmor %vm4355, %vm4356
  %v4358 = vsel %vm4357, %v4350, %v4354
  %v4359 = vand.u32 2147483647, %v4349
  %vm4360 = vcmp.eq.f32.partialorder %v4359, 8.507059e+37
  %v4361 = vand.u32 %v4349, 2147483648
  %v4362 = vor.u32 1.1754944e-38, %v4361
  %v4363 = vsel %vm4360, %v4362, %v4358
  %v4364 = vmul.f32 1.0, %v4363
  %v4365 = vxor.u32 %v4343, 2147483648
  %v4366 = vmul.f32 %v4365, 1.442695
  %v4367 = vpow.pop %v4366
  %v4368 = vadd.f32 %v4367, 1.0
  %v4369 = vrcp.pop %v4368
  %v4370 = vmul.f32 %v4368, %v4369
  %v4371 = vsub.f32 1.0, %v4370
  %v4372 = vmul.f32 %v4369, %v4371
  %v4373 = vadd.f32 %v4369, %v4372
  %vm4374 = vweird.f32 %v4368
  %vm4375 = vweird.f32 %v4369
  %vm4376 = vmor %vm4374, %vm4375
  %v4377 = vsel %vm4376, %v4369, %v4373
  %v4378 = vand.u32 2147483647, %v4368
  %vm4379 = vcmp.eq.f32.partialorder %v4378, 8.507059e+37
  %v4380 = vand.u32 %v4368, 2147483648
  %v4381 = vor.u32 1.1754944e-38, %v4380
  %v4382 = vsel %vm4379, %v4381, %v4377
  %v4383 = vmul.f32 1.0, %v4382
  %v4384 = vtanh.pop %v4344
  %v4385 = vxor.u32 %v4345, 2147483648
  %v4386 = vmul.f32 %v4385, 1.442695
  %v4387 = vpow.pop %v4386
  %v4388 = vadd.f32 %v4387, 1.0
  %v4389 = vrcp.pop %v4388
  %v4390 = vmul.f32 %v4388, %v4389
  %v4391 = vsub.f32 1.0, %v4390
  %v4392 = vmul.f32 %v4389, %v4391
  %v4393 = vadd.f32 %v4389, %v4392
  %vm4394 = vweird.f32 %v4388
  %vm4395 = vweird.f32 %v4389
  %vm4396 = vmor %vm4394, %vm4395
  %v4397 = vsel %vm4396, %v4389, %v4393
  %v4398 = vand.u32 2147483647, %v4388
  %vm4399 = vcmp.eq.f32.partialorder %v4398, 8.507059e+37
  %v4400 = vand.u32 %v4388, 2147483648
  %v4401 = vor.u32 1.1754944e-38, %v4400
  %v4402 = vsel %vm4399, %v4401, %v4397
  %v4403 = vmul.f32 1.0, %v4402
  %v4404 = vmul.f32 %v4383, %v4197
  %v4405 = vmul.f32 %v4364, %v4384
  %v4406 = vadd.f32 %v4404, %v4405
  %v4407 = vtanh.pop %v4406
  %v4408 = vmul.f32 %v4403, %v4407
  %4409 = vst [vmem:[%s665] sm:$0xff] %v4408
  %4410 = vst [vmem:[%s667] sm:$0xff] %v4406
  %v4411 = vld [vmem:[#allocation2 + $0xe0] sm:$0xff]
  %v4412 = vld [vmem:[#allocation2 + $0xe8] sm:$0xff]
  %v4413 = vld [vmem:[#allocation2 + $0xf0] sm:$0xff]
  %v4414 = vld [vmem:[#allocation2 + $0xf8] sm:$0xff]
  %v4415 = vld [vmem:[#allocation3] sm:$0xff]
  %v4416 = vld [vmem:[#allocation4] sm:$0xff]
  %v4417 = vld [vmem:[%s5] sm:$0xff]
  %v4418 = vld [vmem:[%s5 + $0x8] sm:$0xff]
  %v4419 = vld [vmem:[%s5 + $0x10] sm:$0xff]
  %v4420 = vld [vmem:[%s5 + $0x18] sm:$0xff]
  %v4421 = vld [vmem:[%s5 + $0x20] sm:$0xff]
  %v4422 = vld [vmem:[%s5 + $0x28] sm:$0xff]
  %v4423 = vld [vmem:[%s5 + $0x30] sm:$0xff]
  %v4424 = vld [vmem:[%s5 + $0x38] sm:$0xff]
  %v4425 = vld [vmem:[%s5 + $0x40] sm:$0xff]
  %v4426 = vld [vmem:[%s5 + $0x48] sm:$0xff]
  %v4427 = vld [vmem:[%s5 + $0x50] sm:$0xff]
  %v4428 = vld [vmem:[%s5 + $0x58] sm:$0xff]
  %v4429 = vld [vmem:[%s5 + $0x60] sm:$0xff]
  %v4430 = vld [vmem:[%s5 + $0x68] sm:$0xff]
  %v4431 = vld [vmem:[%s5 + $0x70] sm:$0xff]
  %v4432 = vld [vmem:[%s5 + $0x78] sm:$0xff]
  %v4433 = vld [vmem:[%s5 + $0x80] sm:$0xff]
  %v4434 = vld [vmem:[%s5 + $0x88] sm:$0xff]
  %v4435 = vld [vmem:[%s5 + $0x90] sm:$0xff]
  %v4436 = vld [vmem:[%s5 + $0x98] sm:$0xff]
  %v4437 = vld [vmem:[%s5 + $0xa0] sm:$0xff]
  %v4438 = vld [vmem:[%s5 + $0xa8] sm:$0xff]
  %v4439 = vld [vmem:[%s5 + $0xb0] sm:$0xff]
  %v4440 = vld [vmem:[%s5 + $0xb8] sm:$0xff]
  %v4441 = vld [vmem:[%s5 + $0xc0] sm:$0xff]
  %v4442 = vld [vmem:[%s5 + $0xc8] sm:$0xff]
  %v4443 = vld [vmem:[%s5 + $0xd0] sm:$0xff]
  %v4444 = vld [vmem:[%s5 + $0xd8] sm:$0xff]
  %v4445 = vld [vmem:[%s5 + $0xe0] sm:$0xff]
  %v4446 = vld [vmem:[%s5 + $0xe8] sm:$0xff]
  %v4447 = vld [vmem:[%s5 + $0xf0] sm:$0xff]
  %v4448 = vld [vmem:[%s5 + $0xf8] sm:$0xff]
  %v4449 = vld [vmem:[%s5 + $0x100] sm:$0xff]
  %v4450 = vld [vmem:[%s5 + $0x108] sm:$0xff]
  %v4451 = vld [vmem:[%s5 + $0x110] sm:$0xff]
  %v4452 = vld [vmem:[%s5 + $0x118] sm:$0xff]
  %v4453 = vld [vmem:[%s5 + $0x120] sm:$0xff]
  %v4454 = vld [vmem:[%s5 + $0x128] sm:$0xff]
  %v4455 = vld [vmem:[%s5 + $0x130] sm:$0xff]
  %v4456 = vld [vmem:[%s5 + $0x138] sm:$0xff]
  %v4457 = vld [vmem:[%s5 + $0x140] sm:$0xff]
  %v4458 = vld [vmem:[%s5 + $0x148] sm:$0xff]
  %v4459 = vld [vmem:[%s5 + $0x150] sm:$0xff]
  %v4460 = vld [vmem:[%s5 + $0x158] sm:$0xff]
  %v4461 = vld [vmem:[%s5 + $0x160] sm:$0xff]
  %v4462 = vld [vmem:[%s5 + $0x168] sm:$0xff]
  %v4463 = vld [vmem:[%s5 + $0x170] sm:$0xff]
  %v4464 = vld [vmem:[%s5 + $0x178] sm:$0xff]
  %v4465 = vld [vmem:[%s5 + $0x180] sm:$0xff]
  %v4466 = vld [vmem:[%s5 + $0x188] sm:$0xff]
  %v4467 = vld [vmem:[%s5 + $0x190] sm:$0xff]
  %v4468 = vld [vmem:[%s5 + $0x198] sm:$0xff]
  %v4469 = vld [vmem:[%s5 + $0x1a0] sm:$0xff]
  %v4470 = vld [vmem:[%s5 + $0x1a8] sm:$0xff]
  %v4471 = vld [vmem:[%s5 + $0x1b0] sm:$0xff]
  %v4472 = vld [vmem:[%s5 + $0x1b8] sm:$0xff]
  %v4473 = vld [vmem:[%s5 + $0x1c0] sm:$0xff]
  %v4474 = vld [vmem:[%s5 + $0x1c8] sm:$0xff]
  %v4475 = vld [vmem:[%s5 + $0x1d0] sm:$0xff]
  %v4476 = vld [vmem:[%s5 + $0x1d8] sm:$0xff]
  %v4477 = vld [vmem:[%s5 + $0x1e0] sm:$0xff]
  %v4478 = vld [vmem:[%s5 + $0x1e8] sm:$0xff]
  %v4479 = vld [vmem:[%s5 + $0x1f0] sm:$0xff]
  %v4480 = vld [vmem:[%s5 + $0x1f8] sm:$0xff]
  %4481 = vmatpush.msra.mxu0 %v4477
  %4482 = vmatpush.msra.mxu0 %v4473
  %4483 = vmatpush.msra.mxu0 %v4469
  %4484 = vmatpush.msra.mxu0 %v4465
  %4485 = vmatpush.msra.mxu0 %v4461
  %4486 = vmatpush.msra.mxu0 %v4457
  %4487 = vmatpush.msra.mxu0 %v4453
  %4488 = vmatpush.msra.mxu0 %v4449
  %4489 = vmatpush.msra.mxu0 %v4445
  %4490 = vmatpush.msra.mxu0 %v4441
  %4491 = vmatpush.msra.mxu0 %v4437
  %4492 = vmatpush.msra.mxu0 %v4433
  %4493 = vmatpush.msra.mxu0 %v4429
  %4494 = vmatpush.msra.mxu0 %v4425
  %4495 = vmatpush.msra.mxu0 %v4421
  %4496 = vmatpush.msra.mxu0 %v4417
  %4497 = vmatmul.f32.gmra.mxu0 %v4415
  %v4498 = vpop.f32.mrf.mxu0
  %v4499 = vadd.f32 0.0, %v4498
  %4500 = vdwg.mxu0
  %4501 = vmatpush.msra.mxu0 %v4478
  %4502 = vmatpush.msra.mxu0 %v4474
  %4503 = vmatpush.msra.mxu0 %v4470
  %4504 = vmatpush.msra.mxu0 %v4466
  %4505 = vmatpush.msra.mxu0 %v4462
  %4506 = vmatpush.msra.mxu0 %v4458
  %4507 = vmatpush.msra.mxu0 %v4454
  %4508 = vmatpush.msra.mxu0 %v4450
  %4509 = vmatpush.msra.mxu0 %v4446
  %4510 = vmatpush.msra.mxu0 %v4442
  %4511 = vmatpush.msra.mxu0 %v4438
  %4512 = vmatpush.msra.mxu0 %v4434
  %4513 = vmatpush.msra.mxu0 %v4430
  %4514 = vmatpush.msra.mxu0 %v4426
  %4515 = vmatpush.msra.mxu0 %v4422
  %4516 = vmatpush.msra.mxu0 %v4418
  %4517 = vmatmul.f32.gmra.mxu0 %v4415
  %v4518 = vpop.f32.mrf.mxu0
  %v4519 = vadd.f32 0.0, %v4518
  %4520 = vdwg.mxu0
  %4521 = vmatpush.msra.mxu0 %v4479
  %4522 = vmatpush.msra.mxu0 %v4475
  %4523 = vmatpush.msra.mxu0 %v4471
  %4524 = vmatpush.msra.mxu0 %v4467
  %4525 = vmatpush.msra.mxu0 %v4463
  %4526 = vmatpush.msra.mxu0 %v4459
  %4527 = vmatpush.msra.mxu0 %v4455
  %4528 = vmatpush.msra.mxu0 %v4451
  %4529 = vmatpush.msra.mxu0 %v4447
  %4530 = vmatpush.msra.mxu0 %v4443
  %4531 = vmatpush.msra.mxu0 %v4439
  %4532 = vmatpush.msra.mxu0 %v4435
  %4533 = vmatpush.msra.mxu0 %v4431
  %4534 = vmatpush.msra.mxu0 %v4427
  %4535 = vmatpush.msra.mxu0 %v4423
  %4536 = vmatpush.msra.mxu0 %v4419
  %4537 = vmatmul.f32.gmra.mxu0 %v4415
  %v4538 = vpop.f32.mrf.mxu0
  %v4539 = vadd.f32 0.0, %v4538
  %4540 = vdwg.mxu0
  %4541 = vmatpush.msra.mxu0 %v4480
  %4542 = vmatpush.msra.mxu0 %v4476
  %4543 = vmatpush.msra.mxu0 %v4472
  %4544 = vmatpush.msra.mxu0 %v4468
  %4545 = vmatpush.msra.mxu0 %v4464
  %4546 = vmatpush.msra.mxu0 %v4460
  %4547 = vmatpush.msra.mxu0 %v4456
  %4548 = vmatpush.msra.mxu0 %v4452
  %4549 = vmatpush.msra.mxu0 %v4448
  %4550 = vmatpush.msra.mxu0 %v4444
  %4551 = vmatpush.msra.mxu0 %v4440
  %4552 = vmatpush.msra.mxu0 %v4436
  %4553 = vmatpush.msra.mxu0 %v4432
  %4554 = vmatpush.msra.mxu0 %v4428
  %4555 = vmatpush.msra.mxu0 %v4424
  %4556 = vmatpush.msra.mxu0 %v4420
  %4557 = vmatmul.f32.gmra.mxu0 %v4415
  %v4558 = vpop.f32.mrf.mxu0
  %v4559 = vadd.f32 0.0, %v4558
  %4560 = vdwg.mxu0
  %v4561 = vadd.f32 %v4411, %v4499
  %v4562 = vadd.f32 %v4412, %v4519
  %v4563 = vadd.f32 %v4413, %v4539
  %v4564 = vadd.f32 %v4414, %v4559
  %v4565 = vxor.u32 %v4561, 2147483648
  %v4566 = vmul.f32 %v4565, 1.442695
  %v4567 = vpow.pop %v4566
  %v4568 = vadd.f32 %v4567, 1.0
  %v4569 = vrcp.pop %v4568
  %v4570 = vmul.f32 %v4568, %v4569
  %v4571 = vsub.f32 1.0, %v4570
  %v4572 = vmul.f32 %v4569, %v4571
  %v4573 = vadd.f32 %v4569, %v4572
  %vm4574 = vweird.f32 %v4568
  %vm4575 = vweird.f32 %v4569
  %vm4576 = vmor %vm4574, %vm4575
  %v4577 = vsel %vm4576, %v4569, %v4573
  %v4578 = vand.u32 2147483647, %v4568
  %vm4579 = vcmp.eq.f32.partialorder %v4578, 8.507059e+37
  %v4580 = vand.u32 %v4568, 2147483648
  %v4581 = vor.u32 1.1754944e-38, %v4580
  %v4582 = vsel %vm4579, %v4581, %v4577
  %v4583 = vmul.f32 1.0, %v4582
  %v4584 = vxor.u32 %v4562, 2147483648
  %v4585 = vmul.f32 %v4584, 1.442695
  %v4586 = vpow.pop %v4585
  %v4587 = vadd.f32 %v4586, 1.0
  %v4588 = vrcp.pop %v4587
  %v4589 = vmul.f32 %v4587, %v4588
  %v4590 = vsub.f32 1.0, %v4589
  %v4591 = vmul.f32 %v4588, %v4590
  %v4592 = vadd.f32 %v4588, %v4591
  %vm4593 = vweird.f32 %v4587
  %vm4594 = vweird.f32 %v4588
  %vm4595 = vmor %vm4593, %vm4594
  %v4596 = vsel %vm4595, %v4588, %v4592
  %v4597 = vand.u32 2147483647, %v4587
  %vm4598 = vcmp.eq.f32.partialorder %v4597, 8.507059e+37
  %v4599 = vand.u32 %v4587, 2147483648
  %v4600 = vor.u32 1.1754944e-38, %v4599
  %v4601 = vsel %vm4598, %v4600, %v4596
  %v4602 = vmul.f32 1.0, %v4601
  %v4603 = vtanh.pop %v4563
  %v4604 = vxor.u32 %v4564, 2147483648
  %v4605 = vmul.f32 %v4604, 1.442695
  %v4606 = vpow.pop %v4605
  %v4607 = vadd.f32 %v4606, 1.0
  %v4608 = vrcp.pop %v4607
  %v4609 = vmul.f32 %v4607, %v4608
  %v4610 = vsub.f32 1.0, %v4609
  %v4611 = vmul.f32 %v4608, %v4610
  %v4612 = vadd.f32 %v4608, %v4611
  %vm4613 = vweird.f32 %v4607
  %vm4614 = vweird.f32 %v4608
  %vm4615 = vmor %vm4613, %vm4614
  %v4616 = vsel %vm4615, %v4608, %v4612
  %v4617 = vand.u32 2147483647, %v4607
  %vm4618 = vcmp.eq.f32.partialorder %v4617, 8.507059e+37
  %v4619 = vand.u32 %v4607, 2147483648
  %v4620 = vor.u32 1.1754944e-38, %v4619
  %v4621 = vsel %vm4618, %v4620, %v4616
  %v4622 = vmul.f32 1.0, %v4621
  %v4623 = vmul.f32 %v4602, %v4416
  %v4624 = vmul.f32 %v4583, %v4603
  %v4625 = vadd.f32 %v4623, %v4624
  %v4626 = vtanh.pop %v4625
  %v4627 = vmul.f32 %v4622, %v4626
  %4628 = vst [vmem:[#allocation3] sm:$0xff] %v4627
  %4629 = vst [vmem:[#allocation4] sm:$0xff] %v4625
  %v4630 = vld [vmem:[%s3] sm:$0xff]
  %v4631 = vld [vmem:[%s3 + $0x8] sm:$0xff]
  %v4632 = vld [vmem:[%s3 + $0x10] sm:$0xff]
  %v4633 = vld [vmem:[%s3 + $0x18] sm:$0xff]
  %v4634 = vld [vmem:[%s3 + $0x20] sm:$0xff]
  %v4635 = vld [vmem:[%s3 + $0x28] sm:$0xff]
  %v4636 = vld [vmem:[%s3 + $0x30] sm:$0xff]
  %v4637 = vld [vmem:[%s3 + $0x38] sm:$0xff]
  %v4638 = vld [vmem:[%s3 + $0x40] sm:$0xff]
  %v4639 = vld [vmem:[%s3 + $0x48] sm:$0xff]
  %v4640 = vld [vmem:[%s3 + $0x50] sm:$0xff]
  %v4641 = vld [vmem:[%s3 + $0x58] sm:$0xff]
  %v4642 = vld [vmem:[%s3 + $0x60] sm:$0xff]
  %v4643 = vld [vmem:[%s3 + $0x68] sm:$0xff]
  %v4644 = vld [vmem:[%s3 + $0x70] sm:$0xff]
  %v4645 = vld [vmem:[%s3 + $0x78] sm:$0xff]
  %v4646 = vld [vmem:[%s3 + $0x80] sm:$0xff]
  %v4647 = vld [vmem:[%s3 + $0x88] sm:$0xff]
  %v4648 = vld [vmem:[%s3 + $0x90] sm:$0xff]
  %v4649 = vld [vmem:[%s3 + $0x98] sm:$0xff]
  %v4650 = vld [vmem:[%s3 + $0xa0] sm:$0xff]
  %v4651 = vld [vmem:[%s3 + $0xa8] sm:$0xff]
  %v4652 = vld [vmem:[%s3 + $0xb0] sm:$0xff]
  %v4653 = vld [vmem:[%s3 + $0xb8] sm:$0xff]
  %v4654 = vld [vmem:[%s3 + $0xc0] sm:$0xff]
  %v4655 = vld [vmem:[%s3 + $0xc8] sm:$0xff]
  %v4656 = vld [vmem:[%s3 + $0xd0] sm:$0xff]
  %v4657 = vld [vmem:[%s3 + $0xd8] sm:$0xff]
  %v4658 = vld [vmem:[%s3 + $0xe0] sm:$0xff]
  %v4659 = vld [vmem:[%s3 + $0xe8] sm:$0xff]
  %v4660 = vld [vmem:[%s3 + $0xf0] sm:$0xff]
  %v4661 = vld [vmem:[%s3 + $0xf8] sm:$0xff]
  %v4662 = vld [vmem:[%s3 + $0x100] sm:$0xff]
  %v4663 = vld [vmem:[%s3 + $0x108] sm:$0xff]
  %v4664 = vld [vmem:[%s3 + $0x110] sm:$0xff]
  %v4665 = vld [vmem:[%s3 + $0x118] sm:$0xff]
  %v4666 = vld [vmem:[%s3 + $0x120] sm:$0xff]
  %v4667 = vld [vmem:[%s3 + $0x128] sm:$0xff]
  %v4668 = vld [vmem:[%s3 + $0x130] sm:$0xff]
  %v4669 = vld [vmem:[%s3 + $0x138] sm:$0xff]
  %v4670 = vld [vmem:[%s3 + $0x140] sm:$0xff]
  %v4671 = vld [vmem:[%s3 + $0x148] sm:$0xff]
  %v4672 = vld [vmem:[%s3 + $0x150] sm:$0xff]
  %v4673 = vld [vmem:[%s3 + $0x158] sm:$0xff]
  %v4674 = vld [vmem:[%s3 + $0x160] sm:$0xff]
  %v4675 = vld [vmem:[%s3 + $0x168] sm:$0xff]
  %v4676 = vld [vmem:[%s3 + $0x170] sm:$0xff]
  %v4677 = vld [vmem:[%s3 + $0x178] sm:$0xff]
  %v4678 = vld [vmem:[%s3 + $0x180] sm:$0xff]
  %v4679 = vld [vmem:[%s3 + $0x188] sm:$0xff]
  %v4680 = vld [vmem:[%s3 + $0x190] sm:$0xff]
  %v4681 = vld [vmem:[%s3 + $0x198] sm:$0xff]
  %v4682 = vld [vmem:[%s3 + $0x1a0] sm:$0xff]
  %v4683 = vld [vmem:[%s3 + $0x1a8] sm:$0xff]
  %v4684 = vld [vmem:[%s3 + $0x1b0] sm:$0xff]
  %v4685 = vld [vmem:[%s3 + $0x1b8] sm:$0xff]
  %v4686 = vld [vmem:[%s3 + $0x1c0] sm:$0xff]
  %v4687 = vld [vmem:[%s3 + $0x1c8] sm:$0xff]
  %v4688 = vld [vmem:[%s3 + $0x1d0] sm:$0xff]
  %v4689 = vld [vmem:[%s3 + $0x1d8] sm:$0xff]
  %v4690 = vld [vmem:[%s3 + $0x1e0] sm:$0xff]
  %v4691 = vld [vmem:[%s3 + $0x1e8] sm:$0xff]
  %v4692 = vld [vmem:[%s3 + $0x1f0] sm:$0xff]
  %v4693 = vld [vmem:[%s3 + $0x1f8] sm:$0xff]
  %v4694 = vld [vmem:[%s4] sm:$0xf]
  %v4696 = vperm.slane %v4694, 0
  %v4697 = vperm.slane %v4694, 1
  %v4698 = vperm.slane %v4694, 2
  %v4699 = vperm.slane %v4694, 3
  %4704 = vmatpush.msra.mxu0 %v4690
  %4705 = vmatpush.msra.mxu0 %v4686
  %4706 = vmatpush.msra.mxu0 %v4682
  %4707 = vmatpush.msra.mxu0 %v4678
  %4708 = vmatpush.msra.mxu0 %v4674
  %4709 = vmatpush.msra.mxu0 %v4670
  %4710 = vmatpush.msra.mxu0 %v4666
  %4711 = vmatpush.msra.mxu0 %v4662
  %4712 = vmatpush.msra.mxu0 %v4658
  %4713 = vmatpush.msra.mxu0 %v4654
  %4714 = vmatpush.msra.mxu0 %v4650
  %4715 = vmatpush.msra.mxu0 %v4646
  %4716 = vmatpush.msra.mxu0 %v4642
  %4717 = vmatpush.msra.mxu0 %v4638
  %4718 = vmatpush.msra.mxu0 %v4634
  %4719 = vmatpush.msra.mxu0 %v4630
  %4720 = vmatmul.f32.gmra.mxu0 %v4627
  %v4721 = vpop.f32.mrf.mxu0
  %v4722 = vadd.f32 %v4696, %v4721
  %4723 = vdwg.mxu0
  %4724 = vmatpush.msra.mxu0 %v4691
  %4725 = vmatpush.msra.mxu0 %v4687
  %4726 = vmatpush.msra.mxu0 %v4683
  %4727 = vmatpush.msra.mxu0 %v4679
  %4728 = vmatpush.msra.mxu0 %v4675
  %4729 = vmatpush.msra.mxu0 %v4671
  %4730 = vmatpush.msra.mxu0 %v4667
  %4731 = vmatpush.msra.mxu0 %v4663
  %4732 = vmatpush.msra.mxu0 %v4659
  %4733 = vmatpush.msra.mxu0 %v4655
  %4734 = vmatpush.msra.mxu0 %v4651
  %4735 = vmatpush.msra.mxu0 %v4647
  %4736 = vmatpush.msra.mxu0 %v4643
  %4737 = vmatpush.msra.mxu0 %v4639
  %4738 = vmatpush.msra.mxu0 %v4635
  %4739 = vmatpush.msra.mxu0 %v4631
  %4740 = vmatmul.f32.gmra.mxu0 %v4627
  %v4741 = vpop.f32.mrf.mxu0
  %v4742 = vadd.f32 %v4697, %v4741
  %4743 = vdwg.mxu0
  %4744 = vmatpush.msra.mxu0 %v4692
  %4745 = vmatpush.msra.mxu0 %v4688
  %4746 = vmatpush.msra.mxu0 %v4684
  %4747 = vmatpush.msra.mxu0 %v4680
  %4748 = vmatpush.msra.mxu0 %v4676
  %4749 = vmatpush.msra.mxu0 %v4672
  %4750 = vmatpush.msra.mxu0 %v4668
  %4751 = vmatpush.msra.mxu0 %v4664
  %4752 = vmatpush.msra.mxu0 %v4660
  %4753 = vmatpush.msra.mxu0 %v4656
  %4754 = vmatpush.msra.mxu0 %v4652
  %4755 = vmatpush.msra.mxu0 %v4648
  %4756 = vmatpush.msra.mxu0 %v4644
  %4757 = vmatpush.msra.mxu0 %v4640
  %4758 = vmatpush.msra.mxu0 %v4636
  %4759 = vmatpush.msra.mxu0 %v4632
  %4760 = vmatmul.f32.gmra.mxu0 %v4627
  %v4761 = vpop.f32.mrf.mxu0
  %v4762 = vadd.f32 %v4698, %v4761
  %4763 = vdwg.mxu0
  %4764 = vmatpush.msra.mxu0 %v4693
  %4765 = vmatpush.msra.mxu0 %v4689
  %4766 = vmatpush.msra.mxu0 %v4685
  %4767 = vmatpush.msra.mxu0 %v4681
  %4768 = vmatpush.msra.mxu0 %v4677
  %4769 = vmatpush.msra.mxu0 %v4673
  %4770 = vmatpush.msra.mxu0 %v4669
  %4771 = vmatpush.msra.mxu0 %v4665
  %4772 = vmatpush.msra.mxu0 %v4661
  %4773 = vmatpush.msra.mxu0 %v4657
  %4774 = vmatpush.msra.mxu0 %v4653
  %4775 = vmatpush.msra.mxu0 %v4649
  %4776 = vmatpush.msra.mxu0 %v4645
  %4777 = vmatpush.msra.mxu0 %v4641
  %4778 = vmatpush.msra.mxu0 %v4637
  %4779 = vmatpush.msra.mxu0 %v4633
  %4780 = vmatmul.f32.gmra.mxu0 %v4627
  %v4781 = vpop.f32.mrf.mxu0
  %v4782 = vadd.f32 %v4699, %v4781
  %4783 = vdwg.mxu0
  %v4784 = vld [vmem:[%s665] sm:$0xff]
  %v4785 = vld [vmem:[%s667] sm:$0xff]
  %v4786 = vld [vmem:[%s669] sm:$0xff]
  %v4787 = vld [vmem:[%s669 + $0x8] sm:$0xff]
  %v4788 = vld [vmem:[%s669 + $0x10] sm:$0xff]
  %v4789 = vld [vmem:[%s669 + $0x18] sm:$0xff]
  %v4790 = vld [vmem:[%s669 + $0x20] sm:$0xff]
  %v4791 = vld [vmem:[%s669 + $0x28] sm:$0xff]
  %v4792 = vld [vmem:[%s669 + $0x30] sm:$0xff]
  %v4793 = vld [vmem:[%s669 + $0x38] sm:$0xff]
  %v4794 = vld [vmem:[%s669 + $0x40] sm:$0xff]
  %v4795 = vld [vmem:[%s669 + $0x48] sm:$0xff]
  %v4796 = vld [vmem:[%s669 + $0x50] sm:$0xff]
  %v4797 = vld [vmem:[%s669 + $0x58] sm:$0xff]
  %v4798 = vld [vmem:[%s669 + $0x60] sm:$0xff]
  %v4799 = vld [vmem:[%s669 + $0x68] sm:$0xff]
  %v4800 = vld [vmem:[%s669 + $0x70] sm:$0xff]
  %v4801 = vld [vmem:[%s669 + $0x78] sm:$0xff]
  %v4802 = vld [vmem:[%s669 + $0x80] sm:$0xff]
  %v4803 = vld [vmem:[%s669 + $0x88] sm:$0xff]
  %v4804 = vld [vmem:[%s669 + $0x90] sm:$0xff]
  %v4805 = vld [vmem:[%s669 + $0x98] sm:$0xff]
  %v4806 = vld [vmem:[%s669 + $0xa0] sm:$0xff]
  %v4807 = vld [vmem:[%s669 + $0xa8] sm:$0xff]
  %v4808 = vld [vmem:[%s669 + $0xb0] sm:$0xff]
  %v4809 = vld [vmem:[%s669 + $0xb8] sm:$0xff]
  %v4810 = vld [vmem:[%s669 + $0xc0] sm:$0xff]
  %v4811 = vld [vmem:[%s669 + $0xc8] sm:$0xff]
  %v4812 = vld [vmem:[%s669 + $0xd0] sm:$0xff]
  %v4813 = vld [vmem:[%s669 + $0xd8] sm:$0xff]
  %v4814 = vld [vmem:[%s669 + $0xe0] sm:$0xff]
  %v4815 = vld [vmem:[%s669 + $0xe8] sm:$0xff]
  %v4816 = vld [vmem:[%s669 + $0xf0] sm:$0xff]
  %v4817 = vld [vmem:[%s669 + $0xf8] sm:$0xff]
  %v4818 = vld [vmem:[%s669 + $0x100] sm:$0xff]
  %v4819 = vld [vmem:[%s669 + $0x108] sm:$0xff]
  %v4820 = vld [vmem:[%s669 + $0x110] sm:$0xff]
  %v4821 = vld [vmem:[%s669 + $0x118] sm:$0xff]
  %v4822 = vld [vmem:[%s669 + $0x120] sm:$0xff]
  %v4823 = vld [vmem:[%s669 + $0x128] sm:$0xff]
  %v4824 = vld [vmem:[%s669 + $0x130] sm:$0xff]
  %v4825 = vld [vmem:[%s669 + $0x138] sm:$0xff]
  %v4826 = vld [vmem:[%s669 + $0x140] sm:$0xff]
  %v4827 = vld [vmem:[%s669 + $0x148] sm:$0xff]
  %v4828 = vld [vmem:[%s669 + $0x150] sm:$0xff]
  %v4829 = vld [vmem:[%s669 + $0x158] sm:$0xff]
  %v4830 = vld [vmem:[%s669 + $0x160] sm:$0xff]
  %v4831 = vld [vmem:[%s669 + $0x168] sm:$0xff]
  %v4832 = vld [vmem:[%s669 + $0x170] sm:$0xff]
  %v4833 = vld [vmem:[%s669 + $0x178] sm:$0xff]
  %v4834 = vld [vmem:[%s669 + $0x180] sm:$0xff]
  %v4835 = vld [vmem:[%s669 + $0x188] sm:$0xff]
  %v4836 = vld [vmem:[%s669 + $0x190] sm:$0xff]
  %v4837 = vld [vmem:[%s669 + $0x198] sm:$0xff]
  %v4838 = vld [vmem:[%s669 + $0x1a0] sm:$0xff]
  %v4839 = vld [vmem:[%s669 + $0x1a8] sm:$0xff]
  %v4840 = vld [vmem:[%s669 + $0x1b0] sm:$0xff]
  %v4841 = vld [vmem:[%s669 + $0x1b8] sm:$0xff]
  %v4842 = vld [vmem:[%s669 + $0x1c0] sm:$0xff]
  %v4843 = vld [vmem:[%s669 + $0x1c8] sm:$0xff]
  %v4844 = vld [vmem:[%s669 + $0x1d0] sm:$0xff]
  %v4845 = vld [vmem:[%s669 + $0x1d8] sm:$0xff]
  %v4846 = vld [vmem:[%s669 + $0x1e0] sm:$0xff]
  %v4847 = vld [vmem:[%s669 + $0x1e8] sm:$0xff]
  %v4848 = vld [vmem:[%s669 + $0x1f0] sm:$0xff]
  %v4849 = vld [vmem:[%s669 + $0x1f8] sm:$0xff]
  %4850 = vmatpush.msra.mxu0 %v4846
  %4851 = vmatpush.msra.mxu0 %v4842
  %4852 = vmatpush.msra.mxu0 %v4838
  %4853 = vmatpush.msra.mxu0 %v4834
  %4854 = vmatpush.msra.mxu0 %v4830
  %4855 = vmatpush.msra.mxu0 %v4826
  %4856 = vmatpush.msra.mxu0 %v4822
  %4857 = vmatpush.msra.mxu0 %v4818
  %4858 = vmatpush.msra.mxu0 %v4814
  %4859 = vmatpush.msra.mxu0 %v4810
  %4860 = vmatpush.msra.mxu0 %v4806
  %4861 = vmatpush.msra.mxu0 %v4802
  %4862 = vmatpush.msra.mxu0 %v4798
  %4863 = vmatpush.msra.mxu0 %v4794
  %4864 = vmatpush.msra.mxu0 %v4790
  %4865 = vmatpush.msra.mxu0 %v4786
  %4866 = vmatmul.f32.gmra.mxu0 %v4784
  %v4867 = vpop.f32.mrf.mxu0
  %v4868 = vadd.f32 0.0, %v4867
  %4869 = vdwg.mxu0
  %4870 = vmatpush.msra.mxu0 %v4847
  %4871 = vmatpush.msra.mxu0 %v4843
  %4872 = vmatpush.msra.mxu0 %v4839
  %4873 = vmatpush.msra.mxu0 %v4835
  %4874 = vmatpush.msra.mxu0 %v4831
  %4875 = vmatpush.msra.mxu0 %v4827
  %4876 = vmatpush.msra.mxu0 %v4823
  %4877 = vmatpush.msra.mxu0 %v4819
  %4878 = vmatpush.msra.mxu0 %v4815
  %4879 = vmatpush.msra.mxu0 %v4811
  %4880 = vmatpush.msra.mxu0 %v4807
  %4881 = vmatpush.msra.mxu0 %v4803
  %4882 = vmatpush.msra.mxu0 %v4799
  %4883 = vmatpush.msra.mxu0 %v4795
  %4884 = vmatpush.msra.mxu0 %v4791
  %4885 = vmatpush.msra.mxu0 %v4787
  %4886 = vmatmul.f32.gmra.mxu0 %v4784
  %v4887 = vpop.f32.mrf.mxu0
  %v4888 = vadd.f32 0.0, %v4887
  %4889 = vdwg.mxu0
  %4890 = vmatpush.msra.mxu0 %v4848
  %4891 = vmatpush.msra.mxu0 %v4844
  %4892 = vmatpush.msra.mxu0 %v4840
  %4893 = vmatpush.msra.mxu0 %v4836
  %4894 = vmatpush.msra.mxu0 %v4832
  %4895 = vmatpush.msra.mxu0 %v4828
  %4896 = vmatpush.msra.mxu0 %v4824
  %4897 = vmatpush.msra.mxu0 %v4820
  %4898 = vmatpush.msra.mxu0 %v4816
  %4899 = vmatpush.msra.mxu0 %v4812
  %4900 = vmatpush.msra.mxu0 %v4808
  %4901 = vmatpush.msra.mxu0 %v4804
  %4902 = vmatpush.msra.mxu0 %v4800
  %4903 = vmatpush.msra.mxu0 %v4796
  %4904 = vmatpush.msra.mxu0 %v4792
  %4905 = vmatpush.msra.mxu0 %v4788
  %4906 = vmatmul.f32.gmra.mxu0 %v4784
  %v4907 = vpop.f32.mrf.mxu0
  %v4908 = vadd.f32 0.0, %v4907
  %4909 = vdwg.mxu0
  %4910 = vmatpush.msra.mxu0 %v4849
  %4911 = vmatpush.msra.mxu0 %v4845
  %4912 = vmatpush.msra.mxu0 %v4841
  %4913 = vmatpush.msra.mxu0 %v4837
  %4914 = vmatpush.msra.mxu0 %v4833
  %4915 = vmatpush.msra.mxu0 %v4829
  %4916 = vmatpush.msra.mxu0 %v4825
  %4917 = vmatpush.msra.mxu0 %v4821
  %4918 = vmatpush.msra.mxu0 %v4817
  %4919 = vmatpush.msra.mxu0 %v4813
  %4920 = vmatpush.msra.mxu0 %v4809
  %4921 = vmatpush.msra.mxu0 %v4805
  %4922 = vmatpush.msra.mxu0 %v4801
  %4923 = vmatpush.msra.mxu0 %v4797
  %4924 = vmatpush.msra.mxu0 %v4793
  %4925 = vmatpush.msra.mxu0 %v4789
  %4926 = vmatmul.f32.gmra.mxu0 %v4784
  %v4927 = vpop.f32.mrf.mxu0
  %v4928 = vadd.f32 0.0, %v4927
  %4929 = vdwg.mxu0
  %v4930 = vadd.f32 %v4722, %v4868
  %v4931 = vadd.f32 %v4742, %v4888
  %v4932 = vadd.f32 %v4762, %v4908
  %v4933 = vadd.f32 %v4782, %v4928
  %v4934 = vxor.u32 %v4930, 2147483648
  %v4935 = vmul.f32 %v4934, 1.442695
  %v4936 = vpow.pop %v4935
  %v4937 = vadd.f32 %v4936, 1.0
  %v4938 = vrcp.pop %v4937
  %v4939 = vmul.f32 %v4937, %v4938
  %v4940 = vsub.f32 1.0, %v4939
  %v4941 = vmul.f32 %v4938, %v4940
  %v4942 = vadd.f32 %v4938, %v4941
  %vm4943 = vweird.f32 %v4937
  %vm4944 = vweird.f32 %v4938
  %vm4945 = vmor %vm4943, %vm4944
  %v4946 = vsel %vm4945, %v4938, %v4942
  %v4947 = vand.u32 2147483647, %v4937
  %vm4948 = vcmp.eq.f32.partialorder %v4947, 8.507059e+37
  %v4949 = vand.u32 %v4937, 2147483648
  %v4950 = vor.u32 1.1754944e-38, %v4949
  %v4951 = vsel %vm4948, %v4950, %v4946
  %v4952 = vmul.f32 1.0, %v4951
  %v4953 = vxor.u32 %v4931, 2147483648
  %v4954 = vmul.f32 %v4953, 1.442695
  %v4955 = vpow.pop %v4954
  %v4956 = vadd.f32 %v4955, 1.0
  %v4957 = vrcp.pop %v4956
  %v4958 = vmul.f32 %v4956, %v4957
  %v4959 = vsub.f32 1.0, %v4958
  %v4960 = vmul.f32 %v4957, %v4959
  %v4961 = vadd.f32 %v4957, %v4960
  %vm4962 = vweird.f32 %v4956
  %vm4963 = vweird.f32 %v4957
  %vm4964 = vmor %vm4962, %vm4963
  %v4965 = vsel %vm4964, %v4957, %v4961
  %v4966 = vand.u32 2147483647, %v4956
  %vm4967 = vcmp.eq.f32.partialorder %v4966, 8.507059e+37
  %v4968 = vand.u32 %v4956, 2147483648
  %v4969 = vor.u32 1.1754944e-38, %v4968
  %v4970 = vsel %vm4967, %v4969, %v4965
  %v4971 = vmul.f32 1.0, %v4970
  %v4972 = vtanh.pop %v4932
  %v4973 = vxor.u32 %v4933, 2147483648
  %v4974 = vmul.f32 %v4973, 1.442695
  %v4975 = vpow.pop %v4974
  %v4976 = vadd.f32 %v4975, 1.0
  %v4977 = vrcp.pop %v4976
  %v4978 = vmul.f32 %v4976, %v4977
  %v4979 = vsub.f32 1.0, %v4978
  %v4980 = vmul.f32 %v4977, %v4979
  %v4981 = vadd.f32 %v4977, %v4980
  %vm4982 = vweird.f32 %v4976
  %vm4983 = vweird.f32 %v4977
  %vm4984 = vmor %vm4982, %vm4983
  %v4985 = vsel %vm4984, %v4977, %v4981
  %v4986 = vand.u32 2147483647, %v4976
  %vm4987 = vcmp.eq.f32.partialorder %v4986, 8.507059e+37
  %v4988 = vand.u32 %v4976, 2147483648
  %v4989 = vor.u32 1.1754944e-38, %v4988
  %v4990 = vsel %vm4987, %v4989, %v4985
  %v4991 = vmul.f32 1.0, %v4990
  %v4992 = vmul.f32 %v4971, %v4785
  %v4993 = vmul.f32 %v4952, %v4972
  %v4994 = vadd.f32 %v4992, %v4993
  %v4995 = vtanh.pop %v4994
  %v4996 = vmul.f32 %v4991, %v4995
  %4997 = vst [vmem:[%s665] sm:$0xff] %v4996
  %4998 = vst [vmem:[%s667] sm:$0xff] %v4994
  // Predicated region
  $region38: #{rnn_embedding_forward.1} parent=0 // pred_check
    %p4999 = pneg %p29
  $region39: #{rnn_embedding_forward.1} parent=0 // pred_check_branch
    %5001 = sbr.rel (%p4999) target = $region41
  $region40: #{rnn_embedding_forward.1} parent=0 // pred_region
    %v5002 = vld [vmem:[%s665] sm:$0xff]
    %v5003 = vld [vmem:[%s6] sm:$0xff]
    %v5004 = vld [vmem:[%s6 + $0x8] sm:$0xff]
    %v5005 = vld [vmem:[%s6 + $0x10] sm:$0xff]
    %v5006 = vld [vmem:[%s6 + $0x18] sm:$0xff]
    %v5007 = vld [vmem:[%s6 + $0x20] sm:$0xff]
    %v5008 = vld [vmem:[%s6 + $0x28] sm:$0xff]
    %v5009 = vld [vmem:[%s6 + $0x30] sm:$0xff]
    %v5010 = vld [vmem:[%s6 + $0x38] sm:$0xff]
    %v5011 = vld [vmem:[%s6 + $0x40] sm:$0xff]
    %v5012 = vld [vmem:[%s6 + $0x48] sm:$0xff]
    %v5013 = vld [vmem:[%s6 + $0x50] sm:$0xff]
    %v5014 = vld [vmem:[%s6 + $0x58] sm:$0xff]
    %v5015 = vld [vmem:[%s6 + $0x60] sm:$0xff]
    %v5016 = vld [vmem:[%s6 + $0x68] sm:$0xff]
    %v5017 = vld [vmem:[%s6 + $0x70] sm:$0xff]
    %v5018 = vld [vmem:[%s6 + $0x78] sm:$0xff]
    %v5019 = vld [vmem:[%s7] sm:$0x1]
    %v5021 = vperm.slane %v5019, 0
    %5023 = vmatpush.msra.mxu0 %v5018
    %5024 = vmatpush.msra.mxu0 %v5017
    %5025 = vmatpush.msra.mxu0 %v5016
    %5026 = vmatpush.msra.mxu0 %v5015
    %5027 = vmatpush.msra.mxu0 %v5014
    %5028 = vmatpush.msra.mxu0 %v5013
    %5029 = vmatpush.msra.mxu0 %v5012
    %5030 = vmatpush.msra.mxu0 %v5011
    %5031 = vmatpush.msra.mxu0 %v5010
    %5032 = vmatpush.msra.mxu0 %v5009
    %5033 = vmatpush.msra.mxu0 %v5008
    %5034 = vmatpush.msra.mxu0 %v5007
    %5035 = vmatpush.msra.mxu0 %v5006
    %5036 = vmatpush.msra.mxu0 %v5005
    %5037 = vmatpush.msra.mxu0 %v5004
    %5038 = vmatpush.msra.mxu0 %v5003
    %5039 = vmatmul.f32.gmra.mxu0 %v5002
    %v5040 = vpop.f32.mrf.mxu0
    %v5041 = vadd.f32 %v5021, %v5040
    %5042 = vdwg.mxu0
    %5043 = vst [vmem:[%s8] sm:$0xff] %v5041
  $region41: #{rnn_embedding_forward.1} parent=0 // pred_fallthru
    _
  // Predicated region
  $region42: #{rnn_embedding_forward.1} parent=0 // pred_check
    _
  $region43: #{rnn_embedding_forward.1} parent=0 // pred_check_branch
    %5045 = sbr.rel (0) target = $region45
  $region44: #{rnn_embedding_forward.1} parent=0 // pred_region
    _
  $region45: #{rnn_embedding_forward.1} parent=0 // pred_fallthru
    _
  // Predicated region
  $region46: #{rnn_embedding_forward.1} parent=0 // pred_check
    _
  $region47: #{rnn_embedding_forward.1} parent=0 // pred_check_branch
    %5047 = sbr.rel (0) target = $region49
  $region48: #{rnn_embedding_forward.1} parent=0 // pred_region
    _
  $region49: #{rnn_embedding_forward.1} parent=0 // pred_fallthru
    _

</llo_original>
